<compile_context>
chip_gen: v7x
topology: tpu7x:2x2x1
jax: 0.10.0
libtpu: 0.0.40
codegen_flags: <defaults>
</compile_context>

<pallas_src>
import numpy as np
import jax
import jax.numpy as jnp
from jax.experimental import pallas as pl
from jax.experimental.pallas import tpu as pltpu

# Older jax releases named this TPUCompilerParams; new ones CompilerParams.
_CompilerParams = getattr(pltpu, "CompilerParams", None) or getattr(pltpu, "TPUCompilerParams")


def _pool_select(h, w):
    """0/1 matrices S[k] such that max_k (S[k] @ y) == 2x2 max-pool of y, where y has
    rows ordered row-major over an (h, w) spatial grid.  Selection is exact in f32."""
    hq, wq = h // 2, w // 2
    s = np.zeros((4, hq * wq, h * w), np.float32)
    for k, (ph, pw) in enumerate(((0, 0), (0, 1), (1, 0), (1, 1))):
        for i in range(hq):
            for j in range(wq):
                s[k, i * wq + j, (2 * i + ph) * w + (2 * j + pw)] = 1.0
    return jnp.asarray(s)


def _make_kernel(H, W, Cin, C1, C2, NO):
    """Builds the fused per-image kernel (grid axis = batch)."""
    Hq, Wq = H // 2, W // 2          # spatial size after stage-1 pool
    Hq2, Wq2 = Hq // 2, Wq // 2      # spatial size after stage-2 pool
    M1 = H * W                       # conv-1 output rows, ordered (h, w)
    M2 = Hq * Wq                     # conv-2 output rows, ordered (h, w)
    taps = [(di, dj) for di in range(3) for dj in range(3)]

    def kernel(x_ref, w1_ref, b1_ref, w2_ref, b2_ref, wh_ref, bh_ref,
               s1_ref, s2_ref, out_ref, xp2_ref):
        f32 = jnp.float32
        bf16 = jnp.bfloat16

        # ---- stage 1: 3x3 conv (Cin->C1) as 9 per-tap matmuls on the padded input ----
        acc1 = jnp.zeros((M1, C1), f32)
        for t, (di, dj) in enumerate(taps):
            win = x_ref[0, di:di + H, dj:dj + W, :]                    # (H, W, Cin)
            acc1 = acc1 + jnp.dot(win.reshape(M1, Cin).astype(bf16),
                                  w1_ref[t],
                                  preferred_element_type=f32)
        y1 = jnp.maximum(acc1 + b1_ref[...], 0.0)                      # (M1, C1)

        # ---- 2x2 max-pool: exact 0/1 selection matmuls (stays in VMEM) ----
        p1 = jnp.dot(s1_ref[0], y1, preferred_element_type=f32)
        for k in range(1, 4):
            p1 = jnp.maximum(p1, jnp.dot(s1_ref[k], y1, preferred_element_type=f32))
        # p1: (Hq*Wq, C1), rows ordered (h', w')

        # ---- zero-pad pooled activations into VMEM scratch for stage 2 ----
        xp2_ref[...] = jnp.zeros(xp2_ref.shape, f32)
        xp2_ref[1:Hq + 1, 1:Wq + 1, :] = p1.reshape(Hq, Wq, C1)

        # ---- stage 2: 3x3 conv (C1->C2) ----
        acc2 = jnp.zeros((M2, C2), f32)
        for t, (di, dj) in enumerate(taps):
            win = xp2_ref[di:di + Hq, dj:dj + Wq, :]                   # (Hq, Wq, C1)
            acc2 = acc2 + jnp.dot(win.reshape(M2, C1).astype(bf16),
                                  w2_ref[t],
                                  preferred_element_type=f32)
        y2 = jnp.maximum(acc2 + b2_ref[...], 0.0)                      # (M2, C2)

        p2 = jnp.dot(s2_ref[0], y2, preferred_element_type=f32)
        for k in range(1, 4):
            p2 = jnp.maximum(p2, jnp.dot(s2_ref[k], y2, preferred_element_type=f32))
        # p2: (Hq2*Wq2, C2) -- the feature map; never written to HBM.

        # ---- fused classifier+regressor head, contracted per spatial position ----
        feat = p2.astype(bf16)
        oacc = jnp.zeros((1, NO), f32)
        for s in range(Hq2 * Wq2):
            oacc = oacc + jnp.dot(feat[s:s + 1, :], wh_ref[s],
                                  preferred_element_type=f32)
        out_ref[...] = (oacc + bh_ref[...]).reshape(1, 1, NO)

    return kernel


def custom_model_forward(x_nchw, params):
    B, Cin, H, W = x_nchw.shape
    assert H % 4 == 0 and W % 4 == 0, "two MaxPool2d(2) layers require H, W divisible by 4"
    C1 = params["w1"].shape[-1]
    C2 = params["w2"].shape[-1]
    NO = params["wh"].shape[-1]
    NC = NO - 4
    Hq, Wq = H // 2, W // 2

    # Boundary layout plumbing only (cheap XLA ops): NCHW -> NHWC and the conv-1 zero pad.
    x = jnp.transpose(x_nchw, (0, 2, 3, 1)).astype(jnp.float32)
    xpad = jnp.pad(x, ((0, 0), (1, 1), (1, 1), (0, 0)))                # (B, H+2, W+2, Cin)

    kernel = _make_kernel(H, W, Cin, C1, C2, NO)

    out = pl.pallas_call(
        kernel,
        grid=(B,),
        in_specs=[
            pl.BlockSpec((1, H + 2, W + 2, Cin), lambda b: (b, 0, 0, 0)),
            pl.BlockSpec(params["w1"].shape, lambda b: (0, 0, 0)),
            pl.BlockSpec(params["b1"].shape, lambda b: (0, 0)),
            pl.BlockSpec(params["w2"].shape, lambda b: (0, 0, 0)),
            pl.BlockSpec(params["b2"].shape, lambda b: (0, 0)),
            pl.BlockSpec(params["wh"].shape, lambda b: (0, 0, 0)),
            pl.BlockSpec(params["bh"].shape, lambda b: (0, 0)),
            pl.BlockSpec(params["s1"].shape, lambda b: (0, 0, 0)),
            pl.BlockSpec(params["s2"].shape, lambda b: (0, 0, 0)),
        ],
        out_specs=pl.BlockSpec((1, 1, NO), lambda b: (b, 0, 0)),
        out_shape=jax.ShapeDtypeStruct((B, 1, NO), jnp.float32),
        scratch_shapes=[pltpu.VMEM((Hq + 2, Wq + 2, C1), jnp.float32)],
        compiler_params=_CompilerParams(dimension_semantics=("parallel",)),
    )(xpad, params["w1"], params["b1"], params["w2"], params["b2"],
      params["wh"], params["bh"], params["s1"], params["s2"])

    out = out[:, 0, :]
    return out[:, :NC], out[:, NC:]


# ---------------- Deterministic init (PyTorch-layout weights -> kernel layout) ----------------
def init_params(key, input_size=16, num_classes=10):
    ks = jax.random.split(key, 8)
    hq2 = input_size // 4
    feat_dim = 32 * hq2 * hq2
    no = num_classes + 4

    # generated in PyTorch layout first, then re-laid-out for the fused kernel
    w1_t = jax.random.normal(ks[0], (16, 3, 3, 3), jnp.float32) * 0.1       # (Cout,Cin,kh,kw)
    w2_t = jax.random.normal(ks[1], (32, 16, 3, 3), jnp.float32) * 0.05
    wc_t = jax.random.normal(ks[2], (num_classes, feat_dim), jnp.float32) * 0.02
    wr_t = jax.random.normal(ks[3], (4, feat_dim), jnp.float32) * 0.02
    b1_t = jax.random.normal(ks[4], (16,), jnp.float32) * 0.1
    b2_t = jax.random.normal(ks[5], (32,), jnp.float32) * 0.1
    bc_t = jax.random.normal(ks[6], (num_classes,), jnp.float32) * 0.1
    br_t = jax.random.normal(ks[7], (4,), jnp.float32) * 0.1

    # conv weights -> (tap=kh*3+kw, Cin, Cout); bf16 = native MXU operand dtype
    w1 = jnp.transpose(w1_t, (2, 3, 1, 0)).reshape(9, 3, 16).astype(jnp.bfloat16)
    w2 = jnp.transpose(w2_t, (2, 3, 1, 0)).reshape(9, 16, 32).astype(jnp.bfloat16)

    # merged heads.  PyTorch flattens (C2,Hq2,Wq2) as c*Hq2*Wq2 + h*Wq2 + w; permute the
    # columns ONCE here to (h, w, c) order so the kernel needs no runtime transpose.
    wcat = jnp.concatenate([wc_t, wr_t], axis=0)                 # (NO, feat_dim)
    wcat = wcat.reshape(no, 32, hq2, hq2)                        # (o, c, h, w)
    wh = jnp.transpose(wcat, (2, 3, 1, 0)).reshape(hq2 * hq2, 32, no).astype(jnp.bfloat16)

    return {
        "w1": w1, "b1": b1_t.reshape(1, 16),
        "w2": w2, "b2": b2_t.reshape(1, 32),
        "wh": wh, "bh": jnp.concatenate([bc_t, br_t]).reshape(1, no),
        "s1": _pool_select(input_size, input_size),              # (4, H*W/4, H*W)
        "s2": _pool_select(input_size // 2, input_size // 2),
    }


# ---------------- Pure-JAX reference (emulates the kernel's bf16 matmul operands) ----------------
def reference_forward(x_nchw, params):
    f32 = jnp.float32
    bf = lambda a: a.astype(jnp.bfloat16).astype(f32)

    B = x_nchw.shape[0]
    x = jnp.transpose(x_nchw, (0, 2, 3, 1)).astype(f32)

    def conv_relu_pool(x, w, b):
        Bx, h, wd, _ = x.shape
        cout = w.shape[-1]
        xp = jnp.pad(x, ((0, 0), (1, 1), (1, 1), (0, 0)))
        acc = jnp.zeros((Bx, h, wd, cout), f32)
        for t in range(9):
            di, dj = divmod(t, 3)
            win = xp[:, di:di + h, dj:dj + wd, :]
            acc = acc + jnp.einsum("bhwc,co->bhwo", bf(win), w[t].astype(f32))
        y = jnp.maximum(acc + b.reshape(1, 1, 1, cout), 0.0)
        return jnp.max(y.reshape(Bx, h // 2, 2, wd // 2, 2, cout), axis=(2, 4))

    y = conv_relu_pool(x, params["w1"], params["b1"])
    y = conv_relu_pool(y, params["w2"], params["b2"])
    feat = y.reshape(B, -1)                                      # NHWC flatten (h, w, c)
    wh2d = params["wh"].astype(f32).reshape(feat.shape[1], -1)
    out = bf(feat) @ wh2d + params["bh"]
    nc = params["wh"].shape[-1] - 4
    return out[:, :nc], out[:, nc:]


if __name__ == "__main__":
    key = jax.random.PRNGKey(0)
    k_x, k_p = jax.random.split(key)

    batch, input_size, num_classes = 2, 16, 10   # config['data']['input_size']=16, num_classes=10
    x = jax.random.normal(k_x, (batch, 3, input_size, input_size), jnp.float32)
    params = init_params(k_p, input_size=input_size, num_classes=num_classes)

    fwd = jax.jit(custom_model_forward)
    cls_out, bbox_out = fwd(x, params)
    jax.block_until_ready((cls_out, bbox_out))

    assert cls_out.shape == (batch, num_classes) and bbox_out.shape == (batch, 4)

    cls_ref, bbox_ref = reference_forward(x, params)
    assert jnp.allclose(cls_out, cls_ref, atol=1e-3, rtol=1e-3), (
        float(jnp.max(jnp.abs(cls_out - cls_ref))))
    assert jnp.allclose(bbox_out, bbox_ref, atol=1e-3, rtol=1e-3), (
        float(jnp.max(jnp.abs(bbox_out - bbox_ref))))

    print("KERNEL_OK")
</pallas_src>

<mosaic_0001>
module attributes {stable_mosaic.version = 11 : i64} {
  func.func @kernel(%arg0: i32, %arg1: memref<1x18x18x3xf32, #tpu.memory_space<vmem>>, %arg2: memref<9x3x16xbf16, #tpu.memory_space<vmem>>, %arg3: memref<1x16xf32, #tpu.memory_space<vmem>>, %arg4: memref<9x16x32xbf16, #tpu.memory_space<vmem>>, %arg5: memref<1x32xf32, #tpu.memory_space<vmem>>, %arg6: memref<16x32x14xbf16, #tpu.memory_space<vmem>>, %arg7: memref<1x14xf32, #tpu.memory_space<vmem>>, %arg8: memref<4x64x256xf32, #tpu.memory_space<vmem>>, %arg9: memref<4x16x64xf32, #tpu.memory_space<vmem>>, %arg10: memref<1x1x14xf32, #tpu.memory_space<vmem>>, %arg11: memref<10x10x16xf32, #tpu.memory_space<vmem>>) attributes {dimension_semantics = [#tpu.dimension_semantics<parallel>], iteration_bounds = array<i64: 2>, scalar_prefetch = 0 : i64, scratch_operands = 1 : i64, tpu.core_type = #tpu.core_type<tc>, window_params = [{transform_indices = @transform_0, window_bounds = array<i64: 1, 18, 18, 3>}, {pipeline_mode = #tpu.pipeline_mode<synchronous>, transform_indices = @transform_1, window_bounds = array<i64: 9, 3, 16>}, {pipeline_mode = #tpu.pipeline_mode<synchronous>, transform_indices = @transform_2, window_bounds = array<i64: 1, 16>}, {pipeline_mode = #tpu.pipeline_mode<synchronous>, transform_indices = @transform_3, window_bounds = array<i64: 9, 16, 32>}, {pipeline_mode = #tpu.pipeline_mode<synchronous>, transform_indices = @transform_4, window_bounds = array<i64: 1, 32>}, {pipeline_mode = #tpu.pipeline_mode<synchronous>, transform_indices = @transform_5, window_bounds = array<i64: 16, 32, 14>}, {pipeline_mode = #tpu.pipeline_mode<synchronous>, transform_indices = @transform_6, window_bounds = array<i64: 1, 14>}, {pipeline_mode = #tpu.pipeline_mode<synchronous>, transform_indices = @transform_7, window_bounds = array<i64: 4, 64, 256>}, {pipeline_mode = #tpu.pipeline_mode<synchronous>, transform_indices = @transform_8, window_bounds = array<i64: 4, 16, 64>}, {transform_indices = @transform_9, window_bounds = array<i64: 1, 1, 14>}]} {
    %cst = arith.constant 0.000000e+00 : f32
    %0 = vector.broadcast %cst : f32 to vector<256x16xf32>
    %c0 = arith.constant 0 : index
    %c0_0 = arith.constant 0 : index
    %c0_1 = arith.constant 0 : index
    %c0_2 = arith.constant 0 : index
    %1 = vector.load %arg1[%c0, %c0_0, %c0_1, %c0_2] : memref<1x18x18x3xf32, #tpu.memory_space<vmem>>, vector<1x16x16x3xf32>
    %2 = vector.shape_cast %1 : vector<1x16x16x3xf32> to vector<16x16x3xf32>
    %3 = vector.shape_cast %2 : vector<16x16x3xf32> to vector<256x3xf32>
    %4 = arith.truncf %3 : vector<256x3xf32> to vector<256x3xbf16>
    %c0_3 = arith.constant 0 : index
    %c0_4 = arith.constant 0 : index
    %c0_5 = arith.constant 0 : index
    %5 = vector.load %arg2[%c0_3, %c0_4, %c0_5] : memref<9x3x16xbf16, #tpu.memory_space<vmem>>, vector<1x3x16xbf16>
    %6 = vector.shape_cast %5 : vector<1x3x16xbf16> to vector<3x16xbf16>
    %cst_6 = arith.constant dense<0.000000e+00> : vector<256x16xf32>
    %7 = tpu.matmul %4, %6, %cst_6 {dimension_numbers = #tpu.dot_dimension_numbers<[1], [0], [0], [1], [0, 0, 1, 1], [], []>} : vector<256x3xbf16>, vector<3x16xbf16>, vector<256x16xf32> -> vector<256x16xf32>
    %8 = arith.addf %0, %7 : vector<256x16xf32>
    %c0_7 = arith.constant 0 : index
    %c0_8 = arith.constant 0 : index
    %c1 = arith.constant 1 : index
    %c0_9 = arith.constant 0 : index
    %9 = vector.load %arg1[%c0_7, %c0_8, %c1, %c0_9] : memref<1x18x18x3xf32, #tpu.memory_space<vmem>>, vector<1x16x16x3xf32>
    %10 = vector.shape_cast %9 : vector<1x16x16x3xf32> to vector<16x16x3xf32>
    %11 = vector.shape_cast %10 : vector<16x16x3xf32> to vector<256x3xf32>
    %12 = arith.truncf %11 : vector<256x3xf32> to vector<256x3xbf16>
    %c1_10 = arith.constant 1 : index
    %c0_11 = arith.constant 0 : index
    %c0_12 = arith.constant 0 : index
    %13 = vector.load %arg2[%c1_10, %c0_11, %c0_12] : memref<9x3x16xbf16, #tpu.memory_space<vmem>>, vector<1x3x16xbf16>
    %14 = vector.shape_cast %13 : vector<1x3x16xbf16> to vector<3x16xbf16>
    %cst_13 = arith.constant dense<0.000000e+00> : vector<256x16xf32>
    %15 = tpu.matmul %12, %14, %cst_13 {dimension_numbers = #tpu.dot_dimension_numbers<[1], [0], [0], [1], [0, 0, 1, 1], [], []>} : vector<256x3xbf16>, vector<3x16xbf16>, vector<256x16xf32> -> vector<256x16xf32>
    %16 = arith.addf %8, %15 : vector<256x16xf32>
    %c0_14 = arith.constant 0 : index
    %c0_15 = arith.constant 0 : index
    %c2 = arith.constant 2 : index
    %c0_16 = arith.constant 0 : index
    %17 = vector.load %arg1[%c0_14, %c0_15, %c2, %c0_16] : memref<1x18x18x3xf32, #tpu.memory_space<vmem>>, vector<1x16x16x3xf32>
    %18 = vector.shape_cast %17 : vector<1x16x16x3xf32> to vector<16x16x3xf32>
    %19 = vector.shape_cast %18 : vector<16x16x3xf32> to vector<256x3xf32>
    %20 = arith.truncf %19 : vector<256x3xf32> to vector<256x3xbf16>
    %c2_17 = arith.constant 2 : index
    %c0_18 = arith.constant 0 : index
    %c0_19 = arith.constant 0 : index
    %21 = vector.load %arg2[%c2_17, %c0_18, %c0_19] : memref<9x3x16xbf16, #tpu.memory_space<vmem>>, vector<1x3x16xbf16>
    %22 = vector.shape_cast %21 : vector<1x3x16xbf16> to vector<3x16xbf16>
    %cst_20 = arith.constant dense<0.000000e+00> : vector<256x16xf32>
    %23 = tpu.matmul %20, %22, %cst_20 {dimension_numbers = #tpu.dot_dimension_numbers<[1], [0], [0], [1], [0, 0, 1, 1], [], []>} : vector<256x3xbf16>, vector<3x16xbf16>, vector<256x16xf32> -> vector<256x16xf32>
    %24 = arith.addf %16, %23 : vector<256x16xf32>
    %c0_21 = arith.constant 0 : index
    %c1_22 = arith.constant 1 : index
    %c0_23 = arith.constant 0 : index
    %c0_24 = arith.constant 0 : index
    %25 = vector.load %arg1[%c0_21, %c1_22, %c0_23, %c0_24] : memref<1x18x18x3xf32, #tpu.memory_space<vmem>>, vector<1x16x16x3xf32>
    %26 = vector.shape_cast %25 : vector<1x16x16x3xf32> to vector<16x16x3xf32>
    %27 = vector.shape_cast %26 : vector<16x16x3xf32> to vector<256x3xf32>
    %28 = arith.truncf %27 : vector<256x3xf32> to vector<256x3xbf16>
    %c3 = arith.constant 3 : index
    %c0_25 = arith.constant 0 : index
    %c0_26 = arith.constant 0 : index
    %29 = vector.load %arg2[%c3, %c0_25, %c0_26] : memref<9x3x16xbf16, #tpu.memory_space<vmem>>, vector<1x3x16xbf16>
    %30 = vector.shape_cast %29 : vector<1x3x16xbf16> to vector<3x16xbf16>
    %cst_27 = arith.constant dense<0.000000e+00> : vector<256x16xf32>
    %31 = tpu.matmul %28, %30, %cst_27 {dimension_numbers = #tpu.dot_dimension_numbers<[1], [0], [0], [1], [0, 0, 1, 1], [], []>} : vector<256x3xbf16>, vector<3x16xbf16>, vector<256x16xf32> -> vector<256x16xf32>
    %32 = arith.addf %24, %31 : vector<256x16xf32>
    %c0_28 = arith.constant 0 : index
    %c1_29 = arith.constant 1 : index
    %c1_30 = arith.constant 1 : index
    %c0_31 = arith.constant 0 : index
    %33 = vector.load %arg1[%c0_28, %c1_29, %c1_30, %c0_31] : memref<1x18x18x3xf32, #tpu.memory_space<vmem>>, vector<1x16x16x3xf32>
    %34 = vector.shape_cast %33 : vector<1x16x16x3xf32> to vector<16x16x3xf32>
    %35 = vector.shape_cast %34 : vector<16x16x3xf32> to vector<256x3xf32>
    %36 = arith.truncf %35 : vector<256x3xf32> to vector<256x3xbf16>
    %c4 = arith.constant 4 : index
    %c0_32 = arith.constant 0 : index
    %c0_33 = arith.constant 0 : index
    %37 = vector.load %arg2[%c4, %c0_32, %c0_33] : memref<9x3x16xbf16, #tpu.memory_space<vmem>>, vector<1x3x16xbf16>
    %38 = vector.shape_cast %37 : vector<1x3x16xbf16> to vector<3x16xbf16>
    %cst_34 = arith.constant dense<0.000000e+00> : vector<256x16xf32>
    %39 = tpu.matmul %36, %38, %cst_34 {dimension_numbers = #tpu.dot_dimension_numbers<[1], [0], [0], [1], [0, 0, 1, 1], [], []>} : vector<256x3xbf16>, vector<3x16xbf16>, vector<256x16xf32> -> vector<256x16xf32>
    %40 = arith.addf %32, %39 : vector<256x16xf32>
    %c0_35 = arith.constant 0 : index
    %c1_36 = arith.constant 1 : index
    %c2_37 = arith.constant 2 : index
    %c0_38 = arith.constant 0 : index
    %41 = vector.load %arg1[%c0_35, %c1_36, %c2_37, %c0_38] : memref<1x18x18x3xf32, #tpu.memory_space<vmem>>, vector<1x16x16x3xf32>
    %42 = vector.shape_cast %41 : vector<1x16x16x3xf32> to vector<16x16x3xf32>
    %43 = vector.shape_cast %42 : vector<16x16x3xf32> to vector<256x3xf32>
    %44 = arith.truncf %43 : vector<256x3xf32> to vector<256x3xbf16>
    %c5 = arith.constant 5 : index
    %c0_39 = arith.constant 0 : index
    %c0_40 = arith.constant 0 : index
    %45 = vector.load %arg2[%c5, %c0_39, %c0_40] : memref<9x3x16xbf16, #tpu.memory_space<vmem>>, vector<1x3x16xbf16>
    %46 = vector.shape_cast %45 : vector<1x3x16xbf16> to vector<3x16xbf16>
    %cst_41 = arith.constant dense<0.000000e+00> : vector<256x16xf32>
    %47 = tpu.matmul %44, %46, %cst_41 {dimension_numbers = #tpu.dot_dimension_numbers<[1], [0], [0], [1], [0, 0, 1, 1], [], []>} : vector<256x3xbf16>, vector<3x16xbf16>, vector<256x16xf32> -> vector<256x16xf32>
    %48 = arith.addf %40, %47 : vector<256x16xf32>
    %c0_42 = arith.constant 0 : index
    %c2_43 = arith.constant 2 : index
    %c0_44 = arith.constant 0 : index
    %c0_45 = arith.constant 0 : index
    %49 = vector.load %arg1[%c0_42, %c2_43, %c0_44, %c0_45] : memref<1x18x18x3xf32, #tpu.memory_space<vmem>>, vector<1x16x16x3xf32>
    %50 = vector.shape_cast %49 : vector<1x16x16x3xf32> to vector<16x16x3xf32>
    %51 = vector.shape_cast %50 : vector<16x16x3xf32> to vector<256x3xf32>
    %52 = arith.truncf %51 : vector<256x3xf32> to vector<256x3xbf16>
    %c6 = arith.constant 6 : index
    %c0_46 = arith.constant 0 : index
    %c0_47 = arith.constant 0 : index
    %53 = vector.load %arg2[%c6, %c0_46, %c0_47] : memref<9x3x16xbf16, #tpu.memory_space<vmem>>, vector<1x3x16xbf16>
    %54 = vector.shape_cast %53 : vector<1x3x16xbf16> to vector<3x16xbf16>
    %cst_48 = arith.constant dense<0.000000e+00> : vector<256x16xf32>
    %55 = tpu.matmul %52, %54, %cst_48 {dimension_numbers = #tpu.dot_dimension_numbers<[1], [0], [0], [1], [0, 0, 1, 1], [], []>} : vector<256x3xbf16>, vector<3x16xbf16>, vector<256x16xf32> -> vector<256x16xf32>
    %56 = arith.addf %48, %55 : vector<256x16xf32>
    %c0_49 = arith.constant 0 : index
    %c2_50 = arith.constant 2 : index
    %c1_51 = arith.constant 1 : index
    %c0_52 = arith.constant 0 : index
    %57 = vector.load %arg1[%c0_49, %c2_50, %c1_51, %c0_52] : memref<1x18x18x3xf32, #tpu.memory_space<vmem>>, vector<1x16x16x3xf32>
    %58 = vector.shape_cast %57 : vector<1x16x16x3xf32> to vector<16x16x3xf32>
    %59 = vector.shape_cast %58 : vector<16x16x3xf32> to vector<256x3xf32>
    %60 = arith.truncf %59 : vector<256x3xf32> to vector<256x3xbf16>
    %c7 = arith.constant 7 : index
    %c0_53 = arith.constant 0 : index
    %c0_54 = arith.constant 0 : index
    %61 = vector.load %arg2[%c7, %c0_53, %c0_54] : memref<9x3x16xbf16, #tpu.memory_space<vmem>>, vector<1x3x16xbf16>
    %62 = vector.shape_cast %61 : vector<1x3x16xbf16> to vector<3x16xbf16>
    %cst_55 = arith.constant dense<0.000000e+00> : vector<256x16xf32>
    %63 = tpu.matmul %60, %62, %cst_55 {dimension_numbers = #tpu.dot_dimension_numbers<[1], [0], [0], [1], [0, 0, 1, 1], [], []>} : vector<256x3xbf16>, vector<3x16xbf16>, vector<256x16xf32> -> vector<256x16xf32>
    %64 = arith.addf %56, %63 : vector<256x16xf32>
    %c0_56 = arith.constant 0 : index
    %c2_57 = arith.constant 2 : index
    %c2_58 = arith.constant 2 : index
    %c0_59 = arith.constant 0 : index
    %65 = vector.load %arg1[%c0_56, %c2_57, %c2_58, %c0_59] : memref<1x18x18x3xf32, #tpu.memory_space<vmem>>, vector<1x16x16x3xf32>
    %66 = vector.shape_cast %65 : vector<1x16x16x3xf32> to vector<16x16x3xf32>
    %67 = vector.shape_cast %66 : vector<16x16x3xf32> to vector<256x3xf32>
    %68 = arith.truncf %67 : vector<256x3xf32> to vector<256x3xbf16>
    %c8 = arith.constant 8 : index
    %c0_60 = arith.constant 0 : index
    %c0_61 = arith.constant 0 : index
    %69 = vector.load %arg2[%c8, %c0_60, %c0_61] : memref<9x3x16xbf16, #tpu.memory_space<vmem>>, vector<1x3x16xbf16>
    %70 = vector.shape_cast %69 : vector<1x3x16xbf16> to vector<3x16xbf16>
    %cst_62 = arith.constant dense<0.000000e+00> : vector<256x16xf32>
    %71 = tpu.matmul %68, %70, %cst_62 {dimension_numbers = #tpu.dot_dimension_numbers<[1], [0], [0], [1], [0, 0, 1, 1], [], []>} : vector<256x3xbf16>, vector<3x16xbf16>, vector<256x16xf32> -> vector<256x16xf32>
    %72 = arith.addf %64, %71 : vector<256x16xf32>
    %c0_63 = arith.constant 0 : index
    %c0_64 = arith.constant 0 : index
    %73 = vector.load %arg3[%c0_63, %c0_64] : memref<1x16xf32, #tpu.memory_space<vmem>>, vector<1x16xf32>
    %74 = vector.broadcast %73 : vector<1x16xf32> to vector<256x16xf32>
    %75 = arith.addf %72, %74 : vector<256x16xf32>
    %cst_65 = arith.constant 0.000000e+00 : f32
    %76 = vector.broadcast %cst_65 : f32 to vector<256x16xf32>
    %77 = arith.maximumf %75, %76 : vector<256x16xf32>
    %c0_66 = arith.constant 0 : index
    %c0_67 = arith.constant 0 : index
    %c0_68 = arith.constant 0 : index
    %78 = vector.load %arg8[%c0_66, %c0_67, %c0_68] : memref<4x64x256xf32, #tpu.memory_space<vmem>>, vector<1x64x256xf32>
    %79 = vector.shape_cast %78 : vector<1x64x256xf32> to vector<64x256xf32>
    %cst_69 = arith.constant dense<0.000000e+00> : vector<64x16xf32>
    %80 = tpu.matmul %79, %77, %cst_69 {dimension_numbers = #tpu.dot_dimension_numbers<[1], [0], [0], [1], [0, 0, 1, 1], [], []>} : vector<64x256xf32>, vector<256x16xf32>, vector<64x16xf32> -> vector<64x16xf32>
    %c1_70 = arith.constant 1 : index
    %c0_71 = arith.constant 0 : index
    %c0_72 = arith.constant 0 : index
    %81 = vector.load %arg8[%c1_70, %c0_71, %c0_72] : memref<4x64x256xf32, #tpu.memory_space<vmem>>, vector<1x64x256xf32>
    %82 = vector.shape_cast %81 : vector<1x64x256xf32> to vector<64x256xf32>
    %cst_73 = arith.constant dense<0.000000e+00> : vector<64x16xf32>
    %83 = tpu.matmul %82, %77, %cst_73 {dimension_numbers = #tpu.dot_dimension_numbers<[1], [0], [0], [1], [0, 0, 1, 1], [], []>} : vector<64x256xf32>, vector<256x16xf32>, vector<64x16xf32> -> vector<64x16xf32>
    %84 = arith.maximumf %80, %83 : vector<64x16xf32>
    %c2_74 = arith.constant 2 : index
    %c0_75 = arith.constant 0 : index
    %c0_76 = arith.constant 0 : index
    %85 = vector.load %arg8[%c2_74, %c0_75, %c0_76] : memref<4x64x256xf32, #tpu.memory_space<vmem>>, vector<1x64x256xf32>
    %86 = vector.shape_cast %85 : vector<1x64x256xf32> to vector<64x256xf32>
    %cst_77 = arith.constant dense<0.000000e+00> : vector<64x16xf32>
    %87 = tpu.matmul %86, %77, %cst_77 {dimension_numbers = #tpu.dot_dimension_numbers<[1], [0], [0], [1], [0, 0, 1, 1], [], []>} : vector<64x256xf32>, vector<256x16xf32>, vector<64x16xf32> -> vector<64x16xf32>
    %88 = arith.maximumf %84, %87 : vector<64x16xf32>
    %c3_78 = arith.constant 3 : index
    %c0_79 = arith.constant 0 : index
    %c0_80 = arith.constant 0 : index
    %89 = vector.load %arg8[%c3_78, %c0_79, %c0_80] : memref<4x64x256xf32, #tpu.memory_space<vmem>>, vector<1x64x256xf32>
    %90 = vector.shape_cast %89 : vector<1x64x256xf32> to vector<64x256xf32>
    %cst_81 = arith.constant dense<0.000000e+00> : vector<64x16xf32>
    %91 = tpu.matmul %90, %77, %cst_81 {dimension_numbers = #tpu.dot_dimension_numbers<[1], [0], [0], [1], [0, 0, 1, 1], [], []>} : vector<64x256xf32>, vector<256x16xf32>, vector<64x16xf32> -> vector<64x16xf32>
    %92 = arith.maximumf %88, %91 : vector<64x16xf32>
    %cst_82 = arith.constant 0.000000e+00 : f32
    %93 = vector.broadcast %cst_82 : f32 to vector<10x10x16xf32>
    %c0_83 = arith.constant 0 : index
    %c0_84 = arith.constant 0 : index
    %c0_85 = arith.constant 0 : index
    %94 = vector.load %arg11[%c0_83, %c0_84, %c0_85] : memref<10x10x16xf32, #tpu.memory_space<vmem>>, vector<10x10x16xf32>
    tpu.vector_store %arg11[%c0_83, %c0_84, %c0_85], %93 {strides = array<i32>} : memref<10x10x16xf32, #tpu.memory_space<vmem>>, vector<10x10x16xf32>,
    %95 = vector.shape_cast %92 : vector<64x16xf32> to vector<8x8x16xf32>
    %c1_86 = arith.constant 1 : index
    %c1_87 = arith.constant 1 : index
    %c0_88 = arith.constant 0 : index
    %96 = vector.load %arg11[%c1_86, %c1_87, %c0_88] : memref<10x10x16xf32, #tpu.memory_space<vmem>>, vector<8x8x16xf32>
    tpu.vector_store %arg11[%c1_86, %c1_87, %c0_88], %95 {strides = array<i32>} : memref<10x10x16xf32, #tpu.memory_space<vmem>>, vector<8x8x16xf32>,
    %cst_89 = arith.constant 0.000000e+00 : f32
    %97 = vector.broadcast %cst_89 : f32 to vector<64x32xf32>
    %c0_90 = arith.constant 0 : index
    %c0_91 = arith.constant 0 : index
    %c0_92 = arith.constant 0 : index
    %98 = vector.load %arg11[%c0_90, %c0_91, %c0_92] : memref<10x10x16xf32, #tpu.memory_space<vmem>>, vector<8x8x16xf32>
    %99 = vector.shape_cast %98 : vector<8x8x16xf32> to vector<64x16xf32>
    %100 = arith.truncf %99 : vector<64x16xf32> to vector<64x16xbf16>
    %c0_93 = arith.constant 0 : index
    %c0_94 = arith.constant 0 : index
    %c0_95 = arith.constant 0 : index
    %101 = vector.load %arg4[%c0_93, %c0_94, %c0_95] : memref<9x16x32xbf16, #tpu.memory_space<vmem>>, vector<1x16x32xbf16>
    %102 = vector.shape_cast %101 : vector<1x16x32xbf16> to vector<16x32xbf16>
    %cst_96 = arith.constant dense<0.000000e+00> : vector<64x32xf32>
    %103 = tpu.matmul %100, %102, %cst_96 {dimension_numbers = #tpu.dot_dimension_numbers<[1], [0], [0], [1], [0, 0, 1, 1], [], []>} : vector<64x16xbf16>, vector<16x32xbf16>, vector<64x32xf32> -> vector<64x32xf32>
    %104 = arith.addf %97, %103 : vector<64x32xf32>
    %c0_97 = arith.constant 0 : index
    %c1_98 = arith.constant 1 : index
    %c0_99 = arith.constant 0 : index
    %105 = vector.load %arg11[%c0_97, %c1_98, %c0_99] : memref<10x10x16xf32, #tpu.memory_space<vmem>>, vector<8x8x16xf32>
    %106 = vector.shape_cast %105 : vector<8x8x16xf32> to vector<64x16xf32>
    %107 = arith.truncf %106 : vector<64x16xf32> to vector<64x16xbf16>
    %c1_100 = arith.constant 1 : index
    %c0_101 = arith.constant 0 : index
    %c0_102 = arith.constant 0 : index
    %108 = vector.load %arg4[%c1_100, %c0_101, %c0_102] : memref<9x16x32xbf16, #tpu.memory_space<vmem>>, vector<1x16x32xbf16>
    %109 = vector.shape_cast %108 : vector<1x16x32xbf16> to vector<16x32xbf16>
    %cst_103 = arith.constant dense<0.000000e+00> : vector<64x32xf32>
    %110 = tpu.matmul %107, %109, %cst_103 {dimension_numbers = #tpu.dot_dimension_numbers<[1], [0], [0], [1], [0, 0, 1, 1], [], []>} : vector<64x16xbf16>, vector<16x32xbf16>, vector<64x32xf32> -> vector<64x32xf32>
    %111 = arith.addf %104, %110 : vector<64x32xf32>
    %c0_104 = arith.constant 0 : index
    %c2_105 = arith.constant 2 : index
    %c0_106 = arith.constant 0 : index
    %112 = vector.load %arg11[%c0_104, %c2_105, %c0_106] : memref<10x10x16xf32, #tpu.memory_space<vmem>>, vector<8x8x16xf32>
    %113 = vector.shape_cast %112 : vector<8x8x16xf32> to vector<64x16xf32>
    %114 = arith.truncf %113 : vector<64x16xf32> to vector<64x16xbf16>
    %c2_107 = arith.constant 2 : index
    %c0_108 = arith.constant 0 : index
    %c0_109 = arith.constant 0 : index
    %115 = vector.load %arg4[%c2_107, %c0_108, %c0_109] : memref<9x16x32xbf16, #tpu.memory_space<vmem>>, vector<1x16x32xbf16>
    %116 = vector.shape_cast %115 : vector<1x16x32xbf16> to vector<16x32xbf16>
    %cst_110 = arith.constant dense<0.000000e+00> : vector<64x32xf32>
    %117 = tpu.matmul %114, %116, %cst_110 {dimension_numbers = #tpu.dot_dimension_numbers<[1], [0], [0], [1], [0, 0, 1, 1], [], []>} : vector<64x16xbf16>, vector<16x32xbf16>, vector<64x32xf32> -> vector<64x32xf32>
    %118 = arith.addf %111, %117 : vector<64x32xf32>
    %c1_111 = arith.constant 1 : index
    %c0_112 = arith.constant 0 : index
    %c0_113 = arith.constant 0 : index
    %119 = vector.load %arg11[%c1_111, %c0_112, %c0_113] : memref<10x10x16xf32, #tpu.memory_space<vmem>>, vector<8x8x16xf32>
    %120 = vector.shape_cast %119 : vector<8x8x16xf32> to vector<64x16xf32>
    %121 = arith.truncf %120 : vector<64x16xf32> to vector<64x16xbf16>
    %c3_114 = arith.constant 3 : index
    %c0_115 = arith.constant 0 : index
    %c0_116 = arith.constant 0 : index
    %122 = vector.load %arg4[%c3_114, %c0_115, %c0_116] : memref<9x16x32xbf16, #tpu.memory_space<vmem>>, vector<1x16x32xbf16>
    %123 = vector.shape_cast %122 : vector<1x16x32xbf16> to vector<16x32xbf16>
    %cst_117 = arith.constant dense<0.000000e+00> : vector<64x32xf32>
    %124 = tpu.matmul %121, %123, %cst_117 {dimension_numbers = #tpu.dot_dimension_numbers<[1], [0], [0], [1], [0, 0, 1, 1], [], []>} : vector<64x16xbf16>, vector<16x32xbf16>, vector<64x32xf32> -> vector<64x32xf32>
    %125 = arith.addf %118, %124 : vector<64x32xf32>
    %c1_118 = arith.constant 1 : index
    %c1_119 = arith.constant 1 : index
    %c0_120 = arith.constant 0 : index
    %126 = vector.load %arg11[%c1_118, %c1_119, %c0_120] : memref<10x10x16xf32, #tpu.memory_space<vmem>>, vector<8x8x16xf32>
    %127 = vector.shape_cast %126 : vector<8x8x16xf32> to vector<64x16xf32>
    %128 = arith.truncf %127 : vector<64x16xf32> to vector<64x16xbf16>
    %c4_121 = arith.constant 4 : index
    %c0_122 = arith.constant 0 : index
    %c0_123 = arith.constant 0 : index
    %129 = vector.load %arg4[%c4_121, %c0_122, %c0_123] : memref<9x16x32xbf16, #tpu.memory_space<vmem>>, vector<1x16x32xbf16>
    %130 = vector.shape_cast %129 : vector<1x16x32xbf16> to vector<16x32xbf16>
    %cst_124 = arith.constant dense<0.000000e+00> : vector<64x32xf32>
    %131 = tpu.matmul %128, %130, %cst_124 {dimension_numbers = #tpu.dot_dimension_numbers<[1], [0], [0], [1], [0, 0, 1, 1], [], []>} : vector<64x16xbf16>, vector<16x32xbf16>, vector<64x32xf32> -> vector<64x32xf32>
    %132 = arith.addf %125, %131 : vector<64x32xf32>
    %c1_125 = arith.constant 1 : index
    %c2_126 = arith.constant 2 : index
    %c0_127 = arith.constant 0 : index
    %133 = vector.load %arg11[%c1_125, %c2_126, %c0_127] : memref<10x10x16xf32, #tpu.memory_space<vmem>>, vector<8x8x16xf32>
    %134 = vector.shape_cast %133 : vector<8x8x16xf32> to vector<64x16xf32>
    %135 = arith.truncf %134 : vector<64x16xf32> to vector<64x16xbf16>
    %c5_128 = arith.constant 5 : index
    %c0_129 = arith.constant 0 : index
    %c0_130 = arith.constant 0 : index
    %136 = vector.load %arg4[%c5_128, %c0_129, %c0_130] : memref<9x16x32xbf16, #tpu.memory_space<vmem>>, vector<1x16x32xbf16>
    %137 = vector.shape_cast %136 : vector<1x16x32xbf16> to vector<16x32xbf16>
    %cst_131 = arith.constant dense<0.000000e+00> : vector<64x32xf32>
    %138 = tpu.matmul %135, %137, %cst_131 {dimension_numbers = #tpu.dot_dimension_numbers<[1], [0], [0], [1], [0, 0, 1, 1], [], []>} : vector<64x16xbf16>, vector<16x32xbf16>, vector<64x32xf32> -> vector<64x32xf32>
    %139 = arith.addf %132, %138 : vector<64x32xf32>
    %c2_132 = arith.constant 2 : index
    %c0_133 = arith.constant 0 : index
    %c0_134 = arith.constant 0 : index
    %140 = vector.load %arg11[%c2_132, %c0_133, %c0_134] : memref<10x10x16xf32, #tpu.memory_space<vmem>>, vector<8x8x16xf32>
    %141 = vector.shape_cast %140 : vector<8x8x16xf32> to vector<64x16xf32>
    %142 = arith.truncf %141 : vector<64x16xf32> to vector<64x16xbf16>
    %c6_135 = arith.constant 6 : index
    %c0_136 = arith.constant 0 : index
    %c0_137 = arith.constant 0 : index
    %143 = vector.load %arg4[%c6_135, %c0_136, %c0_137] : memref<9x16x32xbf16, #tpu.memory_space<vmem>>, vector<1x16x32xbf16>
    %144 = vector.shape_cast %143 : vector<1x16x32xbf16> to vector<16x32xbf16>
    %cst_138 = arith.constant dense<0.000000e+00> : vector<64x32xf32>
    %145 = tpu.matmul %142, %144, %cst_138 {dimension_numbers = #tpu.dot_dimension_numbers<[1], [0], [0], [1], [0, 0, 1, 1], [], []>} : vector<64x16xbf16>, vector<16x32xbf16>, vector<64x32xf32> -> vector<64x32xf32>
    %146 = arith.addf %139, %145 : vector<64x32xf32>
    %c2_139 = arith.constant 2 : index
    %c1_140 = arith.constant 1 : index
    %c0_141 = arith.constant 0 : index
    %147 = vector.load %arg11[%c2_139, %c1_140, %c0_141] : memref<10x10x16xf32, #tpu.memory_space<vmem>>, vector<8x8x16xf32>
    %148 = vector.shape_cast %147 : vector<8x8x16xf32> to vector<64x16xf32>
    %149 = arith.truncf %148 : vector<64x16xf32> to vector<64x16xbf16>
    %c7_142 = arith.constant 7 : index
    %c0_143 = arith.constant 0 : index
    %c0_144 = arith.constant 0 : index
    %150 = vector.load %arg4[%c7_142, %c0_143, %c0_144] : memref<9x16x32xbf16, #tpu.memory_space<vmem>>, vector<1x16x32xbf16>
    %151 = vector.shape_cast %150 : vector<1x16x32xbf16> to vector<16x32xbf16>
    %cst_145 = arith.constant dense<0.000000e+00> : vector<64x32xf32>
    %152 = tpu.matmul %149, %151, %cst_145 {dimension_numbers = #tpu.dot_dimension_numbers<[1], [0], [0], [1], [0, 0, 1, 1], [], []>} : vector<64x16xbf16>, vector<16x32xbf16>, vector<64x32xf32> -> vector<64x32xf32>
    %153 = arith.addf %146, %152 : vector<64x32xf32>
    %c2_146 = arith.constant 2 : index
    %c2_147 = arith.constant 2 : index
    %c0_148 = arith.constant 0 : index
    %154 = vector.load %arg11[%c2_146, %c2_147, %c0_148] : memref<10x10x16xf32, #tpu.memory_space<vmem>>, vector<8x8x16xf32>
    %155 = vector.shape_cast %154 : vector<8x8x16xf32> to vector<64x16xf32>
    %156 = arith.truncf %155 : vector<64x16xf32> to vector<64x16xbf16>
    %c8_149 = arith.constant 8 : index
    %c0_150 = arith.constant 0 : index
    %c0_151 = arith.constant 0 : index
    %157 = vector.load %arg4[%c8_149, %c0_150, %c0_151] : memref<9x16x32xbf16, #tpu.memory_space<vmem>>, vector<1x16x32xbf16>
    %158 = vector.shape_cast %157 : vector<1x16x32xbf16> to vector<16x32xbf16>
    %cst_152 = arith.constant dense<0.000000e+00> : vector<64x32xf32>
    %159 = tpu.matmul %156, %158, %cst_152 {dimension_numbers = #tpu.dot_dimension_numbers<[1], [0], [0], [1], [0, 0, 1, 1], [], []>} : vector<64x16xbf16>, vector<16x32xbf16>, vector<64x32xf32> -> vector<64x32xf32>
    %160 = arith.addf %153, %159 : vector<64x32xf32>
    %c0_153 = arith.constant 0 : index
    %c0_154 = arith.constant 0 : index
    %161 = vector.load %arg5[%c0_153, %c0_154] : memref<1x32xf32, #tpu.memory_space<vmem>>, vector<1x32xf32>
    %162 = vector.broadcast %161 : vector<1x32xf32> to vector<64x32xf32>
    %163 = arith.addf %160, %162 : vector<64x32xf32>
    %cst_155 = arith.constant 0.000000e+00 : f32
    %164 = vector.broadcast %cst_155 : f32 to vector<64x32xf32>
    %165 = arith.maximumf %163, %164 : vector<64x32xf32>
    %c0_156 = arith.constant 0 : index
    %c0_157 = arith.constant 0 : index
    %c0_158 = arith.constant 0 : index
    %166 = vector.load %arg9[%c0_156, %c0_157, %c0_158] : memref<4x16x64xf32, #tpu.memory_space<vmem>>, vector<1x16x64xf32>
    %167 = vector.shape_cast %166 : vector<1x16x64xf32> to vector<16x64xf32>
    %cst_159 = arith.constant dense<0.000000e+00> : vector<16x32xf32>
    %168 = tpu.matmul %167, %165, %cst_159 {dimension_numbers = #tpu.dot_dimension_numbers<[1], [0], [0], [1], [0, 0, 1, 1], [], []>} : vector<16x64xf32>, vector<64x32xf32>, vector<16x32xf32> -> vector<16x32xf32>
    %c1_160 = arith.constant 1 : index
    %c0_161 = arith.constant 0 : index
    %c0_162 = arith.constant 0 : index
    %169 = vector.load %arg9[%c1_160, %c0_161, %c0_162] : memref<4x16x64xf32, #tpu.memory_space<vmem>>, vector<1x16x64xf32>
    %170 = vector.shape_cast %169 : vector<1x16x64xf32> to vector<16x64xf32>
    %cst_163 = arith.constant dense<0.000000e+00> : vector<16x32xf32>
    %171 = tpu.matmul %170, %165, %cst_163 {dimension_numbers = #tpu.dot_dimension_numbers<[1], [0], [0], [1], [0, 0, 1, 1], [], []>} : vector<16x64xf32>, vector<64x32xf32>, vector<16x32xf32> -> vector<16x32xf32>
    %172 = arith.maximumf %168, %171 : vector<16x32xf32>
    %c2_164 = arith.constant 2 : index
    %c0_165 = arith.constant 0 : index
    %c0_166 = arith.constant 0 : index
    %173 = vector.load %arg9[%c2_164, %c0_165, %c0_166] : memref<4x16x64xf32, #tpu.memory_space<vmem>>, vector<1x16x64xf32>
    %174 = vector.shape_cast %173 : vector<1x16x64xf32> to vector<16x64xf32>
    %cst_167 = arith.constant dense<0.000000e+00> : vector<16x32xf32>
    %175 = tpu.matmul %174, %165, %cst_167 {dimension_numbers = #tpu.dot_dimension_numbers<[1], [0], [0], [1], [0, 0, 1, 1], [], []>} : vector<16x64xf32>, vector<64x32xf32>, vector<16x32xf32> -> vector<16x32xf32>
    %176 = arith.maximumf %172, %175 : vector<16x32xf32>
    %c3_168 = arith.constant 3 : index
    %c0_169 = arith.constant 0 : index
    %c0_170 = arith.constant 0 : index
    %177 = vector.load %arg9[%c3_168, %c0_169, %c0_170] : memref<4x16x64xf32, #tpu.memory_space<vmem>>, vector<1x16x64xf32>
    %178 = vector.shape_cast %177 : vector<1x16x64xf32> to vector<16x64xf32>
    %cst_171 = arith.constant dense<0.000000e+00> : vector<16x32xf32>
    %179 = tpu.matmul %178, %165, %cst_171 {dimension_numbers = #tpu.dot_dimension_numbers<[1], [0], [0], [1], [0, 0, 1, 1], [], []>} : vector<16x64xf32>, vector<64x32xf32>, vector<16x32xf32> -> vector<16x32xf32>
    %180 = arith.maximumf %176, %179 : vector<16x32xf32>
    %181 = arith.truncf %180 : vector<16x32xf32> to vector<16x32xbf16>
    %cst_172 = arith.constant 0.000000e+00 : f32
    %182 = vector.broadcast %cst_172 : f32 to vector<1x14xf32>
    %183 = vector.extract_strided_slice %181 {offsets = [0, 0], sizes = [1, 32], strides = [1, 1]} : vector<16x32xbf16> to vector<1x32xbf16>
    %c0_173 = arith.constant 0 : index
    %c0_174 = arith.constant 0 : index
    %c0_175 = arith.constant 0 : index
    %184 = vector.load %arg6[%c0_173, %c0_174, %c0_175] : memref<16x32x14xbf16, #tpu.memory_space<vmem>>, vector<1x32x14xbf16>
    %185 = vector.shape_cast %184 : vector<1x32x14xbf16> to vector<32x14xbf16>
    %cst_176 = arith.constant dense<0.000000e+00> : vector<1x14xf32>
    %186 = tpu.matmul %183, %185, %cst_176 {dimension_numbers = #tpu.dot_dimension_numbers<[1], [0], [0], [1], [0, 0, 1, 1], [], []>} : vector<1x32xbf16>, vector<32x14xbf16>, vector<1x14xf32> -> vector<1x14xf32>
    %187 = arith.addf %182, %186 : vector<1x14xf32>
    %188 = vector.extract_strided_slice %181 {offsets = [1, 0], sizes = [1, 32], strides = [1, 1]} : vector<16x32xbf16> to vector<1x32xbf16>
    %c1_177 = arith.constant 1 : index
    %c0_178 = arith.constant 0 : index
    %c0_179 = arith.constant 0 : index
    %189 = vector.load %arg6[%c1_177, %c0_178, %c0_179] : memref<16x32x14xbf16, #tpu.memory_space<vmem>>, vector<1x32x14xbf16>
    %190 = vector.shape_cast %189 : vector<1x32x14xbf16> to vector<32x14xbf16>
    %cst_180 = arith.constant dense<0.000000e+00> : vector<1x14xf32>
    %191 = tpu.matmul %188, %190, %cst_180 {dimension_numbers = #tpu.dot_dimension_numbers<[1], [0], [0], [1], [0, 0, 1, 1], [], []>} : vector<1x32xbf16>, vector<32x14xbf16>, vector<1x14xf32> -> vector<1x14xf32>
    %192 = arith.addf %187, %191 : vector<1x14xf32>
    %193 = vector.extract_strided_slice %181 {offsets = [2, 0], sizes = [1, 32], strides = [1, 1]} : vector<16x32xbf16> to vector<1x32xbf16>
    %c2_181 = arith.constant 2 : index
    %c0_182 = arith.constant 0 : index
    %c0_183 = arith.constant 0 : index
    %194 = vector.load %arg6[%c2_181, %c0_182, %c0_183] : memref<16x32x14xbf16, #tpu.memory_space<vmem>>, vector<1x32x14xbf16>
    %195 = vector.shape_cast %194 : vector<1x32x14xbf16> to vector<32x14xbf16>
    %cst_184 = arith.constant dense<0.000000e+00> : vector<1x14xf32>
    %196 = tpu.matmul %193, %195, %cst_184 {dimension_numbers = #tpu.dot_dimension_numbers<[1], [0], [0], [1], [0, 0, 1, 1], [], []>} : vector<1x32xbf16>, vector<32x14xbf16>, vector<1x14xf32> -> vector<1x14xf32>
    %197 = arith.addf %192, %196 : vector<1x14xf32>
    %198 = vector.extract_strided_slice %181 {offsets = [3, 0], sizes = [1, 32], strides = [1, 1]} : vector<16x32xbf16> to vector<1x32xbf16>
    %c3_185 = arith.constant 3 : index
    %c0_186 = arith.constant 0 : index
    %c0_187 = arith.constant 0 : index
    %199 = vector.load %arg6[%c3_185, %c0_186, %c0_187] : memref<16x32x14xbf16, #tpu.memory_space<vmem>>, vector<1x32x14xbf16>
    %200 = vector.shape_cast %199 : vector<1x32x14xbf16> to vector<32x14xbf16>
    %cst_188 = arith.constant dense<0.000000e+00> : vector<1x14xf32>
    %201 = tpu.matmul %198, %200, %cst_188 {dimension_numbers = #tpu.dot_dimension_numbers<[1], [0], [0], [1], [0, 0, 1, 1], [], []>} : vector<1x32xbf16>, vector<32x14xbf16>, vector<1x14xf32> -> vector<1x14xf32>
    %202 = arith.addf %197, %201 : vector<1x14xf32>
    %203 = vector.extract_strided_slice %181 {offsets = [4, 0], sizes = [1, 32], strides = [1, 1]} : vector<16x32xbf16> to vector<1x32xbf16>
    %c4_189 = arith.constant 4 : index
    %c0_190 = arith.constant 0 : index
    %c0_191 = arith.constant 0 : index
    %204 = vector.load %arg6[%c4_189, %c0_190, %c0_191] : memref<16x32x14xbf16, #tpu.memory_space<vmem>>, vector<1x32x14xbf16>
    %205 = vector.shape_cast %204 : vector<1x32x14xbf16> to vector<32x14xbf16>
    %cst_192 = arith.constant dense<0.000000e+00> : vector<1x14xf32>
    %206 = tpu.matmul %203, %205, %cst_192 {dimension_numbers = #tpu.dot_dimension_numbers<[1], [0], [0], [1], [0, 0, 1, 1], [], []>} : vector<1x32xbf16>, vector<32x14xbf16>, vector<1x14xf32> -> vector<1x14xf32>
    %207 = arith.addf %202, %206 : vector<1x14xf32>
    %208 = vector.extract_strided_slice %181 {offsets = [5, 0], sizes = [1, 32], strides = [1, 1]} : vector<16x32xbf16> to vector<1x32xbf16>
    %c5_193 = arith.constant 5 : index
    %c0_194 = arith.constant 0 : index
    %c0_195 = arith.constant 0 : index
    %209 = vector.load %arg6[%c5_193, %c0_194, %c0_195] : memref<16x32x14xbf16, #tpu.memory_space<vmem>>, vector<1x32x14xbf16>
    %210 = vector.shape_cast %209 : vector<1x32x14xbf16> to vector<32x14xbf16>
    %cst_196 = arith.constant dense<0.000000e+00> : vector<1x14xf32>
    %211 = tpu.matmul %208, %210, %cst_196 {dimension_numbers = #tpu.dot_dimension_numbers<[1], [0], [0], [1], [0, 0, 1, 1], [], []>} : vector<1x32xbf16>, vector<32x14xbf16>, vector<1x14xf32> -> vector<1x14xf32>
    %212 = arith.addf %207, %211 : vector<1x14xf32>
    %213 = vector.extract_strided_slice %181 {offsets = [6, 0], sizes = [1, 32], strides = [1, 1]} : vector<16x32xbf16> to vector<1x32xbf16>
    %c6_197 = arith.constant 6 : index
    %c0_198 = arith.constant 0 : index
    %c0_199 = arith.constant 0 : index
    %214 = vector.load %arg6[%c6_197, %c0_198, %c0_199] : memref<16x32x14xbf16, #tpu.memory_space<vmem>>, vector<1x32x14xbf16>
    %215 = vector.shape_cast %214 : vector<1x32x14xbf16> to vector<32x14xbf16>
    %cst_200 = arith.constant dense<0.000000e+00> : vector<1x14xf32>
    %216 = tpu.matmul %213, %215, %cst_200 {dimension_numbers = #tpu.dot_dimension_numbers<[1], [0], [0], [1], [0, 0, 1, 1], [], []>} : vector<1x32xbf16>, vector<32x14xbf16>, vector<1x14xf32> -> vector<1x14xf32>
    %217 = arith.addf %212, %216 : vector<1x14xf32>
    %218 = vector.extract_strided_slice %181 {offsets = [7, 0], sizes = [1, 32], strides = [1, 1]} : vector<16x32xbf16> to vector<1x32xbf16>
    %c7_201 = arith.constant 7 : index
    %c0_202 = arith.constant 0 : index
    %c0_203 = arith.constant 0 : index
    %219 = vector.load %arg6[%c7_201, %c0_202, %c0_203] : memref<16x32x14xbf16, #tpu.memory_space<vmem>>, vector<1x32x14xbf16>
    %220 = vector.shape_cast %219 : vector<1x32x14xbf16> to vector<32x14xbf16>
    %cst_204 = arith.constant dense<0.000000e+00> : vector<1x14xf32>
    %221 = tpu.matmul %218, %220, %cst_204 {dimension_numbers = #tpu.dot_dimension_numbers<[1], [0], [0], [1], [0, 0, 1, 1], [], []>} : vector<1x32xbf16>, vector<32x14xbf16>, vector<1x14xf32> -> vector<1x14xf32>
    %222 = arith.addf %217, %221 : vector<1x14xf32>
    %223 = vector.extract_strided_slice %181 {offsets = [8, 0], sizes = [1, 32], strides = [1, 1]} : vector<16x32xbf16> to vector<1x32xbf16>
    %c8_205 = arith.constant 8 : index
    %c0_206 = arith.constant 0 : index
    %c0_207 = arith.constant 0 : index
    %224 = vector.load %arg6[%c8_205, %c0_206, %c0_207] : memref<16x32x14xbf16, #tpu.memory_space<vmem>>, vector<1x32x14xbf16>
    %225 = vector.shape_cast %224 : vector<1x32x14xbf16> to vector<32x14xbf16>
    %cst_208 = arith.constant dense<0.000000e+00> : vector<1x14xf32>
    %226 = tpu.matmul %223, %225, %cst_208 {dimension_numbers = #tpu.dot_dimension_numbers<[1], [0], [0], [1], [0, 0, 1, 1], [], []>} : vector<1x32xbf16>, vector<32x14xbf16>, vector<1x14xf32> -> vector<1x14xf32>
    %227 = arith.addf %222, %226 : vector<1x14xf32>
    %228 = vector.extract_strided_slice %181 {offsets = [9, 0], sizes = [1, 32], strides = [1, 1]} : vector<16x32xbf16> to vector<1x32xbf16>
    %c9 = arith.constant 9 : index
    %c0_209 = arith.constant 0 : index
    %c0_210 = arith.constant 0 : index
    %229 = vector.load %arg6[%c9, %c0_209, %c0_210] : memref<16x32x14xbf16, #tpu.memory_space<vmem>>, vector<1x32x14xbf16>
    %230 = vector.shape_cast %229 : vector<1x32x14xbf16> to vector<32x14xbf16>
    %cst_211 = arith.constant dense<0.000000e+00> : vector<1x14xf32>
    %231 = tpu.matmul %228, %230, %cst_211 {dimension_numbers = #tpu.dot_dimension_numbers<[1], [0], [0], [1], [0, 0, 1, 1], [], []>} : vector<1x32xbf16>, vector<32x14xbf16>, vector<1x14xf32> -> vector<1x14xf32>
    %232 = arith.addf %227, %231 : vector<1x14xf32>
    %233 = vector.extract_strided_slice %181 {offsets = [10, 0], sizes = [1, 32], strides = [1, 1]} : vector<16x32xbf16> to vector<1x32xbf16>
    %c10 = arith.constant 10 : index
    %c0_212 = arith.constant 0 : index
    %c0_213 = arith.constant 0 : index
    %234 = vector.load %arg6[%c10, %c0_212, %c0_213] : memref<16x32x14xbf16, #tpu.memory_space<vmem>>, vector<1x32x14xbf16>
    %235 = vector.shape_cast %234 : vector<1x32x14xbf16> to vector<32x14xbf16>
    %cst_214 = arith.constant dense<0.000000e+00> : vector<1x14xf32>
    %236 = tpu.matmul %233, %235, %cst_214 {dimension_numbers = #tpu.dot_dimension_numbers<[1], [0], [0], [1], [0, 0, 1, 1], [], []>} : vector<1x32xbf16>, vector<32x14xbf16>, vector<1x14xf32> -> vector<1x14xf32>
    %237 = arith.addf %232, %236 : vector<1x14xf32>
    %238 = vector.extract_strided_slice %181 {offsets = [11, 0], sizes = [1, 32], strides = [1, 1]} : vector<16x32xbf16> to vector<1x32xbf16>
    %c11 = arith.constant 11 : index
    %c0_215 = arith.constant 0 : index
    %c0_216 = arith.constant 0 : index
    %239 = vector.load %arg6[%c11, %c0_215, %c0_216] : memref<16x32x14xbf16, #tpu.memory_space<vmem>>, vector<1x32x14xbf16>
    %240 = vector.shape_cast %239 : vector<1x32x14xbf16> to vector<32x14xbf16>
    %cst_217 = arith.constant dense<0.000000e+00> : vector<1x14xf32>
    %241 = tpu.matmul %238, %240, %cst_217 {dimension_numbers = #tpu.dot_dimension_numbers<[1], [0], [0], [1], [0, 0, 1, 1], [], []>} : vector<1x32xbf16>, vector<32x14xbf16>, vector<1x14xf32> -> vector<1x14xf32>
    %242 = arith.addf %237, %241 : vector<1x14xf32>
    %243 = vector.extract_strided_slice %181 {offsets = [12, 0], sizes = [1, 32], strides = [1, 1]} : vector<16x32xbf16> to vector<1x32xbf16>
    %c12 = arith.constant 12 : index
    %c0_218 = arith.constant 0 : index
    %c0_219 = arith.constant 0 : index
    %244 = vector.load %arg6[%c12, %c0_218, %c0_219] : memref<16x32x14xbf16, #tpu.memory_space<vmem>>, vector<1x32x14xbf16>
    %245 = vector.shape_cast %244 : vector<1x32x14xbf16> to vector<32x14xbf16>
    %cst_220 = arith.constant dense<0.000000e+00> : vector<1x14xf32>
    %246 = tpu.matmul %243, %245, %cst_220 {dimension_numbers = #tpu.dot_dimension_numbers<[1], [0], [0], [1], [0, 0, 1, 1], [], []>} : vector<1x32xbf16>, vector<32x14xbf16>, vector<1x14xf32> -> vector<1x14xf32>
    %247 = arith.addf %242, %246 : vector<1x14xf32>
    %248 = vector.extract_strided_slice %181 {offsets = [13, 0], sizes = [1, 32], strides = [1, 1]} : vector<16x32xbf16> to vector<1x32xbf16>
    %c13 = arith.constant 13 : index
    %c0_221 = arith.constant 0 : index
    %c0_222 = arith.constant 0 : index
    %249 = vector.load %arg6[%c13, %c0_221, %c0_222] : memref<16x32x14xbf16, #tpu.memory_space<vmem>>, vector<1x32x14xbf16>
    %250 = vector.shape_cast %249 : vector<1x32x14xbf16> to vector<32x14xbf16>
    %cst_223 = arith.constant dense<0.000000e+00> : vector<1x14xf32>
    %251 = tpu.matmul %248, %250, %cst_223 {dimension_numbers = #tpu.dot_dimension_numbers<[1], [0], [0], [1], [0, 0, 1, 1], [], []>} : vector<1x32xbf16>, vector<32x14xbf16>, vector<1x14xf32> -> vector<1x14xf32>
    %252 = arith.addf %247, %251 : vector<1x14xf32>
    %253 = vector.extract_strided_slice %181 {offsets = [14, 0], sizes = [1, 32], strides = [1, 1]} : vector<16x32xbf16> to vector<1x32xbf16>
    %c14 = arith.constant 14 : index
    %c0_224 = arith.constant 0 : index
    %c0_225 = arith.constant 0 : index
    %254 = vector.load %arg6[%c14, %c0_224, %c0_225] : memref<16x32x14xbf16, #tpu.memory_space<vmem>>, vector<1x32x14xbf16>
    %255 = vector.shape_cast %254 : vector<1x32x14xbf16> to vector<32x14xbf16>
    %cst_226 = arith.constant dense<0.000000e+00> : vector<1x14xf32>
    %256 = tpu.matmul %253, %255, %cst_226 {dimension_numbers = #tpu.dot_dimension_numbers<[1], [0], [0], [1], [0, 0, 1, 1], [], []>} : vector<1x32xbf16>, vector<32x14xbf16>, vector<1x14xf32> -> vector<1x14xf32>
    %257 = arith.addf %252, %256 : vector<1x14xf32>
    %258 = vector.extract_strided_slice %181 {offsets = [15, 0], sizes = [1, 32], strides = [1, 1]} : vector<16x32xbf16> to vector<1x32xbf16>
    %c15 = arith.constant 15 : index
    %c0_227 = arith.constant 0 : index
    %c0_228 = arith.constant 0 : index
    %259 = vector.load %arg6[%c15, %c0_227, %c0_228] : memref<16x32x14xbf16, #tpu.memory_space<vmem>>, vector<1x32x14xbf16>
    %260 = vector.shape_cast %259 : vector<1x32x14xbf16> to vector<32x14xbf16>
    %cst_229 = arith.constant dense<0.000000e+00> : vector<1x14xf32>
    %261 = tpu.matmul %258, %260, %cst_229 {dimension_numbers = #tpu.dot_dimension_numbers<[1], [0], [0], [1], [0, 0, 1, 1], [], []>} : vector<1x32xbf16>, vector<32x14xbf16>, vector<1x14xf32> -> vector<1x14xf32>
    %262 = arith.addf %257, %261 : vector<1x14xf32>
    %c0_230 = arith.constant 0 : index
    %c0_231 = arith.constant 0 : index
    %263 = vector.load %arg7[%c0_230, %c0_231] : memref<1x14xf32, #tpu.memory_space<vmem>>, vector<1x14xf32>
    %264 = arith.addf %262, %263 : vector<1x14xf32>
    %265 = vector.shape_cast %264 : vector<1x14xf32> to vector<1x1x14xf32>
    %c0_232 = arith.constant 0 : index
    %c0_233 = arith.constant 0 : index
    %c0_234 = arith.constant 0 : index
    %266 = vector.load %arg10[%c0_232, %c0_233, %c0_234] : memref<1x1x14xf32, #tpu.memory_space<vmem>>, vector<1x1x14xf32>
    tpu.vector_store %arg10[%c0_232, %c0_233, %c0_234], %265 {strides = array<i32>} : memref<1x1x14xf32, #tpu.memory_space<vmem>>, vector<1x1x14xf32>,
    return
  }
  func.func @transform_0(%arg0: i32) -> (i32, i32, i32, i32) {
    %c0_i32 = arith.constant 0 : i32
    %c0_i32_0 = arith.constant 0 : i32
    %c0_i32_1 = arith.constant 0 : i32
    %c0_i32_2 = arith.constant 0 : i32
    return %arg0, %c0_i32, %c0_i32_0, %c0_i32_1 : i32, i32, i32, i32
  }
  func.func @transform_1(%arg0: i32) -> (i32, i32, i32) {
    %c0_i32 = arith.constant 0 : i32
    %c0_i32_0 = arith.constant 0 : i32
    %c0_i32_1 = arith.constant 0 : i32
    %c0_i32_2 = arith.constant 0 : i32
    return %c0_i32, %c0_i32_0, %c0_i32_1 : i32, i32, i32
  }
  func.func @transform_2(%arg0: i32) -> (i32, i32) {
    %c0_i32 = arith.constant 0 : i32
    %c0_i32_0 = arith.constant 0 : i32
    %c0_i32_1 = arith.constant 0 : i32
    return %c0_i32, %c0_i32_0 : i32, i32
  }
  func.func @transform_3(%arg0: i32) -> (i32, i32, i32) {
    %c0_i32 = arith.constant 0 : i32
    %c0_i32_0 = arith.constant 0 : i32
    %c0_i32_1 = arith.constant 0 : i32
    %c0_i32_2 = arith.constant 0 : i32
    return %c0_i32, %c0_i32_0, %c0_i32_1 : i32, i32, i32
  }
  func.func @transform_4(%arg0: i32) -> (i32, i32) {
    %c0_i32 = arith.constant 0 : i32
    %c0_i32_0 = arith.constant 0 : i32
    %c0_i32_1 = arith.constant 0 : i32
    return %c0_i32, %c0_i32_0 : i32, i32
  }
  func.func @transform_5(%arg0: i32) -> (i32, i32, i32) {
    %c0_i32 = arith.constant 0 : i32
    %c0_i32_0 = arith.constant 0 : i32
    %c0_i32_1 = arith.constant 0 : i32
    %c0_i32_2 = arith.constant 0 : i32
    return %c0_i32, %c0_i32_0, %c0_i32_1 : i32, i32, i32
  }
  func.func @transform_6(%arg0: i32) -> (i32, i32) {
    %c0_i32 = arith.constant 0 : i32
    %c0_i32_0 = arith.constant 0 : i32
    %c0_i32_1 = arith.constant 0 : i32
    return %c0_i32, %c0_i32_0 : i32, i32
  }
  func.func @transform_7(%arg0: i32) -> (i32, i32, i32) {
    %c0_i32 = arith.constant 0 : i32
    %c0_i32_0 = arith.constant 0 : i32
    %c0_i32_1 = arith.constant 0 : i32
    %c0_i32_2 = arith.constant 0 : i32
    return %c0_i32, %c0_i32_0, %c0_i32_1 : i32, i32, i32
  }
  func.func @transform_8(%arg0: i32) -> (i32, i32, i32) {
    %c0_i32 = arith.constant 0 : i32
    %c0_i32_0 = arith.constant 0 : i32
    %c0_i32_1 = arith.constant 0 : i32
    %c0_i32_2 = arith.constant 0 : i32
    return %c0_i32, %c0_i32_0, %c0_i32_1 : i32, i32, i32
  }
  func.func @transform_9(%arg0: i32) -> (i32, i32, i32) {
    %c0_i32 = arith.constant 0 : i32
    %c0_i32_0 = arith.constant 0 : i32
    %c0_i32_1 = arith.constant 0 : i32
    return %arg0, %c0_i32, %c0_i32_0 : i32, i32, i32
  }
}

</mosaic_0001>

<llo_original>
// kernel: custom_model_forward.1
$region0: #{custom_model_forward.1}
  #allocation0 [shape = 'u32[]', space=smem, size = 0x4, offset = 0x4, fixed_abs, tag = 'smem constant byte address 0x4 - core index']
  #allocation1 [shape = 'u32[144,128]{1,0:T(1,128)}', space=vmem, size = 0x12000, scoped, tag = 'internal scratch']
  #allocation2 [shape = 'f32[10,10,16]{2,1,0:T(8,128)}', space=vmem, size = 0x14000, scoped, tag = 'scratch operand']
  %s0 = inlined_call_operand.vmem [shape: f32[2,18,18,3], index: 0, kind: input, shape index: {}]
  %s1 = inlined_call_operand.vmem [shape: bf16[9,3,16], index: 1, kind: input, shape index: {}]
  %s2 = inlined_call_operand.vmem [shape: f32[1,16], index: 2, kind: input, shape index: {}]
  %s3 = inlined_call_operand.vmem [shape: bf16[9,16,32], index: 3, kind: input, shape index: {}]
  %s4 = inlined_call_operand.vmem [shape: f32[1,32], index: 4, kind: input, shape index: {}]
  %s5 = inlined_call_operand.vmem [shape: bf16[16,32,14], index: 5, kind: input, shape index: {}]
  %s6 = inlined_call_operand.vmem [shape: f32[1,14], index: 6, kind: input, shape index: {}]
  %s7 = inlined_call_operand.vmem [shape: f32[4,64,256], index: 7, kind: input, shape index: {}]
  %s8 = inlined_call_operand.vmem [shape: f32[4,16,64], index: 8, kind: input, shape index: {}]
  %s9 = inlined_call_operand.vmem [shape: f32[2,1,14], index: 9, kind: output, shape index: {}]
  %s10 = sld [smem:[#allocation0]]
  $region69: #{custom_model_forward.1} parent=0
    _
  %s12 = ssub.s32 1, %s10
  %s13 = scalar_select 0, %s12, %s10
  loop: start=0, step=1, limit=4
  $region2: #{custom_model_forward.1} parent=0 // loop_pre_header
    _
  $region3: #{custom_model_forward.1} parent=0 // loop_header
    %s15 = sphi 0, %s19
    %p16 = scmp.ge.s32.totalorder %s15, 4
    %s25 = sphi 0, %s27
    %s28 = sphi 0, %s25
    %s29 = sphi 0, %s28
    %s45 = sphi 0, %s29
    %s49 = sphi 0, %s49
    %s51 = sphi 0, %s49
    %s52 = sphi 0, %s51
    %s66 = sphi 0, %s52
    %s70 = sphi 0, %s70
    %s72 = sphi 0, %s70
    %s73 = sphi 0, %s72
    %s87 = sphi 0, %s73
    %s91 = sphi 0, %s91
    %s93 = sphi 0, %s91
    %s94 = sphi 0, %s93
    %s108 = sphi 0, %s94
    %s112 = sphi 0, %s112
    %s114 = sphi 0, %s112
    %s115 = sphi 0, %s114
    %s129 = sphi 0, %s115
    %s133 = sphi 0, %s133
    %s135 = sphi 0, %s133
    %s136 = sphi 0, %s135
    %s150 = sphi 0, %s136
    %s154 = sphi 0, %s154
    %s156 = sphi 0, %s154
    %s157 = sphi 0, %s156
    %s171 = sphi 0, %s157
    %s175 = sphi 0, %s175
    %s177 = sphi 0, %s175
    %s178 = sphi 0, %s177
    %s192 = sphi 0, %s178
    %s196 = sphi 0, %s196
    %s198 = sphi 0, %s196
    %s199 = sphi 0, %s198
    %s213 = sphi 0, %s199
    %s219 = sphi 0, %s221
    %s222 = sphi 0, %s219
    %s223 = sphi 0, %s222
    %s239 = sphi 0, %s223
  $region4: #{custom_model_forward.1} parent=0 // loop_header_branch
    %18 = sbr.rel (%p16) target = $region8
  $region5: #{custom_model_forward.1} parent=0 // loop_body
    %s20 = ssub.s32 %s15, 1
    %s21 = ssub.s32 %s15, 2
    %s22 = sadd.s32 %s15, 1
    %s23 = ssub.s32 %s15, %s22
    %p24 = scmp.eq.s32.totalorder %s23, 0
    %s26 = sadd.s32 %s25, 1
    %s27 = scalar_select %p24, %s25, %s26
    %p30 = pneg %p24
    %p31 = scmp.eq.s32.totalorder %s15, 1
    %p32 = por %p30, %p31
    %p33 = scmp.ne.s32.totalorder %s25, %s28
    %p34 = scmp.eq.s32.totalorder %s15, 0
    %p35 = por %p33, %p34
    %p36 = scmp.ne.s32.totalorder %s25, %s28
    %p37 = scmp.eq.s32.totalorder %s20, 1
    %p38 = por %p36, %p37
    %p39 = scmp.ne.s32.totalorder %s28, %s29
    %p40 = scmp.eq.s32.totalorder %s20, 0
    %p41 = por %p39, %p40
    %p42 = scmp.ne.s32.totalorder %s28, %s29
    %p43 = scmp.eq.s32.totalorder %s21, 1
    %p44 = por %p42, %p43
    %p46 = scmp.ne.s32.totalorder %s29, %s45
    %p47 = scmp.eq.s32.totalorder %s21, 0
    %p48 = por %p46, %p47
    %s50 = sadd.s32 %s49, 1
    %p53 = scmp.eq.s32.totalorder %s15, 1
    %p54 = scmp.ne.s32.totalorder %s49, %s51
    %p55 = scmp.eq.s32.totalorder %s15, 0
    %p56 = por %p54, %p55
    %p57 = scmp.ne.s32.totalorder %s49, %s51
    %p58 = scmp.eq.s32.totalorder %s20, 1
    %p59 = por %p57, %p58
    %p60 = scmp.ne.s32.totalorder %s51, %s52
    %p61 = scmp.eq.s32.totalorder %s20, 0
    %p62 = por %p60, %p61
    %p63 = scmp.ne.s32.totalorder %s51, %s52
    %p64 = scmp.eq.s32.totalorder %s21, 1
    %p65 = por %p63, %p64
    %p67 = scmp.ne.s32.totalorder %s52, %s66
    %p68 = scmp.eq.s32.totalorder %s21, 0
    %p69 = por %p67, %p68
    %s71 = sadd.s32 %s70, 1
    %p74 = scmp.eq.s32.totalorder %s15, 1
    %p75 = scmp.ne.s32.totalorder %s70, %s72
    %p76 = scmp.eq.s32.totalorder %s15, 0
    %p77 = por %p75, %p76
    %p78 = scmp.ne.s32.totalorder %s70, %s72
    %p79 = scmp.eq.s32.totalorder %s20, 1
    %p80 = por %p78, %p79
    %p81 = scmp.ne.s32.totalorder %s72, %s73
    %p82 = scmp.eq.s32.totalorder %s20, 0
    %p83 = por %p81, %p82
    %p84 = scmp.ne.s32.totalorder %s72, %s73
    %p85 = scmp.eq.s32.totalorder %s21, 1
    %p86 = por %p84, %p85
    %p88 = scmp.ne.s32.totalorder %s73, %s87
    %p89 = scmp.eq.s32.totalorder %s21, 0
    %p90 = por %p88, %p89
    %s92 = sadd.s32 %s91, 1
    %p95 = scmp.eq.s32.totalorder %s15, 1
    %p96 = scmp.ne.s32.totalorder %s91, %s93
    %p97 = scmp.eq.s32.totalorder %s15, 0
    %p98 = por %p96, %p97
    %p99 = scmp.ne.s32.totalorder %s91, %s93
    %p100 = scmp.eq.s32.totalorder %s20, 1
    %p101 = por %p99, %p100
    %p102 = scmp.ne.s32.totalorder %s93, %s94
    %p103 = scmp.eq.s32.totalorder %s20, 0
    %p104 = por %p102, %p103
    %p105 = scmp.ne.s32.totalorder %s93, %s94
    %p106 = scmp.eq.s32.totalorder %s21, 1
    %p107 = por %p105, %p106
    %p109 = scmp.ne.s32.totalorder %s94, %s108
    %p110 = scmp.eq.s32.totalorder %s21, 0
    %p111 = por %p109, %p110
    %s113 = sadd.s32 %s112, 1
    %p116 = scmp.eq.s32.totalorder %s15, 1
    %p117 = scmp.ne.s32.totalorder %s112, %s114
    %p118 = scmp.eq.s32.totalorder %s15, 0
    %p119 = por %p117, %p118
    %p120 = scmp.ne.s32.totalorder %s112, %s114
    %p121 = scmp.eq.s32.totalorder %s20, 1
    %p122 = por %p120, %p121
    %p123 = scmp.ne.s32.totalorder %s114, %s115
    %p124 = scmp.eq.s32.totalorder %s20, 0
    %p125 = por %p123, %p124
    %p126 = scmp.ne.s32.totalorder %s114, %s115
    %p127 = scmp.eq.s32.totalorder %s21, 1
    %p128 = por %p126, %p127
    %p130 = scmp.ne.s32.totalorder %s115, %s129
    %p131 = scmp.eq.s32.totalorder %s21, 0
    %p132 = por %p130, %p131
    %s134 = sadd.s32 %s133, 1
    %p137 = scmp.eq.s32.totalorder %s15, 1
    %p138 = scmp.ne.s32.totalorder %s133, %s135
    %p139 = scmp.eq.s32.totalorder %s15, 0
    %p140 = por %p138, %p139
    %p141 = scmp.ne.s32.totalorder %s133, %s135
    %p142 = scmp.eq.s32.totalorder %s20, 1
    %p143 = por %p141, %p142
    %p144 = scmp.ne.s32.totalorder %s135, %s136
    %p145 = scmp.eq.s32.totalorder %s20, 0
    %p146 = por %p144, %p145
    %p147 = scmp.ne.s32.totalorder %s135, %s136
    %p148 = scmp.eq.s32.totalorder %s21, 1
    %p149 = por %p147, %p148
    %p151 = scmp.ne.s32.totalorder %s136, %s150
    %p152 = scmp.eq.s32.totalorder %s21, 0
    %p153 = por %p151, %p152
    %s155 = sadd.s32 %s154, 1
    %p158 = scmp.eq.s32.totalorder %s15, 1
    %p159 = scmp.ne.s32.totalorder %s154, %s156
    %p160 = scmp.eq.s32.totalorder %s15, 0
    %p161 = por %p159, %p160
    %p162 = scmp.ne.s32.totalorder %s154, %s156
    %p163 = scmp.eq.s32.totalorder %s20, 1
    %p164 = por %p162, %p163
    %p165 = scmp.ne.s32.totalorder %s156, %s157
    %p166 = scmp.eq.s32.totalorder %s20, 0
    %p167 = por %p165, %p166
    %p168 = scmp.ne.s32.totalorder %s156, %s157
    %p169 = scmp.eq.s32.totalorder %s21, 1
    %p170 = por %p168, %p169
    %p172 = scmp.ne.s32.totalorder %s157, %s171
    %p173 = scmp.eq.s32.totalorder %s21, 0
    %p174 = por %p172, %p173
    %s176 = sadd.s32 %s175, 1
    %p179 = scmp.eq.s32.totalorder %s15, 1
    %p180 = scmp.ne.s32.totalorder %s175, %s177
    %p181 = scmp.eq.s32.totalorder %s15, 0
    %p182 = por %p180, %p181
    %p183 = scmp.ne.s32.totalorder %s175, %s177
    %p184 = scmp.eq.s32.totalorder %s20, 1
    %p185 = por %p183, %p184
    %p186 = scmp.ne.s32.totalorder %s177, %s178
    %p187 = scmp.eq.s32.totalorder %s20, 0
    %p188 = por %p186, %p187
    %p189 = scmp.ne.s32.totalorder %s177, %s178
    %p190 = scmp.eq.s32.totalorder %s21, 1
    %p191 = por %p189, %p190
    %p193 = scmp.ne.s32.totalorder %s178, %s192
    %p194 = scmp.eq.s32.totalorder %s21, 0
    %p195 = por %p193, %p194
    %s197 = sadd.s32 %s196, 1
    %p200 = scmp.eq.s32.totalorder %s15, 1
    %p201 = scmp.ne.s32.totalorder %s196, %s198
    %p202 = scmp.eq.s32.totalorder %s15, 0
    %p203 = por %p201, %p202
    %p204 = scmp.ne.s32.totalorder %s196, %s198
    %p205 = scmp.eq.s32.totalorder %s20, 1
    %p206 = por %p204, %p205
    %p207 = scmp.ne.s32.totalorder %s198, %s199
    %p208 = scmp.eq.s32.totalorder %s20, 0
    %p209 = por %p207, %p208
    %p210 = scmp.ne.s32.totalorder %s198, %s199
    %p211 = scmp.eq.s32.totalorder %s21, 1
    %p212 = por %p210, %p211
    %p214 = scmp.ne.s32.totalorder %s199, %s213
    %p215 = scmp.eq.s32.totalorder %s21, 0
    %p216 = por %p214, %p215
    %s217 = ssub.s32 %s15, %s22
    %p218 = scmp.eq.s32.totalorder %s217, 0
    %s220 = sadd.s32 %s219, 1
    %s221 = scalar_select %p218, %s219, %s220
    %p224 = pneg %p218
    %p225 = scmp.eq.s32.totalorder %s15, 1
    %p226 = por %p224, %p225
    %p227 = scmp.ne.s32.totalorder %s219, %s222
    %p228 = scmp.eq.s32.totalorder %s15, 0
    %p229 = por %p227, %p228
    %p230 = scmp.ne.s32.totalorder %s219, %s222
    %p231 = scmp.eq.s32.totalorder %s20, 1
    %p232 = por %p230, %p231
    %p233 = scmp.ne.s32.totalorder %s222, %s223
    %p234 = scmp.eq.s32.totalorder %s20, 0
    %p235 = por %p233, %p234
    %p236 = scmp.ne.s32.totalorder %s222, %s223
    %p237 = scmp.eq.s32.totalorder %s21, 1
    %p238 = por %p236, %p237
    %p240 = scmp.ne.s32.totalorder %s223, %s239
    %p241 = scmp.eq.s32.totalorder %s21, 0
    %p242 = por %p240, %p241
    %p243 = scmp.le.s32.totalorder 1, %s15
    %p244 = scmp.lt.s32.totalorder %s15, 3
    %p245 = pnand %p243, %p244
    %p246 = pneg %p245
    // Predicated region
    $region9: #{custom_model_forward.1} parent=5 // pred_check
      _
    $region10: #{custom_model_forward.1} parent=5 // pred_check_branch
      %248 = sbr.rel (%p245) target = $region12
    $region11: #{custom_model_forward.1} parent=5 // pred_region
      %s249 = ssub.s32 %s15, 1
      // Predicated region
      $region13: #{custom_model_forward.1} parent=11 // pred_check
        %p250 = pneg %p62
      $region14: #{custom_model_forward.1} parent=11 // pred_check_branch
        %252 = sbr.rel (%p250) target = $region16
      $region15: #{custom_model_forward.1} parent=11 // pred_region
        _
      $region16: #{custom_model_forward.1} parent=11 // pred_fallthru
        _
      // Predicated region
      $region17: #{custom_model_forward.1} parent=11 // pred_check
        %p253 = pneg %p83
      $region18: #{custom_model_forward.1} parent=11 // pred_check_branch
        %255 = sbr.rel (%p253) target = $region20
      $region19: #{custom_model_forward.1} parent=11 // pred_region
        _
      $region20: #{custom_model_forward.1} parent=11 // pred_fallthru
        _
      // Predicated region
      $region21: #{custom_model_forward.1} parent=11 // pred_check
        %p256 = pneg %p104
      $region22: #{custom_model_forward.1} parent=11 // pred_check_branch
        %258 = sbr.rel (%p256) target = $region24
      $region23: #{custom_model_forward.1} parent=11 // pred_region
        _
      $region24: #{custom_model_forward.1} parent=11 // pred_fallthru
        _
      // Predicated region
      $region25: #{custom_model_forward.1} parent=11 // pred_check
        %p259 = pneg %p125
      $region26: #{custom_model_forward.1} parent=11 // pred_check_branch
        %261 = sbr.rel (%p259) target = $region28
      $region27: #{custom_model_forward.1} parent=11 // pred_region
        _
      $region28: #{custom_model_forward.1} parent=11 // pred_fallthru
        _
      // Predicated region
      $region29: #{custom_model_forward.1} parent=11 // pred_check
        %p262 = pneg %p146
      $region30: #{custom_model_forward.1} parent=11 // pred_check_branch
        %264 = sbr.rel (%p262) target = $region32
      $region31: #{custom_model_forward.1} parent=11 // pred_region
        _
      $region32: #{custom_model_forward.1} parent=11 // pred_fallthru
        _
      // Predicated region
      $region33: #{custom_model_forward.1} parent=11 // pred_check
        %p265 = pneg %p167
      $region34: #{custom_model_forward.1} parent=11 // pred_check_branch
        %267 = sbr.rel (%p265) target = $region36
      $region35: #{custom_model_forward.1} parent=11 // pred_region
        _
      $region36: #{custom_model_forward.1} parent=11 // pred_fallthru
        _
      // Predicated region
      $region37: #{custom_model_forward.1} parent=11 // pred_check
        %p268 = pneg %p188
      $region38: #{custom_model_forward.1} parent=11 // pred_check_branch
        %270 = sbr.rel (%p268) target = $region40
      $region39: #{custom_model_forward.1} parent=11 // pred_region
        _
      $region40: #{custom_model_forward.1} parent=11 // pred_fallthru
        _
      // Predicated region
      $region41: #{custom_model_forward.1} parent=11 // pred_check
        %p271 = pneg %p209
      $region42: #{custom_model_forward.1} parent=11 // pred_check_branch
        %273 = sbr.rel (%p271) target = $region44
      $region43: #{custom_model_forward.1} parent=11 // pred_region
        _
      $region44: #{custom_model_forward.1} parent=11 // pred_fallthru
        _
    $region12: #{custom_model_forward.1} parent=5 // pred_fallthru
      _
    %p274 = scmp.lt.s32.totalorder %s15, 2
    // Predicated region
    $region45: #{custom_model_forward.1} parent=5 // pred_check
      %p275 = pneg %p274
    $region46: #{custom_model_forward.1} parent=5 // pred_check_branch
      %277 = sbr.rel (%p275) target = $region48
    $region47: #{custom_model_forward.1} parent=5 // pred_region
      // Predicated region
      $region49: #{custom_model_forward.1} parent=47 // pred_check
        %p278 = pneg %p35
      $region50: #{custom_model_forward.1} parent=47 // pred_check_branch
        %280 = sbr.rel (%p278) target = $region52
      $region51: #{custom_model_forward.1} parent=47 // pred_region
        %p281 = scmp.lt.s32.totalorder %s15, 1
        %s282 = scalar_select %p281, %s15, 1
        %s283 = smul.addr %s282, 54
        %s284 = smul.addr %s283, 8
        %s285 = scalar_lea.vmem %s0, %s284
      $region52: #{custom_model_forward.1} parent=47 // pred_fallthru
        _
    $region48: #{custom_model_forward.1} parent=5 // pred_fallthru
      _
    %p286 = scmp.le.s32.totalorder 1, %s15
    %p287 = scmp.lt.s32.totalorder %s15, 3
    %p288 = pnand %p286, %p287
    %p289 = pneg %p288
    // Predicated region
    $region53: #{custom_model_forward.1} parent=5 // pred_check
      _
    $region54: #{custom_model_forward.1} parent=5 // pred_check_branch
      %291 = sbr.rel (%p288) target = $region56
    $region55: #{custom_model_forward.1} parent=5 // pred_region
      %s292 = ssub.s32 %s15, 1
      %p293 = scmp.lt.s32.totalorder %s20, 1
      %s294 = scalar_select %p293, %s20, 1
      %s295 = smul.addr %s294, 54
      %s296 = smul.addr %s295, 8
      %s297 = scalar_lea.vmem %s0, %s296
      %p298 = pneg %p41
      %p299 = pneg %p38
      %p300 = pneg %p62
      %p301 = pneg %p59
      %p302 = pneg %p83
      %p303 = pneg %p80
      %p304 = pneg %p104
      %p305 = pneg %p101
      %p306 = pneg %p125
      %p307 = pneg %p122
      %p308 = pneg %p146
      %p309 = pneg %p143
      %p310 = pneg %p167
      %p311 = pneg %p164
      %p312 = pneg %p188
      %p313 = pneg %p185
      %p314 = pneg %p209
      %p315 = pneg %p206
      %p316 = pneg %p235
      %p317 = pneg %p232
      %p318 = scmp.lt.s32.totalorder %s20, 1
      %s319 = scalar_select %p318, %s20, 1
      %s320 = scalar_lea.vmem %s9, %s319
      %p321 = scmp.lt.s32.totalorder %s20, 1
      %s322 = scalar_select %p321, %s20, 1
      %s323 = smul.addr %s322, 54
      %s324 = smul.addr %s323, 8
      %s325 = scalar_lea.vmem %s0, %s324
      %p326 = scmp.lt.s32.totalorder %s20, 1
      %s327 = scalar_select %p326, %s20, 1
      %s328 = scalar_lea.vmem %s9, %s327
      %v330 = vld [vmem:[%s325] sm:$0xff]
      %v331 = vld [vmem:[%s325 + $0x8] sm:$0xff]
      %v332 = vld [vmem:[%s325 + $0x18] sm:$0xff]
      %v333 = vld [vmem:[%s325 + $0x20] sm:$0xff]
      %v334 = vld [vmem:[%s325 + $0x30] sm:$0xff]
      %v335 = vld [vmem:[%s325 + $0x38] sm:$0xff]
      %v336 = vld [vmem:[%s325 + $0x48] sm:$0xff]
      %v337 = vld [vmem:[%s325 + $0x50] sm:$0xff]
      %v338 = vld [vmem:[%s325 + $0x60] sm:$0xff]
      %v339 = vld [vmem:[%s325 + $0x68] sm:$0xff]
      %v340 = vld [vmem:[%s325 + $0x78] sm:$0xff]
      %v341 = vld [vmem:[%s325 + $0x80] sm:$0xff]
      %v342 = vld [vmem:[%s325 + $0x90] sm:$0xff]
      %v343 = vld [vmem:[%s325 + $0x98] sm:$0xff]
      %v344 = vld [vmem:[%s325 + $0xa8] sm:$0xff]
      %v345 = vld [vmem:[%s325 + $0xb0] sm:$0xff]
      %v346 = vld [vmem:[%s325 + $0xc0] sm:$0xff]
      %v347 = vld [vmem:[%s325 + $0xc8] sm:$0xff]
      %v348 = vld [vmem:[%s325 + $0xd8] sm:$0xff]
      %v349 = vld [vmem:[%s325 + $0xe0] sm:$0xff]
      %v350 = vld [vmem:[%s325 + $0xf0] sm:$0xff]
      %v351 = vld [vmem:[%s325 + $0xf8] sm:$0xff]
      %v352 = vld [vmem:[%s325 + $0x108] sm:$0xff]
      %v353 = vld [vmem:[%s325 + $0x110] sm:$0xff]
      %v354 = vld [vmem:[%s325 + $0x120] sm:$0xff]
      %v355 = vld [vmem:[%s325 + $0x128] sm:$0xff]
      %v356 = vld [vmem:[%s325 + $0x138] sm:$0xff]
      %v357 = vld [vmem:[%s325 + $0x140] sm:$0xff]
      %v358 = vld [vmem:[%s325 + $0x150] sm:$0xff]
      %v359 = vld [vmem:[%s325 + $0x158] sm:$0xff]
      %v360 = vld [vmem:[%s325 + $0x168] sm:$0xff]
      %v361 = vld [vmem:[%s325 + $0x170] sm:$0xff]
      %v362 = vpack.c.bf16 %v331, %v330
      %v363 = vpack.c.bf16 %v333, %v332
      %v364 = vpack.c.bf16 %v335, %v334
      %v365 = vpack.c.bf16 %v337, %v336
      %v366 = vpack.c.bf16 %v339, %v338
      %v367 = vpack.c.bf16 %v341, %v340
      %v368 = vpack.c.bf16 %v343, %v342
      %v369 = vpack.c.bf16 %v345, %v344
      %v370 = vpack.c.bf16 %v347, %v346
      %v371 = vpack.c.bf16 %v349, %v348
      %v372 = vpack.c.bf16 %v351, %v350
      %v373 = vpack.c.bf16 %v353, %v352
      %v374 = vpack.c.bf16 %v355, %v354
      %v375 = vpack.c.bf16 %v357, %v356
      %v376 = vpack.c.bf16 %v359, %v358
      %v377 = vpack.c.bf16 %v361, %v360
      %v378 = vld [vmem:[%s1] sm:$0x3]
      %v379 = vld [vmem:[%s325 + $0x1] sm:$0xff]
      %v380 = vld [vmem:[%s325 + $0x9] sm:$0xff]
      %v381 = vld [vmem:[%s325 + $0x19] sm:$0xff]
      %v382 = vld [vmem:[%s325 + $0x21] sm:$0xff]
      %v383 = vld [vmem:[%s325 + $0x31] sm:$0xff]
      %v384 = vld [vmem:[%s325 + $0x39] sm:$0xff]
      %v385 = vld [vmem:[%s325 + $0x49] sm:$0xff]
      %v386 = vld [vmem:[%s325 + $0x51] sm:$0xff]
      %v387 = vld [vmem:[%s325 + $0x61] sm:$0xff]
      %v388 = vld [vmem:[%s325 + $0x69] sm:$0xff]
      %v389 = vld [vmem:[%s325 + $0x79] sm:$0xff]
      %v390 = vld [vmem:[%s325 + $0x81] sm:$0xff]
      %v391 = vld [vmem:[%s325 + $0x91] sm:$0xff]
      %v392 = vld [vmem:[%s325 + $0x99] sm:$0xff]
      %v393 = vld [vmem:[%s325 + $0xa9] sm:$0xff]
      %v394 = vld [vmem:[%s325 + $0xb1] sm:$0xff]
      %v395 = vld [vmem:[%s325 + $0xc1] sm:$0xff]
      %v396 = vld [vmem:[%s325 + $0xc9] sm:$0xff]
      %v397 = vld [vmem:[%s325 + $0xd9] sm:$0xff]
      %v398 = vld [vmem:[%s325 + $0xe1] sm:$0xff]
      %v399 = vld [vmem:[%s325 + $0xf1] sm:$0xff]
      %v400 = vld [vmem:[%s325 + $0xf9] sm:$0xff]
      %v401 = vld [vmem:[%s325 + $0x109] sm:$0xff]
      %v402 = vld [vmem:[%s325 + $0x111] sm:$0xff]
      %v403 = vld [vmem:[%s325 + $0x121] sm:$0xff]
      %v404 = vld [vmem:[%s325 + $0x129] sm:$0xff]
      %v405 = vld [vmem:[%s325 + $0x139] sm:$0xff]
      %v406 = vld [vmem:[%s325 + $0x141] sm:$0xff]
      %v407 = vld [vmem:[%s325 + $0x151] sm:$0xff]
      %v408 = vld [vmem:[%s325 + $0x159] sm:$0xff]
      %v409 = vld [vmem:[%s325 + $0x169] sm:$0xff]
      %v410 = vld [vmem:[%s325 + $0x171] sm:$0xff]
      %v411 = vpack.c.bf16 %v380, %v379
      %v412 = vpack.c.bf16 %v382, %v381
      %v413 = vpack.c.bf16 %v384, %v383
      %v414 = vpack.c.bf16 %v386, %v385
      %v415 = vpack.c.bf16 %v388, %v387
      %v416 = vpack.c.bf16 %v390, %v389
      %v417 = vpack.c.bf16 %v392, %v391
      %v418 = vpack.c.bf16 %v394, %v393
      %v419 = vpack.c.bf16 %v396, %v395
      %v420 = vpack.c.bf16 %v398, %v397
      %v421 = vpack.c.bf16 %v400, %v399
      %v422 = vpack.c.bf16 %v402, %v401
      %v423 = vpack.c.bf16 %v404, %v403
      %v424 = vpack.c.bf16 %v406, %v405
      %v425 = vpack.c.bf16 %v408, %v407
      %v426 = vpack.c.bf16 %v410, %v409
      %s427 = scalar_lea.vmem %s1, 2
      %v428 = vld [vmem:[%s427] sm:$0x3]
      %vm429 = vcmask 23552
      %v431 = vsel %vm429, %v411, 0
      %v434 = vsel %vm429, %v412, 0
      %v437 = vsel %vm429, %v413, 0
      %v440 = vsel %vm429, %v414, 0
      %v443 = vsel %vm429, %v415, 0
      %v446 = vsel %vm429, %v416, 0
      %v449 = vsel %vm429, %v417, 0
      %v452 = vsel %vm429, %v418, 0
      %v455 = vsel %vm429, %v419, 0
      %v458 = vsel %vm429, %v420, 0
      %v461 = vsel %vm429, %v421, 0
      %v464 = vsel %vm429, %v422, 0
      %v467 = vsel %vm429, %v423, 0
      %v470 = vsel %vm429, %v424, 0
      %v473 = vsel %vm429, %v425, 0
      %v476 = vsel %vm429, %v426, 0
      %vm478 = vcmask 1040384
      %vm479 = vcmask 1041408
      %v480 = vsel %vm478, 4294967295, 65535
      %v481 = vsel %vm479, %v480, 0
      %v483 = vand.u32 %v428, %v481
      %485 = vmatprep.subr.bf16.mxu0 0
      %486 = vmatpush1.bf16.msra.mxu0 %v483
      %487 = vmatprep.subr.bf16.mxu0 0
      %488 = vmatpush1.bf16.msra.mxu0 0
      %489 = vmatprep.subr.bf16.mxu0 0
      %490 = vmatpush1.bf16.msra.mxu0 0
      %491 = vmatprep.subr.bf16.mxu0 0
      %492 = vmatpush1.bf16.msra.mxu0 0
      %493 = vmatprep.subr.bf16.mxu0 0
      %494 = vmatpush1.bf16.msra.mxu0 0
      %495 = vmatprep.subr.bf16.mxu0 0
      %496 = vmatpush1.bf16.msra.mxu0 0
      %497 = vmatprep.subr.bf16.mxu0 0
      %498 = vmatpush1.bf16.msra.mxu0 0
      %499 = vmatprep.subr.bf16.mxu0 0
      %500 = vmatpush1.bf16.msra.mxu0 0
      %501 = vmatprep.subr.bf16.mxu0 0
      %502 = vmatpush1.bf16.msra.mxu0 0
      %503 = vmatprep.subr.bf16.mxu0 0
      %504 = vmatpush1.bf16.msra.mxu0 0
      %505 = vmatprep.subr.bf16.mxu0 0
      %506 = vmatpush1.bf16.msra.mxu0 0
      %507 = vmatprep.subr.bf16.mxu0 0
      %508 = vmatpush1.bf16.msra.mxu0 0
      %509 = vmatprep.subr.bf16.mxu0 0
      %510 = vmatpush1.bf16.msra.mxu0 0
      %511 = vmatprep.subr.bf16.mxu0 0
      %512 = vmatpush1.bf16.msra.mxu0 0
      %513 = vmatprep.subr.bf16.mxu0 0
      %514 = vmatpush1.bf16.msra.mxu0 0
      %515 = vmatprep.subr.bf16.mxu0 0
      %516 = vmatpush1.bf16.msra.mxu0 0
      %517 = vmatprep.mubr.bf16.mxu0 0
      %518 = vmatmul.mubr.bf16.gmra.mrb[0].mxu0 %v431
      %v519 = vpop.f32.mrb[0].mxu0
      %v520 = vadd.f32 0.0, %v519
      %v521 = vpop.f32.mrb[0].mxu0
      %v522 = vpop.f32.mrb[0].mxu0
      %v523 = vadd.f32 0.0, %v522
      %v524 = vpop.f32.mrb[0].mxu0
      %525 = vmatprep.mubr.bf16.mxu0 0
      %526 = vmatmul.mubr.bf16.gmra.mrb[0].mxu0 %v434
      %v527 = vpop.f32.mrb[0].mxu0
      %v528 = vadd.f32 0.0, %v527
      %v529 = vpop.f32.mrb[0].mxu0
      %v530 = vpop.f32.mrb[0].mxu0
      %v531 = vadd.f32 0.0, %v530
      %v532 = vpop.f32.mrb[0].mxu0
      %533 = vmatprep.mubr.bf16.mxu0 0
      %534 = vmatmul.mubr.bf16.gmra.mrb[0].mxu0 %v437
      %v535 = vpop.f32.mrb[0].mxu0
      %v536 = vadd.f32 0.0, %v535
      %v537 = vpop.f32.mrb[0].mxu0
      %v538 = vpop.f32.mrb[0].mxu0
      %v539 = vadd.f32 0.0, %v538
      %v540 = vpop.f32.mrb[0].mxu0
      %541 = vmatprep.mubr.bf16.mxu0 0
      %542 = vmatmul.mubr.bf16.gmra.mrb[0].mxu0 %v440
      %v543 = vpop.f32.mrb[0].mxu0
      %v544 = vadd.f32 0.0, %v543
      %v545 = vpop.f32.mrb[0].mxu0
      %v546 = vpop.f32.mrb[0].mxu0
      %v547 = vadd.f32 0.0, %v546
      %v548 = vpop.f32.mrb[0].mxu0
      %549 = vmatprep.mubr.bf16.mxu0 0
      %550 = vmatmul.mubr.bf16.gmra.mrb[0].mxu0 %v443
      %v551 = vpop.f32.mrb[0].mxu0
      %v552 = vadd.f32 0.0, %v551
      %v553 = vpop.f32.mrb[0].mxu0
      %v554 = vpop.f32.mrb[0].mxu0
      %v555 = vadd.f32 0.0, %v554
      %v556 = vpop.f32.mrb[0].mxu0
      %557 = vmatprep.mubr.bf16.mxu0 0
      %558 = vmatmul.mubr.bf16.gmra.mrb[0].mxu0 %v446
      %v559 = vpop.f32.mrb[0].mxu0
      %v560 = vadd.f32 0.0, %v559
      %v561 = vpop.f32.mrb[0].mxu0
      %v562 = vpop.f32.mrb[0].mxu0
      %v563 = vadd.f32 0.0, %v562
      %v564 = vpop.f32.mrb[0].mxu0
      %565 = vmatprep.mubr.bf16.mxu0 0
      %566 = vmatmul.mubr.bf16.gmra.mrb[0].mxu0 %v449
      %v567 = vpop.f32.mrb[0].mxu0
      %v568 = vadd.f32 0.0, %v567
      %v569 = vpop.f32.mrb[0].mxu0
      %v570 = vpop.f32.mrb[0].mxu0
      %v571 = vadd.f32 0.0, %v570
      %v572 = vpop.f32.mrb[0].mxu0
      %573 = vmatprep.mubr.bf16.mxu0 0
      %574 = vmatmul.mubr.bf16.gmra.mrb[0].mxu0 %v452
      %v575 = vpop.f32.mrb[0].mxu0
      %v576 = vadd.f32 0.0, %v575
      %v577 = vpop.f32.mrb[0].mxu0
      %v578 = vpop.f32.mrb[0].mxu0
      %v579 = vadd.f32 0.0, %v578
      %v580 = vpop.f32.mrb[0].mxu0
      %581 = vmatprep.mubr.bf16.mxu0 0
      %582 = vmatmul.mubr.bf16.gmra.mrb[0].mxu0 %v455
      %v583 = vpop.f32.mrb[0].mxu0
      %v584 = vadd.f32 0.0, %v583
      %v585 = vpop.f32.mrb[0].mxu0
      %v586 = vpop.f32.mrb[0].mxu0
      %v587 = vadd.f32 0.0, %v586
      %v588 = vpop.f32.mrb[0].mxu0
      %589 = vmatprep.mubr.bf16.mxu0 0
      %590 = vmatmul.mubr.bf16.gmra.mrb[0].mxu0 %v458
      %v591 = vpop.f32.mrb[0].mxu0
      %v592 = vadd.f32 0.0, %v591
      %v593 = vpop.f32.mrb[0].mxu0
      %v594 = vpop.f32.mrb[0].mxu0
      %v595 = vadd.f32 0.0, %v594
      %v596 = vpop.f32.mrb[0].mxu0
      %597 = vmatprep.mubr.bf16.mxu0 0
      %598 = vmatmul.mubr.bf16.gmra.mrb[0].mxu0 %v461
      %v599 = vpop.f32.mrb[0].mxu0
      %v600 = vadd.f32 0.0, %v599
      %v601 = vpop.f32.mrb[0].mxu0
      %v602 = vpop.f32.mrb[0].mxu0
      %v603 = vadd.f32 0.0, %v602
      %v604 = vpop.f32.mrb[0].mxu0
      %605 = vmatprep.mubr.bf16.mxu0 0
      %606 = vmatmul.mubr.bf16.gmra.mrb[0].mxu0 %v464
      %v607 = vpop.f32.mrb[0].mxu0
      %v608 = vadd.f32 0.0, %v607
      %v609 = vpop.f32.mrb[0].mxu0
      %v610 = vpop.f32.mrb[0].mxu0
      %v611 = vadd.f32 0.0, %v610
      %v612 = vpop.f32.mrb[0].mxu0
      %613 = vmatprep.mubr.bf16.mxu0 0
      %614 = vmatmul.mubr.bf16.gmra.mrb[0].mxu0 %v467
      %v615 = vpop.f32.mrb[0].mxu0
      %v616 = vadd.f32 0.0, %v615
      %v617 = vpop.f32.mrb[0].mxu0
      %v618 = vpop.f32.mrb[0].mxu0
      %v619 = vadd.f32 0.0, %v618
      %v620 = vpop.f32.mrb[0].mxu0
      %621 = vmatprep.mubr.bf16.mxu0 0
      %622 = vmatmul.mubr.bf16.gmra.mrb[0].mxu0 %v470
      %v623 = vpop.f32.mrb[0].mxu0
      %v624 = vadd.f32 0.0, %v623
      %v625 = vpop.f32.mrb[0].mxu0
      %v626 = vpop.f32.mrb[0].mxu0
      %v627 = vadd.f32 0.0, %v626
      %v628 = vpop.f32.mrb[0].mxu0
      %629 = vmatprep.mubr.bf16.mxu0 0
      %630 = vmatmul.mubr.bf16.gmra.mrb[0].mxu0 %v473
      %v631 = vpop.f32.mrb[0].mxu0
      %v632 = vadd.f32 0.0, %v631
      %v633 = vpop.f32.mrb[0].mxu0
      %v634 = vpop.f32.mrb[0].mxu0
      %v635 = vadd.f32 0.0, %v634
      %v636 = vpop.f32.mrb[0].mxu0
      %637 = vmatprep.mubr.bf16.mxu0 0
      %638 = vmatmul.mubr.bf16.gmra.mrb[0].mxu0 %v476
      %v639 = vpop.f32.mrb[0].mxu0
      %v640 = vadd.f32 0.0, %v639
      %v641 = vpop.f32.mrb[0].mxu0
      %v642 = vpop.f32.mrb[0].mxu0
      %v643 = vadd.f32 0.0, %v642
      %v644 = vpop.f32.mrb[0].mxu0
      %645 = vdwg.mxu0
      %v647 = vsel %vm429, %v362, 0
      %v650 = vsel %vm429, %v363, 0
      %v653 = vsel %vm429, %v364, 0
      %v656 = vsel %vm429, %v365, 0
      %v659 = vsel %vm429, %v366, 0
      %v662 = vsel %vm429, %v367, 0
      %v665 = vsel %vm429, %v368, 0
      %v668 = vsel %vm429, %v369, 0
      %v671 = vsel %vm429, %v370, 0
      %v674 = vsel %vm429, %v371, 0
      %v677 = vsel %vm429, %v372, 0
      %v680 = vsel %vm429, %v373, 0
      %v683 = vsel %vm429, %v374, 0
      %v686 = vsel %vm429, %v375, 0
      %v689 = vsel %vm429, %v376, 0
      %v692 = vsel %vm429, %v377, 0
      %v695 = vand.u32 %v378, %v481
      %697 = vmatprep.subr.bf16.mxu0 0
      %698 = vmatpush1.bf16.msra.mxu0 %v695
      %699 = vmatprep.subr.bf16.mxu0 0
      %700 = vmatpush1.bf16.msra.mxu0 0
      %701 = vmatprep.subr.bf16.mxu0 0
      %702 = vmatpush1.bf16.msra.mxu0 0
      %703 = vmatprep.subr.bf16.mxu0 0
      %704 = vmatpush1.bf16.msra.mxu0 0
      %705 = vmatprep.subr.bf16.mxu0 0
      %706 = vmatpush1.bf16.msra.mxu0 0
      %707 = vmatprep.subr.bf16.mxu0 0
      %708 = vmatpush1.bf16.msra.mxu0 0
      %709 = vmatprep.subr.bf16.mxu0 0
      %710 = vmatpush1.bf16.msra.mxu0 0
      %711 = vmatprep.subr.bf16.mxu0 0
      %712 = vmatpush1.bf16.msra.mxu0 0
      %713 = vmatprep.subr.bf16.mxu0 0
      %714 = vmatpush1.bf16.msra.mxu0 0
      %715 = vmatprep.subr.bf16.mxu0 0
      %716 = vmatpush1.bf16.msra.mxu0 0
      %717 = vmatprep.subr.bf16.mxu0 0
      %718 = vmatpush1.bf16.msra.mxu0 0
      %719 = vmatprep.subr.bf16.mxu0 0
      %720 = vmatpush1.bf16.msra.mxu0 0
      %721 = vmatprep.subr.bf16.mxu0 0
      %722 = vmatpush1.bf16.msra.mxu0 0
      %723 = vmatprep.subr.bf16.mxu0 0
      %724 = vmatpush1.bf16.msra.mxu0 0
      %725 = vmatprep.subr.bf16.mxu0 0
      %726 = vmatpush1.bf16.msra.mxu0 0
      %727 = vmatprep.subr.bf16.mxu0 0
      %728 = vmatpush1.bf16.msra.mxu0 0
      %729 = vmatprep.mubr.bf16.mxu0 0
      %730 = vmatmul.mubr.bf16.gmra.mrb[0].mxu0 %v647
      %v731 = vpop.f32.mrb[0].mxu0
      %v732 = vadd.f32 %v520, %v731
      %v733 = vpop.f32.mrb[0].mxu0
      %v734 = vpop.f32.mrb[0].mxu0
      %v735 = vadd.f32 %v523, %v734
      %v736 = vpop.f32.mrb[0].mxu0
      %737 = vmatprep.mubr.bf16.mxu0 0
      %738 = vmatmul.mubr.bf16.gmra.mrb[0].mxu0 %v650
      %v739 = vpop.f32.mrb[0].mxu0
      %v740 = vadd.f32 %v528, %v739
      %v741 = vpop.f32.mrb[0].mxu0
      %v742 = vpop.f32.mrb[0].mxu0
      %v743 = vadd.f32 %v531, %v742
      %v744 = vpop.f32.mrb[0].mxu0
      %745 = vmatprep.mubr.bf16.mxu0 0
      %746 = vmatmul.mubr.bf16.gmra.mrb[0].mxu0 %v653
      %v747 = vpop.f32.mrb[0].mxu0
      %v748 = vadd.f32 %v536, %v747
      %v749 = vpop.f32.mrb[0].mxu0
      %v750 = vpop.f32.mrb[0].mxu0
      %v751 = vadd.f32 %v539, %v750
      %v752 = vpop.f32.mrb[0].mxu0
      %753 = vmatprep.mubr.bf16.mxu0 0
      %754 = vmatmul.mubr.bf16.gmra.mrb[0].mxu0 %v656
      %v755 = vpop.f32.mrb[0].mxu0
      %v756 = vadd.f32 %v544, %v755
      %v757 = vpop.f32.mrb[0].mxu0
      %v758 = vpop.f32.mrb[0].mxu0
      %v759 = vadd.f32 %v547, %v758
      %v760 = vpop.f32.mrb[0].mxu0
      %761 = vmatprep.mubr.bf16.mxu0 0
      %762 = vmatmul.mubr.bf16.gmra.mrb[0].mxu0 %v659
      %v763 = vpop.f32.mrb[0].mxu0
      %v764 = vadd.f32 %v552, %v763
      %v765 = vpop.f32.mrb[0].mxu0
      %v766 = vpop.f32.mrb[0].mxu0
      %v767 = vadd.f32 %v555, %v766
      %v768 = vpop.f32.mrb[0].mxu0
      %769 = vmatprep.mubr.bf16.mxu0 0
      %770 = vmatmul.mubr.bf16.gmra.mrb[0].mxu0 %v662
      %v771 = vpop.f32.mrb[0].mxu0
      %v772 = vadd.f32 %v560, %v771
      %v773 = vpop.f32.mrb[0].mxu0
      %v774 = vpop.f32.mrb[0].mxu0
      %v775 = vadd.f32 %v563, %v774
      %v776 = vpop.f32.mrb[0].mxu0
      %777 = vmatprep.mubr.bf16.mxu0 0
      %778 = vmatmul.mubr.bf16.gmra.mrb[0].mxu0 %v665
      %v779 = vpop.f32.mrb[0].mxu0
      %v780 = vadd.f32 %v568, %v779
      %v781 = vpop.f32.mrb[0].mxu0
      %v782 = vpop.f32.mrb[0].mxu0
      %v783 = vadd.f32 %v571, %v782
      %v784 = vpop.f32.mrb[0].mxu0
      %785 = vmatprep.mubr.bf16.mxu0 0
      %786 = vmatmul.mubr.bf16.gmra.mrb[0].mxu0 %v668
      %v787 = vpop.f32.mrb[0].mxu0
      %v788 = vadd.f32 %v576, %v787
      %v789 = vpop.f32.mrb[0].mxu0
      %v790 = vpop.f32.mrb[0].mxu0
      %v791 = vadd.f32 %v579, %v790
      %v792 = vpop.f32.mrb[0].mxu0
      %793 = vmatprep.mubr.bf16.mxu0 0
      %794 = vmatmul.mubr.bf16.gmra.mrb[0].mxu0 %v671
      %v795 = vpop.f32.mrb[0].mxu0
      %v796 = vadd.f32 %v584, %v795
      %v797 = vpop.f32.mrb[0].mxu0
      %v798 = vpop.f32.mrb[0].mxu0
      %v799 = vadd.f32 %v587, %v798
      %v800 = vpop.f32.mrb[0].mxu0
      %801 = vmatprep.mubr.bf16.mxu0 0
      %802 = vmatmul.mubr.bf16.gmra.mrb[0].mxu0 %v674
      %v803 = vpop.f32.mrb[0].mxu0
      %v804 = vadd.f32 %v592, %v803
      %v805 = vpop.f32.mrb[0].mxu0
      %v806 = vpop.f32.mrb[0].mxu0
      %v807 = vadd.f32 %v595, %v806
      %v808 = vpop.f32.mrb[0].mxu0
      %809 = vmatprep.mubr.bf16.mxu0 0
      %810 = vmatmul.mubr.bf16.gmra.mrb[0].mxu0 %v677
      %v811 = vpop.f32.mrb[0].mxu0
      %v812 = vadd.f32 %v600, %v811
      %v813 = vpop.f32.mrb[0].mxu0
      %v814 = vpop.f32.mrb[0].mxu0
      %v815 = vadd.f32 %v603, %v814
      %v816 = vpop.f32.mrb[0].mxu0
      %817 = vmatprep.mubr.bf16.mxu0 0
      %818 = vmatmul.mubr.bf16.gmra.mrb[0].mxu0 %v680
      %v819 = vpop.f32.mrb[0].mxu0
      %v820 = vadd.f32 %v608, %v819
      %v821 = vpop.f32.mrb[0].mxu0
      %v822 = vpop.f32.mrb[0].mxu0
      %v823 = vadd.f32 %v611, %v822
      %v824 = vpop.f32.mrb[0].mxu0
      %825 = vmatprep.mubr.bf16.mxu0 0
      %826 = vmatmul.mubr.bf16.gmra.mrb[0].mxu0 %v683
      %v827 = vpop.f32.mrb[0].mxu0
      %v828 = vadd.f32 %v616, %v827
      %v829 = vpop.f32.mrb[0].mxu0
      %v830 = vpop.f32.mrb[0].mxu0
      %v831 = vadd.f32 %v619, %v830
      %v832 = vpop.f32.mrb[0].mxu0
      %833 = vmatprep.mubr.bf16.mxu0 0
      %834 = vmatmul.mubr.bf16.gmra.mrb[0].mxu0 %v686
      %v835 = vpop.f32.mrb[0].mxu0
      %v836 = vadd.f32 %v624, %v835
      %v837 = vpop.f32.mrb[0].mxu0
      %v838 = vpop.f32.mrb[0].mxu0
      %v839 = vadd.f32 %v627, %v838
      %v840 = vpop.f32.mrb[0].mxu0
      %841 = vmatprep.mubr.bf16.mxu0 0
      %842 = vmatmul.mubr.bf16.gmra.mrb[0].mxu0 %v689
      %v843 = vpop.f32.mrb[0].mxu0
      %v844 = vadd.f32 %v632, %v843
      %v845 = vpop.f32.mrb[0].mxu0
      %v846 = vpop.f32.mrb[0].mxu0
      %v847 = vadd.f32 %v635, %v846
      %v848 = vpop.f32.mrb[0].mxu0
      %849 = vmatprep.mubr.bf16.mxu0 0
      %850 = vmatmul.mubr.bf16.gmra.mrb[0].mxu0 %v692
      %v851 = vpop.f32.mrb[0].mxu0
      %v852 = vadd.f32 %v640, %v851
      %v853 = vpop.f32.mrb[0].mxu0
      %v854 = vpop.f32.mrb[0].mxu0
      %v855 = vadd.f32 %v643, %v854
      %v856 = vpop.f32.mrb[0].mxu0
      %857 = vdwg.mxu0
      %v858 = vld [vmem:[%s325 + $0x2] sm:$0xff]
      %v859 = vld [vmem:[%s325 + $0xa] sm:$0xff]
      %v860 = vld [vmem:[%s325 + $0x1a] sm:$0xff]
      %v861 = vld [vmem:[%s325 + $0x22] sm:$0xff]
      %v862 = vld [vmem:[%s325 + $0x32] sm:$0xff]
      %v863 = vld [vmem:[%s325 + $0x3a] sm:$0xff]
      %v864 = vld [vmem:[%s325 + $0x4a] sm:$0xff]
      %v865 = vld [vmem:[%s325 + $0x52] sm:$0xff]
      %v866 = vld [vmem:[%s325 + $0x62] sm:$0xff]
      %v867 = vld [vmem:[%s325 + $0x6a] sm:$0xff]
      %v868 = vld [vmem:[%s325 + $0x7a] sm:$0xff]
      %v869 = vld [vmem:[%s325 + $0x82] sm:$0xff]
      %v870 = vld [vmem:[%s325 + $0x92] sm:$0xff]
      %v871 = vld [vmem:[%s325 + $0x9a] sm:$0xff]
      %v872 = vld [vmem:[%s325 + $0xaa] sm:$0xff]
      %v873 = vld [vmem:[%s325 + $0xb2] sm:$0xff]
      %v874 = vld [vmem:[%s325 + $0xc2] sm:$0xff]
      %v875 = vld [vmem:[%s325 + $0xca] sm:$0xff]
      %v876 = vld [vmem:[%s325 + $0xda] sm:$0xff]
      %v877 = vld [vmem:[%s325 + $0xe2] sm:$0xff]
      %v878 = vld [vmem:[%s325 + $0xf2] sm:$0xff]
      %v879 = vld [vmem:[%s325 + $0xfa] sm:$0xff]
      %v880 = vld [vmem:[%s325 + $0x10a] sm:$0xff]
      %v881 = vld [vmem:[%s325 + $0x112] sm:$0xff]
      %v882 = vld [vmem:[%s325 + $0x122] sm:$0xff]
      %v883 = vld [vmem:[%s325 + $0x12a] sm:$0xff]
      %v884 = vld [vmem:[%s325 + $0x13a] sm:$0xff]
      %v885 = vld [vmem:[%s325 + $0x142] sm:$0xff]
      %v886 = vld [vmem:[%s325 + $0x152] sm:$0xff]
      %v887 = vld [vmem:[%s325 + $0x15a] sm:$0xff]
      %v888 = vld [vmem:[%s325 + $0x16a] sm:$0xff]
      %v889 = vld [vmem:[%s325 + $0x172] sm:$0xff]
      %v890 = vpack.c.bf16 %v859, %v858
      %v891 = vpack.c.bf16 %v861, %v860
      %v892 = vpack.c.bf16 %v863, %v862
      %v893 = vpack.c.bf16 %v865, %v864
      %v894 = vpack.c.bf16 %v867, %v866
      %v895 = vpack.c.bf16 %v869, %v868
      %v896 = vpack.c.bf16 %v871, %v870
      %v897 = vpack.c.bf16 %v873, %v872
      %v898 = vpack.c.bf16 %v875, %v874
      %v899 = vpack.c.bf16 %v877, %v876
      %v900 = vpack.c.bf16 %v879, %v878
      %v901 = vpack.c.bf16 %v881, %v880
      %v902 = vpack.c.bf16 %v883, %v882
      %v903 = vpack.c.bf16 %v885, %v884
      %v904 = vpack.c.bf16 %v887, %v886
      %v905 = vpack.c.bf16 %v889, %v888
      %s906 = scalar_lea.vmem %s1, 4
      %v907 = vld [vmem:[%s906] sm:$0x3]
      %v909 = vsel %vm429, %v890, 0
      %v912 = vsel %vm429, %v891, 0
      %v915 = vsel %vm429, %v892, 0
      %v918 = vsel %vm429, %v893, 0
      %v921 = vsel %vm429, %v894, 0
      %v924 = vsel %vm429, %v895, 0
      %v927 = vsel %vm429, %v896, 0
      %v930 = vsel %vm429, %v897, 0
      %v933 = vsel %vm429, %v898, 0
      %v936 = vsel %vm429, %v899, 0
      %v939 = vsel %vm429, %v900, 0
      %v942 = vsel %vm429, %v901, 0
      %v945 = vsel %vm429, %v902, 0
      %v948 = vsel %vm429, %v903, 0
      %v951 = vsel %vm429, %v904, 0
      %v954 = vsel %vm429, %v905, 0
      %v957 = vand.u32 %v907, %v481
      %959 = vmatprep.subr.bf16.mxu0 0
      %960 = vmatpush1.bf16.msra.mxu0 %v957
      %961 = vmatprep.subr.bf16.mxu0 0
      %962 = vmatpush1.bf16.msra.mxu0 0
      %963 = vmatprep.subr.bf16.mxu0 0
      %964 = vmatpush1.bf16.msra.mxu0 0
      %965 = vmatprep.subr.bf16.mxu0 0
      %966 = vmatpush1.bf16.msra.mxu0 0
      %967 = vmatprep.subr.bf16.mxu0 0
      %968 = vmatpush1.bf16.msra.mxu0 0
      %969 = vmatprep.subr.bf16.mxu0 0
      %970 = vmatpush1.bf16.msra.mxu0 0
      %971 = vmatprep.subr.bf16.mxu0 0
      %972 = vmatpush1.bf16.msra.mxu0 0
      %973 = vmatprep.subr.bf16.mxu0 0
      %974 = vmatpush1.bf16.msra.mxu0 0
      %975 = vmatprep.subr.bf16.mxu0 0
      %976 = vmatpush1.bf16.msra.mxu0 0
      %977 = vmatprep.subr.bf16.mxu0 0
      %978 = vmatpush1.bf16.msra.mxu0 0
      %979 = vmatprep.subr.bf16.mxu0 0
      %980 = vmatpush1.bf16.msra.mxu0 0
      %981 = vmatprep.subr.bf16.mxu0 0
      %982 = vmatpush1.bf16.msra.mxu0 0
      %983 = vmatprep.subr.bf16.mxu0 0
      %984 = vmatpush1.bf16.msra.mxu0 0
      %985 = vmatprep.subr.bf16.mxu0 0
      %986 = vmatpush1.bf16.msra.mxu0 0
      %987 = vmatprep.subr.bf16.mxu0 0
      %988 = vmatpush1.bf16.msra.mxu0 0
      %989 = vmatprep.subr.bf16.mxu0 0
      %990 = vmatpush1.bf16.msra.mxu0 0
      %991 = vmatprep.mubr.bf16.mxu0 0
      %992 = vmatmul.mubr.bf16.gmra.mrb[0].mxu0 %v909
      %v993 = vpop.f32.mrb[0].mxu0
      %v994 = vadd.f32 0.0, %v993
      %v995 = vpop.f32.mrb[0].mxu0
      %v996 = vpop.f32.mrb[0].mxu0
      %v997 = vadd.f32 0.0, %v996
      %v998 = vpop.f32.mrb[0].mxu0
      %999 = vmatprep.mubr.bf16.mxu0 0
      %1000 = vmatmul.mubr.bf16.gmra.mrb[0].mxu0 %v912
      %v1001 = vpop.f32.mrb[0].mxu0
      %v1002 = vadd.f32 0.0, %v1001
      %v1003 = vpop.f32.mrb[0].mxu0
      %v1004 = vpop.f32.mrb[0].mxu0
      %v1005 = vadd.f32 0.0, %v1004
      %v1006 = vpop.f32.mrb[0].mxu0
      %1007 = vmatprep.mubr.bf16.mxu0 0
      %1008 = vmatmul.mubr.bf16.gmra.mrb[0].mxu0 %v915
      %v1009 = vpop.f32.mrb[0].mxu0
      %v1010 = vadd.f32 0.0, %v1009
      %v1011 = vpop.f32.mrb[0].mxu0
      %v1012 = vpop.f32.mrb[0].mxu0
      %v1013 = vadd.f32 0.0, %v1012
      %v1014 = vpop.f32.mrb[0].mxu0
      %1015 = vmatprep.mubr.bf16.mxu0 0
      %1016 = vmatmul.mubr.bf16.gmra.mrb[0].mxu0 %v918
      %v1017 = vpop.f32.mrb[0].mxu0
      %v1018 = vadd.f32 0.0, %v1017
      %v1019 = vpop.f32.mrb[0].mxu0
      %v1020 = vpop.f32.mrb[0].mxu0
      %v1021 = vadd.f32 0.0, %v1020
      %v1022 = vpop.f32.mrb[0].mxu0
      %1023 = vmatprep.mubr.bf16.mxu0 0
      %1024 = vmatmul.mubr.bf16.gmra.mrb[0].mxu0 %v921
      %v1025 = vpop.f32.mrb[0].mxu0
      %v1026 = vadd.f32 0.0, %v1025
      %v1027 = vpop.f32.mrb[0].mxu0
      %v1028 = vpop.f32.mrb[0].mxu0
      %v1029 = vadd.f32 0.0, %v1028
      %v1030 = vpop.f32.mrb[0].mxu0
      %1031 = vmatprep.mubr.bf16.mxu0 0
      %1032 = vmatmul.mubr.bf16.gmra.mrb[0].mxu0 %v924
      %v1033 = vpop.f32.mrb[0].mxu0
      %v1034 = vadd.f32 0.0, %v1033
      %v1035 = vpop.f32.mrb[0].mxu0
      %v1036 = vpop.f32.mrb[0].mxu0
      %v1037 = vadd.f32 0.0, %v1036
      %v1038 = vpop.f32.mrb[0].mxu0
      %1039 = vmatprep.mubr.bf16.mxu0 0
      %1040 = vmatmul.mubr.bf16.gmra.mrb[0].mxu0 %v927
      %v1041 = vpop.f32.mrb[0].mxu0
      %v1042 = vadd.f32 0.0, %v1041
      %v1043 = vpop.f32.mrb[0].mxu0
      %v1044 = vpop.f32.mrb[0].mxu0
      %v1045 = vadd.f32 0.0, %v1044
      %v1046 = vpop.f32.mrb[0].mxu0
      %1047 = vmatprep.mubr.bf16.mxu0 0
      %1048 = vmatmul.mubr.bf16.gmra.mrb[0].mxu0 %v930
      %v1049 = vpop.f32.mrb[0].mxu0
      %v1050 = vadd.f32 0.0, %v1049
      %v1051 = vpop.f32.mrb[0].mxu0
      %v1052 = vpop.f32.mrb[0].mxu0
      %v1053 = vadd.f32 0.0, %v1052
      %v1054 = vpop.f32.mrb[0].mxu0
      %1055 = vmatprep.mubr.bf16.mxu0 0
      %1056 = vmatmul.mubr.bf16.gmra.mrb[0].mxu0 %v933
      %v1057 = vpop.f32.mrb[0].mxu0
      %v1058 = vadd.f32 0.0, %v1057
      %v1059 = vpop.f32.mrb[0].mxu0
      %v1060 = vpop.f32.mrb[0].mxu0
      %v1061 = vadd.f32 0.0, %v1060
      %v1062 = vpop.f32.mrb[0].mxu0
      %1063 = vmatprep.mubr.bf16.mxu0 0
      %1064 = vmatmul.mubr.bf16.gmra.mrb[0].mxu0 %v936
      %v1065 = vpop.f32.mrb[0].mxu0
      %v1066 = vadd.f32 0.0, %v1065
      %v1067 = vpop.f32.mrb[0].mxu0
      %v1068 = vpop.f32.mrb[0].mxu0
      %v1069 = vadd.f32 0.0, %v1068
      %v1070 = vpop.f32.mrb[0].mxu0
      %1071 = vmatprep.mubr.bf16.mxu0 0
      %1072 = vmatmul.mubr.bf16.gmra.mrb[0].mxu0 %v939
      %v1073 = vpop.f32.mrb[0].mxu0
      %v1074 = vadd.f32 0.0, %v1073
      %v1075 = vpop.f32.mrb[0].mxu0
      %v1076 = vpop.f32.mrb[0].mxu0
      %v1077 = vadd.f32 0.0, %v1076
      %v1078 = vpop.f32.mrb[0].mxu0
      %1079 = vmatprep.mubr.bf16.mxu0 0
      %1080 = vmatmul.mubr.bf16.gmra.mrb[0].mxu0 %v942
      %v1081 = vpop.f32.mrb[0].mxu0
      %v1082 = vadd.f32 0.0, %v1081
      %v1083 = vpop.f32.mrb[0].mxu0
      %v1084 = vpop.f32.mrb[0].mxu0
      %v1085 = vadd.f32 0.0, %v1084
      %v1086 = vpop.f32.mrb[0].mxu0
      %1087 = vmatprep.mubr.bf16.mxu0 0
      %1088 = vmatmul.mubr.bf16.gmra.mrb[0].mxu0 %v945
      %v1089 = vpop.f32.mrb[0].mxu0
      %v1090 = vadd.f32 0.0, %v1089
      %v1091 = vpop.f32.mrb[0].mxu0
      %v1092 = vpop.f32.mrb[0].mxu0
      %v1093 = vadd.f32 0.0, %v1092
      %v1094 = vpop.f32.mrb[0].mxu0
      %1095 = vmatprep.mubr.bf16.mxu0 0
      %1096 = vmatmul.mubr.bf16.gmra.mrb[0].mxu0 %v948
      %v1097 = vpop.f32.mrb[0].mxu0
      %v1098 = vadd.f32 0.0, %v1097
      %v1099 = vpop.f32.mrb[0].mxu0
      %v1100 = vpop.f32.mrb[0].mxu0
      %v1101 = vadd.f32 0.0, %v1100
      %v1102 = vpop.f32.mrb[0].mxu0
      %1103 = vmatprep.mubr.bf16.mxu0 0
      %1104 = vmatmul.mubr.bf16.gmra.mrb[0].mxu0 %v951
      %v1105 = vpop.f32.mrb[0].mxu0
      %v1106 = vadd.f32 0.0, %v1105
      %v1107 = vpop.f32.mrb[0].mxu0
      %v1108 = vpop.f32.mrb[0].mxu0
      %v1109 = vadd.f32 0.0, %v1108
      %v1110 = vpop.f32.mrb[0].mxu0
      %1111 = vmatprep.mubr.bf16.mxu0 0
      %1112 = vmatmul.mubr.bf16.gmra.mrb[0].mxu0 %v954
      %v1113 = vpop.f32.mrb[0].mxu0
      %v1114 = vadd.f32 0.0, %v1113
      %v1115 = vpop.f32.mrb[0].mxu0
      %v1116 = vpop.f32.mrb[0].mxu0
      %v1117 = vadd.f32 0.0, %v1116
      %v1118 = vpop.f32.mrb[0].mxu0
      %1119 = vdwg.mxu0
      %v1120 = vadd.f32 %v732, %v994
      %v1121 = vadd.f32 %v735, %v997
      %v1122 = vadd.f32 %v740, %v1002
      %v1123 = vadd.f32 %v743, %v1005
      %v1124 = vadd.f32 %v748, %v1010
      %v1125 = vadd.f32 %v751, %v1013
      %v1126 = vadd.f32 %v756, %v1018
      %v1127 = vadd.f32 %v759, %v1021
      %v1128 = vadd.f32 %v764, %v1026
      %v1129 = vadd.f32 %v767, %v1029
      %v1130 = vadd.f32 %v772, %v1034
      %v1131 = vadd.f32 %v775, %v1037
      %v1132 = vadd.f32 %v780, %v1042
      %v1133 = vadd.f32 %v783, %v1045
      %v1134 = vadd.f32 %v788, %v1050
      %v1135 = vadd.f32 %v791, %v1053
      %v1136 = vadd.f32 %v796, %v1058
      %v1137 = vadd.f32 %v799, %v1061
      %v1138 = vadd.f32 %v804, %v1066
      %v1139 = vadd.f32 %v807, %v1069
      %v1140 = vadd.f32 %v812, %v1074
      %v1141 = vadd.f32 %v815, %v1077
      %v1142 = vadd.f32 %v820, %v1082
      %v1143 = vadd.f32 %v823, %v1085
      %v1144 = vadd.f32 %v828, %v1090
      %v1145 = vadd.f32 %v831, %v1093
      %v1146 = vadd.f32 %v836, %v1098
      %v1147 = vadd.f32 %v839, %v1101
      %v1148 = vadd.f32 %v844, %v1106
      %v1149 = vadd.f32 %v847, %v1109
      %v1150 = vadd.f32 %v852, %v1114
      %v1151 = vadd.f32 %v855, %v1117
      %s1152 = scalar_lea.vmem %s325, 24
      %v1153 = vld [vmem:[%s1152] sm:$0xff]
      %v1154 = vld [vmem:[%s1152 + $0x8] sm:$0xff]
      %v1155 = vld [vmem:[%s1152 + $0x18] sm:$0xff]
      %v1156 = vld [vmem:[%s1152 + $0x20] sm:$0xff]
      %v1157 = vld [vmem:[%s1152 + $0x30] sm:$0xff]
      %v1158 = vld [vmem:[%s1152 + $0x38] sm:$0xff]
      %v1159 = vld [vmem:[%s1152 + $0x48] sm:$0xff]
      %v1160 = vld [vmem:[%s1152 + $0x50] sm:$0xff]
      %v1161 = vld [vmem:[%s1152 + $0x60] sm:$0xff]
      %v1162 = vld [vmem:[%s1152 + $0x68] sm:$0xff]
      %v1163 = vld [vmem:[%s1152 + $0x78] sm:$0xff]
      %v1164 = vld [vmem:[%s1152 + $0x80] sm:$0xff]
      %v1165 = vld [vmem:[%s1152 + $0x90] sm:$0xff]
      %v1166 = vld [vmem:[%s1152 + $0x98] sm:$0xff]
      %v1167 = vld [vmem:[%s1152 + $0xa8] sm:$0xff]
      %v1168 = vld [vmem:[%s1152 + $0xb0] sm:$0xff]
      %v1169 = vld [vmem:[%s1152 + $0xc0] sm:$0xff]
      %v1170 = vld [vmem:[%s1152 + $0xc8] sm:$0xff]
      %v1171 = vld [vmem:[%s1152 + $0xd8] sm:$0xff]
      %v1172 = vld [vmem:[%s1152 + $0xe0] sm:$0xff]
      %v1173 = vld [vmem:[%s1152 + $0xf0] sm:$0xff]
      %v1174 = vld [vmem:[%s1152 + $0xf8] sm:$0xff]
      %v1175 = vld [vmem:[%s1152 + $0x108] sm:$0xff]
      %v1176 = vld [vmem:[%s1152 + $0x110] sm:$0xff]
      %v1177 = vld [vmem:[%s1152 + $0x120] sm:$0xff]
      %v1178 = vld [vmem:[%s1152 + $0x128] sm:$0xff]
      %v1179 = vld [vmem:[%s1152 + $0x138] sm:$0xff]
      %v1180 = vld [vmem:[%s1152 + $0x140] sm:$0xff]
      %v1181 = vld [vmem:[%s1152 + $0x150] sm:$0xff]
      %v1182 = vld [vmem:[%s1152 + $0x158] sm:$0xff]
      %v1183 = vld [vmem:[%s1152 + $0x168] sm:$0xff]
      %v1184 = vld [vmem:[%s1152 + $0x170] sm:$0xff]
      %v1185 = vpack.c.bf16 %v1154, %v1153
      %v1186 = vpack.c.bf16 %v1156, %v1155
      %v1187 = vpack.c.bf16 %v1158, %v1157
      %v1188 = vpack.c.bf16 %v1160, %v1159
      %v1189 = vpack.c.bf16 %v1162, %v1161
      %v1190 = vpack.c.bf16 %v1164, %v1163
      %v1191 = vpack.c.bf16 %v1166, %v1165
      %v1192 = vpack.c.bf16 %v1168, %v1167
      %v1193 = vpack.c.bf16 %v1170, %v1169
      %v1194 = vpack.c.bf16 %v1172, %v1171
      %v1195 = vpack.c.bf16 %v1174, %v1173
      %v1196 = vpack.c.bf16 %v1176, %v1175
      %v1197 = vpack.c.bf16 %v1178, %v1177
      %v1198 = vpack.c.bf16 %v1180, %v1179
      %v1199 = vpack.c.bf16 %v1182, %v1181
      %v1200 = vpack.c.bf16 %v1184, %v1183
      %s1201 = scalar_lea.vmem %s1, 6
      %v1202 = vld [vmem:[%s1201] sm:$0x3]
      %v1204 = vsel %vm429, %v1185, 0
      %v1207 = vsel %vm429, %v1186, 0
      %v1210 = vsel %vm429, %v1187, 0
      %v1213 = vsel %vm429, %v1188, 0
      %v1216 = vsel %vm429, %v1189, 0
      %v1219 = vsel %vm429, %v1190, 0
      %v1222 = vsel %vm429, %v1191, 0
      %v1225 = vsel %vm429, %v1192, 0
      %v1228 = vsel %vm429, %v1193, 0
      %v1231 = vsel %vm429, %v1194, 0
      %v1234 = vsel %vm429, %v1195, 0
      %v1237 = vsel %vm429, %v1196, 0
      %v1240 = vsel %vm429, %v1197, 0
      %v1243 = vsel %vm429, %v1198, 0
      %v1246 = vsel %vm429, %v1199, 0
      %v1249 = vsel %vm429, %v1200, 0
      %v1252 = vand.u32 %v1202, %v481
      %1254 = vmatprep.subr.bf16.mxu0 0
      %1255 = vmatpush1.bf16.msra.mxu0 %v1252
      %1256 = vmatprep.subr.bf16.mxu0 0
      %1257 = vmatpush1.bf16.msra.mxu0 0
      %1258 = vmatprep.subr.bf16.mxu0 0
      %1259 = vmatpush1.bf16.msra.mxu0 0
      %1260 = vmatprep.subr.bf16.mxu0 0
      %1261 = vmatpush1.bf16.msra.mxu0 0
      %1262 = vmatprep.subr.bf16.mxu0 0
      %1263 = vmatpush1.bf16.msra.mxu0 0
      %1264 = vmatprep.subr.bf16.mxu0 0
      %1265 = vmatpush1.bf16.msra.mxu0 0
      %1266 = vmatprep.subr.bf16.mxu0 0
      %1267 = vmatpush1.bf16.msra.mxu0 0
      %1268 = vmatprep.subr.bf16.mxu0 0
      %1269 = vmatpush1.bf16.msra.mxu0 0
      %1270 = vmatprep.subr.bf16.mxu0 0
      %1271 = vmatpush1.bf16.msra.mxu0 0
      %1272 = vmatprep.subr.bf16.mxu0 0
      %1273 = vmatpush1.bf16.msra.mxu0 0
      %1274 = vmatprep.subr.bf16.mxu0 0
      %1275 = vmatpush1.bf16.msra.mxu0 0
      %1276 = vmatprep.subr.bf16.mxu0 0
      %1277 = vmatpush1.bf16.msra.mxu0 0
      %1278 = vmatprep.subr.bf16.mxu0 0
      %1279 = vmatpush1.bf16.msra.mxu0 0
      %1280 = vmatprep.subr.bf16.mxu0 0
      %1281 = vmatpush1.bf16.msra.mxu0 0
      %1282 = vmatprep.subr.bf16.mxu0 0
      %1283 = vmatpush1.bf16.msra.mxu0 0
      %1284 = vmatprep.subr.bf16.mxu0 0
      %1285 = vmatpush1.bf16.msra.mxu0 0
      %1286 = vmatprep.mubr.bf16.mxu0 0
      %1287 = vmatmul.mubr.bf16.gmra.mrb[0].mxu0 %v1204
      %v1288 = vpop.f32.mrb[0].mxu0
      %v1289 = vadd.f32 0.0, %v1288
      %v1290 = vpop.f32.mrb[0].mxu0
      %v1291 = vpop.f32.mrb[0].mxu0
      %v1292 = vadd.f32 0.0, %v1291
      %v1293 = vpop.f32.mrb[0].mxu0
      %1294 = vmatprep.mubr.bf16.mxu0 0
      %1295 = vmatmul.mubr.bf16.gmra.mrb[0].mxu0 %v1207
      %v1296 = vpop.f32.mrb[0].mxu0
      %v1297 = vadd.f32 0.0, %v1296
      %v1298 = vpop.f32.mrb[0].mxu0
      %v1299 = vpop.f32.mrb[0].mxu0
      %v1300 = vadd.f32 0.0, %v1299
      %v1301 = vpop.f32.mrb[0].mxu0
      %1302 = vmatprep.mubr.bf16.mxu0 0
      %1303 = vmatmul.mubr.bf16.gmra.mrb[0].mxu0 %v1210
      %v1304 = vpop.f32.mrb[0].mxu0
      %v1305 = vadd.f32 0.0, %v1304
      %v1306 = vpop.f32.mrb[0].mxu0
      %v1307 = vpop.f32.mrb[0].mxu0
      %v1308 = vadd.f32 0.0, %v1307
      %v1309 = vpop.f32.mrb[0].mxu0
      %1310 = vmatprep.mubr.bf16.mxu0 0
      %1311 = vmatmul.mubr.bf16.gmra.mrb[0].mxu0 %v1213
      %v1312 = vpop.f32.mrb[0].mxu0
      %v1313 = vadd.f32 0.0, %v1312
      %v1314 = vpop.f32.mrb[0].mxu0
      %v1315 = vpop.f32.mrb[0].mxu0
      %v1316 = vadd.f32 0.0, %v1315
      %v1317 = vpop.f32.mrb[0].mxu0
      %1318 = vmatprep.mubr.bf16.mxu0 0
      %1319 = vmatmul.mubr.bf16.gmra.mrb[0].mxu0 %v1216
      %v1320 = vpop.f32.mrb[0].mxu0
      %v1321 = vadd.f32 0.0, %v1320
      %v1322 = vpop.f32.mrb[0].mxu0
      %v1323 = vpop.f32.mrb[0].mxu0
      %v1324 = vadd.f32 0.0, %v1323
      %v1325 = vpop.f32.mrb[0].mxu0
      %1326 = vmatprep.mubr.bf16.mxu0 0
      %1327 = vmatmul.mubr.bf16.gmra.mrb[0].mxu0 %v1219
      %v1328 = vpop.f32.mrb[0].mxu0
      %v1329 = vadd.f32 0.0, %v1328
      %v1330 = vpop.f32.mrb[0].mxu0
      %v1331 = vpop.f32.mrb[0].mxu0
      %v1332 = vadd.f32 0.0, %v1331
      %v1333 = vpop.f32.mrb[0].mxu0
      %1334 = vmatprep.mubr.bf16.mxu0 0
      %1335 = vmatmul.mubr.bf16.gmra.mrb[0].mxu0 %v1222
      %v1336 = vpop.f32.mrb[0].mxu0
      %v1337 = vadd.f32 0.0, %v1336
      %v1338 = vpop.f32.mrb[0].mxu0
      %v1339 = vpop.f32.mrb[0].mxu0
      %v1340 = vadd.f32 0.0, %v1339
      %v1341 = vpop.f32.mrb[0].mxu0
      %1342 = vmatprep.mubr.bf16.mxu0 0
      %1343 = vmatmul.mubr.bf16.gmra.mrb[0].mxu0 %v1225
      %v1344 = vpop.f32.mrb[0].mxu0
      %v1345 = vadd.f32 0.0, %v1344
      %v1346 = vpop.f32.mrb[0].mxu0
      %v1347 = vpop.f32.mrb[0].mxu0
      %v1348 = vadd.f32 0.0, %v1347
      %v1349 = vpop.f32.mrb[0].mxu0
      %1350 = vmatprep.mubr.bf16.mxu0 0
      %1351 = vmatmul.mubr.bf16.gmra.mrb[0].mxu0 %v1228
      %v1352 = vpop.f32.mrb[0].mxu0
      %v1353 = vadd.f32 0.0, %v1352
      %v1354 = vpop.f32.mrb[0].mxu0
      %v1355 = vpop.f32.mrb[0].mxu0
      %v1356 = vadd.f32 0.0, %v1355
      %v1357 = vpop.f32.mrb[0].mxu0
      %1358 = vmatprep.mubr.bf16.mxu0 0
      %1359 = vmatmul.mubr.bf16.gmra.mrb[0].mxu0 %v1231
      %v1360 = vpop.f32.mrb[0].mxu0
      %v1361 = vadd.f32 0.0, %v1360
      %v1362 = vpop.f32.mrb[0].mxu0
      %v1363 = vpop.f32.mrb[0].mxu0
      %v1364 = vadd.f32 0.0, %v1363
      %v1365 = vpop.f32.mrb[0].mxu0
      %1366 = vmatprep.mubr.bf16.mxu0 0
      %1367 = vmatmul.mubr.bf16.gmra.mrb[0].mxu0 %v1234
      %v1368 = vpop.f32.mrb[0].mxu0
      %v1369 = vadd.f32 0.0, %v1368
      %v1370 = vpop.f32.mrb[0].mxu0
      %v1371 = vpop.f32.mrb[0].mxu0
      %v1372 = vadd.f32 0.0, %v1371
      %v1373 = vpop.f32.mrb[0].mxu0
      %1374 = vmatprep.mubr.bf16.mxu0 0
      %1375 = vmatmul.mubr.bf16.gmra.mrb[0].mxu0 %v1237
      %v1376 = vpop.f32.mrb[0].mxu0
      %v1377 = vadd.f32 0.0, %v1376
      %v1378 = vpop.f32.mrb[0].mxu0
      %v1379 = vpop.f32.mrb[0].mxu0
      %v1380 = vadd.f32 0.0, %v1379
      %v1381 = vpop.f32.mrb[0].mxu0
      %1382 = vmatprep.mubr.bf16.mxu0 0
      %1383 = vmatmul.mubr.bf16.gmra.mrb[0].mxu0 %v1240
      %v1384 = vpop.f32.mrb[0].mxu0
      %v1385 = vadd.f32 0.0, %v1384
      %v1386 = vpop.f32.mrb[0].mxu0
      %v1387 = vpop.f32.mrb[0].mxu0
      %v1388 = vadd.f32 0.0, %v1387
      %v1389 = vpop.f32.mrb[0].mxu0
      %1390 = vmatprep.mubr.bf16.mxu0 0
      %1391 = vmatmul.mubr.bf16.gmra.mrb[0].mxu0 %v1243
      %v1392 = vpop.f32.mrb[0].mxu0
      %v1393 = vadd.f32 0.0, %v1392
      %v1394 = vpop.f32.mrb[0].mxu0
      %v1395 = vpop.f32.mrb[0].mxu0
      %v1396 = vadd.f32 0.0, %v1395
      %v1397 = vpop.f32.mrb[0].mxu0
      %1398 = vmatprep.mubr.bf16.mxu0 0
      %1399 = vmatmul.mubr.bf16.gmra.mrb[0].mxu0 %v1246
      %v1400 = vpop.f32.mrb[0].mxu0
      %v1401 = vadd.f32 0.0, %v1400
      %v1402 = vpop.f32.mrb[0].mxu0
      %v1403 = vpop.f32.mrb[0].mxu0
      %v1404 = vadd.f32 0.0, %v1403
      %v1405 = vpop.f32.mrb[0].mxu0
      %1406 = vmatprep.mubr.bf16.mxu0 0
      %1407 = vmatmul.mubr.bf16.gmra.mrb[0].mxu0 %v1249
      %v1408 = vpop.f32.mrb[0].mxu0
      %v1409 = vadd.f32 0.0, %v1408
      %v1410 = vpop.f32.mrb[0].mxu0
      %v1411 = vpop.f32.mrb[0].mxu0
      %v1412 = vadd.f32 0.0, %v1411
      %v1413 = vpop.f32.mrb[0].mxu0
      %1414 = vdwg.mxu0
      %v1415 = vadd.f32 %v1120, %v1289
      %v1416 = vadd.f32 %v1121, %v1292
      %v1417 = vadd.f32 %v1122, %v1297
      %v1418 = vadd.f32 %v1123, %v1300
      %v1419 = vadd.f32 %v1124, %v1305
      %v1420 = vadd.f32 %v1125, %v1308
      %v1421 = vadd.f32 %v1126, %v1313
      %v1422 = vadd.f32 %v1127, %v1316
      %v1423 = vadd.f32 %v1128, %v1321
      %v1424 = vadd.f32 %v1129, %v1324
      %v1425 = vadd.f32 %v1130, %v1329
      %v1426 = vadd.f32 %v1131, %v1332
      %v1427 = vadd.f32 %v1132, %v1337
      %v1428 = vadd.f32 %v1133, %v1340
      %v1429 = vadd.f32 %v1134, %v1345
      %v1430 = vadd.f32 %v1135, %v1348
      %v1431 = vadd.f32 %v1136, %v1353
      %v1432 = vadd.f32 %v1137, %v1356
      %v1433 = vadd.f32 %v1138, %v1361
      %v1434 = vadd.f32 %v1139, %v1364
      %v1435 = vadd.f32 %v1140, %v1369
      %v1436 = vadd.f32 %v1141, %v1372
      %v1437 = vadd.f32 %v1142, %v1377
      %v1438 = vadd.f32 %v1143, %v1380
      %v1439 = vadd.f32 %v1144, %v1385
      %v1440 = vadd.f32 %v1145, %v1388
      %v1441 = vadd.f32 %v1146, %v1393
      %v1442 = vadd.f32 %v1147, %v1396
      %v1443 = vadd.f32 %v1148, %v1401
      %v1444 = vadd.f32 %v1149, %v1404
      %v1445 = vadd.f32 %v1150, %v1409
      %v1446 = vadd.f32 %v1151, %v1412
      %v1447 = vld [vmem:[%s1152 + $0x1] sm:$0xff]
      %v1448 = vld [vmem:[%s1152 + $0x9] sm:$0xff]
      %v1449 = vld [vmem:[%s1152 + $0x19] sm:$0xff]
      %v1450 = vld [vmem:[%s1152 + $0x21] sm:$0xff]
      %v1451 = vld [vmem:[%s1152 + $0x31] sm:$0xff]
      %v1452 = vld [vmem:[%s1152 + $0x39] sm:$0xff]
      %v1453 = vld [vmem:[%s1152 + $0x49] sm:$0xff]
      %v1454 = vld [vmem:[%s1152 + $0x51] sm:$0xff]
      %v1455 = vld [vmem:[%s1152 + $0x61] sm:$0xff]
      %v1456 = vld [vmem:[%s1152 + $0x69] sm:$0xff]
      %v1457 = vld [vmem:[%s1152 + $0x79] sm:$0xff]
      %v1458 = vld [vmem:[%s1152 + $0x81] sm:$0xff]
      %v1459 = vld [vmem:[%s1152 + $0x91] sm:$0xff]
      %v1460 = vld [vmem:[%s1152 + $0x99] sm:$0xff]
      %v1461 = vld [vmem:[%s1152 + $0xa9] sm:$0xff]
      %v1462 = vld [vmem:[%s1152 + $0xb1] sm:$0xff]
      %v1463 = vld [vmem:[%s1152 + $0xc1] sm:$0xff]
      %v1464 = vld [vmem:[%s1152 + $0xc9] sm:$0xff]
      %v1465 = vld [vmem:[%s1152 + $0xd9] sm:$0xff]
      %v1466 = vld [vmem:[%s1152 + $0xe1] sm:$0xff]
      %v1467 = vld [vmem:[%s1152 + $0xf1] sm:$0xff]
      %v1468 = vld [vmem:[%s1152 + $0xf9] sm:$0xff]
      %v1469 = vld [vmem:[%s1152 + $0x109] sm:$0xff]
      %v1470 = vld [vmem:[%s1152 + $0x111] sm:$0xff]
      %v1471 = vld [vmem:[%s1152 + $0x121] sm:$0xff]
      %v1472 = vld [vmem:[%s1152 + $0x129] sm:$0xff]
      %v1473 = vld [vmem:[%s1152 + $0x139] sm:$0xff]
      %v1474 = vld [vmem:[%s1152 + $0x141] sm:$0xff]
      %v1475 = vld [vmem:[%s1152 + $0x151] sm:$0xff]
      %v1476 = vld [vmem:[%s1152 + $0x159] sm:$0xff]
      %v1477 = vld [vmem:[%s1152 + $0x169] sm:$0xff]
      %v1478 = vld [vmem:[%s1152 + $0x171] sm:$0xff]
      %v1479 = vpack.c.bf16 %v1448, %v1447
      %v1480 = vpack.c.bf16 %v1450, %v1449
      %v1481 = vpack.c.bf16 %v1452, %v1451
      %v1482 = vpack.c.bf16 %v1454, %v1453
      %v1483 = vpack.c.bf16 %v1456, %v1455
      %v1484 = vpack.c.bf16 %v1458, %v1457
      %v1485 = vpack.c.bf16 %v1460, %v1459
      %v1486 = vpack.c.bf16 %v1462, %v1461
      %v1487 = vpack.c.bf16 %v1464, %v1463
      %v1488 = vpack.c.bf16 %v1466, %v1465
      %v1489 = vpack.c.bf16 %v1468, %v1467
      %v1490 = vpack.c.bf16 %v1470, %v1469
      %v1491 = vpack.c.bf16 %v1472, %v1471
      %v1492 = vpack.c.bf16 %v1474, %v1473
      %v1493 = vpack.c.bf16 %v1476, %v1475
      %v1494 = vpack.c.bf16 %v1478, %v1477
      %s1495 = scalar_lea.vmem %s1, 8
      %v1496 = vld [vmem:[%s1495] sm:$0x3]
      %v1498 = vsel %vm429, %v1479, 0
      %v1501 = vsel %vm429, %v1480, 0
      %v1504 = vsel %vm429, %v1481, 0
      %v1507 = vsel %vm429, %v1482, 0
      %v1510 = vsel %vm429, %v1483, 0
      %v1513 = vsel %vm429, %v1484, 0
      %v1516 = vsel %vm429, %v1485, 0
      %v1519 = vsel %vm429, %v1486, 0
      %v1522 = vsel %vm429, %v1487, 0
      %v1525 = vsel %vm429, %v1488, 0
      %v1528 = vsel %vm429, %v1489, 0
      %v1531 = vsel %vm429, %v1490, 0
      %v1534 = vsel %vm429, %v1491, 0
      %v1537 = vsel %vm429, %v1492, 0
      %v1540 = vsel %vm429, %v1493, 0
      %v1543 = vsel %vm429, %v1494, 0
      %v1546 = vand.u32 %v1496, %v481
      %1548 = vmatprep.subr.bf16.mxu0 0
      %1549 = vmatpush1.bf16.msra.mxu0 %v1546
      %1550 = vmatprep.subr.bf16.mxu0 0
      %1551 = vmatpush1.bf16.msra.mxu0 0
      %1552 = vmatprep.subr.bf16.mxu0 0
      %1553 = vmatpush1.bf16.msra.mxu0 0
      %1554 = vmatprep.subr.bf16.mxu0 0
      %1555 = vmatpush1.bf16.msra.mxu0 0
      %1556 = vmatprep.subr.bf16.mxu0 0
      %1557 = vmatpush1.bf16.msra.mxu0 0
      %1558 = vmatprep.subr.bf16.mxu0 0
      %1559 = vmatpush1.bf16.msra.mxu0 0
      %1560 = vmatprep.subr.bf16.mxu0 0
      %1561 = vmatpush1.bf16.msra.mxu0 0
      %1562 = vmatprep.subr.bf16.mxu0 0
      %1563 = vmatpush1.bf16.msra.mxu0 0
      %1564 = vmatprep.subr.bf16.mxu0 0
      %1565 = vmatpush1.bf16.msra.mxu0 0
      %1566 = vmatprep.subr.bf16.mxu0 0
      %1567 = vmatpush1.bf16.msra.mxu0 0
      %1568 = vmatprep.subr.bf16.mxu0 0
      %1569 = vmatpush1.bf16.msra.mxu0 0
      %1570 = vmatprep.subr.bf16.mxu0 0
      %1571 = vmatpush1.bf16.msra.mxu0 0
      %1572 = vmatprep.subr.bf16.mxu0 0
      %1573 = vmatpush1.bf16.msra.mxu0 0
      %1574 = vmatprep.subr.bf16.mxu0 0
      %1575 = vmatpush1.bf16.msra.mxu0 0
      %1576 = vmatprep.subr.bf16.mxu0 0
      %1577 = vmatpush1.bf16.msra.mxu0 0
      %1578 = vmatprep.subr.bf16.mxu0 0
      %1579 = vmatpush1.bf16.msra.mxu0 0
      %1580 = vmatprep.mubr.bf16.mxu0 0
      %1581 = vmatmul.mubr.bf16.gmra.mrb[0].mxu0 %v1498
      %v1582 = vpop.f32.mrb[0].mxu0
      %v1583 = vadd.f32 0.0, %v1582
      %v1584 = vpop.f32.mrb[0].mxu0
      %v1585 = vpop.f32.mrb[0].mxu0
      %v1586 = vadd.f32 0.0, %v1585
      %v1587 = vpop.f32.mrb[0].mxu0
      %1588 = vmatprep.mubr.bf16.mxu0 0
      %1589 = vmatmul.mubr.bf16.gmra.mrb[0].mxu0 %v1501
      %v1590 = vpop.f32.mrb[0].mxu0
      %v1591 = vadd.f32 0.0, %v1590
      %v1592 = vpop.f32.mrb[0].mxu0
      %v1593 = vpop.f32.mrb[0].mxu0
      %v1594 = vadd.f32 0.0, %v1593
      %v1595 = vpop.f32.mrb[0].mxu0
      %1596 = vmatprep.mubr.bf16.mxu0 0
      %1597 = vmatmul.mubr.bf16.gmra.mrb[0].mxu0 %v1504
      %v1598 = vpop.f32.mrb[0].mxu0
      %v1599 = vadd.f32 0.0, %v1598
      %v1600 = vpop.f32.mrb[0].mxu0
      %v1601 = vpop.f32.mrb[0].mxu0
      %v1602 = vadd.f32 0.0, %v1601
      %v1603 = vpop.f32.mrb[0].mxu0
      %1604 = vmatprep.mubr.bf16.mxu0 0
      %1605 = vmatmul.mubr.bf16.gmra.mrb[0].mxu0 %v1507
      %v1606 = vpop.f32.mrb[0].mxu0
      %v1607 = vadd.f32 0.0, %v1606
      %v1608 = vpop.f32.mrb[0].mxu0
      %v1609 = vpop.f32.mrb[0].mxu0
      %v1610 = vadd.f32 0.0, %v1609
      %v1611 = vpop.f32.mrb[0].mxu0
      %1612 = vmatprep.mubr.bf16.mxu0 0
      %1613 = vmatmul.mubr.bf16.gmra.mrb[0].mxu0 %v1510
      %v1614 = vpop.f32.mrb[0].mxu0
      %v1615 = vadd.f32 0.0, %v1614
      %v1616 = vpop.f32.mrb[0].mxu0
      %v1617 = vpop.f32.mrb[0].mxu0
      %v1618 = vadd.f32 0.0, %v1617
      %v1619 = vpop.f32.mrb[0].mxu0
      %1620 = vmatprep.mubr.bf16.mxu0 0
      %1621 = vmatmul.mubr.bf16.gmra.mrb[0].mxu0 %v1513
      %v1622 = vpop.f32.mrb[0].mxu0
      %v1623 = vadd.f32 0.0, %v1622
      %v1624 = vpop.f32.mrb[0].mxu0
      %v1625 = vpop.f32.mrb[0].mxu0
      %v1626 = vadd.f32 0.0, %v1625
      %v1627 = vpop.f32.mrb[0].mxu0
      %1628 = vmatprep.mubr.bf16.mxu0 0
      %1629 = vmatmul.mubr.bf16.gmra.mrb[0].mxu0 %v1516
      %v1630 = vpop.f32.mrb[0].mxu0
      %v1631 = vadd.f32 0.0, %v1630
      %v1632 = vpop.f32.mrb[0].mxu0
      %v1633 = vpop.f32.mrb[0].mxu0
      %v1634 = vadd.f32 0.0, %v1633
      %v1635 = vpop.f32.mrb[0].mxu0
      %1636 = vmatprep.mubr.bf16.mxu0 0
      %1637 = vmatmul.mubr.bf16.gmra.mrb[0].mxu0 %v1519
      %v1638 = vpop.f32.mrb[0].mxu0
      %v1639 = vadd.f32 0.0, %v1638
      %v1640 = vpop.f32.mrb[0].mxu0
      %v1641 = vpop.f32.mrb[0].mxu0
      %v1642 = vadd.f32 0.0, %v1641
      %v1643 = vpop.f32.mrb[0].mxu0
      %1644 = vmatprep.mubr.bf16.mxu0 0
      %1645 = vmatmul.mubr.bf16.gmra.mrb[0].mxu0 %v1522
      %v1646 = vpop.f32.mrb[0].mxu0
      %v1647 = vadd.f32 0.0, %v1646
      %v1648 = vpop.f32.mrb[0].mxu0
      %v1649 = vpop.f32.mrb[0].mxu0
      %v1650 = vadd.f32 0.0, %v1649
      %v1651 = vpop.f32.mrb[0].mxu0
      %1652 = vmatprep.mubr.bf16.mxu0 0
      %1653 = vmatmul.mubr.bf16.gmra.mrb[0].mxu0 %v1525
      %v1654 = vpop.f32.mrb[0].mxu0
      %v1655 = vadd.f32 0.0, %v1654
      %v1656 = vpop.f32.mrb[0].mxu0
      %v1657 = vpop.f32.mrb[0].mxu0
      %v1658 = vadd.f32 0.0, %v1657
      %v1659 = vpop.f32.mrb[0].mxu0
      %1660 = vmatprep.mubr.bf16.mxu0 0
      %1661 = vmatmul.mubr.bf16.gmra.mrb[0].mxu0 %v1528
      %v1662 = vpop.f32.mrb[0].mxu0
      %v1663 = vadd.f32 0.0, %v1662
      %v1664 = vpop.f32.mrb[0].mxu0
      %v1665 = vpop.f32.mrb[0].mxu0
      %v1666 = vadd.f32 0.0, %v1665
      %v1667 = vpop.f32.mrb[0].mxu0
      %1668 = vmatprep.mubr.bf16.mxu0 0
      %1669 = vmatmul.mubr.bf16.gmra.mrb[0].mxu0 %v1531
      %v1670 = vpop.f32.mrb[0].mxu0
      %v1671 = vadd.f32 0.0, %v1670
      %v1672 = vpop.f32.mrb[0].mxu0
      %v1673 = vpop.f32.mrb[0].mxu0
      %v1674 = vadd.f32 0.0, %v1673
      %v1675 = vpop.f32.mrb[0].mxu0
      %1676 = vmatprep.mubr.bf16.mxu0 0
      %1677 = vmatmul.mubr.bf16.gmra.mrb[0].mxu0 %v1534
      %v1678 = vpop.f32.mrb[0].mxu0
      %v1679 = vadd.f32 0.0, %v1678
      %v1680 = vpop.f32.mrb[0].mxu0
      %v1681 = vpop.f32.mrb[0].mxu0
      %v1682 = vadd.f32 0.0, %v1681
      %v1683 = vpop.f32.mrb[0].mxu0
      %1684 = vmatprep.mubr.bf16.mxu0 0
      %1685 = vmatmul.mubr.bf16.gmra.mrb[0].mxu0 %v1537
      %v1686 = vpop.f32.mrb[0].mxu0
      %v1687 = vadd.f32 0.0, %v1686
      %v1688 = vpop.f32.mrb[0].mxu0
      %v1689 = vpop.f32.mrb[0].mxu0
      %v1690 = vadd.f32 0.0, %v1689
      %v1691 = vpop.f32.mrb[0].mxu0
      %1692 = vmatprep.mubr.bf16.mxu0 0
      %1693 = vmatmul.mubr.bf16.gmra.mrb[0].mxu0 %v1540
      %v1694 = vpop.f32.mrb[0].mxu0
      %v1695 = vadd.f32 0.0, %v1694
      %v1696 = vpop.f32.mrb[0].mxu0
      %v1697 = vpop.f32.mrb[0].mxu0
      %v1698 = vadd.f32 0.0, %v1697
      %v1699 = vpop.f32.mrb[0].mxu0
      %1700 = vmatprep.mubr.bf16.mxu0 0
      %1701 = vmatmul.mubr.bf16.gmra.mrb[0].mxu0 %v1543
      %v1702 = vpop.f32.mrb[0].mxu0
      %v1703 = vadd.f32 0.0, %v1702
      %v1704 = vpop.f32.mrb[0].mxu0
      %v1705 = vpop.f32.mrb[0].mxu0
      %v1706 = vadd.f32 0.0, %v1705
      %v1707 = vpop.f32.mrb[0].mxu0
      %1708 = vdwg.mxu0
      %v1709 = vadd.f32 %v1415, %v1583
      %v1710 = vadd.f32 %v1416, %v1586
      %v1711 = vadd.f32 %v1417, %v1591
      %v1712 = vadd.f32 %v1418, %v1594
      %v1713 = vadd.f32 %v1419, %v1599
      %v1714 = vadd.f32 %v1420, %v1602
      %v1715 = vadd.f32 %v1421, %v1607
      %v1716 = vadd.f32 %v1422, %v1610
      %v1717 = vadd.f32 %v1423, %v1615
      %v1718 = vadd.f32 %v1424, %v1618
      %v1719 = vadd.f32 %v1425, %v1623
      %v1720 = vadd.f32 %v1426, %v1626
      %v1721 = vadd.f32 %v1427, %v1631
      %v1722 = vadd.f32 %v1428, %v1634
      %v1723 = vadd.f32 %v1429, %v1639
      %v1724 = vadd.f32 %v1430, %v1642
      %v1725 = vadd.f32 %v1431, %v1647
      %v1726 = vadd.f32 %v1432, %v1650
      %v1727 = vadd.f32 %v1433, %v1655
      %v1728 = vadd.f32 %v1434, %v1658
      %v1729 = vadd.f32 %v1435, %v1663
      %v1730 = vadd.f32 %v1436, %v1666
      %v1731 = vadd.f32 %v1437, %v1671
      %v1732 = vadd.f32 %v1438, %v1674
      %v1733 = vadd.f32 %v1439, %v1679
      %v1734 = vadd.f32 %v1440, %v1682
      %v1735 = vadd.f32 %v1441, %v1687
      %v1736 = vadd.f32 %v1442, %v1690
      %v1737 = vadd.f32 %v1443, %v1695
      %v1738 = vadd.f32 %v1444, %v1698
      %v1739 = vadd.f32 %v1445, %v1703
      %v1740 = vadd.f32 %v1446, %v1706
      %v1741 = vld [vmem:[%s1152 + $0x2] sm:$0xff]
      %v1742 = vld [vmem:[%s1152 + $0xa] sm:$0xff]
      %v1743 = vld [vmem:[%s1152 + $0x1a] sm:$0xff]
      %v1744 = vld [vmem:[%s1152 + $0x22] sm:$0xff]
      %v1745 = vld [vmem:[%s1152 + $0x32] sm:$0xff]
      %v1746 = vld [vmem:[%s1152 + $0x3a] sm:$0xff]
      %v1747 = vld [vmem:[%s1152 + $0x4a] sm:$0xff]
      %v1748 = vld [vmem:[%s1152 + $0x52] sm:$0xff]
      %v1749 = vld [vmem:[%s1152 + $0x62] sm:$0xff]
      %v1750 = vld [vmem:[%s1152 + $0x6a] sm:$0xff]
      %v1751 = vld [vmem:[%s1152 + $0x7a] sm:$0xff]
      %v1752 = vld [vmem:[%s1152 + $0x82] sm:$0xff]
      %v1753 = vld [vmem:[%s1152 + $0x92] sm:$0xff]
      %v1754 = vld [vmem:[%s1152 + $0x9a] sm:$0xff]
      %v1755 = vld [vmem:[%s1152 + $0xaa] sm:$0xff]
      %v1756 = vld [vmem:[%s1152 + $0xb2] sm:$0xff]
      %v1757 = vld [vmem:[%s1152 + $0xc2] sm:$0xff]
      %v1758 = vld [vmem:[%s1152 + $0xca] sm:$0xff]
      %v1759 = vld [vmem:[%s1152 + $0xda] sm:$0xff]
      %v1760 = vld [vmem:[%s1152 + $0xe2] sm:$0xff]
      %v1761 = vld [vmem:[%s1152 + $0xf2] sm:$0xff]
      %v1762 = vld [vmem:[%s1152 + $0xfa] sm:$0xff]
      %v1763 = vld [vmem:[%s1152 + $0x10a] sm:$0xff]
      %v1764 = vld [vmem:[%s1152 + $0x112] sm:$0xff]
      %v1765 = vld [vmem:[%s1152 + $0x122] sm:$0xff]
      %v1766 = vld [vmem:[%s1152 + $0x12a] sm:$0xff]
      %v1767 = vld [vmem:[%s1152 + $0x13a] sm:$0xff]
      %v1768 = vld [vmem:[%s1152 + $0x142] sm:$0xff]
      %v1769 = vld [vmem:[%s1152 + $0x152] sm:$0xff]
      %v1770 = vld [vmem:[%s1152 + $0x15a] sm:$0xff]
      %v1771 = vld [vmem:[%s1152 + $0x16a] sm:$0xff]
      %v1772 = vld [vmem:[%s1152 + $0x172] sm:$0xff]
      %v1773 = vpack.c.bf16 %v1742, %v1741
      %v1774 = vpack.c.bf16 %v1744, %v1743
      %v1775 = vpack.c.bf16 %v1746, %v1745
      %v1776 = vpack.c.bf16 %v1748, %v1747
      %v1777 = vpack.c.bf16 %v1750, %v1749
      %v1778 = vpack.c.bf16 %v1752, %v1751
      %v1779 = vpack.c.bf16 %v1754, %v1753
      %v1780 = vpack.c.bf16 %v1756, %v1755
      %v1781 = vpack.c.bf16 %v1758, %v1757
      %v1782 = vpack.c.bf16 %v1760, %v1759
      %v1783 = vpack.c.bf16 %v1762, %v1761
      %v1784 = vpack.c.bf16 %v1764, %v1763
      %v1785 = vpack.c.bf16 %v1766, %v1765
      %v1786 = vpack.c.bf16 %v1768, %v1767
      %v1787 = vpack.c.bf16 %v1770, %v1769
      %v1788 = vpack.c.bf16 %v1772, %v1771
      %s1789 = scalar_lea.vmem %s1, 10
      %v1790 = vld [vmem:[%s1789] sm:$0x3]
      %v1792 = vsel %vm429, %v1773, 0
      %v1795 = vsel %vm429, %v1774, 0
      %v1798 = vsel %vm429, %v1775, 0
      %v1801 = vsel %vm429, %v1776, 0
      %v1804 = vsel %vm429, %v1777, 0
      %v1807 = vsel %vm429, %v1778, 0
      %v1810 = vsel %vm429, %v1779, 0
      %v1813 = vsel %vm429, %v1780, 0
      %v1816 = vsel %vm429, %v1781, 0
      %v1819 = vsel %vm429, %v1782, 0
      %v1822 = vsel %vm429, %v1783, 0
      %v1825 = vsel %vm429, %v1784, 0
      %v1828 = vsel %vm429, %v1785, 0
      %v1831 = vsel %vm429, %v1786, 0
      %v1834 = vsel %vm429, %v1787, 0
      %v1837 = vsel %vm429, %v1788, 0
      %v1840 = vand.u32 %v1790, %v481
      %1842 = vmatprep.subr.bf16.mxu0 0
      %1843 = vmatpush1.bf16.msra.mxu0 %v1840
      %1844 = vmatprep.subr.bf16.mxu0 0
      %1845 = vmatpush1.bf16.msra.mxu0 0
      %1846 = vmatprep.subr.bf16.mxu0 0
      %1847 = vmatpush1.bf16.msra.mxu0 0
      %1848 = vmatprep.subr.bf16.mxu0 0
      %1849 = vmatpush1.bf16.msra.mxu0 0
      %1850 = vmatprep.subr.bf16.mxu0 0
      %1851 = vmatpush1.bf16.msra.mxu0 0
      %1852 = vmatprep.subr.bf16.mxu0 0
      %1853 = vmatpush1.bf16.msra.mxu0 0
      %1854 = vmatprep.subr.bf16.mxu0 0
      %1855 = vmatpush1.bf16.msra.mxu0 0
      %1856 = vmatprep.subr.bf16.mxu0 0
      %1857 = vmatpush1.bf16.msra.mxu0 0
      %1858 = vmatprep.subr.bf16.mxu0 0
      %1859 = vmatpush1.bf16.msra.mxu0 0
      %1860 = vmatprep.subr.bf16.mxu0 0
      %1861 = vmatpush1.bf16.msra.mxu0 0
      %1862 = vmatprep.subr.bf16.mxu0 0
      %1863 = vmatpush1.bf16.msra.mxu0 0
      %1864 = vmatprep.subr.bf16.mxu0 0
      %1865 = vmatpush1.bf16.msra.mxu0 0
      %1866 = vmatprep.subr.bf16.mxu0 0
      %1867 = vmatpush1.bf16.msra.mxu0 0
      %1868 = vmatprep.subr.bf16.mxu0 0
      %1869 = vmatpush1.bf16.msra.mxu0 0
      %1870 = vmatprep.subr.bf16.mxu0 0
      %1871 = vmatpush1.bf16.msra.mxu0 0
      %1872 = vmatprep.subr.bf16.mxu0 0
      %1873 = vmatpush1.bf16.msra.mxu0 0
      %1874 = vmatprep.mubr.bf16.mxu0 0
      %1875 = vmatmul.mubr.bf16.gmra.mrb[0].mxu0 %v1792
      %v1876 = vpop.f32.mrb[0].mxu0
      %v1877 = vadd.f32 0.0, %v1876
      %v1878 = vpop.f32.mrb[0].mxu0
      %v1879 = vpop.f32.mrb[0].mxu0
      %v1880 = vadd.f32 0.0, %v1879
      %v1881 = vpop.f32.mrb[0].mxu0
      %1882 = vmatprep.mubr.bf16.mxu0 0
      %1883 = vmatmul.mubr.bf16.gmra.mrb[0].mxu0 %v1795
      %v1884 = vpop.f32.mrb[0].mxu0
      %v1885 = vadd.f32 0.0, %v1884
      %v1886 = vpop.f32.mrb[0].mxu0
      %v1887 = vpop.f32.mrb[0].mxu0
      %v1888 = vadd.f32 0.0, %v1887
      %v1889 = vpop.f32.mrb[0].mxu0
      %1890 = vmatprep.mubr.bf16.mxu0 0
      %1891 = vmatmul.mubr.bf16.gmra.mrb[0].mxu0 %v1798
      %v1892 = vpop.f32.mrb[0].mxu0
      %v1893 = vadd.f32 0.0, %v1892
      %v1894 = vpop.f32.mrb[0].mxu0
      %v1895 = vpop.f32.mrb[0].mxu0
      %v1896 = vadd.f32 0.0, %v1895
      %v1897 = vpop.f32.mrb[0].mxu0
      %1898 = vmatprep.mubr.bf16.mxu0 0
      %1899 = vmatmul.mubr.bf16.gmra.mrb[0].mxu0 %v1801
      %v1900 = vpop.f32.mrb[0].mxu0
      %v1901 = vadd.f32 0.0, %v1900
      %v1902 = vpop.f32.mrb[0].mxu0
      %v1903 = vpop.f32.mrb[0].mxu0
      %v1904 = vadd.f32 0.0, %v1903
      %v1905 = vpop.f32.mrb[0].mxu0
      %1906 = vmatprep.mubr.bf16.mxu0 0
      %1907 = vmatmul.mubr.bf16.gmra.mrb[0].mxu0 %v1804
      %v1908 = vpop.f32.mrb[0].mxu0
      %v1909 = vadd.f32 0.0, %v1908
      %v1910 = vpop.f32.mrb[0].mxu0
      %v1911 = vpop.f32.mrb[0].mxu0
      %v1912 = vadd.f32 0.0, %v1911
      %v1913 = vpop.f32.mrb[0].mxu0
      %1914 = vmatprep.mubr.bf16.mxu0 0
      %1915 = vmatmul.mubr.bf16.gmra.mrb[0].mxu0 %v1807
      %v1916 = vpop.f32.mrb[0].mxu0
      %v1917 = vadd.f32 0.0, %v1916
      %v1918 = vpop.f32.mrb[0].mxu0
      %v1919 = vpop.f32.mrb[0].mxu0
      %v1920 = vadd.f32 0.0, %v1919
      %v1921 = vpop.f32.mrb[0].mxu0
      %1922 = vmatprep.mubr.bf16.mxu0 0
      %1923 = vmatmul.mubr.bf16.gmra.mrb[0].mxu0 %v1810
      %v1924 = vpop.f32.mrb[0].mxu0
      %v1925 = vadd.f32 0.0, %v1924
      %v1926 = vpop.f32.mrb[0].mxu0
      %v1927 = vpop.f32.mrb[0].mxu0
      %v1928 = vadd.f32 0.0, %v1927
      %v1929 = vpop.f32.mrb[0].mxu0
      %1930 = vmatprep.mubr.bf16.mxu0 0
      %1931 = vmatmul.mubr.bf16.gmra.mrb[0].mxu0 %v1813
      %v1932 = vpop.f32.mrb[0].mxu0
      %v1933 = vadd.f32 0.0, %v1932
      %v1934 = vpop.f32.mrb[0].mxu0
      %v1935 = vpop.f32.mrb[0].mxu0
      %v1936 = vadd.f32 0.0, %v1935
      %v1937 = vpop.f32.mrb[0].mxu0
      %1938 = vmatprep.mubr.bf16.mxu0 0
      %1939 = vmatmul.mubr.bf16.gmra.mrb[0].mxu0 %v1816
      %v1940 = vpop.f32.mrb[0].mxu0
      %v1941 = vadd.f32 0.0, %v1940
      %v1942 = vpop.f32.mrb[0].mxu0
      %v1943 = vpop.f32.mrb[0].mxu0
      %v1944 = vadd.f32 0.0, %v1943
      %v1945 = vpop.f32.mrb[0].mxu0
      %1946 = vmatprep.mubr.bf16.mxu0 0
      %1947 = vmatmul.mubr.bf16.gmra.mrb[0].mxu0 %v1819
      %v1948 = vpop.f32.mrb[0].mxu0
      %v1949 = vadd.f32 0.0, %v1948
      %v1950 = vpop.f32.mrb[0].mxu0
      %v1951 = vpop.f32.mrb[0].mxu0
      %v1952 = vadd.f32 0.0, %v1951
      %v1953 = vpop.f32.mrb[0].mxu0
      %1954 = vmatprep.mubr.bf16.mxu0 0
      %1955 = vmatmul.mubr.bf16.gmra.mrb[0].mxu0 %v1822
      %v1956 = vpop.f32.mrb[0].mxu0
      %v1957 = vadd.f32 0.0, %v1956
      %v1958 = vpop.f32.mrb[0].mxu0
      %v1959 = vpop.f32.mrb[0].mxu0
      %v1960 = vadd.f32 0.0, %v1959
      %v1961 = vpop.f32.mrb[0].mxu0
      %1962 = vmatprep.mubr.bf16.mxu0 0
      %1963 = vmatmul.mubr.bf16.gmra.mrb[0].mxu0 %v1825
      %v1964 = vpop.f32.mrb[0].mxu0
      %v1965 = vadd.f32 0.0, %v1964
      %v1966 = vpop.f32.mrb[0].mxu0
      %v1967 = vpop.f32.mrb[0].mxu0
      %v1968 = vadd.f32 0.0, %v1967
      %v1969 = vpop.f32.mrb[0].mxu0
      %1970 = vmatprep.mubr.bf16.mxu0 0
      %1971 = vmatmul.mubr.bf16.gmra.mrb[0].mxu0 %v1828
      %v1972 = vpop.f32.mrb[0].mxu0
      %v1973 = vadd.f32 0.0, %v1972
      %v1974 = vpop.f32.mrb[0].mxu0
      %v1975 = vpop.f32.mrb[0].mxu0
      %v1976 = vadd.f32 0.0, %v1975
      %v1977 = vpop.f32.mrb[0].mxu0
      %1978 = vmatprep.mubr.bf16.mxu0 0
      %1979 = vmatmul.mubr.bf16.gmra.mrb[0].mxu0 %v1831
      %v1980 = vpop.f32.mrb[0].mxu0
      %v1981 = vadd.f32 0.0, %v1980
      %v1982 = vpop.f32.mrb[0].mxu0
      %v1983 = vpop.f32.mrb[0].mxu0
      %v1984 = vadd.f32 0.0, %v1983
      %v1985 = vpop.f32.mrb[0].mxu0
      %1986 = vmatprep.mubr.bf16.mxu0 0
      %1987 = vmatmul.mubr.bf16.gmra.mrb[0].mxu0 %v1834
      %v1988 = vpop.f32.mrb[0].mxu0
      %v1989 = vadd.f32 0.0, %v1988
      %v1990 = vpop.f32.mrb[0].mxu0
      %v1991 = vpop.f32.mrb[0].mxu0
      %v1992 = vadd.f32 0.0, %v1991
      %v1993 = vpop.f32.mrb[0].mxu0
      %1994 = vmatprep.mubr.bf16.mxu0 0
      %1995 = vmatmul.mubr.bf16.gmra.mrb[0].mxu0 %v1837
      %v1996 = vpop.f32.mrb[0].mxu0
      %v1997 = vadd.f32 0.0, %v1996
      %v1998 = vpop.f32.mrb[0].mxu0
      %v1999 = vpop.f32.mrb[0].mxu0
      %v2000 = vadd.f32 0.0, %v1999
      %v2001 = vpop.f32.mrb[0].mxu0
      %2002 = vdwg.mxu0
      %v2003 = vadd.f32 %v1709, %v1877
      %v2004 = vadd.f32 %v1710, %v1880
      %v2005 = vadd.f32 %v1711, %v1885
      %v2006 = vadd.f32 %v1712, %v1888
      %v2007 = vadd.f32 %v1713, %v1893
      %v2008 = vadd.f32 %v1714, %v1896
      %v2009 = vadd.f32 %v1715, %v1901
      %v2010 = vadd.f32 %v1716, %v1904
      %v2011 = vadd.f32 %v1717, %v1909
      %v2012 = vadd.f32 %v1718, %v1912
      %v2013 = vadd.f32 %v1719, %v1917
      %v2014 = vadd.f32 %v1720, %v1920
      %v2015 = vadd.f32 %v1721, %v1925
      %v2016 = vadd.f32 %v1722, %v1928
      %v2017 = vadd.f32 %v1723, %v1933
      %v2018 = vadd.f32 %v1724, %v1936
      %v2019 = vadd.f32 %v1725, %v1941
      %v2020 = vadd.f32 %v1726, %v1944
      %v2021 = vadd.f32 %v1727, %v1949
      %v2022 = vadd.f32 %v1728, %v1952
      %v2023 = vadd.f32 %v1729, %v1957
      %v2024 = vadd.f32 %v1730, %v1960
      %v2025 = vadd.f32 %v1731, %v1965
      %v2026 = vadd.f32 %v1732, %v1968
      %v2027 = vadd.f32 %v1733, %v1973
      %v2028 = vadd.f32 %v1734, %v1976
      %v2029 = vadd.f32 %v1735, %v1981
      %v2030 = vadd.f32 %v1736, %v1984
      %v2031 = vadd.f32 %v1737, %v1989
      %v2032 = vadd.f32 %v1738, %v1992
      %v2033 = vadd.f32 %v1739, %v1997
      %v2034 = vadd.f32 %v1740, %v2000
      %s2035 = scalar_lea.vmem %s325, 48
      %v2036 = vld [vmem:[%s2035] sm:$0xff]
      %v2037 = vld [vmem:[%s2035 + $0x8] sm:$0xff]
      %v2038 = vld [vmem:[%s2035 + $0x18] sm:$0xff]
      %v2039 = vld [vmem:[%s2035 + $0x20] sm:$0xff]
      %v2040 = vld [vmem:[%s2035 + $0x30] sm:$0xff]
      %v2041 = vld [vmem:[%s2035 + $0x38] sm:$0xff]
      %v2042 = vld [vmem:[%s2035 + $0x48] sm:$0xff]
      %v2043 = vld [vmem:[%s2035 + $0x50] sm:$0xff]
      %v2044 = vld [vmem:[%s2035 + $0x60] sm:$0xff]
      %v2045 = vld [vmem:[%s2035 + $0x68] sm:$0xff]
      %v2046 = vld [vmem:[%s2035 + $0x78] sm:$0xff]
      %v2047 = vld [vmem:[%s2035 + $0x80] sm:$0xff]
      %v2048 = vld [vmem:[%s2035 + $0x90] sm:$0xff]
      %v2049 = vld [vmem:[%s2035 + $0x98] sm:$0xff]
      %v2050 = vld [vmem:[%s2035 + $0xa8] sm:$0xff]
      %v2051 = vld [vmem:[%s2035 + $0xb0] sm:$0xff]
      %v2052 = vld [vmem:[%s2035 + $0xc0] sm:$0xff]
      %v2053 = vld [vmem:[%s2035 + $0xc8] sm:$0xff]
      %v2054 = vld [vmem:[%s2035 + $0xd8] sm:$0xff]
      %v2055 = vld [vmem:[%s2035 + $0xe0] sm:$0xff]
      %v2056 = vld [vmem:[%s2035 + $0xf0] sm:$0xff]
      %v2057 = vld [vmem:[%s2035 + $0xf8] sm:$0xff]
      %v2058 = vld [vmem:[%s2035 + $0x108] sm:$0xff]
      %v2059 = vld [vmem:[%s2035 + $0x110] sm:$0xff]
      %v2060 = vld [vmem:[%s2035 + $0x120] sm:$0xff]
      %v2061 = vld [vmem:[%s2035 + $0x128] sm:$0xff]
      %v2062 = vld [vmem:[%s2035 + $0x138] sm:$0xff]
      %v2063 = vld [vmem:[%s2035 + $0x140] sm:$0xff]
      %v2064 = vld [vmem:[%s2035 + $0x150] sm:$0xff]
      %v2065 = vld [vmem:[%s2035 + $0x158] sm:$0xff]
      %v2066 = vld [vmem:[%s2035 + $0x168] sm:$0xff]
      %v2067 = vld [vmem:[%s2035 + $0x170] sm:$0xff]
      %v2068 = vpack.c.bf16 %v2037, %v2036
      %v2069 = vpack.c.bf16 %v2039, %v2038
      %v2070 = vpack.c.bf16 %v2041, %v2040
      %v2071 = vpack.c.bf16 %v2043, %v2042
      %v2072 = vpack.c.bf16 %v2045, %v2044
      %v2073 = vpack.c.bf16 %v2047, %v2046
      %v2074 = vpack.c.bf16 %v2049, %v2048
      %v2075 = vpack.c.bf16 %v2051, %v2050
      %v2076 = vpack.c.bf16 %v2053, %v2052
      %v2077 = vpack.c.bf16 %v2055, %v2054
      %v2078 = vpack.c.bf16 %v2057, %v2056
      %v2079 = vpack.c.bf16 %v2059, %v2058
      %v2080 = vpack.c.bf16 %v2061, %v2060
      %v2081 = vpack.c.bf16 %v2063, %v2062
      %v2082 = vpack.c.bf16 %v2065, %v2064
      %v2083 = vpack.c.bf16 %v2067, %v2066
      %s2084 = scalar_lea.vmem %s1, 12
      %v2085 = vld [vmem:[%s2084] sm:$0x3]
      %v2087 = vsel %vm429, %v2068, 0
      %v2090 = vsel %vm429, %v2069, 0
      %v2093 = vsel %vm429, %v2070, 0
      %v2096 = vsel %vm429, %v2071, 0
      %v2099 = vsel %vm429, %v2072, 0
      %v2102 = vsel %vm429, %v2073, 0
      %v2105 = vsel %vm429, %v2074, 0
      %v2108 = vsel %vm429, %v2075, 0
      %v2111 = vsel %vm429, %v2076, 0
      %v2114 = vsel %vm429, %v2077, 0
      %v2117 = vsel %vm429, %v2078, 0
      %v2120 = vsel %vm429, %v2079, 0
      %v2123 = vsel %vm429, %v2080, 0
      %v2126 = vsel %vm429, %v2081, 0
      %v2129 = vsel %vm429, %v2082, 0
      %v2132 = vsel %vm429, %v2083, 0
      %v2135 = vand.u32 %v2085, %v481
      %2137 = vmatprep.subr.bf16.mxu0 0
      %2138 = vmatpush1.bf16.msra.mxu0 %v2135
      %2139 = vmatprep.subr.bf16.mxu0 0
      %2140 = vmatpush1.bf16.msra.mxu0 0
      %2141 = vmatprep.subr.bf16.mxu0 0
      %2142 = vmatpush1.bf16.msra.mxu0 0
      %2143 = vmatprep.subr.bf16.mxu0 0
      %2144 = vmatpush1.bf16.msra.mxu0 0
      %2145 = vmatprep.subr.bf16.mxu0 0
      %2146 = vmatpush1.bf16.msra.mxu0 0
      %2147 = vmatprep.subr.bf16.mxu0 0
      %2148 = vmatpush1.bf16.msra.mxu0 0
      %2149 = vmatprep.subr.bf16.mxu0 0
      %2150 = vmatpush1.bf16.msra.mxu0 0
      %2151 = vmatprep.subr.bf16.mxu0 0
      %2152 = vmatpush1.bf16.msra.mxu0 0
      %2153 = vmatprep.subr.bf16.mxu0 0
      %2154 = vmatpush1.bf16.msra.mxu0 0
      %2155 = vmatprep.subr.bf16.mxu0 0
      %2156 = vmatpush1.bf16.msra.mxu0 0
      %2157 = vmatprep.subr.bf16.mxu0 0
      %2158 = vmatpush1.bf16.msra.mxu0 0
      %2159 = vmatprep.subr.bf16.mxu0 0
      %2160 = vmatpush1.bf16.msra.mxu0 0
      %2161 = vmatprep.subr.bf16.mxu0 0
      %2162 = vmatpush1.bf16.msra.mxu0 0
      %2163 = vmatprep.subr.bf16.mxu0 0
      %2164 = vmatpush1.bf16.msra.mxu0 0
      %2165 = vmatprep.subr.bf16.mxu0 0
      %2166 = vmatpush1.bf16.msra.mxu0 0
      %2167 = vmatprep.subr.bf16.mxu0 0
      %2168 = vmatpush1.bf16.msra.mxu0 0
      %2169 = vmatprep.mubr.bf16.mxu0 0
      %2170 = vmatmul.mubr.bf16.gmra.mrb[0].mxu0 %v2087
      %v2171 = vpop.f32.mrb[0].mxu0
      %v2172 = vadd.f32 0.0, %v2171
      %v2173 = vpop.f32.mrb[0].mxu0
      %v2174 = vpop.f32.mrb[0].mxu0
      %v2175 = vadd.f32 0.0, %v2174
      %v2176 = vpop.f32.mrb[0].mxu0
      %2177 = vmatprep.mubr.bf16.mxu0 0
      %2178 = vmatmul.mubr.bf16.gmra.mrb[0].mxu0 %v2090
      %v2179 = vpop.f32.mrb[0].mxu0
      %v2180 = vadd.f32 0.0, %v2179
      %v2181 = vpop.f32.mrb[0].mxu0
      %v2182 = vpop.f32.mrb[0].mxu0
      %v2183 = vadd.f32 0.0, %v2182
      %v2184 = vpop.f32.mrb[0].mxu0
      %2185 = vmatprep.mubr.bf16.mxu0 0
      %2186 = vmatmul.mubr.bf16.gmra.mrb[0].mxu0 %v2093
      %v2187 = vpop.f32.mrb[0].mxu0
      %v2188 = vadd.f32 0.0, %v2187
      %v2189 = vpop.f32.mrb[0].mxu0
      %v2190 = vpop.f32.mrb[0].mxu0
      %v2191 = vadd.f32 0.0, %v2190
      %v2192 = vpop.f32.mrb[0].mxu0
      %2193 = vmatprep.mubr.bf16.mxu0 0
      %2194 = vmatmul.mubr.bf16.gmra.mrb[0].mxu0 %v2096
      %v2195 = vpop.f32.mrb[0].mxu0
      %v2196 = vadd.f32 0.0, %v2195
      %v2197 = vpop.f32.mrb[0].mxu0
      %v2198 = vpop.f32.mrb[0].mxu0
      %v2199 = vadd.f32 0.0, %v2198
      %v2200 = vpop.f32.mrb[0].mxu0
      %2201 = vmatprep.mubr.bf16.mxu0 0
      %2202 = vmatmul.mubr.bf16.gmra.mrb[0].mxu0 %v2099
      %v2203 = vpop.f32.mrb[0].mxu0
      %v2204 = vadd.f32 0.0, %v2203
      %v2205 = vpop.f32.mrb[0].mxu0
      %v2206 = vpop.f32.mrb[0].mxu0
      %v2207 = vadd.f32 0.0, %v2206
      %v2208 = vpop.f32.mrb[0].mxu0
      %2209 = vmatprep.mubr.bf16.mxu0 0
      %2210 = vmatmul.mubr.bf16.gmra.mrb[0].mxu0 %v2102
      %v2211 = vpop.f32.mrb[0].mxu0
      %v2212 = vadd.f32 0.0, %v2211
      %v2213 = vpop.f32.mrb[0].mxu0
      %v2214 = vpop.f32.mrb[0].mxu0
      %v2215 = vadd.f32 0.0, %v2214
      %v2216 = vpop.f32.mrb[0].mxu0
      %2217 = vmatprep.mubr.bf16.mxu0 0
      %2218 = vmatmul.mubr.bf16.gmra.mrb[0].mxu0 %v2105
      %v2219 = vpop.f32.mrb[0].mxu0
      %v2220 = vadd.f32 0.0, %v2219
      %v2221 = vpop.f32.mrb[0].mxu0
      %v2222 = vpop.f32.mrb[0].mxu0
      %v2223 = vadd.f32 0.0, %v2222
      %v2224 = vpop.f32.mrb[0].mxu0
      %2225 = vmatprep.mubr.bf16.mxu0 0
      %2226 = vmatmul.mubr.bf16.gmra.mrb[0].mxu0 %v2108
      %v2227 = vpop.f32.mrb[0].mxu0
      %v2228 = vadd.f32 0.0, %v2227
      %v2229 = vpop.f32.mrb[0].mxu0
      %v2230 = vpop.f32.mrb[0].mxu0
      %v2231 = vadd.f32 0.0, %v2230
      %v2232 = vpop.f32.mrb[0].mxu0
      %2233 = vmatprep.mubr.bf16.mxu0 0
      %2234 = vmatmul.mubr.bf16.gmra.mrb[0].mxu0 %v2111
      %v2235 = vpop.f32.mrb[0].mxu0
      %v2236 = vadd.f32 0.0, %v2235
      %v2237 = vpop.f32.mrb[0].mxu0
      %v2238 = vpop.f32.mrb[0].mxu0
      %v2239 = vadd.f32 0.0, %v2238
      %v2240 = vpop.f32.mrb[0].mxu0
      %2241 = vmatprep.mubr.bf16.mxu0 0
      %2242 = vmatmul.mubr.bf16.gmra.mrb[0].mxu0 %v2114
      %v2243 = vpop.f32.mrb[0].mxu0
      %v2244 = vadd.f32 0.0, %v2243
      %v2245 = vpop.f32.mrb[0].mxu0
      %v2246 = vpop.f32.mrb[0].mxu0
      %v2247 = vadd.f32 0.0, %v2246
      %v2248 = vpop.f32.mrb[0].mxu0
      %2249 = vmatprep.mubr.bf16.mxu0 0
      %2250 = vmatmul.mubr.bf16.gmra.mrb[0].mxu0 %v2117
      %v2251 = vpop.f32.mrb[0].mxu0
      %v2252 = vadd.f32 0.0, %v2251
      %v2253 = vpop.f32.mrb[0].mxu0
      %v2254 = vpop.f32.mrb[0].mxu0
      %v2255 = vadd.f32 0.0, %v2254
      %v2256 = vpop.f32.mrb[0].mxu0
      %2257 = vmatprep.mubr.bf16.mxu0 0
      %2258 = vmatmul.mubr.bf16.gmra.mrb[0].mxu0 %v2120
      %v2259 = vpop.f32.mrb[0].mxu0
      %v2260 = vadd.f32 0.0, %v2259
      %v2261 = vpop.f32.mrb[0].mxu0
      %v2262 = vpop.f32.mrb[0].mxu0
      %v2263 = vadd.f32 0.0, %v2262
      %v2264 = vpop.f32.mrb[0].mxu0
      %2265 = vmatprep.mubr.bf16.mxu0 0
      %2266 = vmatmul.mubr.bf16.gmra.mrb[0].mxu0 %v2123
      %v2267 = vpop.f32.mrb[0].mxu0
      %v2268 = vadd.f32 0.0, %v2267
      %v2269 = vpop.f32.mrb[0].mxu0
      %v2270 = vpop.f32.mrb[0].mxu0
      %v2271 = vadd.f32 0.0, %v2270
      %v2272 = vpop.f32.mrb[0].mxu0
      %2273 = vmatprep.mubr.bf16.mxu0 0
      %2274 = vmatmul.mubr.bf16.gmra.mrb[0].mxu0 %v2126
      %v2275 = vpop.f32.mrb[0].mxu0
      %v2276 = vadd.f32 0.0, %v2275
      %v2277 = vpop.f32.mrb[0].mxu0
      %v2278 = vpop.f32.mrb[0].mxu0
      %v2279 = vadd.f32 0.0, %v2278
      %v2280 = vpop.f32.mrb[0].mxu0
      %2281 = vmatprep.mubr.bf16.mxu0 0
      %2282 = vmatmul.mubr.bf16.gmra.mrb[0].mxu0 %v2129
      %v2283 = vpop.f32.mrb[0].mxu0
      %v2284 = vadd.f32 0.0, %v2283
      %v2285 = vpop.f32.mrb[0].mxu0
      %v2286 = vpop.f32.mrb[0].mxu0
      %v2287 = vadd.f32 0.0, %v2286
      %v2288 = vpop.f32.mrb[0].mxu0
      %2289 = vmatprep.mubr.bf16.mxu0 0
      %2290 = vmatmul.mubr.bf16.gmra.mrb[0].mxu0 %v2132
      %v2291 = vpop.f32.mrb[0].mxu0
      %v2292 = vadd.f32 0.0, %v2291
      %v2293 = vpop.f32.mrb[0].mxu0
      %v2294 = vpop.f32.mrb[0].mxu0
      %v2295 = vadd.f32 0.0, %v2294
      %v2296 = vpop.f32.mrb[0].mxu0
      %2297 = vdwg.mxu0
      %v2298 = vadd.f32 %v2003, %v2172
      %v2299 = vadd.f32 %v2004, %v2175
      %v2300 = vadd.f32 %v2005, %v2180
      %v2301 = vadd.f32 %v2006, %v2183
      %v2302 = vadd.f32 %v2007, %v2188
      %v2303 = vadd.f32 %v2008, %v2191
      %v2304 = vadd.f32 %v2009, %v2196
      %v2305 = vadd.f32 %v2010, %v2199
      %v2306 = vadd.f32 %v2011, %v2204
      %v2307 = vadd.f32 %v2012, %v2207
      %v2308 = vadd.f32 %v2013, %v2212
      %v2309 = vadd.f32 %v2014, %v2215
      %v2310 = vadd.f32 %v2015, %v2220
      %v2311 = vadd.f32 %v2016, %v2223
      %v2312 = vadd.f32 %v2017, %v2228
      %v2313 = vadd.f32 %v2018, %v2231
      %v2314 = vadd.f32 %v2019, %v2236
      %v2315 = vadd.f32 %v2020, %v2239
      %v2316 = vadd.f32 %v2021, %v2244
      %v2317 = vadd.f32 %v2022, %v2247
      %v2318 = vadd.f32 %v2023, %v2252
      %v2319 = vadd.f32 %v2024, %v2255
      %v2320 = vadd.f32 %v2025, %v2260
      %v2321 = vadd.f32 %v2026, %v2263
      %v2322 = vadd.f32 %v2027, %v2268
      %v2323 = vadd.f32 %v2028, %v2271
      %v2324 = vadd.f32 %v2029, %v2276
      %v2325 = vadd.f32 %v2030, %v2279
      %v2326 = vadd.f32 %v2031, %v2284
      %v2327 = vadd.f32 %v2032, %v2287
      %v2328 = vadd.f32 %v2033, %v2292
      %v2329 = vadd.f32 %v2034, %v2295
      %v2330 = vld [vmem:[%s2035 + $0x1] sm:$0xff]
      %v2331 = vld [vmem:[%s2035 + $0x9] sm:$0xff]
      %v2332 = vld [vmem:[%s2035 + $0x19] sm:$0xff]
      %v2333 = vld [vmem:[%s2035 + $0x21] sm:$0xff]
      %v2334 = vld [vmem:[%s2035 + $0x31] sm:$0xff]
      %v2335 = vld [vmem:[%s2035 + $0x39] sm:$0xff]
      %v2336 = vld [vmem:[%s2035 + $0x49] sm:$0xff]
      %v2337 = vld [vmem:[%s2035 + $0x51] sm:$0xff]
      %v2338 = vld [vmem:[%s2035 + $0x61] sm:$0xff]
      %v2339 = vld [vmem:[%s2035 + $0x69] sm:$0xff]
      %v2340 = vld [vmem:[%s2035 + $0x79] sm:$0xff]
      %v2341 = vld [vmem:[%s2035 + $0x81] sm:$0xff]
      %v2342 = vld [vmem:[%s2035 + $0x91] sm:$0xff]
      %v2343 = vld [vmem:[%s2035 + $0x99] sm:$0xff]
      %v2344 = vld [vmem:[%s2035 + $0xa9] sm:$0xff]
      %v2345 = vld [vmem:[%s2035 + $0xb1] sm:$0xff]
      %v2346 = vld [vmem:[%s2035 + $0xc1] sm:$0xff]
      %v2347 = vld [vmem:[%s2035 + $0xc9] sm:$0xff]
      %v2348 = vld [vmem:[%s2035 + $0xd9] sm:$0xff]
      %v2349 = vld [vmem:[%s2035 + $0xe1] sm:$0xff]
      %v2350 = vld [vmem:[%s2035 + $0xf1] sm:$0xff]
      %v2351 = vld [vmem:[%s2035 + $0xf9] sm:$0xff]
      %v2352 = vld [vmem:[%s2035 + $0x109] sm:$0xff]
      %v2353 = vld [vmem:[%s2035 + $0x111] sm:$0xff]
      %v2354 = vld [vmem:[%s2035 + $0x121] sm:$0xff]
      %v2355 = vld [vmem:[%s2035 + $0x129] sm:$0xff]
      %v2356 = vld [vmem:[%s2035 + $0x139] sm:$0xff]
      %v2357 = vld [vmem:[%s2035 + $0x141] sm:$0xff]
      %v2358 = vld [vmem:[%s2035 + $0x151] sm:$0xff]
      %v2359 = vld [vmem:[%s2035 + $0x159] sm:$0xff]
      %v2360 = vld [vmem:[%s2035 + $0x169] sm:$0xff]
      %v2361 = vld [vmem:[%s2035 + $0x171] sm:$0xff]
      %v2362 = vpack.c.bf16 %v2331, %v2330
      %v2363 = vpack.c.bf16 %v2333, %v2332
      %v2364 = vpack.c.bf16 %v2335, %v2334
      %v2365 = vpack.c.bf16 %v2337, %v2336
      %v2366 = vpack.c.bf16 %v2339, %v2338
      %v2367 = vpack.c.bf16 %v2341, %v2340
      %v2368 = vpack.c.bf16 %v2343, %v2342
      %v2369 = vpack.c.bf16 %v2345, %v2344
      %v2370 = vpack.c.bf16 %v2347, %v2346
      %v2371 = vpack.c.bf16 %v2349, %v2348
      %v2372 = vpack.c.bf16 %v2351, %v2350
      %v2373 = vpack.c.bf16 %v2353, %v2352
      %v2374 = vpack.c.bf16 %v2355, %v2354
      %v2375 = vpack.c.bf16 %v2357, %v2356
      %v2376 = vpack.c.bf16 %v2359, %v2358
      %v2377 = vpack.c.bf16 %v2361, %v2360
      %s2378 = scalar_lea.vmem %s1, 14
      %v2379 = vld [vmem:[%s2378] sm:$0x3]
      %v2381 = vsel %vm429, %v2362, 0
      %v2384 = vsel %vm429, %v2363, 0
      %v2387 = vsel %vm429, %v2364, 0
      %v2390 = vsel %vm429, %v2365, 0
      %v2393 = vsel %vm429, %v2366, 0
      %v2396 = vsel %vm429, %v2367, 0
      %v2399 = vsel %vm429, %v2368, 0
      %v2402 = vsel %vm429, %v2369, 0
      %v2405 = vsel %vm429, %v2370, 0
      %v2408 = vsel %vm429, %v2371, 0
      %v2411 = vsel %vm429, %v2372, 0
      %v2414 = vsel %vm429, %v2373, 0
      %v2417 = vsel %vm429, %v2374, 0
      %v2420 = vsel %vm429, %v2375, 0
      %v2423 = vsel %vm429, %v2376, 0
      %v2426 = vsel %vm429, %v2377, 0
      %v2429 = vand.u32 %v2379, %v481
      %2431 = vmatprep.subr.bf16.mxu0 0
      %2432 = vmatpush1.bf16.msra.mxu0 %v2429
      %2433 = vmatprep.subr.bf16.mxu0 0
      %2434 = vmatpush1.bf16.msra.mxu0 0
      %2435 = vmatprep.subr.bf16.mxu0 0
      %2436 = vmatpush1.bf16.msra.mxu0 0
      %2437 = vmatprep.subr.bf16.mxu0 0
      %2438 = vmatpush1.bf16.msra.mxu0 0
      %2439 = vmatprep.subr.bf16.mxu0 0
      %2440 = vmatpush1.bf16.msra.mxu0 0
      %2441 = vmatprep.subr.bf16.mxu0 0
      %2442 = vmatpush1.bf16.msra.mxu0 0
      %2443 = vmatprep.subr.bf16.mxu0 0
      %2444 = vmatpush1.bf16.msra.mxu0 0
      %2445 = vmatprep.subr.bf16.mxu0 0
      %2446 = vmatpush1.bf16.msra.mxu0 0
      %2447 = vmatprep.subr.bf16.mxu0 0
      %2448 = vmatpush1.bf16.msra.mxu0 0
      %2449 = vmatprep.subr.bf16.mxu0 0
      %2450 = vmatpush1.bf16.msra.mxu0 0
      %2451 = vmatprep.subr.bf16.mxu0 0
      %2452 = vmatpush1.bf16.msra.mxu0 0
      %2453 = vmatprep.subr.bf16.mxu0 0
      %2454 = vmatpush1.bf16.msra.mxu0 0
      %2455 = vmatprep.subr.bf16.mxu0 0
      %2456 = vmatpush1.bf16.msra.mxu0 0
      %2457 = vmatprep.subr.bf16.mxu0 0
      %2458 = vmatpush1.bf16.msra.mxu0 0
      %2459 = vmatprep.subr.bf16.mxu0 0
      %2460 = vmatpush1.bf16.msra.mxu0 0
      %2461 = vmatprep.subr.bf16.mxu0 0
      %2462 = vmatpush1.bf16.msra.mxu0 0
      %2463 = vmatprep.mubr.bf16.mxu0 0
      %2464 = vmatmul.mubr.bf16.gmra.mrb[0].mxu0 %v2381
      %v2465 = vpop.f32.mrb[0].mxu0
      %v2466 = vadd.f32 0.0, %v2465
      %v2467 = vpop.f32.mrb[0].mxu0
      %v2468 = vpop.f32.mrb[0].mxu0
      %v2469 = vadd.f32 0.0, %v2468
      %v2470 = vpop.f32.mrb[0].mxu0
      %2471 = vmatprep.mubr.bf16.mxu0 0
      %2472 = vmatmul.mubr.bf16.gmra.mrb[0].mxu0 %v2384
      %v2473 = vpop.f32.mrb[0].mxu0
      %v2474 = vadd.f32 0.0, %v2473
      %v2475 = vpop.f32.mrb[0].mxu0
      %v2476 = vpop.f32.mrb[0].mxu0
      %v2477 = vadd.f32 0.0, %v2476
      %v2478 = vpop.f32.mrb[0].mxu0
      %2479 = vmatprep.mubr.bf16.mxu0 0
      %2480 = vmatmul.mubr.bf16.gmra.mrb[0].mxu0 %v2387
      %v2481 = vpop.f32.mrb[0].mxu0
      %v2482 = vadd.f32 0.0, %v2481
      %v2483 = vpop.f32.mrb[0].mxu0
      %v2484 = vpop.f32.mrb[0].mxu0
      %v2485 = vadd.f32 0.0, %v2484
      %v2486 = vpop.f32.mrb[0].mxu0
      %2487 = vmatprep.mubr.bf16.mxu0 0
      %2488 = vmatmul.mubr.bf16.gmra.mrb[0].mxu0 %v2390
      %v2489 = vpop.f32.mrb[0].mxu0
      %v2490 = vadd.f32 0.0, %v2489
      %v2491 = vpop.f32.mrb[0].mxu0
      %v2492 = vpop.f32.mrb[0].mxu0
      %v2493 = vadd.f32 0.0, %v2492
      %v2494 = vpop.f32.mrb[0].mxu0
      %2495 = vmatprep.mubr.bf16.mxu0 0
      %2496 = vmatmul.mubr.bf16.gmra.mrb[0].mxu0 %v2393
      %v2497 = vpop.f32.mrb[0].mxu0
      %v2498 = vadd.f32 0.0, %v2497
      %v2499 = vpop.f32.mrb[0].mxu0
      %v2500 = vpop.f32.mrb[0].mxu0
      %v2501 = vadd.f32 0.0, %v2500
      %v2502 = vpop.f32.mrb[0].mxu0
      %2503 = vmatprep.mubr.bf16.mxu0 0
      %2504 = vmatmul.mubr.bf16.gmra.mrb[0].mxu0 %v2396
      %v2505 = vpop.f32.mrb[0].mxu0
      %v2506 = vadd.f32 0.0, %v2505
      %v2507 = vpop.f32.mrb[0].mxu0
      %v2508 = vpop.f32.mrb[0].mxu0
      %v2509 = vadd.f32 0.0, %v2508
      %v2510 = vpop.f32.mrb[0].mxu0
      %2511 = vmatprep.mubr.bf16.mxu0 0
      %2512 = vmatmul.mubr.bf16.gmra.mrb[0].mxu0 %v2399
      %v2513 = vpop.f32.mrb[0].mxu0
      %v2514 = vadd.f32 0.0, %v2513
      %v2515 = vpop.f32.mrb[0].mxu0
      %v2516 = vpop.f32.mrb[0].mxu0
      %v2517 = vadd.f32 0.0, %v2516
      %v2518 = vpop.f32.mrb[0].mxu0
      %2519 = vmatprep.mubr.bf16.mxu0 0
      %2520 = vmatmul.mubr.bf16.gmra.mrb[0].mxu0 %v2402
      %v2521 = vpop.f32.mrb[0].mxu0
      %v2522 = vadd.f32 0.0, %v2521
      %v2523 = vpop.f32.mrb[0].mxu0
      %v2524 = vpop.f32.mrb[0].mxu0
      %v2525 = vadd.f32 0.0, %v2524
      %v2526 = vpop.f32.mrb[0].mxu0
      %2527 = vmatprep.mubr.bf16.mxu0 0
      %2528 = vmatmul.mubr.bf16.gmra.mrb[0].mxu0 %v2405
      %v2529 = vpop.f32.mrb[0].mxu0
      %v2530 = vadd.f32 0.0, %v2529
      %v2531 = vpop.f32.mrb[0].mxu0
      %v2532 = vpop.f32.mrb[0].mxu0
      %v2533 = vadd.f32 0.0, %v2532
      %v2534 = vpop.f32.mrb[0].mxu0
      %2535 = vmatprep.mubr.bf16.mxu0 0
      %2536 = vmatmul.mubr.bf16.gmra.mrb[0].mxu0 %v2408
      %v2537 = vpop.f32.mrb[0].mxu0
      %v2538 = vadd.f32 0.0, %v2537
      %v2539 = vpop.f32.mrb[0].mxu0
      %v2540 = vpop.f32.mrb[0].mxu0
      %v2541 = vadd.f32 0.0, %v2540
      %v2542 = vpop.f32.mrb[0].mxu0
      %2543 = vmatprep.mubr.bf16.mxu0 0
      %2544 = vmatmul.mubr.bf16.gmra.mrb[0].mxu0 %v2411
      %v2545 = vpop.f32.mrb[0].mxu0
      %v2546 = vadd.f32 0.0, %v2545
      %v2547 = vpop.f32.mrb[0].mxu0
      %v2548 = vpop.f32.mrb[0].mxu0
      %v2549 = vadd.f32 0.0, %v2548
      %v2550 = vpop.f32.mrb[0].mxu0
      %2551 = vmatprep.mubr.bf16.mxu0 0
      %2552 = vmatmul.mubr.bf16.gmra.mrb[0].mxu0 %v2414
      %v2553 = vpop.f32.mrb[0].mxu0
      %v2554 = vadd.f32 0.0, %v2553
      %v2555 = vpop.f32.mrb[0].mxu0
      %v2556 = vpop.f32.mrb[0].mxu0
      %v2557 = vadd.f32 0.0, %v2556
      %v2558 = vpop.f32.mrb[0].mxu0
      %2559 = vmatprep.mubr.bf16.mxu0 0
      %2560 = vmatmul.mubr.bf16.gmra.mrb[0].mxu0 %v2417
      %v2561 = vpop.f32.mrb[0].mxu0
      %v2562 = vadd.f32 0.0, %v2561
      %v2563 = vpop.f32.mrb[0].mxu0
      %v2564 = vpop.f32.mrb[0].mxu0
      %v2565 = vadd.f32 0.0, %v2564
      %v2566 = vpop.f32.mrb[0].mxu0
      %2567 = vmatprep.mubr.bf16.mxu0 0
      %2568 = vmatmul.mubr.bf16.gmra.mrb[0].mxu0 %v2420
      %v2569 = vpop.f32.mrb[0].mxu0
      %v2570 = vadd.f32 0.0, %v2569
      %v2571 = vpop.f32.mrb[0].mxu0
      %v2572 = vpop.f32.mrb[0].mxu0
      %v2573 = vadd.f32 0.0, %v2572
      %v2574 = vpop.f32.mrb[0].mxu0
      %2575 = vmatprep.mubr.bf16.mxu0 0
      %2576 = vmatmul.mubr.bf16.gmra.mrb[0].mxu0 %v2423
      %v2577 = vpop.f32.mrb[0].mxu0
      %v2578 = vadd.f32 0.0, %v2577
      %v2579 = vpop.f32.mrb[0].mxu0
      %v2580 = vpop.f32.mrb[0].mxu0
      %v2581 = vadd.f32 0.0, %v2580
      %v2582 = vpop.f32.mrb[0].mxu0
      %2583 = vmatprep.mubr.bf16.mxu0 0
      %2584 = vmatmul.mubr.bf16.gmra.mrb[0].mxu0 %v2426
      %v2585 = vpop.f32.mrb[0].mxu0
      %v2586 = vadd.f32 0.0, %v2585
      %v2587 = vpop.f32.mrb[0].mxu0
      %v2588 = vpop.f32.mrb[0].mxu0
      %v2589 = vadd.f32 0.0, %v2588
      %v2590 = vpop.f32.mrb[0].mxu0
      %2591 = vdwg.mxu0
      %v2592 = vadd.f32 %v2298, %v2466
      %v2593 = vadd.f32 %v2299, %v2469
      %v2594 = vadd.f32 %v2300, %v2474
      %v2595 = vadd.f32 %v2301, %v2477
      %v2596 = vadd.f32 %v2302, %v2482
      %v2597 = vadd.f32 %v2303, %v2485
      %v2598 = vadd.f32 %v2304, %v2490
      %v2599 = vadd.f32 %v2305, %v2493
      %v2600 = vadd.f32 %v2306, %v2498
      %v2601 = vadd.f32 %v2307, %v2501
      %v2602 = vadd.f32 %v2308, %v2506
      %v2603 = vadd.f32 %v2309, %v2509
      %v2604 = vadd.f32 %v2310, %v2514
      %v2605 = vadd.f32 %v2311, %v2517
      %v2606 = vadd.f32 %v2312, %v2522
      %v2607 = vadd.f32 %v2313, %v2525
      %v2608 = vadd.f32 %v2314, %v2530
      %v2609 = vadd.f32 %v2315, %v2533
      %v2610 = vadd.f32 %v2316, %v2538
      %v2611 = vadd.f32 %v2317, %v2541
      %v2612 = vadd.f32 %v2318, %v2546
      %v2613 = vadd.f32 %v2319, %v2549
      %v2614 = vadd.f32 %v2320, %v2554
      %v2615 = vadd.f32 %v2321, %v2557
      %v2616 = vadd.f32 %v2322, %v2562
      %v2617 = vadd.f32 %v2323, %v2565
      %v2618 = vadd.f32 %v2324, %v2570
      %v2619 = vadd.f32 %v2325, %v2573
      %v2620 = vadd.f32 %v2326, %v2578
      %v2621 = vadd.f32 %v2327, %v2581
      %v2622 = vadd.f32 %v2328, %v2586
      %v2623 = vadd.f32 %v2329, %v2589
      %v2624 = vld [vmem:[%s2035 + $0x2] sm:$0xff]
      %v2625 = vld [vmem:[%s2035 + $0xa] sm:$0xff]
      %v2626 = vld [vmem:[%s2035 + $0x1a] sm:$0xff]
      %v2627 = vld [vmem:[%s2035 + $0x22] sm:$0xff]
      %v2628 = vld [vmem:[%s2035 + $0x32] sm:$0xff]
      %v2629 = vld [vmem:[%s2035 + $0x3a] sm:$0xff]
      %v2630 = vld [vmem:[%s2035 + $0x4a] sm:$0xff]
      %v2631 = vld [vmem:[%s2035 + $0x52] sm:$0xff]
      %v2632 = vld [vmem:[%s2035 + $0x62] sm:$0xff]
      %v2633 = vld [vmem:[%s2035 + $0x6a] sm:$0xff]
      %v2634 = vld [vmem:[%s2035 + $0x7a] sm:$0xff]
      %v2635 = vld [vmem:[%s2035 + $0x82] sm:$0xff]
      %v2636 = vld [vmem:[%s2035 + $0x92] sm:$0xff]
      %v2637 = vld [vmem:[%s2035 + $0x9a] sm:$0xff]
      %v2638 = vld [vmem:[%s2035 + $0xaa] sm:$0xff]
      %v2639 = vld [vmem:[%s2035 + $0xb2] sm:$0xff]
      %v2640 = vld [vmem:[%s2035 + $0xc2] sm:$0xff]
      %v2641 = vld [vmem:[%s2035 + $0xca] sm:$0xff]
      %v2642 = vld [vmem:[%s2035 + $0xda] sm:$0xff]
      %v2643 = vld [vmem:[%s2035 + $0xe2] sm:$0xff]
      %v2644 = vld [vmem:[%s2035 + $0xf2] sm:$0xff]
      %v2645 = vld [vmem:[%s2035 + $0xfa] sm:$0xff]
      %v2646 = vld [vmem:[%s2035 + $0x10a] sm:$0xff]
      %v2647 = vld [vmem:[%s2035 + $0x112] sm:$0xff]
      %v2648 = vld [vmem:[%s2035 + $0x122] sm:$0xff]
      %v2649 = vld [vmem:[%s2035 + $0x12a] sm:$0xff]
      %v2650 = vld [vmem:[%s2035 + $0x13a] sm:$0xff]
      %v2651 = vld [vmem:[%s2035 + $0x142] sm:$0xff]
      %v2652 = vld [vmem:[%s2035 + $0x152] sm:$0xff]
      %v2653 = vld [vmem:[%s2035 + $0x15a] sm:$0xff]
      %v2654 = vld [vmem:[%s2035 + $0x16a] sm:$0xff]
      %v2655 = vld [vmem:[%s2035 + $0x172] sm:$0xff]
      %v2656 = vpack.c.bf16 %v2625, %v2624
      %v2657 = vpack.c.bf16 %v2627, %v2626
      %v2658 = vpack.c.bf16 %v2629, %v2628
      %v2659 = vpack.c.bf16 %v2631, %v2630
      %v2660 = vpack.c.bf16 %v2633, %v2632
      %v2661 = vpack.c.bf16 %v2635, %v2634
      %v2662 = vpack.c.bf16 %v2637, %v2636
      %v2663 = vpack.c.bf16 %v2639, %v2638
      %v2664 = vpack.c.bf16 %v2641, %v2640
      %v2665 = vpack.c.bf16 %v2643, %v2642
      %v2666 = vpack.c.bf16 %v2645, %v2644
      %v2667 = vpack.c.bf16 %v2647, %v2646
      %v2668 = vpack.c.bf16 %v2649, %v2648
      %v2669 = vpack.c.bf16 %v2651, %v2650
      %v2670 = vpack.c.bf16 %v2653, %v2652
      %v2671 = vpack.c.bf16 %v2655, %v2654
      %s2672 = scalar_lea.vmem %s1, 16
      %v2673 = vld [vmem:[%s2672] sm:$0x3]
      %v2675 = vsel %vm429, %v2656, 0
      %v2678 = vsel %vm429, %v2657, 0
      %v2681 = vsel %vm429, %v2658, 0
      %v2684 = vsel %vm429, %v2659, 0
      %v2687 = vsel %vm429, %v2660, 0
      %v2690 = vsel %vm429, %v2661, 0
      %v2693 = vsel %vm429, %v2662, 0
      %v2696 = vsel %vm429, %v2663, 0
      %v2699 = vsel %vm429, %v2664, 0
      %v2702 = vsel %vm429, %v2665, 0
      %v2705 = vsel %vm429, %v2666, 0
      %v2708 = vsel %vm429, %v2667, 0
      %v2711 = vsel %vm429, %v2668, 0
      %v2714 = vsel %vm429, %v2669, 0
      %v2717 = vsel %vm429, %v2670, 0
      %v2720 = vsel %vm429, %v2671, 0
      %v2723 = vand.u32 %v2673, %v481
      %2725 = vmatprep.subr.bf16.mxu0 0
      %2726 = vmatpush1.bf16.msra.mxu0 %v2723
      %2727 = vmatprep.subr.bf16.mxu0 0
      %2728 = vmatpush1.bf16.msra.mxu0 0
      %2729 = vmatprep.subr.bf16.mxu0 0
      %2730 = vmatpush1.bf16.msra.mxu0 0
      %2731 = vmatprep.subr.bf16.mxu0 0
      %2732 = vmatpush1.bf16.msra.mxu0 0
      %2733 = vmatprep.subr.bf16.mxu0 0
      %2734 = vmatpush1.bf16.msra.mxu0 0
      %2735 = vmatprep.subr.bf16.mxu0 0
      %2736 = vmatpush1.bf16.msra.mxu0 0
      %2737 = vmatprep.subr.bf16.mxu0 0
      %2738 = vmatpush1.bf16.msra.mxu0 0
      %2739 = vmatprep.subr.bf16.mxu0 0
      %2740 = vmatpush1.bf16.msra.mxu0 0
      %2741 = vmatprep.subr.bf16.mxu0 0
      %2742 = vmatpush1.bf16.msra.mxu0 0
      %2743 = vmatprep.subr.bf16.mxu0 0
      %2744 = vmatpush1.bf16.msra.mxu0 0
      %2745 = vmatprep.subr.bf16.mxu0 0
      %2746 = vmatpush1.bf16.msra.mxu0 0
      %2747 = vmatprep.subr.bf16.mxu0 0
      %2748 = vmatpush1.bf16.msra.mxu0 0
      %2749 = vmatprep.subr.bf16.mxu0 0
      %2750 = vmatpush1.bf16.msra.mxu0 0
      %2751 = vmatprep.subr.bf16.mxu0 0
      %2752 = vmatpush1.bf16.msra.mxu0 0
      %2753 = vmatprep.subr.bf16.mxu0 0
      %2754 = vmatpush1.bf16.msra.mxu0 0
      %2755 = vmatprep.subr.bf16.mxu0 0
      %2756 = vmatpush1.bf16.msra.mxu0 0
      %2757 = vmatprep.mubr.bf16.mxu0 0
      %2758 = vmatmul.mubr.bf16.gmra.mrb[0].mxu0 %v2675
      %v2759 = vpop.f32.mrb[0].mxu0
      %v2760 = vadd.f32 0.0, %v2759
      %v2761 = vpop.f32.mrb[0].mxu0
      %v2762 = vpop.f32.mrb[0].mxu0
      %v2763 = vadd.f32 0.0, %v2762
      %v2764 = vpop.f32.mrb[0].mxu0
      %2765 = vmatprep.mubr.bf16.mxu0 0
      %2766 = vmatmul.mubr.bf16.gmra.mrb[0].mxu0 %v2678
      %v2767 = vpop.f32.mrb[0].mxu0
      %v2768 = vadd.f32 0.0, %v2767
      %v2769 = vpop.f32.mrb[0].mxu0
      %v2770 = vpop.f32.mrb[0].mxu0
      %v2771 = vadd.f32 0.0, %v2770
      %v2772 = vpop.f32.mrb[0].mxu0
      %2773 = vmatprep.mubr.bf16.mxu0 0
      %2774 = vmatmul.mubr.bf16.gmra.mrb[0].mxu0 %v2681
      %v2775 = vpop.f32.mrb[0].mxu0
      %v2776 = vadd.f32 0.0, %v2775
      %v2777 = vpop.f32.mrb[0].mxu0
      %v2778 = vpop.f32.mrb[0].mxu0
      %v2779 = vadd.f32 0.0, %v2778
      %v2780 = vpop.f32.mrb[0].mxu0
      %2781 = vmatprep.mubr.bf16.mxu0 0
      %2782 = vmatmul.mubr.bf16.gmra.mrb[0].mxu0 %v2684
      %v2783 = vpop.f32.mrb[0].mxu0
      %v2784 = vadd.f32 0.0, %v2783
      %v2785 = vpop.f32.mrb[0].mxu0
      %v2786 = vpop.f32.mrb[0].mxu0
      %v2787 = vadd.f32 0.0, %v2786
      %v2788 = vpop.f32.mrb[0].mxu0
      %2789 = vmatprep.mubr.bf16.mxu0 0
      %2790 = vmatmul.mubr.bf16.gmra.mrb[0].mxu0 %v2687
      %v2791 = vpop.f32.mrb[0].mxu0
      %v2792 = vadd.f32 0.0, %v2791
      %v2793 = vpop.f32.mrb[0].mxu0
      %v2794 = vpop.f32.mrb[0].mxu0
      %v2795 = vadd.f32 0.0, %v2794
      %v2796 = vpop.f32.mrb[0].mxu0
      %2797 = vmatprep.mubr.bf16.mxu0 0
      %2798 = vmatmul.mubr.bf16.gmra.mrb[0].mxu0 %v2690
      %v2799 = vpop.f32.mrb[0].mxu0
      %v2800 = vadd.f32 0.0, %v2799
      %v2801 = vpop.f32.mrb[0].mxu0
      %v2802 = vpop.f32.mrb[0].mxu0
      %v2803 = vadd.f32 0.0, %v2802
      %v2804 = vpop.f32.mrb[0].mxu0
      %2805 = vmatprep.mubr.bf16.mxu0 0
      %2806 = vmatmul.mubr.bf16.gmra.mrb[0].mxu0 %v2693
      %v2807 = vpop.f32.mrb[0].mxu0
      %v2808 = vadd.f32 0.0, %v2807
      %v2809 = vpop.f32.mrb[0].mxu0
      %v2810 = vpop.f32.mrb[0].mxu0
      %v2811 = vadd.f32 0.0, %v2810
      %v2812 = vpop.f32.mrb[0].mxu0
      %2813 = vmatprep.mubr.bf16.mxu0 0
      %2814 = vmatmul.mubr.bf16.gmra.mrb[0].mxu0 %v2696
      %v2815 = vpop.f32.mrb[0].mxu0
      %v2816 = vadd.f32 0.0, %v2815
      %v2817 = vpop.f32.mrb[0].mxu0
      %v2818 = vpop.f32.mrb[0].mxu0
      %v2819 = vadd.f32 0.0, %v2818
      %v2820 = vpop.f32.mrb[0].mxu0
      %2821 = vmatprep.mubr.bf16.mxu0 0
      %2822 = vmatmul.mubr.bf16.gmra.mrb[0].mxu0 %v2699
      %v2823 = vpop.f32.mrb[0].mxu0
      %v2824 = vadd.f32 0.0, %v2823
      %v2825 = vpop.f32.mrb[0].mxu0
      %v2826 = vpop.f32.mrb[0].mxu0
      %v2827 = vadd.f32 0.0, %v2826
      %v2828 = vpop.f32.mrb[0].mxu0
      %2829 = vmatprep.mubr.bf16.mxu0 0
      %2830 = vmatmul.mubr.bf16.gmra.mrb[0].mxu0 %v2702
      %v2831 = vpop.f32.mrb[0].mxu0
      %v2832 = vadd.f32 0.0, %v2831
      %v2833 = vpop.f32.mrb[0].mxu0
      %v2834 = vpop.f32.mrb[0].mxu0
      %v2835 = vadd.f32 0.0, %v2834
      %v2836 = vpop.f32.mrb[0].mxu0
      %2837 = vmatprep.mubr.bf16.mxu0 0
      %2838 = vmatmul.mubr.bf16.gmra.mrb[0].mxu0 %v2705
      %v2839 = vpop.f32.mrb[0].mxu0
      %v2840 = vadd.f32 0.0, %v2839
      %v2841 = vpop.f32.mrb[0].mxu0
      %v2842 = vpop.f32.mrb[0].mxu0
      %v2843 = vadd.f32 0.0, %v2842
      %v2844 = vpop.f32.mrb[0].mxu0
      %2845 = vmatprep.mubr.bf16.mxu0 0
      %2846 = vmatmul.mubr.bf16.gmra.mrb[0].mxu0 %v2708
      %v2847 = vpop.f32.mrb[0].mxu0
      %v2848 = vadd.f32 0.0, %v2847
      %v2849 = vpop.f32.mrb[0].mxu0
      %v2850 = vpop.f32.mrb[0].mxu0
      %v2851 = vadd.f32 0.0, %v2850
      %v2852 = vpop.f32.mrb[0].mxu0
      %2853 = vmatprep.mubr.bf16.mxu0 0
      %2854 = vmatmul.mubr.bf16.gmra.mrb[0].mxu0 %v2711
      %v2855 = vpop.f32.mrb[0].mxu0
      %v2856 = vadd.f32 0.0, %v2855
      %v2857 = vpop.f32.mrb[0].mxu0
      %v2858 = vpop.f32.mrb[0].mxu0
      %v2859 = vadd.f32 0.0, %v2858
      %v2860 = vpop.f32.mrb[0].mxu0
      %2861 = vmatprep.mubr.bf16.mxu0 0
      %2862 = vmatmul.mubr.bf16.gmra.mrb[0].mxu0 %v2714
      %v2863 = vpop.f32.mrb[0].mxu0
      %v2864 = vadd.f32 0.0, %v2863
      %v2865 = vpop.f32.mrb[0].mxu0
      %v2866 = vpop.f32.mrb[0].mxu0
      %v2867 = vadd.f32 0.0, %v2866
      %v2868 = vpop.f32.mrb[0].mxu0
      %2869 = vmatprep.mubr.bf16.mxu0 0
      %2870 = vmatmul.mubr.bf16.gmra.mrb[0].mxu0 %v2717
      %v2871 = vpop.f32.mrb[0].mxu0
      %v2872 = vadd.f32 0.0, %v2871
      %v2873 = vpop.f32.mrb[0].mxu0
      %v2874 = vpop.f32.mrb[0].mxu0
      %v2875 = vadd.f32 0.0, %v2874
      %v2876 = vpop.f32.mrb[0].mxu0
      %2877 = vmatprep.mubr.bf16.mxu0 0
      %2878 = vmatmul.mubr.bf16.gmra.mrb[0].mxu0 %v2720
      %v2879 = vpop.f32.mrb[0].mxu0
      %v2880 = vadd.f32 0.0, %v2879
      %v2881 = vpop.f32.mrb[0].mxu0
      %v2882 = vpop.f32.mrb[0].mxu0
      %v2883 = vadd.f32 0.0, %v2882
      %v2884 = vpop.f32.mrb[0].mxu0
      %2885 = vdwg.mxu0
      %v2886 = vadd.f32 %v2592, %v2760
      %v2887 = vadd.f32 %v2593, %v2763
      %v2888 = vadd.f32 %v2594, %v2768
      %v2889 = vadd.f32 %v2595, %v2771
      %v2890 = vadd.f32 %v2596, %v2776
      %v2891 = vadd.f32 %v2597, %v2779
      %v2892 = vadd.f32 %v2598, %v2784
      %v2893 = vadd.f32 %v2599, %v2787
      %v2894 = vadd.f32 %v2600, %v2792
      %v2895 = vadd.f32 %v2601, %v2795
      %v2896 = vadd.f32 %v2602, %v2800
      %v2897 = vadd.f32 %v2603, %v2803
      %v2898 = vadd.f32 %v2604, %v2808
      %v2899 = vadd.f32 %v2605, %v2811
      %v2900 = vadd.f32 %v2606, %v2816
      %v2901 = vadd.f32 %v2607, %v2819
      %v2902 = vadd.f32 %v2608, %v2824
      %v2903 = vadd.f32 %v2609, %v2827
      %v2904 = vadd.f32 %v2610, %v2832
      %v2905 = vadd.f32 %v2611, %v2835
      %v2906 = vadd.f32 %v2612, %v2840
      %v2907 = vadd.f32 %v2613, %v2843
      %v2908 = vadd.f32 %v2614, %v2848
      %v2909 = vadd.f32 %v2615, %v2851
      %v2910 = vadd.f32 %v2616, %v2856
      %v2911 = vadd.f32 %v2617, %v2859
      %v2912 = vadd.f32 %v2618, %v2864
      %v2913 = vadd.f32 %v2619, %v2867
      %v2914 = vadd.f32 %v2620, %v2872
      %v2915 = vadd.f32 %v2621, %v2875
      %v2916 = vadd.f32 %v2622, %v2880
      %v2917 = vadd.f32 %v2623, %v2883
      %v2918 = vld [vmem:[%s2] sm:$0x1]
      %v2920 = vlaneseq
      %v2921 = vshrl.u32 %v2920, 7
      %v2922 = vsub.s32 0, %v2921
      %v2923 = vrot.slane %v2918, %v2922
      %v2925 = vadd.f32 %v2886, %v2923
      %v2926 = vadd.f32 %v2887, %v2923
      %v2927 = vadd.f32 %v2888, %v2923
      %v2928 = vadd.f32 %v2889, %v2923
      %v2929 = vadd.f32 %v2890, %v2923
      %v2930 = vadd.f32 %v2891, %v2923
      %v2931 = vadd.f32 %v2892, %v2923
      %v2932 = vadd.f32 %v2893, %v2923
      %v2933 = vadd.f32 %v2894, %v2923
      %v2934 = vadd.f32 %v2895, %v2923
      %v2935 = vadd.f32 %v2896, %v2923
      %v2936 = vadd.f32 %v2897, %v2923
      %v2937 = vadd.f32 %v2898, %v2923
      %v2938 = vadd.f32 %v2899, %v2923
      %v2939 = vadd.f32 %v2900, %v2923
      %v2940 = vadd.f32 %v2901, %v2923
      %v2941 = vadd.f32 %v2902, %v2923
      %v2942 = vadd.f32 %v2903, %v2923
      %v2943 = vadd.f32 %v2904, %v2923
      %v2944 = vadd.f32 %v2905, %v2923
      %v2945 = vadd.f32 %v2906, %v2923
      %v2946 = vadd.f32 %v2907, %v2923
      %v2947 = vadd.f32 %v2908, %v2923
      %v2948 = vadd.f32 %v2909, %v2923
      %v2949 = vadd.f32 %v2910, %v2923
      %v2950 = vadd.f32 %v2911, %v2923
      %v2951 = vadd.f32 %v2912, %v2923
      %v2952 = vadd.f32 %v2913, %v2923
      %v2953 = vadd.f32 %v2914, %v2923
      %v2954 = vadd.f32 %v2915, %v2923
      %v2955 = vadd.f32 %v2916, %v2923
      %v2956 = vadd.f32 %v2917, %v2923
      %v2957 = vmax.f32 %v2925, 0.0
      %v2958 = vmax.f32 %v2926, 0.0
      %v2959 = vmax.f32 %v2927, 0.0
      %v2960 = vmax.f32 %v2928, 0.0
      %v2961 = vmax.f32 %v2929, 0.0
      %v2962 = vmax.f32 %v2930, 0.0
      %v2963 = vmax.f32 %v2931, 0.0
      %v2964 = vmax.f32 %v2932, 0.0
      %v2965 = vmax.f32 %v2933, 0.0
      %v2966 = vmax.f32 %v2934, 0.0
      %v2967 = vmax.f32 %v2935, 0.0
      %v2968 = vmax.f32 %v2936, 0.0
      %v2969 = vmax.f32 %v2937, 0.0
      %v2970 = vmax.f32 %v2938, 0.0
      %v2971 = vmax.f32 %v2939, 0.0
      %v2972 = vmax.f32 %v2940, 0.0
      %v2973 = vmax.f32 %v2941, 0.0
      %v2974 = vmax.f32 %v2942, 0.0
      %v2975 = vmax.f32 %v2943, 0.0
      %v2976 = vmax.f32 %v2944, 0.0
      %v2977 = vmax.f32 %v2945, 0.0
      %v2978 = vmax.f32 %v2946, 0.0
      %v2979 = vmax.f32 %v2947, 0.0
      %v2980 = vmax.f32 %v2948, 0.0
      %v2981 = vmax.f32 %v2949, 0.0
      %v2982 = vmax.f32 %v2950, 0.0
      %v2983 = vmax.f32 %v2951, 0.0
      %v2984 = vmax.f32 %v2952, 0.0
      %v2985 = vmax.f32 %v2953, 0.0
      %v2986 = vmax.f32 %v2954, 0.0
      %v2987 = vmax.f32 %v2955, 0.0
      %v2988 = vmax.f32 %v2956, 0.0
      %v2989 = vld [vmem:[%s7] sm:$0xff]
      %v2990 = vld [vmem:[%s7 + $0x8] sm:$0xff]
      %v2991 = vld [vmem:[%s7 + $0x10] sm:$0xff]
      %v2992 = vld [vmem:[%s7 + $0x18] sm:$0xff]
      %v2993 = vld [vmem:[%s7 + $0x20] sm:$0xff]
      %v2994 = vld [vmem:[%s7 + $0x28] sm:$0xff]
      %v2995 = vld [vmem:[%s7 + $0x30] sm:$0xff]
      %v2996 = vld [vmem:[%s7 + $0x38] sm:$0xff]
      %v2997 = vld [vmem:[%s7 + $0x40] sm:$0xff]
      %v2998 = vld [vmem:[%s7 + $0x48] sm:$0xff]
      %v2999 = vld [vmem:[%s7 + $0x50] sm:$0xff]
      %v3000 = vld [vmem:[%s7 + $0x58] sm:$0xff]
      %v3001 = vld [vmem:[%s7 + $0x60] sm:$0xff]
      %v3002 = vld [vmem:[%s7 + $0x68] sm:$0xff]
      %v3003 = vld [vmem:[%s7 + $0x70] sm:$0xff]
      %v3004 = vld [vmem:[%s7 + $0x78] sm:$0xff]
      %3005 = vmatprep.subr.mxu0 0.0
      %3006 = vmatpush1.msra.mxu0 %v2957
      %3007 = vmatprep.subr.mxu0 0.0
      %3008 = vmatpush1.msra.mxu0 %v2958
      %3009 = vmatprep.subr.mxu0 0.0
      %3010 = vmatpush1.msra.mxu0 %v2959
      %3011 = vmatprep.subr.mxu0 0.0
      %3012 = vmatpush1.msra.mxu0 %v2960
      %3013 = vmatprep.subr.mxu0 0.0
      %3014 = vmatpush1.msra.mxu0 %v2961
      %3015 = vmatprep.subr.mxu0 0.0
      %3016 = vmatpush1.msra.mxu0 %v2962
      %3017 = vmatprep.subr.mxu0 0.0
      %3018 = vmatpush1.msra.mxu0 %v2963
      %3019 = vmatprep.subr.mxu0 0.0
      %3020 = vmatpush1.msra.mxu0 %v2964
      %3021 = vmatprep.subr.mxu0 0.0
      %3022 = vmatpush1.msra.mxu0 %v2965
      %3023 = vmatprep.subr.mxu0 0.0
      %3024 = vmatpush1.msra.mxu0 %v2966
      %3025 = vmatprep.subr.mxu0 0.0
      %3026 = vmatpush1.msra.mxu0 %v2967
      %3027 = vmatprep.subr.mxu0 0.0
      %3028 = vmatpush1.msra.mxu0 %v2968
      %3029 = vmatprep.subr.mxu0 0.0
      %3030 = vmatpush1.msra.mxu0 %v2969
      %3031 = vmatprep.subr.mxu0 0.0
      %3032 = vmatpush1.msra.mxu0 %v2970
      %3033 = vmatprep.subr.mxu0 0.0
      %3034 = vmatpush1.msra.mxu0 %v2971
      %3035 = vmatprep.subr.mxu0 0.0
      %3036 = vmatpush1.msra.mxu0 %v2972
      %3037 = vmatprep.subr.mxu0 0.0
      %3038 = vmatpush1.msra.mxu0 %v2973
      %3039 = vmatprep.subr.mxu0 0.0
      %3040 = vmatpush1.msra.mxu0 %v2974
      %3041 = vmatprep.subr.mxu0 0.0
      %3042 = vmatpush1.msra.mxu0 %v2975
      %3043 = vmatprep.subr.mxu0 0.0
      %3044 = vmatpush1.msra.mxu0 %v2976
      %3045 = vmatprep.subr.mxu0 0.0
      %3046 = vmatpush1.msra.mxu0 %v2977
      %3047 = vmatprep.subr.mxu0 0.0
      %3048 = vmatpush1.msra.mxu0 %v2978
      %3049 = vmatprep.subr.mxu0 0.0
      %3050 = vmatpush1.msra.mxu0 %v2979
      %3051 = vmatprep.subr.mxu0 0.0
      %3052 = vmatpush1.msra.mxu0 %v2980
      %3053 = vmatprep.subr.mxu0 0.0
      %3054 = vmatpush1.msra.mxu0 %v2981
      %3055 = vmatprep.subr.mxu0 0.0
      %3056 = vmatpush1.msra.mxu0 %v2982
      %3057 = vmatprep.subr.mxu0 0.0
      %3058 = vmatpush1.msra.mxu0 %v2983
      %3059 = vmatprep.subr.mxu0 0.0
      %3060 = vmatpush1.msra.mxu0 %v2984
      %3061 = vmatprep.subr.mxu0 0.0
      %3062 = vmatpush1.msra.mxu0 %v2985
      %3063 = vmatprep.subr.mxu0 0.0
      %3064 = vmatpush1.msra.mxu0 %v2986
      %3065 = vmatprep.subr.mxu0 0.0
      %3066 = vmatpush1.msra.mxu0 %v2987
      %3067 = vmatprep.subr.mxu0 0.0
      %3068 = vmatpush1.msra.mxu0 %v2988
      %3069 = vmatprep.mubr.f32.mxu0 %v2990
      %3070 = vmatmul.mubr.f32.gmra.mrb[0].mxu0 %v2989
      %v3071 = vpop.f32.mrb[0].mxu0
      %v3072 = vadd.f32 0.0, %v3071
      %v3073 = vpop.f32.mrb[0].mxu0
      %3074 = vmatprep.mubr.f32.mxu0 %v2992
      %3075 = vmatmul.mubr.f32.gmra.mrb[0].mxu0 %v2991
      %v3076 = vpop.f32.mrb[0].mxu0
      %v3077 = vadd.f32 0.0, %v3076
      %v3078 = vpop.f32.mrb[0].mxu0
      %3079 = vmatprep.mubr.f32.mxu0 %v2994
      %3080 = vmatmul.mubr.f32.gmra.mrb[0].mxu0 %v2993
      %v3081 = vpop.f32.mrb[0].mxu0
      %v3082 = vadd.f32 0.0, %v3081
      %v3083 = vpop.f32.mrb[0].mxu0
      %3084 = vmatprep.mubr.f32.mxu0 %v2996
      %3085 = vmatmul.mubr.f32.gmra.mrb[0].mxu0 %v2995
      %v3086 = vpop.f32.mrb[0].mxu0
      %v3087 = vadd.f32 0.0, %v3086
      %v3088 = vpop.f32.mrb[0].mxu0
      %3089 = vmatprep.mubr.f32.mxu0 %v2998
      %3090 = vmatmul.mubr.f32.gmra.mrb[0].mxu0 %v2997
      %v3091 = vpop.f32.mrb[0].mxu0
      %v3092 = vadd.f32 0.0, %v3091
      %v3093 = vpop.f32.mrb[0].mxu0
      %3094 = vmatprep.mubr.f32.mxu0 %v3000
      %3095 = vmatmul.mubr.f32.gmra.mrb[0].mxu0 %v2999
      %v3096 = vpop.f32.mrb[0].mxu0
      %v3097 = vadd.f32 0.0, %v3096
      %v3098 = vpop.f32.mrb[0].mxu0
      %3099 = vmatprep.mubr.f32.mxu0 %v3002
      %3100 = vmatmul.mubr.f32.gmra.mrb[0].mxu0 %v3001
      %v3101 = vpop.f32.mrb[0].mxu0
      %v3102 = vadd.f32 0.0, %v3101
      %v3103 = vpop.f32.mrb[0].mxu0
      %3104 = vmatprep.mubr.f32.mxu0 %v3004
      %3105 = vmatmul.mubr.f32.gmra.mrb[0].mxu0 %v3003
      %v3106 = vpop.f32.mrb[0].mxu0
      %v3107 = vadd.f32 0.0, %v3106
      %v3108 = vpop.f32.mrb[0].mxu0
      %3109 = vdwg.mxu0
      %s3110 = scalar_lea.vmem %s7, 128
      %v3111 = vld [vmem:[%s3110] sm:$0xff]
      %v3112 = vld [vmem:[%s3110 + $0x8] sm:$0xff]
      %v3113 = vld [vmem:[%s3110 + $0x10] sm:$0xff]
      %v3114 = vld [vmem:[%s3110 + $0x18] sm:$0xff]
      %v3115 = vld [vmem:[%s3110 + $0x20] sm:$0xff]
      %v3116 = vld [vmem:[%s3110 + $0x28] sm:$0xff]
      %v3117 = vld [vmem:[%s3110 + $0x30] sm:$0xff]
      %v3118 = vld [vmem:[%s3110 + $0x38] sm:$0xff]
      %v3119 = vld [vmem:[%s3110 + $0x40] sm:$0xff]
      %v3120 = vld [vmem:[%s3110 + $0x48] sm:$0xff]
      %v3121 = vld [vmem:[%s3110 + $0x50] sm:$0xff]
      %v3122 = vld [vmem:[%s3110 + $0x58] sm:$0xff]
      %v3123 = vld [vmem:[%s3110 + $0x60] sm:$0xff]
      %v3124 = vld [vmem:[%s3110 + $0x68] sm:$0xff]
      %v3125 = vld [vmem:[%s3110 + $0x70] sm:$0xff]
      %v3126 = vld [vmem:[%s3110 + $0x78] sm:$0xff]
      %3127 = vmatprep.subr.mxu0 0.0
      %3128 = vmatpush1.msra.mxu0 %v2957
      %3129 = vmatprep.subr.mxu0 0.0
      %3130 = vmatpush1.msra.mxu0 %v2958
      %3131 = vmatprep.subr.mxu0 0.0
      %3132 = vmatpush1.msra.mxu0 %v2959
      %3133 = vmatprep.subr.mxu0 0.0
      %3134 = vmatpush1.msra.mxu0 %v2960
      %3135 = vmatprep.subr.mxu0 0.0
      %3136 = vmatpush1.msra.mxu0 %v2961
      %3137 = vmatprep.subr.mxu0 0.0
      %3138 = vmatpush1.msra.mxu0 %v2962
      %3139 = vmatprep.subr.mxu0 0.0
      %3140 = vmatpush1.msra.mxu0 %v2963
      %3141 = vmatprep.subr.mxu0 0.0
      %3142 = vmatpush1.msra.mxu0 %v2964
      %3143 = vmatprep.subr.mxu0 0.0
      %3144 = vmatpush1.msra.mxu0 %v2965
      %3145 = vmatprep.subr.mxu0 0.0
      %3146 = vmatpush1.msra.mxu0 %v2966
      %3147 = vmatprep.subr.mxu0 0.0
      %3148 = vmatpush1.msra.mxu0 %v2967
      %3149 = vmatprep.subr.mxu0 0.0
      %3150 = vmatpush1.msra.mxu0 %v2968
      %3151 = vmatprep.subr.mxu0 0.0
      %3152 = vmatpush1.msra.mxu0 %v2969
      %3153 = vmatprep.subr.mxu0 0.0
      %3154 = vmatpush1.msra.mxu0 %v2970
      %3155 = vmatprep.subr.mxu0 0.0
      %3156 = vmatpush1.msra.mxu0 %v2971
      %3157 = vmatprep.subr.mxu0 0.0
      %3158 = vmatpush1.msra.mxu0 %v2972
      %3159 = vmatprep.subr.mxu0 0.0
      %3160 = vmatpush1.msra.mxu0 %v2973
      %3161 = vmatprep.subr.mxu0 0.0
      %3162 = vmatpush1.msra.mxu0 %v2974
      %3163 = vmatprep.subr.mxu0 0.0
      %3164 = vmatpush1.msra.mxu0 %v2975
      %3165 = vmatprep.subr.mxu0 0.0
      %3166 = vmatpush1.msra.mxu0 %v2976
      %3167 = vmatprep.subr.mxu0 0.0
      %3168 = vmatpush1.msra.mxu0 %v2977
      %3169 = vmatprep.subr.mxu0 0.0
      %3170 = vmatpush1.msra.mxu0 %v2978
      %3171 = vmatprep.subr.mxu0 0.0
      %3172 = vmatpush1.msra.mxu0 %v2979
      %3173 = vmatprep.subr.mxu0 0.0
      %3174 = vmatpush1.msra.mxu0 %v2980
      %3175 = vmatprep.subr.mxu0 0.0
      %3176 = vmatpush1.msra.mxu0 %v2981
      %3177 = vmatprep.subr.mxu0 0.0
      %3178 = vmatpush1.msra.mxu0 %v2982
      %3179 = vmatprep.subr.mxu0 0.0
      %3180 = vmatpush1.msra.mxu0 %v2983
      %3181 = vmatprep.subr.mxu0 0.0
      %3182 = vmatpush1.msra.mxu0 %v2984
      %3183 = vmatprep.subr.mxu0 0.0
      %3184 = vmatpush1.msra.mxu0 %v2985
      %3185 = vmatprep.subr.mxu0 0.0
      %3186 = vmatpush1.msra.mxu0 %v2986
      %3187 = vmatprep.subr.mxu0 0.0
      %3188 = vmatpush1.msra.mxu0 %v2987
      %3189 = vmatprep.subr.mxu0 0.0
      %3190 = vmatpush1.msra.mxu0 %v2988
      %3191 = vmatprep.mubr.f32.mxu0 %v3112
      %3192 = vmatmul.mubr.f32.gmra.mrb[0].mxu0 %v3111
      %v3193 = vpop.f32.mrb[0].mxu0
      %v3194 = vadd.f32 0.0, %v3193
      %v3195 = vpop.f32.mrb[0].mxu0
      %3196 = vmatprep.mubr.f32.mxu0 %v3114
      %3197 = vmatmul.mubr.f32.gmra.mrb[0].mxu0 %v3113
      %v3198 = vpop.f32.mrb[0].mxu0
      %v3199 = vadd.f32 0.0, %v3198
      %v3200 = vpop.f32.mrb[0].mxu0
      %3201 = vmatprep.mubr.f32.mxu0 %v3116
      %3202 = vmatmul.mubr.f32.gmra.mrb[0].mxu0 %v3115
      %v3203 = vpop.f32.mrb[0].mxu0
      %v3204 = vadd.f32 0.0, %v3203
      %v3205 = vpop.f32.mrb[0].mxu0
      %3206 = vmatprep.mubr.f32.mxu0 %v3118
      %3207 = vmatmul.mubr.f32.gmra.mrb[0].mxu0 %v3117
      %v3208 = vpop.f32.mrb[0].mxu0
      %v3209 = vadd.f32 0.0, %v3208
      %v3210 = vpop.f32.mrb[0].mxu0
      %3211 = vmatprep.mubr.f32.mxu0 %v3120
      %3212 = vmatmul.mubr.f32.gmra.mrb[0].mxu0 %v3119
      %v3213 = vpop.f32.mrb[0].mxu0
      %v3214 = vadd.f32 0.0, %v3213
      %v3215 = vpop.f32.mrb[0].mxu0
      %3216 = vmatprep.mubr.f32.mxu0 %v3122
      %3217 = vmatmul.mubr.f32.gmra.mrb[0].mxu0 %v3121
      %v3218 = vpop.f32.mrb[0].mxu0
      %v3219 = vadd.f32 0.0, %v3218
      %v3220 = vpop.f32.mrb[0].mxu0
      %3221 = vmatprep.mubr.f32.mxu0 %v3124
      %3222 = vmatmul.mubr.f32.gmra.mrb[0].mxu0 %v3123
      %v3223 = vpop.f32.mrb[0].mxu0
      %v3224 = vadd.f32 0.0, %v3223
      %v3225 = vpop.f32.mrb[0].mxu0
      %3226 = vmatprep.mubr.f32.mxu0 %v3126
      %3227 = vmatmul.mubr.f32.gmra.mrb[0].mxu0 %v3125
      %v3228 = vpop.f32.mrb[0].mxu0
      %v3229 = vadd.f32 0.0, %v3228
      %v3230 = vpop.f32.mrb[0].mxu0
      %3231 = vdwg.mxu0
      %v3232 = vmax.f32 %v3072, %v3194
      %v3233 = vmax.f32 %v3077, %v3199
      %v3234 = vmax.f32 %v3082, %v3204
      %v3235 = vmax.f32 %v3087, %v3209
      %v3236 = vmax.f32 %v3092, %v3214
      %v3237 = vmax.f32 %v3097, %v3219
      %v3238 = vmax.f32 %v3102, %v3224
      %v3239 = vmax.f32 %v3107, %v3229
      %s3240 = scalar_lea.vmem %s7, 256
      %v3241 = vld [vmem:[%s3240] sm:$0xff]
      %v3242 = vld [vmem:[%s3240 + $0x8] sm:$0xff]
      %v3243 = vld [vmem:[%s3240 + $0x10] sm:$0xff]
      %v3244 = vld [vmem:[%s3240 + $0x18] sm:$0xff]
      %v3245 = vld [vmem:[%s3240 + $0x20] sm:$0xff]
      %v3246 = vld [vmem:[%s3240 + $0x28] sm:$0xff]
      %v3247 = vld [vmem:[%s3240 + $0x30] sm:$0xff]
      %v3248 = vld [vmem:[%s3240 + $0x38] sm:$0xff]
      %v3249 = vld [vmem:[%s3240 + $0x40] sm:$0xff]
      %v3250 = vld [vmem:[%s3240 + $0x48] sm:$0xff]
      %v3251 = vld [vmem:[%s3240 + $0x50] sm:$0xff]
      %v3252 = vld [vmem:[%s3240 + $0x58] sm:$0xff]
      %v3253 = vld [vmem:[%s3240 + $0x60] sm:$0xff]
      %v3254 = vld [vmem:[%s3240 + $0x68] sm:$0xff]
      %v3255 = vld [vmem:[%s3240 + $0x70] sm:$0xff]
      %v3256 = vld [vmem:[%s3240 + $0x78] sm:$0xff]
      %3257 = vmatprep.subr.mxu0 0.0
      %3258 = vmatpush1.msra.mxu0 %v2957
      %3259 = vmatprep.subr.mxu0 0.0
      %3260 = vmatpush1.msra.mxu0 %v2958
      %3261 = vmatprep.subr.mxu0 0.0
      %3262 = vmatpush1.msra.mxu0 %v2959
      %3263 = vmatprep.subr.mxu0 0.0
      %3264 = vmatpush1.msra.mxu0 %v2960
      %3265 = vmatprep.subr.mxu0 0.0
      %3266 = vmatpush1.msra.mxu0 %v2961
      %3267 = vmatprep.subr.mxu0 0.0
      %3268 = vmatpush1.msra.mxu0 %v2962
      %3269 = vmatprep.subr.mxu0 0.0
      %3270 = vmatpush1.msra.mxu0 %v2963
      %3271 = vmatprep.subr.mxu0 0.0
      %3272 = vmatpush1.msra.mxu0 %v2964
      %3273 = vmatprep.subr.mxu0 0.0
      %3274 = vmatpush1.msra.mxu0 %v2965
      %3275 = vmatprep.subr.mxu0 0.0
      %3276 = vmatpush1.msra.mxu0 %v2966
      %3277 = vmatprep.subr.mxu0 0.0
      %3278 = vmatpush1.msra.mxu0 %v2967
      %3279 = vmatprep.subr.mxu0 0.0
      %3280 = vmatpush1.msra.mxu0 %v2968
      %3281 = vmatprep.subr.mxu0 0.0
      %3282 = vmatpush1.msra.mxu0 %v2969
      %3283 = vmatprep.subr.mxu0 0.0
      %3284 = vmatpush1.msra.mxu0 %v2970
      %3285 = vmatprep.subr.mxu0 0.0
      %3286 = vmatpush1.msra.mxu0 %v2971
      %3287 = vmatprep.subr.mxu0 0.0
      %3288 = vmatpush1.msra.mxu0 %v2972
      %3289 = vmatprep.subr.mxu0 0.0
      %3290 = vmatpush1.msra.mxu0 %v2973
      %3291 = vmatprep.subr.mxu0 0.0
      %3292 = vmatpush1.msra.mxu0 %v2974
      %3293 = vmatprep.subr.mxu0 0.0
      %3294 = vmatpush1.msra.mxu0 %v2975
      %3295 = vmatprep.subr.mxu0 0.0
      %3296 = vmatpush1.msra.mxu0 %v2976
      %3297 = vmatprep.subr.mxu0 0.0
      %3298 = vmatpush1.msra.mxu0 %v2977
      %3299 = vmatprep.subr.mxu0 0.0
      %3300 = vmatpush1.msra.mxu0 %v2978
      %3301 = vmatprep.subr.mxu0 0.0
      %3302 = vmatpush1.msra.mxu0 %v2979
      %3303 = vmatprep.subr.mxu0 0.0
      %3304 = vmatpush1.msra.mxu0 %v2980
      %3305 = vmatprep.subr.mxu0 0.0
      %3306 = vmatpush1.msra.mxu0 %v2981
      %3307 = vmatprep.subr.mxu0 0.0
      %3308 = vmatpush1.msra.mxu0 %v2982
      %3309 = vmatprep.subr.mxu0 0.0
      %3310 = vmatpush1.msra.mxu0 %v2983
      %3311 = vmatprep.subr.mxu0 0.0
      %3312 = vmatpush1.msra.mxu0 %v2984
      %3313 = vmatprep.subr.mxu0 0.0
      %3314 = vmatpush1.msra.mxu0 %v2985
      %3315 = vmatprep.subr.mxu0 0.0
      %3316 = vmatpush1.msra.mxu0 %v2986
      %3317 = vmatprep.subr.mxu0 0.0
      %3318 = vmatpush1.msra.mxu0 %v2987
      %3319 = vmatprep.subr.mxu0 0.0
      %3320 = vmatpush1.msra.mxu0 %v2988
      %3321 = vmatprep.mubr.f32.mxu0 %v3242
      %3322 = vmatmul.mubr.f32.gmra.mrb[0].mxu0 %v3241
      %v3323 = vpop.f32.mrb[0].mxu0
      %v3324 = vadd.f32 0.0, %v3323
      %v3325 = vpop.f32.mrb[0].mxu0
      %3326 = vmatprep.mubr.f32.mxu0 %v3244
      %3327 = vmatmul.mubr.f32.gmra.mrb[0].mxu0 %v3243
      %v3328 = vpop.f32.mrb[0].mxu0
      %v3329 = vadd.f32 0.0, %v3328
      %v3330 = vpop.f32.mrb[0].mxu0
      %3331 = vmatprep.mubr.f32.mxu0 %v3246
      %3332 = vmatmul.mubr.f32.gmra.mrb[0].mxu0 %v3245
      %v3333 = vpop.f32.mrb[0].mxu0
      %v3334 = vadd.f32 0.0, %v3333
      %v3335 = vpop.f32.mrb[0].mxu0
      %3336 = vmatprep.mubr.f32.mxu0 %v3248
      %3337 = vmatmul.mubr.f32.gmra.mrb[0].mxu0 %v3247
      %v3338 = vpop.f32.mrb[0].mxu0
      %v3339 = vadd.f32 0.0, %v3338
      %v3340 = vpop.f32.mrb[0].mxu0
      %3341 = vmatprep.mubr.f32.mxu0 %v3250
      %3342 = vmatmul.mubr.f32.gmra.mrb[0].mxu0 %v3249
      %v3343 = vpop.f32.mrb[0].mxu0
      %v3344 = vadd.f32 0.0, %v3343
      %v3345 = vpop.f32.mrb[0].mxu0
      %3346 = vmatprep.mubr.f32.mxu0 %v3252
      %3347 = vmatmul.mubr.f32.gmra.mrb[0].mxu0 %v3251
      %v3348 = vpop.f32.mrb[0].mxu0
      %v3349 = vadd.f32 0.0, %v3348
      %v3350 = vpop.f32.mrb[0].mxu0
      %3351 = vmatprep.mubr.f32.mxu0 %v3254
      %3352 = vmatmul.mubr.f32.gmra.mrb[0].mxu0 %v3253
      %v3353 = vpop.f32.mrb[0].mxu0
      %v3354 = vadd.f32 0.0, %v3353
      %v3355 = vpop.f32.mrb[0].mxu0
      %3356 = vmatprep.mubr.f32.mxu0 %v3256
      %3357 = vmatmul.mubr.f32.gmra.mrb[0].mxu0 %v3255
      %v3358 = vpop.f32.mrb[0].mxu0
      %v3359 = vadd.f32 0.0, %v3358
      %v3360 = vpop.f32.mrb[0].mxu0
      %3361 = vdwg.mxu0
      %v3362 = vmax.f32 %v3232, %v3324
      %v3363 = vmax.f32 %v3233, %v3329
      %v3364 = vmax.f32 %v3234, %v3334
      %v3365 = vmax.f32 %v3235, %v3339
      %v3366 = vmax.f32 %v3236, %v3344
      %v3367 = vmax.f32 %v3237, %v3349
      %v3368 = vmax.f32 %v3238, %v3354
      %v3369 = vmax.f32 %v3239, %v3359
      %s3370 = scalar_lea.vmem %s7, 384
      %v3371 = vld [vmem:[%s3370] sm:$0xff]
      %v3372 = vld [vmem:[%s3370 + $0x8] sm:$0xff]
      %v3373 = vld [vmem:[%s3370 + $0x10] sm:$0xff]
      %v3374 = vld [vmem:[%s3370 + $0x18] sm:$0xff]
      %v3375 = vld [vmem:[%s3370 + $0x20] sm:$0xff]
      %v3376 = vld [vmem:[%s3370 + $0x28] sm:$0xff]
      %v3377 = vld [vmem:[%s3370 + $0x30] sm:$0xff]
      %v3378 = vld [vmem:[%s3370 + $0x38] sm:$0xff]
      %v3379 = vld [vmem:[%s3370 + $0x40] sm:$0xff]
      %v3380 = vld [vmem:[%s3370 + $0x48] sm:$0xff]
      %v3381 = vld [vmem:[%s3370 + $0x50] sm:$0xff]
      %v3382 = vld [vmem:[%s3370 + $0x58] sm:$0xff]
      %v3383 = vld [vmem:[%s3370 + $0x60] sm:$0xff]
      %v3384 = vld [vmem:[%s3370 + $0x68] sm:$0xff]
      %v3385 = vld [vmem:[%s3370 + $0x70] sm:$0xff]
      %v3386 = vld [vmem:[%s3370 + $0x78] sm:$0xff]
      %3387 = vmatprep.subr.mxu0 0.0
      %3388 = vmatpush1.msra.mxu0 %v2957
      %3389 = vmatprep.subr.mxu0 0.0
      %3390 = vmatpush1.msra.mxu0 %v2958
      %3391 = vmatprep.subr.mxu0 0.0
      %3392 = vmatpush1.msra.mxu0 %v2959
      %3393 = vmatprep.subr.mxu0 0.0
      %3394 = vmatpush1.msra.mxu0 %v2960
      %3395 = vmatprep.subr.mxu0 0.0
      %3396 = vmatpush1.msra.mxu0 %v2961
      %3397 = vmatprep.subr.mxu0 0.0
      %3398 = vmatpush1.msra.mxu0 %v2962
      %3399 = vmatprep.subr.mxu0 0.0
      %3400 = vmatpush1.msra.mxu0 %v2963
      %3401 = vmatprep.subr.mxu0 0.0
      %3402 = vmatpush1.msra.mxu0 %v2964
      %3403 = vmatprep.subr.mxu0 0.0
      %3404 = vmatpush1.msra.mxu0 %v2965
      %3405 = vmatprep.subr.mxu0 0.0
      %3406 = vmatpush1.msra.mxu0 %v2966
      %3407 = vmatprep.subr.mxu0 0.0
      %3408 = vmatpush1.msra.mxu0 %v2967
      %3409 = vmatprep.subr.mxu0 0.0
      %3410 = vmatpush1.msra.mxu0 %v2968
      %3411 = vmatprep.subr.mxu0 0.0
      %3412 = vmatpush1.msra.mxu0 %v2969
      %3413 = vmatprep.subr.mxu0 0.0
      %3414 = vmatpush1.msra.mxu0 %v2970
      %3415 = vmatprep.subr.mxu0 0.0
      %3416 = vmatpush1.msra.mxu0 %v2971
      %3417 = vmatprep.subr.mxu0 0.0
      %3418 = vmatpush1.msra.mxu0 %v2972
      %3419 = vmatprep.subr.mxu0 0.0
      %3420 = vmatpush1.msra.mxu0 %v2973
      %3421 = vmatprep.subr.mxu0 0.0
      %3422 = vmatpush1.msra.mxu0 %v2974
      %3423 = vmatprep.subr.mxu0 0.0
      %3424 = vmatpush1.msra.mxu0 %v2975
      %3425 = vmatprep.subr.mxu0 0.0
      %3426 = vmatpush1.msra.mxu0 %v2976
      %3427 = vmatprep.subr.mxu0 0.0
      %3428 = vmatpush1.msra.mxu0 %v2977
      %3429 = vmatprep.subr.mxu0 0.0
      %3430 = vmatpush1.msra.mxu0 %v2978
      %3431 = vmatprep.subr.mxu0 0.0
      %3432 = vmatpush1.msra.mxu0 %v2979
      %3433 = vmatprep.subr.mxu0 0.0
      %3434 = vmatpush1.msra.mxu0 %v2980
      %3435 = vmatprep.subr.mxu0 0.0
      %3436 = vmatpush1.msra.mxu0 %v2981
      %3437 = vmatprep.subr.mxu0 0.0
      %3438 = vmatpush1.msra.mxu0 %v2982
      %3439 = vmatprep.subr.mxu0 0.0
      %3440 = vmatpush1.msra.mxu0 %v2983
      %3441 = vmatprep.subr.mxu0 0.0
      %3442 = vmatpush1.msra.mxu0 %v2984
      %3443 = vmatprep.subr.mxu0 0.0
      %3444 = vmatpush1.msra.mxu0 %v2985
      %3445 = vmatprep.subr.mxu0 0.0
      %3446 = vmatpush1.msra.mxu0 %v2986
      %3447 = vmatprep.subr.mxu0 0.0
      %3448 = vmatpush1.msra.mxu0 %v2987
      %3449 = vmatprep.subr.mxu0 0.0
      %3450 = vmatpush1.msra.mxu0 %v2988
      %3451 = vmatprep.mubr.f32.mxu0 %v3372
      %3452 = vmatmul.mubr.f32.gmra.mrb[0].mxu0 %v3371
      %v3453 = vpop.f32.mrb[0].mxu0
      %v3454 = vadd.f32 0.0, %v3453
      %v3455 = vpop.f32.mrb[0].mxu0
      %3456 = vmatprep.mubr.f32.mxu0 %v3374
      %3457 = vmatmul.mubr.f32.gmra.mrb[0].mxu0 %v3373
      %v3458 = vpop.f32.mrb[0].mxu0
      %v3459 = vadd.f32 0.0, %v3458
      %v3460 = vpop.f32.mrb[0].mxu0
      %3461 = vmatprep.mubr.f32.mxu0 %v3376
      %3462 = vmatmul.mubr.f32.gmra.mrb[0].mxu0 %v3375
      %v3463 = vpop.f32.mrb[0].mxu0
      %v3464 = vadd.f32 0.0, %v3463
      %v3465 = vpop.f32.mrb[0].mxu0
      %3466 = vmatprep.mubr.f32.mxu0 %v3378
      %3467 = vmatmul.mubr.f32.gmra.mrb[0].mxu0 %v3377
      %v3468 = vpop.f32.mrb[0].mxu0
      %v3469 = vadd.f32 0.0, %v3468
      %v3470 = vpop.f32.mrb[0].mxu0
      %3471 = vmatprep.mubr.f32.mxu0 %v3380
      %3472 = vmatmul.mubr.f32.gmra.mrb[0].mxu0 %v3379
      %v3473 = vpop.f32.mrb[0].mxu0
      %v3474 = vadd.f32 0.0, %v3473
      %v3475 = vpop.f32.mrb[0].mxu0
      %3476 = vmatprep.mubr.f32.mxu0 %v3382
      %3477 = vmatmul.mubr.f32.gmra.mrb[0].mxu0 %v3381
      %v3478 = vpop.f32.mrb[0].mxu0
      %v3479 = vadd.f32 0.0, %v3478
      %v3480 = vpop.f32.mrb[0].mxu0
      %3481 = vmatprep.mubr.f32.mxu0 %v3384
      %3482 = vmatmul.mubr.f32.gmra.mrb[0].mxu0 %v3383
      %v3483 = vpop.f32.mrb[0].mxu0
      %v3484 = vadd.f32 0.0, %v3483
      %v3485 = vpop.f32.mrb[0].mxu0
      %3486 = vmatprep.mubr.f32.mxu0 %v3386
      %3487 = vmatmul.mubr.f32.gmra.mrb[0].mxu0 %v3385
      %v3488 = vpop.f32.mrb[0].mxu0
      %v3489 = vadd.f32 0.0, %v3488
      %v3490 = vpop.f32.mrb[0].mxu0
      %3491 = vdwg.mxu0
      %v3492 = vmax.f32 %v3362, %v3454
      %v3493 = vmax.f32 %v3363, %v3459
      %v3494 = vmax.f32 %v3364, %v3464
      %v3495 = vmax.f32 %v3365, %v3469
      %v3496 = vmax.f32 %v3366, %v3474
      %v3497 = vmax.f32 %v3367, %v3479
      %v3498 = vmax.f32 %v3368, %v3484
      %v3499 = vmax.f32 %v3369, %v3489
      %vm3500 = vcmask 130048
      %3501 = vst.msk [vmem:[#allocation2] sm:$0xff] %vm3500, 0.0
      %vm3502 = vcmask 123904
      %3503 = vst.msk [vmem:[#allocation2 + $0x8] sm:$0x3] %vm3502, 0.0
      %3504 = vst.msk [vmem:[#allocation2 + $0x10] sm:$0xff] %vm3500, 0.0
      %3505 = vst.msk [vmem:[#allocation2 + $0x18] sm:$0x3] %vm3502, 0.0
      %3506 = vst.msk [vmem:[#allocation2 + $0x20] sm:$0xff] %vm3500, 0.0
      %3507 = vst.msk [vmem:[#allocation2 + $0x28] sm:$0x3] %vm3502, 0.0
      %3508 = vst.msk [vmem:[#allocation2 + $0x30] sm:$0xff] %vm3500, 0.0
      %3509 = vst.msk [vmem:[#allocation2 + $0x38] sm:$0x3] %vm3502, 0.0
      %3510 = vst.msk [vmem:[#allocation2 + $0x40] sm:$0xff] %vm3500, 0.0
      %3511 = vst.msk [vmem:[#allocation2 + $0x48] sm:$0x3] %vm3502, 0.0
      %3512 = vst.msk [vmem:[#allocation2 + $0x50] sm:$0xff] %vm3500, 0.0
      %3513 = vst.msk [vmem:[#allocation2 + $0x58] sm:$0x3] %vm3502, 0.0
      %3514 = vst.msk [vmem:[#allocation2 + $0x60] sm:$0xff] %vm3500, 0.0
      %3515 = vst.msk [vmem:[#allocation2 + $0x68] sm:$0x3] %vm3502, 0.0
      %3516 = vst.msk [vmem:[#allocation2 + $0x70] sm:$0xff] %vm3500, 0.0
      %3517 = vst.msk [vmem:[#allocation2 + $0x78] sm:$0x3] %vm3502, 0.0
      %3518 = vst.msk [vmem:[#allocation2 + $0x80] sm:$0xff] %vm3500, 0.0
      %3519 = vst.msk [vmem:[#allocation2 + $0x88] sm:$0x3] %vm3502, 0.0
      %3520 = vst.msk [vmem:[#allocation2 + $0x90] sm:$0xff] %vm3500, 0.0
      %3521 = vst.msk [vmem:[#allocation2 + $0x98] sm:$0x3] %vm3502, 0.0
      %s3522 = scalar_lea.vmem [#allocation2], 16
      %3523 = vst.msk [vmem:[%s3522 + $0x1] sm:$0xff] %vm3500, %v3492
      %3524 = vst.msk [vmem:[%s3522 + $0x11] sm:$0xff] %vm3500, %v3493
      %3525 = vst.msk [vmem:[%s3522 + $0x21] sm:$0xff] %vm3500, %v3494
      %3526 = vst.msk [vmem:[%s3522 + $0x31] sm:$0xff] %vm3500, %v3495
      %3527 = vst.msk [vmem:[%s3522 + $0x41] sm:$0xff] %vm3500, %v3496
      %3528 = vst.msk [vmem:[%s3522 + $0x51] sm:$0xff] %vm3500, %v3497
      %3529 = vst.msk [vmem:[%s3522 + $0x61] sm:$0xff] %vm3500, %v3498
      %3530 = vst.msk [vmem:[%s3522 + $0x71] sm:$0xff] %vm3500, %v3499
      %v3531 = vld [vmem:[#allocation2] sm:$0xff]
      %v3532 = vld [vmem:[#allocation2 + $0x10] sm:$0xff]
      %v3533 = vld [vmem:[#allocation2 + $0x20] sm:$0xff]
      %v3534 = vld [vmem:[#allocation2 + $0x30] sm:$0xff]
      %v3535 = vld [vmem:[#allocation2 + $0x40] sm:$0xff]
      %v3536 = vld [vmem:[#allocation2 + $0x50] sm:$0xff]
      %v3537 = vld [vmem:[#allocation2 + $0x60] sm:$0xff]
      %v3538 = vld [vmem:[#allocation2 + $0x70] sm:$0xff]
      %v3539 = vpack.c.bf16 %v3532, %v3531
      %v3540 = vpack.c.bf16 %v3534, %v3533
      %v3541 = vpack.c.bf16 %v3536, %v3535
      %v3542 = vpack.c.bf16 %v3538, %v3537
      %v3543 = vld [vmem:[%s3] sm:$0xf]
      %v3544 = vld [vmem:[%s3 + $0x4] sm:$0xf]
      %v3545 = vld [vmem:[#allocation2 + $0x1] sm:$0xff]
      %v3546 = vld [vmem:[#allocation2 + $0x11] sm:$0xff]
      %v3547 = vld [vmem:[#allocation2 + $0x21] sm:$0xff]
      %v3548 = vld [vmem:[#allocation2 + $0x31] sm:$0xff]
      %v3549 = vld [vmem:[#allocation2 + $0x41] sm:$0xff]
      %v3550 = vld [vmem:[#allocation2 + $0x51] sm:$0xff]
      %v3551 = vld [vmem:[#allocation2 + $0x61] sm:$0xff]
      %v3552 = vld [vmem:[#allocation2 + $0x71] sm:$0xff]
      %v3553 = vpack.c.bf16 %v3546, %v3545
      %v3554 = vpack.c.bf16 %v3548, %v3547
      %v3555 = vpack.c.bf16 %v3550, %v3549
      %v3556 = vpack.c.bf16 %v3552, %v3551
      %s3557 = scalar_lea.vmem %s3, 8
      %v3558 = vld [vmem:[%s3557] sm:$0xf]
      %v3559 = vld [vmem:[%s3557 + $0x4] sm:$0xf]
      %v3562 = vunpack.c.l.b16 %v3558
      %v3563 = vunpack.c.l.b16 %v3559
      %v3564 = vpack.c.b16 %v3563, %v3562
      %v3567 = vsel %vm3500, %v3553, 0
      %v3570 = vsel %vm3500, %v3554, 0
      %v3573 = vsel %vm3500, %v3555, 0
      %v3576 = vsel %vm3500, %v3556, 0
      %3578 = vmatprep.subr.bf16.mxu0 0
      %3579 = vmatpush1.bf16.msra.mxu0 %v3564
      %3580 = vmatprep.subr.bf16.mxu0 0
      %3581 = vmatpush1.bf16.msra.mxu0 0
      %3582 = vmatprep.subr.bf16.mxu0 0
      %3583 = vmatpush1.bf16.msra.mxu0 0
      %3584 = vmatprep.subr.bf16.mxu0 0
      %3585 = vmatpush1.bf16.msra.mxu0 0
      %3586 = vmatprep.subr.bf16.mxu0 0
      %3587 = vmatpush1.bf16.msra.mxu0 0
      %3588 = vmatprep.subr.bf16.mxu0 0
      %3589 = vmatpush1.bf16.msra.mxu0 0
      %3590 = vmatprep.subr.bf16.mxu0 0
      %3591 = vmatpush1.bf16.msra.mxu0 0
      %3592 = vmatprep.subr.bf16.mxu0 0
      %3593 = vmatpush1.bf16.msra.mxu0 0
      %3594 = vmatprep.subr.bf16.mxu0 0
      %3595 = vmatpush1.bf16.msra.mxu0 0
      %3596 = vmatprep.subr.bf16.mxu0 0
      %3597 = vmatpush1.bf16.msra.mxu0 0
      %3598 = vmatprep.subr.bf16.mxu0 0
      %3599 = vmatpush1.bf16.msra.mxu0 0
      %3600 = vmatprep.subr.bf16.mxu0 0
      %3601 = vmatpush1.bf16.msra.mxu0 0
      %3602 = vmatprep.subr.bf16.mxu0 0
      %3603 = vmatpush1.bf16.msra.mxu0 0
      %3604 = vmatprep.subr.bf16.mxu0 0
      %3605 = vmatpush1.bf16.msra.mxu0 0
      %3606 = vmatprep.subr.bf16.mxu0 0
      %3607 = vmatpush1.bf16.msra.mxu0 0
      %3608 = vmatprep.subr.bf16.mxu0 0
      %3609 = vmatpush1.bf16.msra.mxu0 0
      %3610 = vmatprep.mubr.bf16.mxu0 0
      %3611 = vmatmul.mubr.bf16.gmra.mrb[0].mxu0 %v3567
      %v3612 = vpop.f32.mrb[0].mxu0
      %v3613 = vadd.f32 0.0, %v3612
      %v3614 = vpop.f32.mrb[0].mxu0
      %v3615 = vpop.f32.mrb[0].mxu0
      %v3616 = vadd.f32 0.0, %v3615
      %v3617 = vpop.f32.mrb[0].mxu0
      %3618 = vmatprep.mubr.bf16.mxu0 0
      %3619 = vmatmul.mubr.bf16.gmra.mrb[0].mxu0 %v3570
      %v3620 = vpop.f32.mrb[0].mxu0
      %v3621 = vadd.f32 0.0, %v3620
      %v3622 = vpop.f32.mrb[0].mxu0
      %v3623 = vpop.f32.mrb[0].mxu0
      %v3624 = vadd.f32 0.0, %v3623
      %v3625 = vpop.f32.mrb[0].mxu0
      %3626 = vmatprep.mubr.bf16.mxu0 0
      %3627 = vmatmul.mubr.bf16.gmra.mrb[0].mxu0 %v3573
      %v3628 = vpop.f32.mrb[0].mxu0
      %v3629 = vadd.f32 0.0, %v3628
      %v3630 = vpop.f32.mrb[0].mxu0
      %v3631 = vpop.f32.mrb[0].mxu0
      %v3632 = vadd.f32 0.0, %v3631
      %v3633 = vpop.f32.mrb[0].mxu0
      %3634 = vmatprep.mubr.bf16.mxu0 0
      %3635 = vmatmul.mubr.bf16.gmra.mrb[0].mxu0 %v3576
      %v3636 = vpop.f32.mrb[0].mxu0
      %v3637 = vadd.f32 0.0, %v3636
      %v3638 = vpop.f32.mrb[0].mxu0
      %v3639 = vpop.f32.mrb[0].mxu0
      %v3640 = vadd.f32 0.0, %v3639
      %v3641 = vpop.f32.mrb[0].mxu0
      %3642 = vdwg.mxu0
      %v3645 = vunpack.c.l.b16 %v3543
      %v3646 = vunpack.c.l.b16 %v3544
      %v3647 = vpack.c.b16 %v3646, %v3645
      %v3650 = vsel %vm3500, %v3539, 0
      %v3653 = vsel %vm3500, %v3540, 0
      %v3656 = vsel %vm3500, %v3541, 0
      %v3659 = vsel %vm3500, %v3542, 0
      %3661 = vmatprep.subr.bf16.mxu0 0
      %3662 = vmatpush1.bf16.msra.mxu0 %v3647
      %3663 = vmatprep.subr.bf16.mxu0 0
      %3664 = vmatpush1.bf16.msra.mxu0 0
      %3665 = vmatprep.subr.bf16.mxu0 0
      %3666 = vmatpush1.bf16.msra.mxu0 0
      %3667 = vmatprep.subr.bf16.mxu0 0
      %3668 = vmatpush1.bf16.msra.mxu0 0
      %3669 = vmatprep.subr.bf16.mxu0 0
      %3670 = vmatpush1.bf16.msra.mxu0 0
      %3671 = vmatprep.subr.bf16.mxu0 0
      %3672 = vmatpush1.bf16.msra.mxu0 0
      %3673 = vmatprep.subr.bf16.mxu0 0
      %3674 = vmatpush1.bf16.msra.mxu0 0
      %3675 = vmatprep.subr.bf16.mxu0 0
      %3676 = vmatpush1.bf16.msra.mxu0 0
      %3677 = vmatprep.subr.bf16.mxu0 0
      %3678 = vmatpush1.bf16.msra.mxu0 0
      %3679 = vmatprep.subr.bf16.mxu0 0
      %3680 = vmatpush1.bf16.msra.mxu0 0
      %3681 = vmatprep.subr.bf16.mxu0 0
      %3682 = vmatpush1.bf16.msra.mxu0 0
      %3683 = vmatprep.subr.bf16.mxu0 0
      %3684 = vmatpush1.bf16.msra.mxu0 0
      %3685 = vmatprep.subr.bf16.mxu0 0
      %3686 = vmatpush1.bf16.msra.mxu0 0
      %3687 = vmatprep.subr.bf16.mxu0 0
      %3688 = vmatpush1.bf16.msra.mxu0 0
      %3689 = vmatprep.subr.bf16.mxu0 0
      %3690 = vmatpush1.bf16.msra.mxu0 0
      %3691 = vmatprep.subr.bf16.mxu0 0
      %3692 = vmatpush1.bf16.msra.mxu0 0
      %3693 = vmatprep.mubr.bf16.mxu0 0
      %3694 = vmatmul.mubr.bf16.gmra.mrb[0].mxu0 %v3650
      %v3695 = vpop.f32.mrb[0].mxu0
      %v3696 = vadd.f32 %v3613, %v3695
      %v3697 = vpop.f32.mrb[0].mxu0
      %v3698 = vpop.f32.mrb[0].mxu0
      %v3699 = vadd.f32 %v3616, %v3698
      %v3700 = vpop.f32.mrb[0].mxu0
      %3701 = vmatprep.mubr.bf16.mxu0 0
      %3702 = vmatmul.mubr.bf16.gmra.mrb[0].mxu0 %v3653
      %v3703 = vpop.f32.mrb[0].mxu0
      %v3704 = vadd.f32 %v3621, %v3703
      %v3705 = vpop.f32.mrb[0].mxu0
      %v3706 = vpop.f32.mrb[0].mxu0
      %v3707 = vadd.f32 %v3624, %v3706
      %v3708 = vpop.f32.mrb[0].mxu0
      %3709 = vmatprep.mubr.bf16.mxu0 0
      %3710 = vmatmul.mubr.bf16.gmra.mrb[0].mxu0 %v3656
      %v3711 = vpop.f32.mrb[0].mxu0
      %v3712 = vadd.f32 %v3629, %v3711
      %v3713 = vpop.f32.mrb[0].mxu0
      %v3714 = vpop.f32.mrb[0].mxu0
      %v3715 = vadd.f32 %v3632, %v3714
      %v3716 = vpop.f32.mrb[0].mxu0
      %3717 = vmatprep.mubr.bf16.mxu0 0
      %3718 = vmatmul.mubr.bf16.gmra.mrb[0].mxu0 %v3659
      %v3719 = vpop.f32.mrb[0].mxu0
      %v3720 = vadd.f32 %v3637, %v3719
      %v3721 = vpop.f32.mrb[0].mxu0
      %v3722 = vpop.f32.mrb[0].mxu0
      %v3723 = vadd.f32 %v3640, %v3722
      %v3724 = vpop.f32.mrb[0].mxu0
      %3725 = vdwg.mxu0
      %v3726 = vld [vmem:[#allocation2 + $0x2] sm:$0xff]
      %v3727 = vld [vmem:[#allocation2 + $0x12] sm:$0xff]
      %v3728 = vld [vmem:[#allocation2 + $0x22] sm:$0xff]
      %v3729 = vld [vmem:[#allocation2 + $0x32] sm:$0xff]
      %v3730 = vld [vmem:[#allocation2 + $0x42] sm:$0xff]
      %v3731 = vld [vmem:[#allocation2 + $0x52] sm:$0xff]
      %v3732 = vld [vmem:[#allocation2 + $0x62] sm:$0xff]
      %v3733 = vld [vmem:[#allocation2 + $0x72] sm:$0xff]
      %v3734 = vpack.c.bf16 %v3727, %v3726
      %v3735 = vpack.c.bf16 %v3729, %v3728
      %v3736 = vpack.c.bf16 %v3731, %v3730
      %v3737 = vpack.c.bf16 %v3733, %v3732
      %s3738 = scalar_lea.vmem %s3, 16
      %v3739 = vld [vmem:[%s3738] sm:$0xf]
      %v3740 = vld [vmem:[%s3738 + $0x4] sm:$0xf]
      %v3743 = vunpack.c.l.b16 %v3739
      %v3744 = vunpack.c.l.b16 %v3740
      %v3745 = vpack.c.b16 %v3744, %v3743
      %v3748 = vsel %vm3500, %v3734, 0
      %v3751 = vsel %vm3500, %v3735, 0
      %v3754 = vsel %vm3500, %v3736, 0
      %v3757 = vsel %vm3500, %v3737, 0
      %3759 = vmatprep.subr.bf16.mxu0 0
      %3760 = vmatpush1.bf16.msra.mxu0 %v3745
      %3761 = vmatprep.subr.bf16.mxu0 0
      %3762 = vmatpush1.bf16.msra.mxu0 0
      %3763 = vmatprep.subr.bf16.mxu0 0
      %3764 = vmatpush1.bf16.msra.mxu0 0
      %3765 = vmatprep.subr.bf16.mxu0 0
      %3766 = vmatpush1.bf16.msra.mxu0 0
      %3767 = vmatprep.subr.bf16.mxu0 0
      %3768 = vmatpush1.bf16.msra.mxu0 0
      %3769 = vmatprep.subr.bf16.mxu0 0
      %3770 = vmatpush1.bf16.msra.mxu0 0
      %3771 = vmatprep.subr.bf16.mxu0 0
      %3772 = vmatpush1.bf16.msra.mxu0 0
      %3773 = vmatprep.subr.bf16.mxu0 0
      %3774 = vmatpush1.bf16.msra.mxu0 0
      %3775 = vmatprep.subr.bf16.mxu0 0
      %3776 = vmatpush1.bf16.msra.mxu0 0
      %3777 = vmatprep.subr.bf16.mxu0 0
      %3778 = vmatpush1.bf16.msra.mxu0 0
      %3779 = vmatprep.subr.bf16.mxu0 0
      %3780 = vmatpush1.bf16.msra.mxu0 0
      %3781 = vmatprep.subr.bf16.mxu0 0
      %3782 = vmatpush1.bf16.msra.mxu0 0
      %3783 = vmatprep.subr.bf16.mxu0 0
      %3784 = vmatpush1.bf16.msra.mxu0 0
      %3785 = vmatprep.subr.bf16.mxu0 0
      %3786 = vmatpush1.bf16.msra.mxu0 0
      %3787 = vmatprep.subr.bf16.mxu0 0
      %3788 = vmatpush1.bf16.msra.mxu0 0
      %3789 = vmatprep.subr.bf16.mxu0 0
      %3790 = vmatpush1.bf16.msra.mxu0 0
      %3791 = vmatprep.mubr.bf16.mxu0 0
      %3792 = vmatmul.mubr.bf16.gmra.mrb[0].mxu0 %v3748
      %v3793 = vpop.f32.mrb[0].mxu0
      %v3794 = vadd.f32 0.0, %v3793
      %v3795 = vpop.f32.mrb[0].mxu0
      %v3796 = vpop.f32.mrb[0].mxu0
      %v3797 = vadd.f32 0.0, %v3796
      %v3798 = vpop.f32.mrb[0].mxu0
      %3799 = vmatprep.mubr.bf16.mxu0 0
      %3800 = vmatmul.mubr.bf16.gmra.mrb[0].mxu0 %v3751
      %v3801 = vpop.f32.mrb[0].mxu0
      %v3802 = vadd.f32 0.0, %v3801
      %v3803 = vpop.f32.mrb[0].mxu0
      %v3804 = vpop.f32.mrb[0].mxu0
      %v3805 = vadd.f32 0.0, %v3804
      %v3806 = vpop.f32.mrb[0].mxu0
      %3807 = vmatprep.mubr.bf16.mxu0 0
      %3808 = vmatmul.mubr.bf16.gmra.mrb[0].mxu0 %v3754
      %v3809 = vpop.f32.mrb[0].mxu0
      %v3810 = vadd.f32 0.0, %v3809
      %v3811 = vpop.f32.mrb[0].mxu0
      %v3812 = vpop.f32.mrb[0].mxu0
      %v3813 = vadd.f32 0.0, %v3812
      %v3814 = vpop.f32.mrb[0].mxu0
      %3815 = vmatprep.mubr.bf16.mxu0 0
      %3816 = vmatmul.mubr.bf16.gmra.mrb[0].mxu0 %v3757
      %v3817 = vpop.f32.mrb[0].mxu0
      %v3818 = vadd.f32 0.0, %v3817
      %v3819 = vpop.f32.mrb[0].mxu0
      %v3820 = vpop.f32.mrb[0].mxu0
      %v3821 = vadd.f32 0.0, %v3820
      %v3822 = vpop.f32.mrb[0].mxu0
      %3823 = vdwg.mxu0
      %v3824 = vadd.f32 %v3696, %v3794
      %v3825 = vadd.f32 %v3699, %v3797
      %v3826 = vadd.f32 %v3704, %v3802
      %v3827 = vadd.f32 %v3707, %v3805
      %v3828 = vadd.f32 %v3712, %v3810
      %v3829 = vadd.f32 %v3715, %v3813
      %v3830 = vadd.f32 %v3720, %v3818
      %v3831 = vadd.f32 %v3723, %v3821
      %v3832 = vld [vmem:[%s3522] sm:$0xff]
      %v3833 = vld [vmem:[%s3522 + $0x10] sm:$0xff]
      %v3834 = vld [vmem:[%s3522 + $0x20] sm:$0xff]
      %v3835 = vld [vmem:[%s3522 + $0x30] sm:$0xff]
      %v3836 = vld [vmem:[%s3522 + $0x40] sm:$0xff]
      %v3837 = vld [vmem:[%s3522 + $0x50] sm:$0xff]
      %v3838 = vld [vmem:[%s3522 + $0x60] sm:$0xff]
      %v3839 = vld [vmem:[%s3522 + $0x70] sm:$0xff]
      %v3840 = vpack.c.bf16 %v3833, %v3832
      %v3841 = vpack.c.bf16 %v3835, %v3834
      %v3842 = vpack.c.bf16 %v3837, %v3836
      %v3843 = vpack.c.bf16 %v3839, %v3838
      %s3844 = scalar_lea.vmem %s3, 24
      %v3845 = vld [vmem:[%s3844] sm:$0xf]
      %v3846 = vld [vmem:[%s3844 + $0x4] sm:$0xf]
      %v3849 = vunpack.c.l.b16 %v3845
      %v3850 = vunpack.c.l.b16 %v3846
      %v3851 = vpack.c.b16 %v3850, %v3849
      %v3854 = vsel %vm3500, %v3840, 0
      %v3857 = vsel %vm3500, %v3841, 0
      %v3860 = vsel %vm3500, %v3842, 0
      %v3863 = vsel %vm3500, %v3843, 0
      %3865 = vmatprep.subr.bf16.mxu0 0
      %3866 = vmatpush1.bf16.msra.mxu0 %v3851
      %3867 = vmatprep.subr.bf16.mxu0 0
      %3868 = vmatpush1.bf16.msra.mxu0 0
      %3869 = vmatprep.subr.bf16.mxu0 0
      %3870 = vmatpush1.bf16.msra.mxu0 0
      %3871 = vmatprep.subr.bf16.mxu0 0
      %3872 = vmatpush1.bf16.msra.mxu0 0
      %3873 = vmatprep.subr.bf16.mxu0 0
      %3874 = vmatpush1.bf16.msra.mxu0 0
      %3875 = vmatprep.subr.bf16.mxu0 0
      %3876 = vmatpush1.bf16.msra.mxu0 0
      %3877 = vmatprep.subr.bf16.mxu0 0
      %3878 = vmatpush1.bf16.msra.mxu0 0
      %3879 = vmatprep.subr.bf16.mxu0 0
      %3880 = vmatpush1.bf16.msra.mxu0 0
      %3881 = vmatprep.subr.bf16.mxu0 0
      %3882 = vmatpush1.bf16.msra.mxu0 0
      %3883 = vmatprep.subr.bf16.mxu0 0
      %3884 = vmatpush1.bf16.msra.mxu0 0
      %3885 = vmatprep.subr.bf16.mxu0 0
      %3886 = vmatpush1.bf16.msra.mxu0 0
      %3887 = vmatprep.subr.bf16.mxu0 0
      %3888 = vmatpush1.bf16.msra.mxu0 0
      %3889 = vmatprep.subr.bf16.mxu0 0
      %3890 = vmatpush1.bf16.msra.mxu0 0
      %3891 = vmatprep.subr.bf16.mxu0 0
      %3892 = vmatpush1.bf16.msra.mxu0 0
      %3893 = vmatprep.subr.bf16.mxu0 0
      %3894 = vmatpush1.bf16.msra.mxu0 0
      %3895 = vmatprep.subr.bf16.mxu0 0
      %3896 = vmatpush1.bf16.msra.mxu0 0
      %3897 = vmatprep.mubr.bf16.mxu0 0
      %3898 = vmatmul.mubr.bf16.gmra.mrb[0].mxu0 %v3854
      %v3899 = vpop.f32.mrb[0].mxu0
      %v3900 = vadd.f32 0.0, %v3899
      %v3901 = vpop.f32.mrb[0].mxu0
      %v3902 = vpop.f32.mrb[0].mxu0
      %v3903 = vadd.f32 0.0, %v3902
      %v3904 = vpop.f32.mrb[0].mxu0
      %3905 = vmatprep.mubr.bf16.mxu0 0
      %3906 = vmatmul.mubr.bf16.gmra.mrb[0].mxu0 %v3857
      %v3907 = vpop.f32.mrb[0].mxu0
      %v3908 = vadd.f32 0.0, %v3907
      %v3909 = vpop.f32.mrb[0].mxu0
      %v3910 = vpop.f32.mrb[0].mxu0
      %v3911 = vadd.f32 0.0, %v3910
      %v3912 = vpop.f32.mrb[0].mxu0
      %3913 = vmatprep.mubr.bf16.mxu0 0
      %3914 = vmatmul.mubr.bf16.gmra.mrb[0].mxu0 %v3860
      %v3915 = vpop.f32.mrb[0].mxu0
      %v3916 = vadd.f32 0.0, %v3915
      %v3917 = vpop.f32.mrb[0].mxu0
      %v3918 = vpop.f32.mrb[0].mxu0
      %v3919 = vadd.f32 0.0, %v3918
      %v3920 = vpop.f32.mrb[0].mxu0
      %3921 = vmatprep.mubr.bf16.mxu0 0
      %3922 = vmatmul.mubr.bf16.gmra.mrb[0].mxu0 %v3863
      %v3923 = vpop.f32.mrb[0].mxu0
      %v3924 = vadd.f32 0.0, %v3923
      %v3925 = vpop.f32.mrb[0].mxu0
      %v3926 = vpop.f32.mrb[0].mxu0
      %v3927 = vadd.f32 0.0, %v3926
      %v3928 = vpop.f32.mrb[0].mxu0
      %3929 = vdwg.mxu0
      %v3930 = vadd.f32 %v3824, %v3900
      %v3931 = vadd.f32 %v3825, %v3903
      %v3932 = vadd.f32 %v3826, %v3908
      %v3933 = vadd.f32 %v3827, %v3911
      %v3934 = vadd.f32 %v3828, %v3916
      %v3935 = vadd.f32 %v3829, %v3919
      %v3936 = vadd.f32 %v3830, %v3924
      %v3937 = vadd.f32 %v3831, %v3927
      %v3938 = vld [vmem:[%s3522 + $0x1] sm:$0xff]
      %v3939 = vld [vmem:[%s3522 + $0x11] sm:$0xff]
      %v3940 = vld [vmem:[%s3522 + $0x21] sm:$0xff]
      %v3941 = vld [vmem:[%s3522 + $0x31] sm:$0xff]
      %v3942 = vld [vmem:[%s3522 + $0x41] sm:$0xff]
      %v3943 = vld [vmem:[%s3522 + $0x51] sm:$0xff]
      %v3944 = vld [vmem:[%s3522 + $0x61] sm:$0xff]
      %v3945 = vld [vmem:[%s3522 + $0x71] sm:$0xff]
      %v3946 = vpack.c.bf16 %v3939, %v3938
      %v3947 = vpack.c.bf16 %v3941, %v3940
      %v3948 = vpack.c.bf16 %v3943, %v3942
      %v3949 = vpack.c.bf16 %v3945, %v3944
      %s3950 = scalar_lea.vmem %s3, 32
      %v3951 = vld [vmem:[%s3950] sm:$0xf]
      %v3952 = vld [vmem:[%s3950 + $0x4] sm:$0xf]
      %v3955 = vunpack.c.l.b16 %v3951
      %v3956 = vunpack.c.l.b16 %v3952
      %v3957 = vpack.c.b16 %v3956, %v3955
      %v3960 = vsel %vm3500, %v3946, 0
      %v3963 = vsel %vm3500, %v3947, 0
      %v3966 = vsel %vm3500, %v3948, 0
      %v3969 = vsel %vm3500, %v3949, 0
      %3971 = vmatprep.subr.bf16.mxu0 0
      %3972 = vmatpush1.bf16.msra.mxu0 %v3957
      %3973 = vmatprep.subr.bf16.mxu0 0
      %3974 = vmatpush1.bf16.msra.mxu0 0
      %3975 = vmatprep.subr.bf16.mxu0 0
      %3976 = vmatpush1.bf16.msra.mxu0 0
      %3977 = vmatprep.subr.bf16.mxu0 0
      %3978 = vmatpush1.bf16.msra.mxu0 0
      %3979 = vmatprep.subr.bf16.mxu0 0
      %3980 = vmatpush1.bf16.msra.mxu0 0
      %3981 = vmatprep.subr.bf16.mxu0 0
      %3982 = vmatpush1.bf16.msra.mxu0 0
      %3983 = vmatprep.subr.bf16.mxu0 0
      %3984 = vmatpush1.bf16.msra.mxu0 0
      %3985 = vmatprep.subr.bf16.mxu0 0
      %3986 = vmatpush1.bf16.msra.mxu0 0
      %3987 = vmatprep.subr.bf16.mxu0 0
      %3988 = vmatpush1.bf16.msra.mxu0 0
      %3989 = vmatprep.subr.bf16.mxu0 0
      %3990 = vmatpush1.bf16.msra.mxu0 0
      %3991 = vmatprep.subr.bf16.mxu0 0
      %3992 = vmatpush1.bf16.msra.mxu0 0
      %3993 = vmatprep.subr.bf16.mxu0 0
      %3994 = vmatpush1.bf16.msra.mxu0 0
      %3995 = vmatprep.subr.bf16.mxu0 0
      %3996 = vmatpush1.bf16.msra.mxu0 0
      %3997 = vmatprep.subr.bf16.mxu0 0
      %3998 = vmatpush1.bf16.msra.mxu0 0
      %3999 = vmatprep.subr.bf16.mxu0 0
      %4000 = vmatpush1.bf16.msra.mxu0 0
      %4001 = vmatprep.subr.bf16.mxu0 0
      %4002 = vmatpush1.bf16.msra.mxu0 0
      %4003 = vmatprep.mubr.bf16.mxu0 0
      %4004 = vmatmul.mubr.bf16.gmra.mrb[0].mxu0 %v3960
      %v4005 = vpop.f32.mrb[0].mxu0
      %v4006 = vadd.f32 0.0, %v4005
      %v4007 = vpop.f32.mrb[0].mxu0
      %v4008 = vpop.f32.mrb[0].mxu0
      %v4009 = vadd.f32 0.0, %v4008
      %v4010 = vpop.f32.mrb[0].mxu0
      %4011 = vmatprep.mubr.bf16.mxu0 0
      %4012 = vmatmul.mubr.bf16.gmra.mrb[0].mxu0 %v3963
      %v4013 = vpop.f32.mrb[0].mxu0
      %v4014 = vadd.f32 0.0, %v4013
      %v4015 = vpop.f32.mrb[0].mxu0
      %v4016 = vpop.f32.mrb[0].mxu0
      %v4017 = vadd.f32 0.0, %v4016
      %v4018 = vpop.f32.mrb[0].mxu0
      %4019 = vmatprep.mubr.bf16.mxu0 0
      %4020 = vmatmul.mubr.bf16.gmra.mrb[0].mxu0 %v3966
      %v4021 = vpop.f32.mrb[0].mxu0
      %v4022 = vadd.f32 0.0, %v4021
      %v4023 = vpop.f32.mrb[0].mxu0
      %v4024 = vpop.f32.mrb[0].mxu0
      %v4025 = vadd.f32 0.0, %v4024
      %v4026 = vpop.f32.mrb[0].mxu0
      %4027 = vmatprep.mubr.bf16.mxu0 0
      %4028 = vmatmul.mubr.bf16.gmra.mrb[0].mxu0 %v3969
      %v4029 = vpop.f32.mrb[0].mxu0
      %v4030 = vadd.f32 0.0, %v4029
      %v4031 = vpop.f32.mrb[0].mxu0
      %v4032 = vpop.f32.mrb[0].mxu0
      %v4033 = vadd.f32 0.0, %v4032
      %v4034 = vpop.f32.mrb[0].mxu0
      %4035 = vdwg.mxu0
      %v4036 = vadd.f32 %v3930, %v4006
      %v4037 = vadd.f32 %v3931, %v4009
      %v4038 = vadd.f32 %v3932, %v4014
      %v4039 = vadd.f32 %v3933, %v4017
      %v4040 = vadd.f32 %v3934, %v4022
      %v4041 = vadd.f32 %v3935, %v4025
      %v4042 = vadd.f32 %v3936, %v4030
      %v4043 = vadd.f32 %v3937, %v4033
      %v4044 = vld [vmem:[%s3522 + $0x2] sm:$0xff]
      %v4045 = vld [vmem:[%s3522 + $0x12] sm:$0xff]
      %v4046 = vld [vmem:[%s3522 + $0x22] sm:$0xff]
      %v4047 = vld [vmem:[%s3522 + $0x32] sm:$0xff]
      %v4048 = vld [vmem:[%s3522 + $0x42] sm:$0xff]
      %v4049 = vld [vmem:[%s3522 + $0x52] sm:$0xff]
      %v4050 = vld [vmem:[%s3522 + $0x62] sm:$0xff]
      %v4051 = vld [vmem:[%s3522 + $0x72] sm:$0xff]
      %v4052 = vpack.c.bf16 %v4045, %v4044
      %v4053 = vpack.c.bf16 %v4047, %v4046
      %v4054 = vpack.c.bf16 %v4049, %v4048
      %v4055 = vpack.c.bf16 %v4051, %v4050
      %s4056 = scalar_lea.vmem %s3, 40
      %v4057 = vld [vmem:[%s4056] sm:$0xf]
      %v4058 = vld [vmem:[%s4056 + $0x4] sm:$0xf]
      %v4061 = vunpack.c.l.b16 %v4057
      %v4062 = vunpack.c.l.b16 %v4058
      %v4063 = vpack.c.b16 %v4062, %v4061
      %v4066 = vsel %vm3500, %v4052, 0
      %v4069 = vsel %vm3500, %v4053, 0
      %v4072 = vsel %vm3500, %v4054, 0
      %v4075 = vsel %vm3500, %v4055, 0
      %4077 = vmatprep.subr.bf16.mxu0 0
      %4078 = vmatpush1.bf16.msra.mxu0 %v4063
      %4079 = vmatprep.subr.bf16.mxu0 0
      %4080 = vmatpush1.bf16.msra.mxu0 0
      %4081 = vmatprep.subr.bf16.mxu0 0
      %4082 = vmatpush1.bf16.msra.mxu0 0
      %4083 = vmatprep.subr.bf16.mxu0 0
      %4084 = vmatpush1.bf16.msra.mxu0 0
      %4085 = vmatprep.subr.bf16.mxu0 0
      %4086 = vmatpush1.bf16.msra.mxu0 0
      %4087 = vmatprep.subr.bf16.mxu0 0
      %4088 = vmatpush1.bf16.msra.mxu0 0
      %4089 = vmatprep.subr.bf16.mxu0 0
      %4090 = vmatpush1.bf16.msra.mxu0 0
      %4091 = vmatprep.subr.bf16.mxu0 0
      %4092 = vmatpush1.bf16.msra.mxu0 0
      %4093 = vmatprep.subr.bf16.mxu0 0
      %4094 = vmatpush1.bf16.msra.mxu0 0
      %4095 = vmatprep.subr.bf16.mxu0 0
      %4096 = vmatpush1.bf16.msra.mxu0 0
      %4097 = vmatprep.subr.bf16.mxu0 0
      %4098 = vmatpush1.bf16.msra.mxu0 0
      %4099 = vmatprep.subr.bf16.mxu0 0
      %4100 = vmatpush1.bf16.msra.mxu0 0
      %4101 = vmatprep.subr.bf16.mxu0 0
      %4102 = vmatpush1.bf16.msra.mxu0 0
      %4103 = vmatprep.subr.bf16.mxu0 0
      %4104 = vmatpush1.bf16.msra.mxu0 0
      %4105 = vmatprep.subr.bf16.mxu0 0
      %4106 = vmatpush1.bf16.msra.mxu0 0
      %4107 = vmatprep.subr.bf16.mxu0 0
      %4108 = vmatpush1.bf16.msra.mxu0 0
      %4109 = vmatprep.mubr.bf16.mxu0 0
      %4110 = vmatmul.mubr.bf16.gmra.mrb[0].mxu0 %v4066
      %v4111 = vpop.f32.mrb[0].mxu0
      %v4112 = vadd.f32 0.0, %v4111
      %v4113 = vpop.f32.mrb[0].mxu0
      %v4114 = vpop.f32.mrb[0].mxu0
      %v4115 = vadd.f32 0.0, %v4114
      %v4116 = vpop.f32.mrb[0].mxu0
      %4117 = vmatprep.mubr.bf16.mxu0 0
      %4118 = vmatmul.mubr.bf16.gmra.mrb[0].mxu0 %v4069
      %v4119 = vpop.f32.mrb[0].mxu0
      %v4120 = vadd.f32 0.0, %v4119
      %v4121 = vpop.f32.mrb[0].mxu0
      %v4122 = vpop.f32.mrb[0].mxu0
      %v4123 = vadd.f32 0.0, %v4122
      %v4124 = vpop.f32.mrb[0].mxu0
      %4125 = vmatprep.mubr.bf16.mxu0 0
      %4126 = vmatmul.mubr.bf16.gmra.mrb[0].mxu0 %v4072
      %v4127 = vpop.f32.mrb[0].mxu0
      %v4128 = vadd.f32 0.0, %v4127
      %v4129 = vpop.f32.mrb[0].mxu0
      %v4130 = vpop.f32.mrb[0].mxu0
      %v4131 = vadd.f32 0.0, %v4130
      %v4132 = vpop.f32.mrb[0].mxu0
      %4133 = vmatprep.mubr.bf16.mxu0 0
      %4134 = vmatmul.mubr.bf16.gmra.mrb[0].mxu0 %v4075
      %v4135 = vpop.f32.mrb[0].mxu0
      %v4136 = vadd.f32 0.0, %v4135
      %v4137 = vpop.f32.mrb[0].mxu0
      %v4138 = vpop.f32.mrb[0].mxu0
      %v4139 = vadd.f32 0.0, %v4138
      %v4140 = vpop.f32.mrb[0].mxu0
      %4141 = vdwg.mxu0
      %v4142 = vadd.f32 %v4036, %v4112
      %v4143 = vadd.f32 %v4037, %v4115
      %v4144 = vadd.f32 %v4038, %v4120
      %v4145 = vadd.f32 %v4039, %v4123
      %v4146 = vadd.f32 %v4040, %v4128
      %v4147 = vadd.f32 %v4041, %v4131
      %v4148 = vadd.f32 %v4042, %v4136
      %v4149 = vadd.f32 %v4043, %v4139
      %s4150 = scalar_lea.vmem [#allocation2], 32
      %v4151 = vld [vmem:[%s4150] sm:$0xff]
      %v4152 = vld [vmem:[%s4150 + $0x10] sm:$0xff]
      %v4153 = vld [vmem:[%s4150 + $0x20] sm:$0xff]
      %v4154 = vld [vmem:[%s4150 + $0x30] sm:$0xff]
      %v4155 = vld [vmem:[%s4150 + $0x40] sm:$0xff]
      %v4156 = vld [vmem:[%s4150 + $0x50] sm:$0xff]
      %v4157 = vld [vmem:[%s4150 + $0x60] sm:$0xff]
      %v4158 = vld [vmem:[%s4150 + $0x70] sm:$0xff]
      %v4159 = vpack.c.bf16 %v4152, %v4151
      %v4160 = vpack.c.bf16 %v4154, %v4153
      %v4161 = vpack.c.bf16 %v4156, %v4155
      %v4162 = vpack.c.bf16 %v4158, %v4157
      %s4163 = scalar_lea.vmem %s3, 48
      %v4164 = vld [vmem:[%s4163] sm:$0xf]
      %v4165 = vld [vmem:[%s4163 + $0x4] sm:$0xf]
      %v4168 = vunpack.c.l.b16 %v4164
      %v4169 = vunpack.c.l.b16 %v4165
      %v4170 = vpack.c.b16 %v4169, %v4168
      %v4173 = vsel %vm3500, %v4159, 0
      %v4176 = vsel %vm3500, %v4160, 0
      %v4179 = vsel %vm3500, %v4161, 0
      %v4182 = vsel %vm3500, %v4162, 0
      %4184 = vmatprep.subr.bf16.mxu0 0
      %4185 = vmatpush1.bf16.msra.mxu0 %v4170
      %4186 = vmatprep.subr.bf16.mxu0 0
      %4187 = vmatpush1.bf16.msra.mxu0 0
      %4188 = vmatprep.subr.bf16.mxu0 0
      %4189 = vmatpush1.bf16.msra.mxu0 0
      %4190 = vmatprep.subr.bf16.mxu0 0
      %4191 = vmatpush1.bf16.msra.mxu0 0
      %4192 = vmatprep.subr.bf16.mxu0 0
      %4193 = vmatpush1.bf16.msra.mxu0 0
      %4194 = vmatprep.subr.bf16.mxu0 0
      %4195 = vmatpush1.bf16.msra.mxu0 0
      %4196 = vmatprep.subr.bf16.mxu0 0
      %4197 = vmatpush1.bf16.msra.mxu0 0
      %4198 = vmatprep.subr.bf16.mxu0 0
      %4199 = vmatpush1.bf16.msra.mxu0 0
      %4200 = vmatprep.subr.bf16.mxu0 0
      %4201 = vmatpush1.bf16.msra.mxu0 0
      %4202 = vmatprep.subr.bf16.mxu0 0
      %4203 = vmatpush1.bf16.msra.mxu0 0
      %4204 = vmatprep.subr.bf16.mxu0 0
      %4205 = vmatpush1.bf16.msra.mxu0 0
      %4206 = vmatprep.subr.bf16.mxu0 0
      %4207 = vmatpush1.bf16.msra.mxu0 0
      %4208 = vmatprep.subr.bf16.mxu0 0
      %4209 = vmatpush1.bf16.msra.mxu0 0
      %4210 = vmatprep.subr.bf16.mxu0 0
      %4211 = vmatpush1.bf16.msra.mxu0 0
      %4212 = vmatprep.subr.bf16.mxu0 0
      %4213 = vmatpush1.bf16.msra.mxu0 0
      %4214 = vmatprep.subr.bf16.mxu0 0
      %4215 = vmatpush1.bf16.msra.mxu0 0
      %4216 = vmatprep.mubr.bf16.mxu0 0
      %4217 = vmatmul.mubr.bf16.gmra.mrb[0].mxu0 %v4173
      %v4218 = vpop.f32.mrb[0].mxu0
      %v4219 = vadd.f32 0.0, %v4218
      %v4220 = vpop.f32.mrb[0].mxu0
      %v4221 = vpop.f32.mrb[0].mxu0
      %v4222 = vadd.f32 0.0, %v4221
      %v4223 = vpop.f32.mrb[0].mxu0
      %4224 = vmatprep.mubr.bf16.mxu0 0
      %4225 = vmatmul.mubr.bf16.gmra.mrb[0].mxu0 %v4176
      %v4226 = vpop.f32.mrb[0].mxu0
      %v4227 = vadd.f32 0.0, %v4226
      %v4228 = vpop.f32.mrb[0].mxu0
      %v4229 = vpop.f32.mrb[0].mxu0
      %v4230 = vadd.f32 0.0, %v4229
      %v4231 = vpop.f32.mrb[0].mxu0
      %4232 = vmatprep.mubr.bf16.mxu0 0
      %4233 = vmatmul.mubr.bf16.gmra.mrb[0].mxu0 %v4179
      %v4234 = vpop.f32.mrb[0].mxu0
      %v4235 = vadd.f32 0.0, %v4234
      %v4236 = vpop.f32.mrb[0].mxu0
      %v4237 = vpop.f32.mrb[0].mxu0
      %v4238 = vadd.f32 0.0, %v4237
      %v4239 = vpop.f32.mrb[0].mxu0
      %4240 = vmatprep.mubr.bf16.mxu0 0
      %4241 = vmatmul.mubr.bf16.gmra.mrb[0].mxu0 %v4182
      %v4242 = vpop.f32.mrb[0].mxu0
      %v4243 = vadd.f32 0.0, %v4242
      %v4244 = vpop.f32.mrb[0].mxu0
      %v4245 = vpop.f32.mrb[0].mxu0
      %v4246 = vadd.f32 0.0, %v4245
      %v4247 = vpop.f32.mrb[0].mxu0
      %4248 = vdwg.mxu0
      %v4249 = vadd.f32 %v4142, %v4219
      %v4250 = vadd.f32 %v4143, %v4222
      %v4251 = vadd.f32 %v4144, %v4227
      %v4252 = vadd.f32 %v4145, %v4230
      %v4253 = vadd.f32 %v4146, %v4235
      %v4254 = vadd.f32 %v4147, %v4238
      %v4255 = vadd.f32 %v4148, %v4243
      %v4256 = vadd.f32 %v4149, %v4246
      %v4257 = vld [vmem:[%s4150 + $0x1] sm:$0xff]
      %v4258 = vld [vmem:[%s4150 + $0x11] sm:$0xff]
      %v4259 = vld [vmem:[%s4150 + $0x21] sm:$0xff]
      %v4260 = vld [vmem:[%s4150 + $0x31] sm:$0xff]
      %v4261 = vld [vmem:[%s4150 + $0x41] sm:$0xff]
      %v4262 = vld [vmem:[%s4150 + $0x51] sm:$0xff]
      %v4263 = vld [vmem:[%s4150 + $0x61] sm:$0xff]
      %v4264 = vld [vmem:[%s4150 + $0x71] sm:$0xff]
      %v4265 = vpack.c.bf16 %v4258, %v4257
      %v4266 = vpack.c.bf16 %v4260, %v4259
      %v4267 = vpack.c.bf16 %v4262, %v4261
      %v4268 = vpack.c.bf16 %v4264, %v4263
      %s4269 = scalar_lea.vmem %s3, 56
      %v4270 = vld [vmem:[%s4269] sm:$0xf]
      %v4271 = vld [vmem:[%s4269 + $0x4] sm:$0xf]
      %v4274 = vunpack.c.l.b16 %v4270
      %v4275 = vunpack.c.l.b16 %v4271
      %v4276 = vpack.c.b16 %v4275, %v4274
      %v4279 = vsel %vm3500, %v4265, 0
      %v4282 = vsel %vm3500, %v4266, 0
      %v4285 = vsel %vm3500, %v4267, 0
      %v4288 = vsel %vm3500, %v4268, 0
      %4290 = vmatprep.subr.bf16.mxu0 0
      %4291 = vmatpush1.bf16.msra.mxu0 %v4276
      %4292 = vmatprep.subr.bf16.mxu0 0
      %4293 = vmatpush1.bf16.msra.mxu0 0
      %4294 = vmatprep.subr.bf16.mxu0 0
      %4295 = vmatpush1.bf16.msra.mxu0 0
      %4296 = vmatprep.subr.bf16.mxu0 0
      %4297 = vmatpush1.bf16.msra.mxu0 0
      %4298 = vmatprep.subr.bf16.mxu0 0
      %4299 = vmatpush1.bf16.msra.mxu0 0
      %4300 = vmatprep.subr.bf16.mxu0 0
      %4301 = vmatpush1.bf16.msra.mxu0 0
      %4302 = vmatprep.subr.bf16.mxu0 0
      %4303 = vmatpush1.bf16.msra.mxu0 0
      %4304 = vmatprep.subr.bf16.mxu0 0
      %4305 = vmatpush1.bf16.msra.mxu0 0
      %4306 = vmatprep.subr.bf16.mxu0 0
      %4307 = vmatpush1.bf16.msra.mxu0 0
      %4308 = vmatprep.subr.bf16.mxu0 0
      %4309 = vmatpush1.bf16.msra.mxu0 0
      %4310 = vmatprep.subr.bf16.mxu0 0
      %4311 = vmatpush1.bf16.msra.mxu0 0
      %4312 = vmatprep.subr.bf16.mxu0 0
      %4313 = vmatpush1.bf16.msra.mxu0 0
      %4314 = vmatprep.subr.bf16.mxu0 0
      %4315 = vmatpush1.bf16.msra.mxu0 0
      %4316 = vmatprep.subr.bf16.mxu0 0
      %4317 = vmatpush1.bf16.msra.mxu0 0
      %4318 = vmatprep.subr.bf16.mxu0 0
      %4319 = vmatpush1.bf16.msra.mxu0 0
      %4320 = vmatprep.subr.bf16.mxu0 0
      %4321 = vmatpush1.bf16.msra.mxu0 0
      %4322 = vmatprep.mubr.bf16.mxu0 0
      %4323 = vmatmul.mubr.bf16.gmra.mrb[0].mxu0 %v4279
      %v4324 = vpop.f32.mrb[0].mxu0
      %v4325 = vadd.f32 0.0, %v4324
      %v4326 = vpop.f32.mrb[0].mxu0
      %v4327 = vpop.f32.mrb[0].mxu0
      %v4328 = vadd.f32 0.0, %v4327
      %v4329 = vpop.f32.mrb[0].mxu0
      %4330 = vmatprep.mubr.bf16.mxu0 0
      %4331 = vmatmul.mubr.bf16.gmra.mrb[0].mxu0 %v4282
      %v4332 = vpop.f32.mrb[0].mxu0
      %v4333 = vadd.f32 0.0, %v4332
      %v4334 = vpop.f32.mrb[0].mxu0
      %v4335 = vpop.f32.mrb[0].mxu0
      %v4336 = vadd.f32 0.0, %v4335
      %v4337 = vpop.f32.mrb[0].mxu0
      %4338 = vmatprep.mubr.bf16.mxu0 0
      %4339 = vmatmul.mubr.bf16.gmra.mrb[0].mxu0 %v4285
      %v4340 = vpop.f32.mrb[0].mxu0
      %v4341 = vadd.f32 0.0, %v4340
      %v4342 = vpop.f32.mrb[0].mxu0
      %v4343 = vpop.f32.mrb[0].mxu0
      %v4344 = vadd.f32 0.0, %v4343
      %v4345 = vpop.f32.mrb[0].mxu0
      %4346 = vmatprep.mubr.bf16.mxu0 0
      %4347 = vmatmul.mubr.bf16.gmra.mrb[0].mxu0 %v4288
      %v4348 = vpop.f32.mrb[0].mxu0
      %v4349 = vadd.f32 0.0, %v4348
      %v4350 = vpop.f32.mrb[0].mxu0
      %v4351 = vpop.f32.mrb[0].mxu0
      %v4352 = vadd.f32 0.0, %v4351
      %v4353 = vpop.f32.mrb[0].mxu0
      %4354 = vdwg.mxu0
      %v4355 = vadd.f32 %v4249, %v4325
      %v4356 = vadd.f32 %v4250, %v4328
      %v4357 = vadd.f32 %v4251, %v4333
      %v4358 = vadd.f32 %v4252, %v4336
      %v4359 = vadd.f32 %v4253, %v4341
      %v4360 = vadd.f32 %v4254, %v4344
      %v4361 = vadd.f32 %v4255, %v4349
      %v4362 = vadd.f32 %v4256, %v4352
      %v4363 = vld [vmem:[%s4150 + $0x2] sm:$0xff]
      %v4364 = vld [vmem:[%s4150 + $0x12] sm:$0xff]
      %v4365 = vld [vmem:[%s4150 + $0x22] sm:$0xff]
      %v4366 = vld [vmem:[%s4150 + $0x32] sm:$0xff]
      %v4367 = vld [vmem:[%s4150 + $0x42] sm:$0xff]
      %v4368 = vld [vmem:[%s4150 + $0x52] sm:$0xff]
      %v4369 = vld [vmem:[%s4150 + $0x62] sm:$0xff]
      %v4370 = vld [vmem:[%s4150 + $0x72] sm:$0xff]
      %v4371 = vpack.c.bf16 %v4364, %v4363
      %v4372 = vpack.c.bf16 %v4366, %v4365
      %v4373 = vpack.c.bf16 %v4368, %v4367
      %v4374 = vpack.c.bf16 %v4370, %v4369
      %s4375 = scalar_lea.vmem %s3, 64
      %v4376 = vld [vmem:[%s4375] sm:$0xf]
      %v4377 = vld [vmem:[%s4375 + $0x4] sm:$0xf]
      %v4380 = vunpack.c.l.b16 %v4376
      %v4381 = vunpack.c.l.b16 %v4377
      %v4382 = vpack.c.b16 %v4381, %v4380
      %v4385 = vsel %vm3500, %v4371, 0
      %v4388 = vsel %vm3500, %v4372, 0
      %v4391 = vsel %vm3500, %v4373, 0
      %v4394 = vsel %vm3500, %v4374, 0
      %4396 = vmatprep.subr.bf16.mxu0 0
      %4397 = vmatpush1.bf16.msra.mxu0 %v4382
      %4398 = vmatprep.subr.bf16.mxu0 0
      %4399 = vmatpush1.bf16.msra.mxu0 0
      %4400 = vmatprep.subr.bf16.mxu0 0
      %4401 = vmatpush1.bf16.msra.mxu0 0
      %4402 = vmatprep.subr.bf16.mxu0 0
      %4403 = vmatpush1.bf16.msra.mxu0 0
      %4404 = vmatprep.subr.bf16.mxu0 0
      %4405 = vmatpush1.bf16.msra.mxu0 0
      %4406 = vmatprep.subr.bf16.mxu0 0
      %4407 = vmatpush1.bf16.msra.mxu0 0
      %4408 = vmatprep.subr.bf16.mxu0 0
      %4409 = vmatpush1.bf16.msra.mxu0 0
      %4410 = vmatprep.subr.bf16.mxu0 0
      %4411 = vmatpush1.bf16.msra.mxu0 0
      %4412 = vmatprep.subr.bf16.mxu0 0
      %4413 = vmatpush1.bf16.msra.mxu0 0
      %4414 = vmatprep.subr.bf16.mxu0 0
      %4415 = vmatpush1.bf16.msra.mxu0 0
      %4416 = vmatprep.subr.bf16.mxu0 0
      %4417 = vmatpush1.bf16.msra.mxu0 0
      %4418 = vmatprep.subr.bf16.mxu0 0
      %4419 = vmatpush1.bf16.msra.mxu0 0
      %4420 = vmatprep.subr.bf16.mxu0 0
      %4421 = vmatpush1.bf16.msra.mxu0 0
      %4422 = vmatprep.subr.bf16.mxu0 0
      %4423 = vmatpush1.bf16.msra.mxu0 0
      %4424 = vmatprep.subr.bf16.mxu0 0
      %4425 = vmatpush1.bf16.msra.mxu0 0
      %4426 = vmatprep.subr.bf16.mxu0 0
      %4427 = vmatpush1.bf16.msra.mxu0 0
      %4428 = vmatprep.mubr.bf16.mxu0 0
      %4429 = vmatmul.mubr.bf16.gmra.mrb[0].mxu0 %v4385
      %v4430 = vpop.f32.mrb[0].mxu0
      %v4431 = vadd.f32 0.0, %v4430
      %v4432 = vpop.f32.mrb[0].mxu0
      %v4433 = vpop.f32.mrb[0].mxu0
      %v4434 = vadd.f32 0.0, %v4433
      %v4435 = vpop.f32.mrb[0].mxu0
      %4436 = vmatprep.mubr.bf16.mxu0 0
      %4437 = vmatmul.mubr.bf16.gmra.mrb[0].mxu0 %v4388
      %v4438 = vpop.f32.mrb[0].mxu0
      %v4439 = vadd.f32 0.0, %v4438
      %v4440 = vpop.f32.mrb[0].mxu0
      %v4441 = vpop.f32.mrb[0].mxu0
      %v4442 = vadd.f32 0.0, %v4441
      %v4443 = vpop.f32.mrb[0].mxu0
      %4444 = vmatprep.mubr.bf16.mxu0 0
      %4445 = vmatmul.mubr.bf16.gmra.mrb[0].mxu0 %v4391
      %v4446 = vpop.f32.mrb[0].mxu0
      %v4447 = vadd.f32 0.0, %v4446
      %v4448 = vpop.f32.mrb[0].mxu0
      %v4449 = vpop.f32.mrb[0].mxu0
      %v4450 = vadd.f32 0.0, %v4449
      %v4451 = vpop.f32.mrb[0].mxu0
      %4452 = vmatprep.mubr.bf16.mxu0 0
      %4453 = vmatmul.mubr.bf16.gmra.mrb[0].mxu0 %v4394
      %v4454 = vpop.f32.mrb[0].mxu0
      %v4455 = vadd.f32 0.0, %v4454
      %v4456 = vpop.f32.mrb[0].mxu0
      %v4457 = vpop.f32.mrb[0].mxu0
      %v4458 = vadd.f32 0.0, %v4457
      %v4459 = vpop.f32.mrb[0].mxu0
      %4460 = vdwg.mxu0
      %v4461 = vadd.f32 %v4355, %v4431
      %v4462 = vadd.f32 %v4356, %v4434
      %v4463 = vadd.f32 %v4357, %v4439
      %v4464 = vadd.f32 %v4358, %v4442
      %v4465 = vadd.f32 %v4359, %v4447
      %v4466 = vadd.f32 %v4360, %v4450
      %v4467 = vadd.f32 %v4361, %v4455
      %v4468 = vadd.f32 %v4362, %v4458
      %v4469 = vld [vmem:[%s4] sm:$0x1]
      %v4471 = vlaneseq
      %v4472 = vshrl.u32 %v4471, 7
      %v4473 = vsub.s32 0, %v4472
      %v4474 = vrot.slane %v4469, %v4473
      %v4476 = vadd.f32 %v4461, %v4474
      %v4477 = vadd.f32 %v4462, %v4474
      %v4478 = vadd.f32 %v4463, %v4474
      %v4479 = vadd.f32 %v4464, %v4474
      %v4480 = vadd.f32 %v4465, %v4474
      %v4481 = vadd.f32 %v4466, %v4474
      %v4482 = vadd.f32 %v4467, %v4474
      %v4483 = vadd.f32 %v4468, %v4474
      %v4484 = vmax.f32 %v4476, 0.0
      %v4485 = vmax.f32 %v4477, 0.0
      %v4486 = vmax.f32 %v4478, 0.0
      %v4487 = vmax.f32 %v4479, 0.0
      %v4488 = vmax.f32 %v4480, 0.0
      %v4489 = vmax.f32 %v4481, 0.0
      %v4490 = vmax.f32 %v4482, 0.0
      %v4491 = vmax.f32 %v4483, 0.0
      %v4492 = vld [vmem:[%s8] sm:$0xff]
      %v4493 = vld [vmem:[%s8 + $0x8] sm:$0xff]
      %vm4494 = vcmask 523264
      %v4496 = vsel %vm4494, %v4492, 0
      %v4499 = vsel %vm4494, %v4493, 0
      %4501 = vmatprep.subr.mxu0 0.0
      %4502 = vmatpush1.msra.mxu0 %v4484
      %4503 = vmatprep.subr.mxu0 0.0
      %4504 = vmatpush1.msra.mxu0 %v4485
      %4505 = vmatprep.subr.mxu0 0.0
      %4506 = vmatpush1.msra.mxu0 %v4486
      %4507 = vmatprep.subr.mxu0 0.0
      %4508 = vmatpush1.msra.mxu0 %v4487
      %4509 = vmatprep.subr.mxu0 0.0
      %4510 = vmatpush1.msra.mxu0 %v4488
      %4511 = vmatprep.subr.mxu0 0.0
      %4512 = vmatpush1.msra.mxu0 %v4489
      %4513 = vmatprep.subr.mxu0 0.0
      %4514 = vmatpush1.msra.mxu0 %v4490
      %4515 = vmatprep.subr.mxu0 0.0
      %4516 = vmatpush1.msra.mxu0 %v4491
      %4517 = vmatprep.subr.mxu0 0.0
      %4518 = vmatpush1.msra.mxu0 0.0
      %4519 = vmatprep.subr.mxu0 0.0
      %4520 = vmatpush1.msra.mxu0 0.0
      %4521 = vmatprep.subr.mxu0 0.0
      %4522 = vmatpush1.msra.mxu0 0.0
      %4523 = vmatprep.subr.mxu0 0.0
      %4524 = vmatpush1.msra.mxu0 0.0
      %4525 = vmatprep.subr.mxu0 0.0
      %4526 = vmatpush1.msra.mxu0 0.0
      %4527 = vmatprep.subr.mxu0 0.0
      %4528 = vmatpush1.msra.mxu0 0.0
      %4529 = vmatprep.subr.mxu0 0.0
      %4530 = vmatpush1.msra.mxu0 0.0
      %4531 = vmatprep.subr.mxu0 0.0
      %4532 = vmatpush1.msra.mxu0 0.0
      %4533 = vmatprep.subr.mxu0 0.0
      %4534 = vmatpush1.msra.mxu0 0.0
      %4535 = vmatprep.subr.mxu0 0.0
      %4536 = vmatpush1.msra.mxu0 0.0
      %4537 = vmatprep.subr.mxu0 0.0
      %4538 = vmatpush1.msra.mxu0 0.0
      %4539 = vmatprep.subr.mxu0 0.0
      %4540 = vmatpush1.msra.mxu0 0.0
      %4541 = vmatprep.subr.mxu0 0.0
      %4542 = vmatpush1.msra.mxu0 0.0
      %4543 = vmatprep.subr.mxu0 0.0
      %4544 = vmatpush1.msra.mxu0 0.0
      %4545 = vmatprep.subr.mxu0 0.0
      %4546 = vmatpush1.msra.mxu0 0.0
      %4547 = vmatprep.subr.mxu0 0.0
      %4548 = vmatpush1.msra.mxu0 0.0
      %4549 = vmatprep.subr.mxu0 0.0
      %4550 = vmatpush1.msra.mxu0 0.0
      %4551 = vmatprep.subr.mxu0 0.0
      %4552 = vmatpush1.msra.mxu0 0.0
      %4553 = vmatprep.subr.mxu0 0.0
      %4554 = vmatpush1.msra.mxu0 0.0
      %4555 = vmatprep.subr.mxu0 0.0
      %4556 = vmatpush1.msra.mxu0 0.0
      %4557 = vmatprep.subr.mxu0 0.0
      %4558 = vmatpush1.msra.mxu0 0.0
      %4559 = vmatprep.subr.mxu0 0.0
      %4560 = vmatpush1.msra.mxu0 0.0
      %4561 = vmatprep.subr.mxu0 0.0
      %4562 = vmatpush1.msra.mxu0 0.0
      %4563 = vmatprep.subr.mxu0 0.0
      %4564 = vmatpush1.msra.mxu0 0.0
      %4565 = vmatprep.mubr.f32.mxu0 0.0
      %4566 = vmatmul.mubr.f32.gmra.mrb[0].mxu0 %v4496
      %v4567 = vpop.f32.mrb[0].mxu0
      %v4568 = vadd.f32 0.0, %v4567
      %v4569 = vpop.f32.mrb[0].mxu0
      %4570 = vmatprep.mubr.f32.mxu0 0.0
      %4571 = vmatmul.mubr.f32.gmra.mrb[0].mxu0 %v4499
      %v4572 = vpop.f32.mrb[0].mxu0
      %v4573 = vadd.f32 0.0, %v4572
      %v4574 = vpop.f32.mrb[0].mxu0
      %4575 = vdwg.mxu0
      %s4576 = scalar_lea.vmem %s8, 16
      %v4577 = vld [vmem:[%s4576] sm:$0xff]
      %v4578 = vld [vmem:[%s4576 + $0x8] sm:$0xff]
      %v4580 = vsel %vm4494, %v4577, 0
      %v4583 = vsel %vm4494, %v4578, 0
      %4585 = vmatprep.subr.mxu0 0.0
      %4586 = vmatpush1.msra.mxu0 %v4484
      %4587 = vmatprep.subr.mxu0 0.0
      %4588 = vmatpush1.msra.mxu0 %v4485
      %4589 = vmatprep.subr.mxu0 0.0
      %4590 = vmatpush1.msra.mxu0 %v4486
      %4591 = vmatprep.subr.mxu0 0.0
      %4592 = vmatpush1.msra.mxu0 %v4487
      %4593 = vmatprep.subr.mxu0 0.0
      %4594 = vmatpush1.msra.mxu0 %v4488
      %4595 = vmatprep.subr.mxu0 0.0
      %4596 = vmatpush1.msra.mxu0 %v4489
      %4597 = vmatprep.subr.mxu0 0.0
      %4598 = vmatpush1.msra.mxu0 %v4490
      %4599 = vmatprep.subr.mxu0 0.0
      %4600 = vmatpush1.msra.mxu0 %v4491
      %4601 = vmatprep.subr.mxu0 0.0
      %4602 = vmatpush1.msra.mxu0 0.0
      %4603 = vmatprep.subr.mxu0 0.0
      %4604 = vmatpush1.msra.mxu0 0.0
      %4605 = vmatprep.subr.mxu0 0.0
      %4606 = vmatpush1.msra.mxu0 0.0
      %4607 = vmatprep.subr.mxu0 0.0
      %4608 = vmatpush1.msra.mxu0 0.0
      %4609 = vmatprep.subr.mxu0 0.0
      %4610 = vmatpush1.msra.mxu0 0.0
      %4611 = vmatprep.subr.mxu0 0.0
      %4612 = vmatpush1.msra.mxu0 0.0
      %4613 = vmatprep.subr.mxu0 0.0
      %4614 = vmatpush1.msra.mxu0 0.0
      %4615 = vmatprep.subr.mxu0 0.0
      %4616 = vmatpush1.msra.mxu0 0.0
      %4617 = vmatprep.subr.mxu0 0.0
      %4618 = vmatpush1.msra.mxu0 0.0
      %4619 = vmatprep.subr.mxu0 0.0
      %4620 = vmatpush1.msra.mxu0 0.0
      %4621 = vmatprep.subr.mxu0 0.0
      %4622 = vmatpush1.msra.mxu0 0.0
      %4623 = vmatprep.subr.mxu0 0.0
      %4624 = vmatpush1.msra.mxu0 0.0
      %4625 = vmatprep.subr.mxu0 0.0
      %4626 = vmatpush1.msra.mxu0 0.0
      %4627 = vmatprep.subr.mxu0 0.0
      %4628 = vmatpush1.msra.mxu0 0.0
      %4629 = vmatprep.subr.mxu0 0.0
      %4630 = vmatpush1.msra.mxu0 0.0
      %4631 = vmatprep.subr.mxu0 0.0
      %4632 = vmatpush1.msra.mxu0 0.0
      %4633 = vmatprep.subr.mxu0 0.0
      %4634 = vmatpush1.msra.mxu0 0.0
      %4635 = vmatprep.subr.mxu0 0.0
      %4636 = vmatpush1.msra.mxu0 0.0
      %4637 = vmatprep.subr.mxu0 0.0
      %4638 = vmatpush1.msra.mxu0 0.0
      %4639 = vmatprep.subr.mxu0 0.0
      %4640 = vmatpush1.msra.mxu0 0.0
      %4641 = vmatprep.subr.mxu0 0.0
      %4642 = vmatpush1.msra.mxu0 0.0
      %4643 = vmatprep.subr.mxu0 0.0
      %4644 = vmatpush1.msra.mxu0 0.0
      %4645 = vmatprep.subr.mxu0 0.0
      %4646 = vmatpush1.msra.mxu0 0.0
      %4647 = vmatprep.subr.mxu0 0.0
      %4648 = vmatpush1.msra.mxu0 0.0
      %4649 = vmatprep.mubr.f32.mxu0 0.0
      %4650 = vmatmul.mubr.f32.gmra.mrb[0].mxu0 %v4580
      %v4651 = vpop.f32.mrb[0].mxu0
      %v4652 = vadd.f32 0.0, %v4651
      %v4653 = vpop.f32.mrb[0].mxu0
      %4654 = vmatprep.mubr.f32.mxu0 0.0
      %4655 = vmatmul.mubr.f32.gmra.mrb[0].mxu0 %v4583
      %v4656 = vpop.f32.mrb[0].mxu0
      %v4657 = vadd.f32 0.0, %v4656
      %v4658 = vpop.f32.mrb[0].mxu0
      %4659 = vdwg.mxu0
      %v4660 = vmax.f32 %v4568, %v4652
      %v4661 = vmax.f32 %v4573, %v4657
      %s4662 = scalar_lea.vmem %s8, 32
      %v4663 = vld [vmem:[%s4662] sm:$0xff]
      %v4664 = vld [vmem:[%s4662 + $0x8] sm:$0xff]
      %v4666 = vsel %vm4494, %v4663, 0
      %v4669 = vsel %vm4494, %v4664, 0
      %4671 = vmatprep.subr.mxu0 0.0
      %4672 = vmatpush1.msra.mxu0 %v4484
      %4673 = vmatprep.subr.mxu0 0.0
      %4674 = vmatpush1.msra.mxu0 %v4485
      %4675 = vmatprep.subr.mxu0 0.0
      %4676 = vmatpush1.msra.mxu0 %v4486
      %4677 = vmatprep.subr.mxu0 0.0
      %4678 = vmatpush1.msra.mxu0 %v4487
      %4679 = vmatprep.subr.mxu0 0.0
      %4680 = vmatpush1.msra.mxu0 %v4488
      %4681 = vmatprep.subr.mxu0 0.0
      %4682 = vmatpush1.msra.mxu0 %v4489
      %4683 = vmatprep.subr.mxu0 0.0
      %4684 = vmatpush1.msra.mxu0 %v4490
      %4685 = vmatprep.subr.mxu0 0.0
      %4686 = vmatpush1.msra.mxu0 %v4491
      %4687 = vmatprep.subr.mxu0 0.0
      %4688 = vmatpush1.msra.mxu0 0.0
      %4689 = vmatprep.subr.mxu0 0.0
      %4690 = vmatpush1.msra.mxu0 0.0
      %4691 = vmatprep.subr.mxu0 0.0
      %4692 = vmatpush1.msra.mxu0 0.0
      %4693 = vmatprep.subr.mxu0 0.0
      %4694 = vmatpush1.msra.mxu0 0.0
      %4695 = vmatprep.subr.mxu0 0.0
      %4696 = vmatpush1.msra.mxu0 0.0
      %4697 = vmatprep.subr.mxu0 0.0
      %4698 = vmatpush1.msra.mxu0 0.0
      %4699 = vmatprep.subr.mxu0 0.0
      %4700 = vmatpush1.msra.mxu0 0.0
      %4701 = vmatprep.subr.mxu0 0.0
      %4702 = vmatpush1.msra.mxu0 0.0
      %4703 = vmatprep.subr.mxu0 0.0
      %4704 = vmatpush1.msra.mxu0 0.0
      %4705 = vmatprep.subr.mxu0 0.0
      %4706 = vmatpush1.msra.mxu0 0.0
      %4707 = vmatprep.subr.mxu0 0.0
      %4708 = vmatpush1.msra.mxu0 0.0
      %4709 = vmatprep.subr.mxu0 0.0
      %4710 = vmatpush1.msra.mxu0 0.0
      %4711 = vmatprep.subr.mxu0 0.0
      %4712 = vmatpush1.msra.mxu0 0.0
      %4713 = vmatprep.subr.mxu0 0.0
      %4714 = vmatpush1.msra.mxu0 0.0
      %4715 = vmatprep.subr.mxu0 0.0
      %4716 = vmatpush1.msra.mxu0 0.0
      %4717 = vmatprep.subr.mxu0 0.0
      %4718 = vmatpush1.msra.mxu0 0.0
      %4719 = vmatprep.subr.mxu0 0.0
      %4720 = vmatpush1.msra.mxu0 0.0
      %4721 = vmatprep.subr.mxu0 0.0
      %4722 = vmatpush1.msra.mxu0 0.0
      %4723 = vmatprep.subr.mxu0 0.0
      %4724 = vmatpush1.msra.mxu0 0.0
      %4725 = vmatprep.subr.mxu0 0.0
      %4726 = vmatpush1.msra.mxu0 0.0
      %4727 = vmatprep.subr.mxu0 0.0
      %4728 = vmatpush1.msra.mxu0 0.0
      %4729 = vmatprep.subr.mxu0 0.0
      %4730 = vmatpush1.msra.mxu0 0.0
      %4731 = vmatprep.subr.mxu0 0.0
      %4732 = vmatpush1.msra.mxu0 0.0
      %4733 = vmatprep.subr.mxu0 0.0
      %4734 = vmatpush1.msra.mxu0 0.0
      %4735 = vmatprep.mubr.f32.mxu0 0.0
      %4736 = vmatmul.mubr.f32.gmra.mrb[0].mxu0 %v4666
      %v4737 = vpop.f32.mrb[0].mxu0
      %v4738 = vadd.f32 0.0, %v4737
      %v4739 = vpop.f32.mrb[0].mxu0
      %4740 = vmatprep.mubr.f32.mxu0 0.0
      %4741 = vmatmul.mubr.f32.gmra.mrb[0].mxu0 %v4669
      %v4742 = vpop.f32.mrb[0].mxu0
      %v4743 = vadd.f32 0.0, %v4742
      %v4744 = vpop.f32.mrb[0].mxu0
      %4745 = vdwg.mxu0
      %v4746 = vmax.f32 %v4660, %v4738
      %v4747 = vmax.f32 %v4661, %v4743
      %s4748 = scalar_lea.vmem %s8, 48
      %v4749 = vld [vmem:[%s4748] sm:$0xff]
      %v4750 = vld [vmem:[%s4748 + $0x8] sm:$0xff]
      %v4752 = vsel %vm4494, %v4749, 0
      %v4755 = vsel %vm4494, %v4750, 0
      %4757 = vmatprep.subr.mxu0 0.0
      %4758 = vmatpush1.msra.mxu0 %v4484
      %4759 = vmatprep.subr.mxu0 0.0
      %4760 = vmatpush1.msra.mxu0 %v4485
      %4761 = vmatprep.subr.mxu0 0.0
      %4762 = vmatpush1.msra.mxu0 %v4486
      %4763 = vmatprep.subr.mxu0 0.0
      %4764 = vmatpush1.msra.mxu0 %v4487
      %4765 = vmatprep.subr.mxu0 0.0
      %4766 = vmatpush1.msra.mxu0 %v4488
      %4767 = vmatprep.subr.mxu0 0.0
      %4768 = vmatpush1.msra.mxu0 %v4489
      %4769 = vmatprep.subr.mxu0 0.0
      %4770 = vmatpush1.msra.mxu0 %v4490
      %4771 = vmatprep.subr.mxu0 0.0
      %4772 = vmatpush1.msra.mxu0 %v4491
      %4773 = vmatprep.subr.mxu0 0.0
      %4774 = vmatpush1.msra.mxu0 0.0
      %4775 = vmatprep.subr.mxu0 0.0
      %4776 = vmatpush1.msra.mxu0 0.0
      %4777 = vmatprep.subr.mxu0 0.0
      %4778 = vmatpush1.msra.mxu0 0.0
      %4779 = vmatprep.subr.mxu0 0.0
      %4780 = vmatpush1.msra.mxu0 0.0
      %4781 = vmatprep.subr.mxu0 0.0
      %4782 = vmatpush1.msra.mxu0 0.0
      %4783 = vmatprep.subr.mxu0 0.0
      %4784 = vmatpush1.msra.mxu0 0.0
      %4785 = vmatprep.subr.mxu0 0.0
      %4786 = vmatpush1.msra.mxu0 0.0
      %4787 = vmatprep.subr.mxu0 0.0
      %4788 = vmatpush1.msra.mxu0 0.0
      %4789 = vmatprep.subr.mxu0 0.0
      %4790 = vmatpush1.msra.mxu0 0.0
      %4791 = vmatprep.subr.mxu0 0.0
      %4792 = vmatpush1.msra.mxu0 0.0
      %4793 = vmatprep.subr.mxu0 0.0
      %4794 = vmatpush1.msra.mxu0 0.0
      %4795 = vmatprep.subr.mxu0 0.0
      %4796 = vmatpush1.msra.mxu0 0.0
      %4797 = vmatprep.subr.mxu0 0.0
      %4798 = vmatpush1.msra.mxu0 0.0
      %4799 = vmatprep.subr.mxu0 0.0
      %4800 = vmatpush1.msra.mxu0 0.0
      %4801 = vmatprep.subr.mxu0 0.0
      %4802 = vmatpush1.msra.mxu0 0.0
      %4803 = vmatprep.subr.mxu0 0.0
      %4804 = vmatpush1.msra.mxu0 0.0
      %4805 = vmatprep.subr.mxu0 0.0
      %4806 = vmatpush1.msra.mxu0 0.0
      %4807 = vmatprep.subr.mxu0 0.0
      %4808 = vmatpush1.msra.mxu0 0.0
      %4809 = vmatprep.subr.mxu0 0.0
      %4810 = vmatpush1.msra.mxu0 0.0
      %4811 = vmatprep.subr.mxu0 0.0
      %4812 = vmatpush1.msra.mxu0 0.0
      %4813 = vmatprep.subr.mxu0 0.0
      %4814 = vmatpush1.msra.mxu0 0.0
      %4815 = vmatprep.subr.mxu0 0.0
      %4816 = vmatpush1.msra.mxu0 0.0
      %4817 = vmatprep.subr.mxu0 0.0
      %4818 = vmatpush1.msra.mxu0 0.0
      %4819 = vmatprep.subr.mxu0 0.0
      %4820 = vmatpush1.msra.mxu0 0.0
      %4821 = vmatprep.mubr.f32.mxu0 0.0
      %4822 = vmatmul.mubr.f32.gmra.mrb[0].mxu0 %v4752
      %v4823 = vpop.f32.mrb[0].mxu0
      %v4824 = vadd.f32 0.0, %v4823
      %v4825 = vpop.f32.mrb[0].mxu0
      %4826 = vmatprep.mubr.f32.mxu0 0.0
      %4827 = vmatmul.mubr.f32.gmra.mrb[0].mxu0 %v4755
      %v4828 = vpop.f32.mrb[0].mxu0
      %v4829 = vadd.f32 0.0, %v4828
      %v4830 = vpop.f32.mrb[0].mxu0
      %4831 = vdwg.mxu0
      %v4832 = vmax.f32 %v4746, %v4824
      %v4833 = vmax.f32 %v4747, %v4829
      %v4834 = vpack.c.bf16 %v4833, %v4832
      %v4835 = vld [vmem:[%s5] sm:$0xf]
      %v4836 = vld [vmem:[%s5 + $0x4] sm:$0xf]
      %v4837 = vld [vmem:[%s5 + $0x8] sm:$0xf]
      %v4838 = vld [vmem:[%s5 + $0xc] sm:$0xf]
      %s4839 = scalar_lea.vmem %s5, 16
      %v4840 = vld [vmem:[%s4839] sm:$0xf]
      %v4841 = vld [vmem:[%s4839 + $0x4] sm:$0xf]
      %v4842 = vld [vmem:[%s4839 + $0x8] sm:$0xf]
      %v4843 = vld [vmem:[%s4839 + $0xc] sm:$0xf]
      %v4845 = vshrl.u32 %v4834, 16
      %v4851 = vunpack.c.l.b16 %v4840
      %v4852 = vunpack.c.l.b16 %v4841
      %v4853 = vunpack.c.l.b16 %v4842
      %v4854 = vunpack.c.l.b16 %v4843
      %v4855 = vpack.c.b16 %v4852, %v4851
      %v4856 = vpack.c.b16 %v4854, %v4853
      %vm4859 = vcmask 261120
      %v4861 = vsel %vm4859, %v4845, 0
      %4863 = vmatprep.subr.bf16.mxu0 0
      %4864 = vmatpush1.bf16.msra.mxu0 %v4855
      %4865 = vmatprep.subr.bf16.mxu0 0
      %4866 = vmatpush1.bf16.msra.mxu0 %v4856
      %4867 = vmatprep.subr.bf16.mxu0 0
      %4868 = vmatpush1.bf16.msra.mxu0 0
      %4869 = vmatprep.subr.bf16.mxu0 0
      %4870 = vmatpush1.bf16.msra.mxu0 0
      %4871 = vmatprep.subr.bf16.mxu0 0
      %4872 = vmatpush1.bf16.msra.mxu0 0
      %4873 = vmatprep.subr.bf16.mxu0 0
      %4874 = vmatpush1.bf16.msra.mxu0 0
      %4875 = vmatprep.subr.bf16.mxu0 0
      %4876 = vmatpush1.bf16.msra.mxu0 0
      %4877 = vmatprep.subr.bf16.mxu0 0
      %4878 = vmatpush1.bf16.msra.mxu0 0
      %4879 = vmatprep.subr.bf16.mxu0 0
      %4880 = vmatpush1.bf16.msra.mxu0 0
      %4881 = vmatprep.subr.bf16.mxu0 0
      %4882 = vmatpush1.bf16.msra.mxu0 0
      %4883 = vmatprep.subr.bf16.mxu0 0
      %4884 = vmatpush1.bf16.msra.mxu0 0
      %4885 = vmatprep.subr.bf16.mxu0 0
      %4886 = vmatpush1.bf16.msra.mxu0 0
      %4887 = vmatprep.subr.bf16.mxu0 0
      %4888 = vmatpush1.bf16.msra.mxu0 0
      %4889 = vmatprep.subr.bf16.mxu0 0
      %4890 = vmatpush1.bf16.msra.mxu0 0
      %4891 = vmatprep.subr.bf16.mxu0 0
      %4892 = vmatpush1.bf16.msra.mxu0 0
      %4893 = vmatprep.subr.bf16.mxu0 0
      %4894 = vmatpush1.bf16.msra.mxu0 0
      %4895 = vmatprep.mubr.bf16.mxu0 0
      %4896 = vmatmul.mubr.bf16.gmra.mrb[0].mxu0 %v4861
      %v4897 = vpop.f32.mrb[0].mxu0
      %v4898 = vadd.f32 0.0, %v4897
      %v4899 = vpop.f32.mrb[0].mxu0
      %v4900 = vpop.f32.mrb[0].mxu0
      %v4901 = vpop.f32.mrb[0].mxu0
      %4902 = vdwg.mxu0
      %v4907 = vunpack.c.l.b16 %v4835
      %v4908 = vunpack.c.l.b16 %v4836
      %v4909 = vunpack.c.l.b16 %v4837
      %v4910 = vunpack.c.l.b16 %v4838
      %v4911 = vpack.c.b16 %v4908, %v4907
      %v4912 = vpack.c.b16 %v4910, %v4909
      %v4915 = vsel %vm4859, %v4834, 0
      %4917 = vmatprep.subr.bf16.mxu0 0
      %4918 = vmatpush1.bf16.msra.mxu0 %v4911
      %4919 = vmatprep.subr.bf16.mxu0 0
      %4920 = vmatpush1.bf16.msra.mxu0 %v4912
      %4921 = vmatprep.subr.bf16.mxu0 0
      %4922 = vmatpush1.bf16.msra.mxu0 0
      %4923 = vmatprep.subr.bf16.mxu0 0
      %4924 = vmatpush1.bf16.msra.mxu0 0
      %4925 = vmatprep.subr.bf16.mxu0 0
      %4926 = vmatpush1.bf16.msra.mxu0 0
      %4927 = vmatprep.subr.bf16.mxu0 0
      %4928 = vmatpush1.bf16.msra.mxu0 0
      %4929 = vmatprep.subr.bf16.mxu0 0
      %4930 = vmatpush1.bf16.msra.mxu0 0
      %4931 = vmatprep.subr.bf16.mxu0 0
      %4932 = vmatpush1.bf16.msra.mxu0 0
      %4933 = vmatprep.subr.bf16.mxu0 0
      %4934 = vmatpush1.bf16.msra.mxu0 0
      %4935 = vmatprep.subr.bf16.mxu0 0
      %4936 = vmatpush1.bf16.msra.mxu0 0
      %4937 = vmatprep.subr.bf16.mxu0 0
      %4938 = vmatpush1.bf16.msra.mxu0 0
      %4939 = vmatprep.subr.bf16.mxu0 0
      %4940 = vmatpush1.bf16.msra.mxu0 0
      %4941 = vmatprep.subr.bf16.mxu0 0
      %4942 = vmatpush1.bf16.msra.mxu0 0
      %4943 = vmatprep.subr.bf16.mxu0 0
      %4944 = vmatpush1.bf16.msra.mxu0 0
      %4945 = vmatprep.subr.bf16.mxu0 0
      %4946 = vmatpush1.bf16.msra.mxu0 0
      %4947 = vmatprep.subr.bf16.mxu0 0
      %4948 = vmatpush1.bf16.msra.mxu0 0
      %4949 = vmatprep.mubr.bf16.mxu0 0
      %4950 = vmatmul.mubr.bf16.gmra.mrb[0].mxu0 %v4915
      %v4951 = vpop.f32.mrb[0].mxu0
      %v4952 = vadd.f32 %v4898, %v4951
      %v4953 = vpop.f32.mrb[0].mxu0
      %v4954 = vpop.f32.mrb[0].mxu0
      %v4955 = vpop.f32.mrb[0].mxu0
      %4956 = vdwg.mxu0
      %s4957 = scalar_lea.vmem %s5, 32
      %v4958 = vld [vmem:[%s4957] sm:$0xf]
      %v4959 = vld [vmem:[%s4957 + $0x4] sm:$0xf]
      %v4960 = vld [vmem:[%s4957 + $0x8] sm:$0xf]
      %v4961 = vld [vmem:[%s4957 + $0xc] sm:$0xf]
      %v4963 = vrot.slane %v4834, 1
      %v4968 = vunpack.c.l.b16 %v4958
      %v4969 = vunpack.c.l.b16 %v4959
      %v4970 = vunpack.c.l.b16 %v4960
      %v4971 = vunpack.c.l.b16 %v4961
      %v4972 = vpack.c.b16 %v4969, %v4968
      %v4973 = vpack.c.b16 %v4971, %v4970
      %v4977 = vsel %vm4859, %v4963, 0
      %4979 = vmatprep.subr.bf16.mxu0 0
      %4980 = vmatpush1.bf16.msra.mxu0 %v4972
      %4981 = vmatprep.subr.bf16.mxu0 0
      %4982 = vmatpush1.bf16.msra.mxu0 %v4973
      %4983 = vmatprep.subr.bf16.mxu0 0
      %4984 = vmatpush1.bf16.msra.mxu0 0
      %4985 = vmatprep.subr.bf16.mxu0 0
      %4986 = vmatpush1.bf16.msra.mxu0 0
      %4987 = vmatprep.subr.bf16.mxu0 0
      %4988 = vmatpush1.bf16.msra.mxu0 0
      %4989 = vmatprep.subr.bf16.mxu0 0
      %4990 = vmatpush1.bf16.msra.mxu0 0
      %4991 = vmatprep.subr.bf16.mxu0 0
      %4992 = vmatpush1.bf16.msra.mxu0 0
      %4993 = vmatprep.subr.bf16.mxu0 0
      %4994 = vmatpush1.bf16.msra.mxu0 0
      %4995 = vmatprep.subr.bf16.mxu0 0
      %4996 = vmatpush1.bf16.msra.mxu0 0
      %4997 = vmatprep.subr.bf16.mxu0 0
      %4998 = vmatpush1.bf16.msra.mxu0 0
      %4999 = vmatprep.subr.bf16.mxu0 0
      %5000 = vmatpush1.bf16.msra.mxu0 0
      %5001 = vmatprep.subr.bf16.mxu0 0
      %5002 = vmatpush1.bf16.msra.mxu0 0
      %5003 = vmatprep.subr.bf16.mxu0 0
      %5004 = vmatpush1.bf16.msra.mxu0 0
      %5005 = vmatprep.subr.bf16.mxu0 0
      %5006 = vmatpush1.bf16.msra.mxu0 0
      %5007 = vmatprep.subr.bf16.mxu0 0
      %5008 = vmatpush1.bf16.msra.mxu0 0
      %5009 = vmatprep.subr.bf16.mxu0 0
      %5010 = vmatpush1.bf16.msra.mxu0 0
      %5011 = vmatprep.mubr.bf16.mxu0 0
      %5012 = vmatmul.mubr.bf16.gmra.mrb[0].mxu0 %v4977
      %v5013 = vpop.f32.mrb[0].mxu0
      %v5014 = vadd.f32 0.0, %v5013
      %v5015 = vpop.f32.mrb[0].mxu0
      %v5016 = vpop.f32.mrb[0].mxu0
      %v5017 = vpop.f32.mrb[0].mxu0
      %5018 = vdwg.mxu0
      %v5019 = vadd.f32 %v4952, %v5014
      %s5020 = scalar_lea.vmem %s5, 48
      %v5021 = vld [vmem:[%s5020] sm:$0xf]
      %v5022 = vld [vmem:[%s5020 + $0x4] sm:$0xf]
      %v5023 = vld [vmem:[%s5020 + $0x8] sm:$0xf]
      %v5024 = vld [vmem:[%s5020 + $0xc] sm:$0xf]
      %v5025 = vrot.slane %v4845, 1
      %v5030 = vunpack.c.l.b16 %v5021
      %v5031 = vunpack.c.l.b16 %v5022
      %v5032 = vunpack.c.l.b16 %v5023
      %v5033 = vunpack.c.l.b16 %v5024
      %v5034 = vpack.c.b16 %v5031, %v5030
      %v5035 = vpack.c.b16 %v5033, %v5032
      %v5039 = vsel %vm4859, %v5025, 0
      %5041 = vmatprep.subr.bf16.mxu0 0
      %5042 = vmatpush1.bf16.msra.mxu0 %v5034
      %5043 = vmatprep.subr.bf16.mxu0 0
      %5044 = vmatpush1.bf16.msra.mxu0 %v5035
      %5045 = vmatprep.subr.bf16.mxu0 0
      %5046 = vmatpush1.bf16.msra.mxu0 0
      %5047 = vmatprep.subr.bf16.mxu0 0
      %5048 = vmatpush1.bf16.msra.mxu0 0
      %5049 = vmatprep.subr.bf16.mxu0 0
      %5050 = vmatpush1.bf16.msra.mxu0 0
      %5051 = vmatprep.subr.bf16.mxu0 0
      %5052 = vmatpush1.bf16.msra.mxu0 0
      %5053 = vmatprep.subr.bf16.mxu0 0
      %5054 = vmatpush1.bf16.msra.mxu0 0
      %5055 = vmatprep.subr.bf16.mxu0 0
      %5056 = vmatpush1.bf16.msra.mxu0 0
      %5057 = vmatprep.subr.bf16.mxu0 0
      %5058 = vmatpush1.bf16.msra.mxu0 0
      %5059 = vmatprep.subr.bf16.mxu0 0
      %5060 = vmatpush1.bf16.msra.mxu0 0
      %5061 = vmatprep.subr.bf16.mxu0 0
      %5062 = vmatpush1.bf16.msra.mxu0 0
      %5063 = vmatprep.subr.bf16.mxu0 0
      %5064 = vmatpush1.bf16.msra.mxu0 0
      %5065 = vmatprep.subr.bf16.mxu0 0
      %5066 = vmatpush1.bf16.msra.mxu0 0
      %5067 = vmatprep.subr.bf16.mxu0 0
      %5068 = vmatpush1.bf16.msra.mxu0 0
      %5069 = vmatprep.subr.bf16.mxu0 0
      %5070 = vmatpush1.bf16.msra.mxu0 0
      %5071 = vmatprep.subr.bf16.mxu0 0
      %5072 = vmatpush1.bf16.msra.mxu0 0
      %5073 = vmatprep.mubr.bf16.mxu0 0
      %5074 = vmatmul.mubr.bf16.gmra.mrb[0].mxu0 %v5039
      %v5075 = vpop.f32.mrb[0].mxu0
      %v5076 = vadd.f32 0.0, %v5075
      %v5077 = vpop.f32.mrb[0].mxu0
      %v5078 = vpop.f32.mrb[0].mxu0
      %v5079 = vpop.f32.mrb[0].mxu0
      %5080 = vdwg.mxu0
      %v5081 = vadd.f32 %v5019, %v5076
      %s5082 = scalar_lea.vmem %s5, 64
      %v5083 = vld [vmem:[%s5082] sm:$0xf]
      %v5084 = vld [vmem:[%s5082 + $0x4] sm:$0xf]
      %v5085 = vld [vmem:[%s5082 + $0x8] sm:$0xf]
      %v5086 = vld [vmem:[%s5082 + $0xc] sm:$0xf]
      %v5087 = vrot.slane %v4834, 2
      %v5092 = vunpack.c.l.b16 %v5083
      %v5093 = vunpack.c.l.b16 %v5084
      %v5094 = vunpack.c.l.b16 %v5085
      %v5095 = vunpack.c.l.b16 %v5086
      %v5096 = vpack.c.b16 %v5093, %v5092
      %v5097 = vpack.c.b16 %v5095, %v5094
      %v5101 = vsel %vm4859, %v5087, 0
      %5103 = vmatprep.subr.bf16.mxu0 0
      %5104 = vmatpush1.bf16.msra.mxu0 %v5096
      %5105 = vmatprep.subr.bf16.mxu0 0
      %5106 = vmatpush1.bf16.msra.mxu0 %v5097
      %5107 = vmatprep.subr.bf16.mxu0 0
      %5108 = vmatpush1.bf16.msra.mxu0 0
      %5109 = vmatprep.subr.bf16.mxu0 0
      %5110 = vmatpush1.bf16.msra.mxu0 0
      %5111 = vmatprep.subr.bf16.mxu0 0
      %5112 = vmatpush1.bf16.msra.mxu0 0
      %5113 = vmatprep.subr.bf16.mxu0 0
      %5114 = vmatpush1.bf16.msra.mxu0 0
      %5115 = vmatprep.subr.bf16.mxu0 0
      %5116 = vmatpush1.bf16.msra.mxu0 0
      %5117 = vmatprep.subr.bf16.mxu0 0
      %5118 = vmatpush1.bf16.msra.mxu0 0
      %5119 = vmatprep.subr.bf16.mxu0 0
      %5120 = vmatpush1.bf16.msra.mxu0 0
      %5121 = vmatprep.subr.bf16.mxu0 0
      %5122 = vmatpush1.bf16.msra.mxu0 0
      %5123 = vmatprep.subr.bf16.mxu0 0
      %5124 = vmatpush1.bf16.msra.mxu0 0
      %5125 = vmatprep.subr.bf16.mxu0 0
      %5126 = vmatpush1.bf16.msra.mxu0 0
      %5127 = vmatprep.subr.bf16.mxu0 0
      %5128 = vmatpush1.bf16.msra.mxu0 0
      %5129 = vmatprep.subr.bf16.mxu0 0
      %5130 = vmatpush1.bf16.msra.mxu0 0
      %5131 = vmatprep.subr.bf16.mxu0 0
      %5132 = vmatpush1.bf16.msra.mxu0 0
      %5133 = vmatprep.subr.bf16.mxu0 0
      %5134 = vmatpush1.bf16.msra.mxu0 0
      %5135 = vmatprep.mubr.bf16.mxu0 0
      %5136 = vmatmul.mubr.bf16.gmra.mrb[0].mxu0 %v5101
      %v5137 = vpop.f32.mrb[0].mxu0
      %v5138 = vadd.f32 0.0, %v5137
      %v5139 = vpop.f32.mrb[0].mxu0
      %v5140 = vpop.f32.mrb[0].mxu0
      %v5141 = vpop.f32.mrb[0].mxu0
      %5142 = vdwg.mxu0
      %v5143 = vadd.f32 %v5081, %v5138
      %s5144 = scalar_lea.vmem %s5, 80
      %v5145 = vld [vmem:[%s5144] sm:$0xf]
      %v5146 = vld [vmem:[%s5144 + $0x4] sm:$0xf]
      %v5147 = vld [vmem:[%s5144 + $0x8] sm:$0xf]
      %v5148 = vld [vmem:[%s5144 + $0xc] sm:$0xf]
      %v5149 = vrot.slane %v4845, 2
      %v5154 = vunpack.c.l.b16 %v5145
      %v5155 = vunpack.c.l.b16 %v5146
      %v5156 = vunpack.c.l.b16 %v5147
      %v5157 = vunpack.c.l.b16 %v5148
      %v5158 = vpack.c.b16 %v5155, %v5154
      %v5159 = vpack.c.b16 %v5157, %v5156
      %v5163 = vsel %vm4859, %v5149, 0
      %5165 = vmatprep.subr.bf16.mxu0 0
      %5166 = vmatpush1.bf16.msra.mxu0 %v5158
      %5167 = vmatprep.subr.bf16.mxu0 0
      %5168 = vmatpush1.bf16.msra.mxu0 %v5159
      %5169 = vmatprep.subr.bf16.mxu0 0
      %5170 = vmatpush1.bf16.msra.mxu0 0
      %5171 = vmatprep.subr.bf16.mxu0 0
      %5172 = vmatpush1.bf16.msra.mxu0 0
      %5173 = vmatprep.subr.bf16.mxu0 0
      %5174 = vmatpush1.bf16.msra.mxu0 0
      %5175 = vmatprep.subr.bf16.mxu0 0
      %5176 = vmatpush1.bf16.msra.mxu0 0
      %5177 = vmatprep.subr.bf16.mxu0 0
      %5178 = vmatpush1.bf16.msra.mxu0 0
      %5179 = vmatprep.subr.bf16.mxu0 0
      %5180 = vmatpush1.bf16.msra.mxu0 0
      %5181 = vmatprep.subr.bf16.mxu0 0
      %5182 = vmatpush1.bf16.msra.mxu0 0
      %5183 = vmatprep.subr.bf16.mxu0 0
      %5184 = vmatpush1.bf16.msra.mxu0 0
      %5185 = vmatprep.subr.bf16.mxu0 0
      %5186 = vmatpush1.bf16.msra.mxu0 0
      %5187 = vmatprep.subr.bf16.mxu0 0
      %5188 = vmatpush1.bf16.msra.mxu0 0
      %5189 = vmatprep.subr.bf16.mxu0 0
      %5190 = vmatpush1.bf16.msra.mxu0 0
      %5191 = vmatprep.subr.bf16.mxu0 0
      %5192 = vmatpush1.bf16.msra.mxu0 0
      %5193 = vmatprep.subr.bf16.mxu0 0
      %5194 = vmatpush1.bf16.msra.mxu0 0
      %5195 = vmatprep.subr.bf16.mxu0 0
      %5196 = vmatpush1.bf16.msra.mxu0 0
      %5197 = vmatprep.mubr.bf16.mxu0 0
      %5198 = vmatmul.mubr.bf16.gmra.mrb[0].mxu0 %v5163
      %v5199 = vpop.f32.mrb[0].mxu0
      %v5200 = vadd.f32 0.0, %v5199
      %v5201 = vpop.f32.mrb[0].mxu0
      %v5202 = vpop.f32.mrb[0].mxu0
      %v5203 = vpop.f32.mrb[0].mxu0
      %5204 = vdwg.mxu0
      %v5205 = vadd.f32 %v5143, %v5200
      %s5206 = scalar_lea.vmem %s5, 96
      %v5207 = vld [vmem:[%s5206] sm:$0xf]
      %v5208 = vld [vmem:[%s5206 + $0x4] sm:$0xf]
      %v5209 = vld [vmem:[%s5206 + $0x8] sm:$0xf]
      %v5210 = vld [vmem:[%s5206 + $0xc] sm:$0xf]
      %v5211 = vrot.slane %v4834, 3
      %v5216 = vunpack.c.l.b16 %v5207
      %v5217 = vunpack.c.l.b16 %v5208
      %v5218 = vunpack.c.l.b16 %v5209
      %v5219 = vunpack.c.l.b16 %v5210
      %v5220 = vpack.c.b16 %v5217, %v5216
      %v5221 = vpack.c.b16 %v5219, %v5218
      %v5225 = vsel %vm4859, %v5211, 0
      %5227 = vmatprep.subr.bf16.mxu0 0
      %5228 = vmatpush1.bf16.msra.mxu0 %v5220
      %5229 = vmatprep.subr.bf16.mxu0 0
      %5230 = vmatpush1.bf16.msra.mxu0 %v5221
      %5231 = vmatprep.subr.bf16.mxu0 0
      %5232 = vmatpush1.bf16.msra.mxu0 0
      %5233 = vmatprep.subr.bf16.mxu0 0
      %5234 = vmatpush1.bf16.msra.mxu0 0
      %5235 = vmatprep.subr.bf16.mxu0 0
      %5236 = vmatpush1.bf16.msra.mxu0 0
      %5237 = vmatprep.subr.bf16.mxu0 0
      %5238 = vmatpush1.bf16.msra.mxu0 0
      %5239 = vmatprep.subr.bf16.mxu0 0
      %5240 = vmatpush1.bf16.msra.mxu0 0
      %5241 = vmatprep.subr.bf16.mxu0 0
      %5242 = vmatpush1.bf16.msra.mxu0 0
      %5243 = vmatprep.subr.bf16.mxu0 0
      %5244 = vmatpush1.bf16.msra.mxu0 0
      %5245 = vmatprep.subr.bf16.mxu0 0
      %5246 = vmatpush1.bf16.msra.mxu0 0
      %5247 = vmatprep.subr.bf16.mxu0 0
      %5248 = vmatpush1.bf16.msra.mxu0 0
      %5249 = vmatprep.subr.bf16.mxu0 0
      %5250 = vmatpush1.bf16.msra.mxu0 0
      %5251 = vmatprep.subr.bf16.mxu0 0
      %5252 = vmatpush1.bf16.msra.mxu0 0
      %5253 = vmatprep.subr.bf16.mxu0 0
      %5254 = vmatpush1.bf16.msra.mxu0 0
      %5255 = vmatprep.subr.bf16.mxu0 0
      %5256 = vmatpush1.bf16.msra.mxu0 0
      %5257 = vmatprep.subr.bf16.mxu0 0
      %5258 = vmatpush1.bf16.msra.mxu0 0
      %5259 = vmatprep.mubr.bf16.mxu0 0
      %5260 = vmatmul.mubr.bf16.gmra.mrb[0].mxu0 %v5225
      %v5261 = vpop.f32.mrb[0].mxu0
      %v5262 = vadd.f32 0.0, %v5261
      %v5263 = vpop.f32.mrb[0].mxu0
      %v5264 = vpop.f32.mrb[0].mxu0
      %v5265 = vpop.f32.mrb[0].mxu0
      %5266 = vdwg.mxu0
      %v5267 = vadd.f32 %v5205, %v5262
      %s5268 = scalar_lea.vmem %s5, 112
      %v5269 = vld [vmem:[%s5268] sm:$0xf]
      %v5270 = vld [vmem:[%s5268 + $0x4] sm:$0xf]
      %v5271 = vld [vmem:[%s5268 + $0x8] sm:$0xf]
      %v5272 = vld [vmem:[%s5268 + $0xc] sm:$0xf]
      %v5273 = vrot.slane %v4845, 3
      %v5278 = vunpack.c.l.b16 %v5269
      %v5279 = vunpack.c.l.b16 %v5270
      %v5280 = vunpack.c.l.b16 %v5271
      %v5281 = vunpack.c.l.b16 %v5272
      %v5282 = vpack.c.b16 %v5279, %v5278
      %v5283 = vpack.c.b16 %v5281, %v5280
      %v5287 = vsel %vm4859, %v5273, 0
      %5289 = vmatprep.subr.bf16.mxu0 0
      %5290 = vmatpush1.bf16.msra.mxu0 %v5282
      %5291 = vmatprep.subr.bf16.mxu0 0
      %5292 = vmatpush1.bf16.msra.mxu0 %v5283
      %5293 = vmatprep.subr.bf16.mxu0 0
      %5294 = vmatpush1.bf16.msra.mxu0 0
      %5295 = vmatprep.subr.bf16.mxu0 0
      %5296 = vmatpush1.bf16.msra.mxu0 0
      %5297 = vmatprep.subr.bf16.mxu0 0
      %5298 = vmatpush1.bf16.msra.mxu0 0
      %5299 = vmatprep.subr.bf16.mxu0 0
      %5300 = vmatpush1.bf16.msra.mxu0 0
      %5301 = vmatprep.subr.bf16.mxu0 0
      %5302 = vmatpush1.bf16.msra.mxu0 0
      %5303 = vmatprep.subr.bf16.mxu0 0
      %5304 = vmatpush1.bf16.msra.mxu0 0
      %5305 = vmatprep.subr.bf16.mxu0 0
      %5306 = vmatpush1.bf16.msra.mxu0 0
      %5307 = vmatprep.subr.bf16.mxu0 0
      %5308 = vmatpush1.bf16.msra.mxu0 0
      %5309 = vmatprep.subr.bf16.mxu0 0
      %5310 = vmatpush1.bf16.msra.mxu0 0
      %5311 = vmatprep.subr.bf16.mxu0 0
      %5312 = vmatpush1.bf16.msra.mxu0 0
      %5313 = vmatprep.subr.bf16.mxu0 0
      %5314 = vmatpush1.bf16.msra.mxu0 0
      %5315 = vmatprep.subr.bf16.mxu0 0
      %5316 = vmatpush1.bf16.msra.mxu0 0
      %5317 = vmatprep.subr.bf16.mxu0 0
      %5318 = vmatpush1.bf16.msra.mxu0 0
      %5319 = vmatprep.subr.bf16.mxu0 0
      %5320 = vmatpush1.bf16.msra.mxu0 0
      %5321 = vmatprep.mubr.bf16.mxu0 0
      %5322 = vmatmul.mubr.bf16.gmra.mrb[0].mxu0 %v5287
      %v5323 = vpop.f32.mrb[0].mxu0
      %v5324 = vadd.f32 0.0, %v5323
      %v5325 = vpop.f32.mrb[0].mxu0
      %v5326 = vpop.f32.mrb[0].mxu0
      %v5327 = vpop.f32.mrb[0].mxu0
      %5328 = vdwg.mxu0
      %v5329 = vadd.f32 %v5267, %v5324
      %s5330 = scalar_lea.vmem %s5, 128
      %v5331 = vld [vmem:[%s5330] sm:$0xf]
      %v5332 = vld [vmem:[%s5330 + $0x4] sm:$0xf]
      %v5333 = vld [vmem:[%s5330 + $0x8] sm:$0xf]
      %v5334 = vld [vmem:[%s5330 + $0xc] sm:$0xf]
      %v5335 = vrot.slane %v4834, 4
      %v5340 = vunpack.c.l.b16 %v5331
      %v5341 = vunpack.c.l.b16 %v5332
      %v5342 = vunpack.c.l.b16 %v5333
      %v5343 = vunpack.c.l.b16 %v5334
      %v5344 = vpack.c.b16 %v5341, %v5340
      %v5345 = vpack.c.b16 %v5343, %v5342
      %v5349 = vsel %vm4859, %v5335, 0
      %5351 = vmatprep.subr.bf16.mxu0 0
      %5352 = vmatpush1.bf16.msra.mxu0 %v5344
      %5353 = vmatprep.subr.bf16.mxu0 0
      %5354 = vmatpush1.bf16.msra.mxu0 %v5345
      %5355 = vmatprep.subr.bf16.mxu0 0
      %5356 = vmatpush1.bf16.msra.mxu0 0
      %5357 = vmatprep.subr.bf16.mxu0 0
      %5358 = vmatpush1.bf16.msra.mxu0 0
      %5359 = vmatprep.subr.bf16.mxu0 0
      %5360 = vmatpush1.bf16.msra.mxu0 0
      %5361 = vmatprep.subr.bf16.mxu0 0
      %5362 = vmatpush1.bf16.msra.mxu0 0
      %5363 = vmatprep.subr.bf16.mxu0 0
      %5364 = vmatpush1.bf16.msra.mxu0 0
      %5365 = vmatprep.subr.bf16.mxu0 0
      %5366 = vmatpush1.bf16.msra.mxu0 0
      %5367 = vmatprep.subr.bf16.mxu0 0
      %5368 = vmatpush1.bf16.msra.mxu0 0
      %5369 = vmatprep.subr.bf16.mxu0 0
      %5370 = vmatpush1.bf16.msra.mxu0 0
      %5371 = vmatprep.subr.bf16.mxu0 0
      %5372 = vmatpush1.bf16.msra.mxu0 0
      %5373 = vmatprep.subr.bf16.mxu0 0
      %5374 = vmatpush1.bf16.msra.mxu0 0
      %5375 = vmatprep.subr.bf16.mxu0 0
      %5376 = vmatpush1.bf16.msra.mxu0 0
      %5377 = vmatprep.subr.bf16.mxu0 0
      %5378 = vmatpush1.bf16.msra.mxu0 0
      %5379 = vmatprep.subr.bf16.mxu0 0
      %5380 = vmatpush1.bf16.msra.mxu0 0
      %5381 = vmatprep.subr.bf16.mxu0 0
      %5382 = vmatpush1.bf16.msra.mxu0 0
      %5383 = vmatprep.mubr.bf16.mxu0 0
      %5384 = vmatmul.mubr.bf16.gmra.mrb[0].mxu0 %v5349
      %v5385 = vpop.f32.mrb[0].mxu0
      %v5386 = vadd.f32 0.0, %v5385
      %v5387 = vpop.f32.mrb[0].mxu0
      %v5388 = vpop.f32.mrb[0].mxu0
      %v5389 = vpop.f32.mrb[0].mxu0
      %5390 = vdwg.mxu0
      %v5391 = vadd.f32 %v5329, %v5386
      %s5392 = scalar_lea.vmem %s5, 144
      %v5393 = vld [vmem:[%s5392] sm:$0xf]
      %v5394 = vld [vmem:[%s5392 + $0x4] sm:$0xf]
      %v5395 = vld [vmem:[%s5392 + $0x8] sm:$0xf]
      %v5396 = vld [vmem:[%s5392 + $0xc] sm:$0xf]
      %v5397 = vrot.slane %v4845, 4
      %v5402 = vunpack.c.l.b16 %v5393
      %v5403 = vunpack.c.l.b16 %v5394
      %v5404 = vunpack.c.l.b16 %v5395
      %v5405 = vunpack.c.l.b16 %v5396
      %v5406 = vpack.c.b16 %v5403, %v5402
      %v5407 = vpack.c.b16 %v5405, %v5404
      %v5411 = vsel %vm4859, %v5397, 0
      %5413 = vmatprep.subr.bf16.mxu0 0
      %5414 = vmatpush1.bf16.msra.mxu0 %v5406
      %5415 = vmatprep.subr.bf16.mxu0 0
      %5416 = vmatpush1.bf16.msra.mxu0 %v5407
      %5417 = vmatprep.subr.bf16.mxu0 0
      %5418 = vmatpush1.bf16.msra.mxu0 0
      %5419 = vmatprep.subr.bf16.mxu0 0
      %5420 = vmatpush1.bf16.msra.mxu0 0
      %5421 = vmatprep.subr.bf16.mxu0 0
      %5422 = vmatpush1.bf16.msra.mxu0 0
      %5423 = vmatprep.subr.bf16.mxu0 0
      %5424 = vmatpush1.bf16.msra.mxu0 0
      %5425 = vmatprep.subr.bf16.mxu0 0
      %5426 = vmatpush1.bf16.msra.mxu0 0
      %5427 = vmatprep.subr.bf16.mxu0 0
      %5428 = vmatpush1.bf16.msra.mxu0 0
      %5429 = vmatprep.subr.bf16.mxu0 0
      %5430 = vmatpush1.bf16.msra.mxu0 0
      %5431 = vmatprep.subr.bf16.mxu0 0
      %5432 = vmatpush1.bf16.msra.mxu0 0
      %5433 = vmatprep.subr.bf16.mxu0 0
      %5434 = vmatpush1.bf16.msra.mxu0 0
      %5435 = vmatprep.subr.bf16.mxu0 0
      %5436 = vmatpush1.bf16.msra.mxu0 0
      %5437 = vmatprep.subr.bf16.mxu0 0
      %5438 = vmatpush1.bf16.msra.mxu0 0
      %5439 = vmatprep.subr.bf16.mxu0 0
      %5440 = vmatpush1.bf16.msra.mxu0 0
      %5441 = vmatprep.subr.bf16.mxu0 0
      %5442 = vmatpush1.bf16.msra.mxu0 0
      %5443 = vmatprep.subr.bf16.mxu0 0
      %5444 = vmatpush1.bf16.msra.mxu0 0
      %5445 = vmatprep.mubr.bf16.mxu0 0
      %5446 = vmatmul.mubr.bf16.gmra.mrb[0].mxu0 %v5411
      %v5447 = vpop.f32.mrb[0].mxu0
      %v5448 = vadd.f32 0.0, %v5447
      %v5449 = vpop.f32.mrb[0].mxu0
      %v5450 = vpop.f32.mrb[0].mxu0
      %v5451 = vpop.f32.mrb[0].mxu0
      %5452 = vdwg.mxu0
      %v5453 = vadd.f32 %v5391, %v5448
      %s5454 = scalar_lea.vmem %s5, 160
      %v5455 = vld [vmem:[%s5454] sm:$0xf]
      %v5456 = vld [vmem:[%s5454 + $0x4] sm:$0xf]
      %v5457 = vld [vmem:[%s5454 + $0x8] sm:$0xf]
      %v5458 = vld [vmem:[%s5454 + $0xc] sm:$0xf]
      %v5459 = vrot.slane %v4834, 5
      %v5464 = vunpack.c.l.b16 %v5455
      %v5465 = vunpack.c.l.b16 %v5456
      %v5466 = vunpack.c.l.b16 %v5457
      %v5467 = vunpack.c.l.b16 %v5458
      %v5468 = vpack.c.b16 %v5465, %v5464
      %v5469 = vpack.c.b16 %v5467, %v5466
      %v5473 = vsel %vm4859, %v5459, 0
      %5475 = vmatprep.subr.bf16.mxu0 0
      %5476 = vmatpush1.bf16.msra.mxu0 %v5468
      %5477 = vmatprep.subr.bf16.mxu0 0
      %5478 = vmatpush1.bf16.msra.mxu0 %v5469
      %5479 = vmatprep.subr.bf16.mxu0 0
      %5480 = vmatpush1.bf16.msra.mxu0 0
      %5481 = vmatprep.subr.bf16.mxu0 0
      %5482 = vmatpush1.bf16.msra.mxu0 0
      %5483 = vmatprep.subr.bf16.mxu0 0
      %5484 = vmatpush1.bf16.msra.mxu0 0
      %5485 = vmatprep.subr.bf16.mxu0 0
      %5486 = vmatpush1.bf16.msra.mxu0 0
      %5487 = vmatprep.subr.bf16.mxu0 0
      %5488 = vmatpush1.bf16.msra.mxu0 0
      %5489 = vmatprep.subr.bf16.mxu0 0
      %5490 = vmatpush1.bf16.msra.mxu0 0
      %5491 = vmatprep.subr.bf16.mxu0 0
      %5492 = vmatpush1.bf16.msra.mxu0 0
      %5493 = vmatprep.subr.bf16.mxu0 0
      %5494 = vmatpush1.bf16.msra.mxu0 0
      %5495 = vmatprep.subr.bf16.mxu0 0
      %5496 = vmatpush1.bf16.msra.mxu0 0
      %5497 = vmatprep.subr.bf16.mxu0 0
      %5498 = vmatpush1.bf16.msra.mxu0 0
      %5499 = vmatprep.subr.bf16.mxu0 0
      %5500 = vmatpush1.bf16.msra.mxu0 0
      %5501 = vmatprep.subr.bf16.mxu0 0
      %5502 = vmatpush1.bf16.msra.mxu0 0
      %5503 = vmatprep.subr.bf16.mxu0 0
      %5504 = vmatpush1.bf16.msra.mxu0 0
      %5505 = vmatprep.subr.bf16.mxu0 0
      %5506 = vmatpush1.bf16.msra.mxu0 0
      %5507 = vmatprep.mubr.bf16.mxu0 0
      %5508 = vmatmul.mubr.bf16.gmra.mrb[0].mxu0 %v5473
      %v5509 = vpop.f32.mrb[0].mxu0
      %v5510 = vadd.f32 0.0, %v5509
      %v5511 = vpop.f32.mrb[0].mxu0
      %v5512 = vpop.f32.mrb[0].mxu0
      %v5513 = vpop.f32.mrb[0].mxu0
      %5514 = vdwg.mxu0
      %v5515 = vadd.f32 %v5453, %v5510
      %s5516 = scalar_lea.vmem %s5, 176
      %v5517 = vld [vmem:[%s5516] sm:$0xf]
      %v5518 = vld [vmem:[%s5516 + $0x4] sm:$0xf]
      %v5519 = vld [vmem:[%s5516 + $0x8] sm:$0xf]
      %v5520 = vld [vmem:[%s5516 + $0xc] sm:$0xf]
      %v5521 = vrot.slane %v4845, 5
      %v5526 = vunpack.c.l.b16 %v5517
      %v5527 = vunpack.c.l.b16 %v5518
      %v5528 = vunpack.c.l.b16 %v5519
      %v5529 = vunpack.c.l.b16 %v5520
      %v5530 = vpack.c.b16 %v5527, %v5526
      %v5531 = vpack.c.b16 %v5529, %v5528
      %v5535 = vsel %vm4859, %v5521, 0
      %5537 = vmatprep.subr.bf16.mxu0 0
      %5538 = vmatpush1.bf16.msra.mxu0 %v5530
      %5539 = vmatprep.subr.bf16.mxu0 0
      %5540 = vmatpush1.bf16.msra.mxu0 %v5531
      %5541 = vmatprep.subr.bf16.mxu0 0
      %5542 = vmatpush1.bf16.msra.mxu0 0
      %5543 = vmatprep.subr.bf16.mxu0 0
      %5544 = vmatpush1.bf16.msra.mxu0 0
      %5545 = vmatprep.subr.bf16.mxu0 0
      %5546 = vmatpush1.bf16.msra.mxu0 0
      %5547 = vmatprep.subr.bf16.mxu0 0
      %5548 = vmatpush1.bf16.msra.mxu0 0
      %5549 = vmatprep.subr.bf16.mxu0 0
      %5550 = vmatpush1.bf16.msra.mxu0 0
      %5551 = vmatprep.subr.bf16.mxu0 0
      %5552 = vmatpush1.bf16.msra.mxu0 0
      %5553 = vmatprep.subr.bf16.mxu0 0
      %5554 = vmatpush1.bf16.msra.mxu0 0
      %5555 = vmatprep.subr.bf16.mxu0 0
      %5556 = vmatpush1.bf16.msra.mxu0 0
      %5557 = vmatprep.subr.bf16.mxu0 0
      %5558 = vmatpush1.bf16.msra.mxu0 0
      %5559 = vmatprep.subr.bf16.mxu0 0
      %5560 = vmatpush1.bf16.msra.mxu0 0
      %5561 = vmatprep.subr.bf16.mxu0 0
      %5562 = vmatpush1.bf16.msra.mxu0 0
      %5563 = vmatprep.subr.bf16.mxu0 0
      %5564 = vmatpush1.bf16.msra.mxu0 0
      %5565 = vmatprep.subr.bf16.mxu0 0
      %5566 = vmatpush1.bf16.msra.mxu0 0
      %5567 = vmatprep.subr.bf16.mxu0 0
      %5568 = vmatpush1.bf16.msra.mxu0 0
      %5569 = vmatprep.mubr.bf16.mxu0 0
      %5570 = vmatmul.mubr.bf16.gmra.mrb[0].mxu0 %v5535
      %v5571 = vpop.f32.mrb[0].mxu0
      %v5572 = vadd.f32 0.0, %v5571
      %v5573 = vpop.f32.mrb[0].mxu0
      %v5574 = vpop.f32.mrb[0].mxu0
      %v5575 = vpop.f32.mrb[0].mxu0
      %5576 = vdwg.mxu0
      %v5577 = vadd.f32 %v5515, %v5572
      %s5578 = scalar_lea.vmem %s5, 192
      %v5579 = vld [vmem:[%s5578] sm:$0xf]
      %v5580 = vld [vmem:[%s5578 + $0x4] sm:$0xf]
      %v5581 = vld [vmem:[%s5578 + $0x8] sm:$0xf]
      %v5582 = vld [vmem:[%s5578 + $0xc] sm:$0xf]
      %v5583 = vrot.slane %v4834, 6
      %v5588 = vunpack.c.l.b16 %v5579
      %v5589 = vunpack.c.l.b16 %v5580
      %v5590 = vunpack.c.l.b16 %v5581
      %v5591 = vunpack.c.l.b16 %v5582
      %v5592 = vpack.c.b16 %v5589, %v5588
      %v5593 = vpack.c.b16 %v5591, %v5590
      %v5597 = vsel %vm4859, %v5583, 0
      %5599 = vmatprep.subr.bf16.mxu0 0
      %5600 = vmatpush1.bf16.msra.mxu0 %v5592
      %5601 = vmatprep.subr.bf16.mxu0 0
      %5602 = vmatpush1.bf16.msra.mxu0 %v5593
      %5603 = vmatprep.subr.bf16.mxu0 0
      %5604 = vmatpush1.bf16.msra.mxu0 0
      %5605 = vmatprep.subr.bf16.mxu0 0
      %5606 = vmatpush1.bf16.msra.mxu0 0
      %5607 = vmatprep.subr.bf16.mxu0 0
      %5608 = vmatpush1.bf16.msra.mxu0 0
      %5609 = vmatprep.subr.bf16.mxu0 0
      %5610 = vmatpush1.bf16.msra.mxu0 0
      %5611 = vmatprep.subr.bf16.mxu0 0
      %5612 = vmatpush1.bf16.msra.mxu0 0
      %5613 = vmatprep.subr.bf16.mxu0 0
      %5614 = vmatpush1.bf16.msra.mxu0 0
      %5615 = vmatprep.subr.bf16.mxu0 0
      %5616 = vmatpush1.bf16.msra.mxu0 0
      %5617 = vmatprep.subr.bf16.mxu0 0
      %5618 = vmatpush1.bf16.msra.mxu0 0
      %5619 = vmatprep.subr.bf16.mxu0 0
      %5620 = vmatpush1.bf16.msra.mxu0 0
      %5621 = vmatprep.subr.bf16.mxu0 0
      %5622 = vmatpush1.bf16.msra.mxu0 0
      %5623 = vmatprep.subr.bf16.mxu0 0
      %5624 = vmatpush1.bf16.msra.mxu0 0
      %5625 = vmatprep.subr.bf16.mxu0 0
      %5626 = vmatpush1.bf16.msra.mxu0 0
      %5627 = vmatprep.subr.bf16.mxu0 0
      %5628 = vmatpush1.bf16.msra.mxu0 0
      %5629 = vmatprep.subr.bf16.mxu0 0
      %5630 = vmatpush1.bf16.msra.mxu0 0
      %5631 = vmatprep.mubr.bf16.mxu0 0
      %5632 = vmatmul.mubr.bf16.gmra.mrb[0].mxu0 %v5597
      %v5633 = vpop.f32.mrb[0].mxu0
      %v5634 = vadd.f32 0.0, %v5633
      %v5635 = vpop.f32.mrb[0].mxu0
      %v5636 = vpop.f32.mrb[0].mxu0
      %v5637 = vpop.f32.mrb[0].mxu0
      %5638 = vdwg.mxu0
      %v5639 = vadd.f32 %v5577, %v5634
      %s5640 = scalar_lea.vmem %s5, 208
      %v5641 = vld [vmem:[%s5640] sm:$0xf]
      %v5642 = vld [vmem:[%s5640 + $0x4] sm:$0xf]
      %v5643 = vld [vmem:[%s5640 + $0x8] sm:$0xf]
      %v5644 = vld [vmem:[%s5640 + $0xc] sm:$0xf]
      %v5645 = vrot.slane %v4845, 6
      %v5650 = vunpack.c.l.b16 %v5641
      %v5651 = vunpack.c.l.b16 %v5642
      %v5652 = vunpack.c.l.b16 %v5643
      %v5653 = vunpack.c.l.b16 %v5644
      %v5654 = vpack.c.b16 %v5651, %v5650
      %v5655 = vpack.c.b16 %v5653, %v5652
      %v5659 = vsel %vm4859, %v5645, 0
      %5661 = vmatprep.subr.bf16.mxu0 0
      %5662 = vmatpush1.bf16.msra.mxu0 %v5654
      %5663 = vmatprep.subr.bf16.mxu0 0
      %5664 = vmatpush1.bf16.msra.mxu0 %v5655
      %5665 = vmatprep.subr.bf16.mxu0 0
      %5666 = vmatpush1.bf16.msra.mxu0 0
      %5667 = vmatprep.subr.bf16.mxu0 0
      %5668 = vmatpush1.bf16.msra.mxu0 0
      %5669 = vmatprep.subr.bf16.mxu0 0
      %5670 = vmatpush1.bf16.msra.mxu0 0
      %5671 = vmatprep.subr.bf16.mxu0 0
      %5672 = vmatpush1.bf16.msra.mxu0 0
      %5673 = vmatprep.subr.bf16.mxu0 0
      %5674 = vmatpush1.bf16.msra.mxu0 0
      %5675 = vmatprep.subr.bf16.mxu0 0
      %5676 = vmatpush1.bf16.msra.mxu0 0
      %5677 = vmatprep.subr.bf16.mxu0 0
      %5678 = vmatpush1.bf16.msra.mxu0 0
      %5679 = vmatprep.subr.bf16.mxu0 0
      %5680 = vmatpush1.bf16.msra.mxu0 0
      %5681 = vmatprep.subr.bf16.mxu0 0
      %5682 = vmatpush1.bf16.msra.mxu0 0
      %5683 = vmatprep.subr.bf16.mxu0 0
      %5684 = vmatpush1.bf16.msra.mxu0 0
      %5685 = vmatprep.subr.bf16.mxu0 0
      %5686 = vmatpush1.bf16.msra.mxu0 0
      %5687 = vmatprep.subr.bf16.mxu0 0
      %5688 = vmatpush1.bf16.msra.mxu0 0
      %5689 = vmatprep.subr.bf16.mxu0 0
      %5690 = vmatpush1.bf16.msra.mxu0 0
      %5691 = vmatprep.subr.bf16.mxu0 0
      %5692 = vmatpush1.bf16.msra.mxu0 0
      %5693 = vmatprep.mubr.bf16.mxu0 0
      %5694 = vmatmul.mubr.bf16.gmra.mrb[0].mxu0 %v5659
      %v5695 = vpop.f32.mrb[0].mxu0
      %v5696 = vadd.f32 0.0, %v5695
      %v5697 = vpop.f32.mrb[0].mxu0
      %v5698 = vpop.f32.mrb[0].mxu0
      %v5699 = vpop.f32.mrb[0].mxu0
      %5700 = vdwg.mxu0
      %v5701 = vadd.f32 %v5639, %v5696
      %s5702 = scalar_lea.vmem %s5, 224
      %v5703 = vld [vmem:[%s5702] sm:$0xf]
      %v5704 = vld [vmem:[%s5702 + $0x4] sm:$0xf]
      %v5705 = vld [vmem:[%s5702 + $0x8] sm:$0xf]
      %v5706 = vld [vmem:[%s5702 + $0xc] sm:$0xf]
      %v5707 = vrot.slane %v4834, 7
      %v5712 = vunpack.c.l.b16 %v5703
      %v5713 = vunpack.c.l.b16 %v5704
      %v5714 = vunpack.c.l.b16 %v5705
      %v5715 = vunpack.c.l.b16 %v5706
      %v5716 = vpack.c.b16 %v5713, %v5712
      %v5717 = vpack.c.b16 %v5715, %v5714
      %v5721 = vsel %vm4859, %v5707, 0
      %5723 = vmatprep.subr.bf16.mxu0 0
      %5724 = vmatpush1.bf16.msra.mxu0 %v5716
      %5725 = vmatprep.subr.bf16.mxu0 0
      %5726 = vmatpush1.bf16.msra.mxu0 %v5717
      %5727 = vmatprep.subr.bf16.mxu0 0
      %5728 = vmatpush1.bf16.msra.mxu0 0
      %5729 = vmatprep.subr.bf16.mxu0 0
      %5730 = vmatpush1.bf16.msra.mxu0 0
      %5731 = vmatprep.subr.bf16.mxu0 0
      %5732 = vmatpush1.bf16.msra.mxu0 0
      %5733 = vmatprep.subr.bf16.mxu0 0
      %5734 = vmatpush1.bf16.msra.mxu0 0
      %5735 = vmatprep.subr.bf16.mxu0 0
      %5736 = vmatpush1.bf16.msra.mxu0 0
      %5737 = vmatprep.subr.bf16.mxu0 0
      %5738 = vmatpush1.bf16.msra.mxu0 0
      %5739 = vmatprep.subr.bf16.mxu0 0
      %5740 = vmatpush1.bf16.msra.mxu0 0
      %5741 = vmatprep.subr.bf16.mxu0 0
      %5742 = vmatpush1.bf16.msra.mxu0 0
      %5743 = vmatprep.subr.bf16.mxu0 0
      %5744 = vmatpush1.bf16.msra.mxu0 0
      %5745 = vmatprep.subr.bf16.mxu0 0
      %5746 = vmatpush1.bf16.msra.mxu0 0
      %5747 = vmatprep.subr.bf16.mxu0 0
      %5748 = vmatpush1.bf16.msra.mxu0 0
      %5749 = vmatprep.subr.bf16.mxu0 0
      %5750 = vmatpush1.bf16.msra.mxu0 0
      %5751 = vmatprep.subr.bf16.mxu0 0
      %5752 = vmatpush1.bf16.msra.mxu0 0
      %5753 = vmatprep.subr.bf16.mxu0 0
      %5754 = vmatpush1.bf16.msra.mxu0 0
      %5755 = vmatprep.mubr.bf16.mxu0 0
      %5756 = vmatmul.mubr.bf16.gmra.mrb[0].mxu0 %v5721
      %v5757 = vpop.f32.mrb[0].mxu0
      %v5758 = vadd.f32 0.0, %v5757
      %v5759 = vpop.f32.mrb[0].mxu0
      %v5760 = vpop.f32.mrb[0].mxu0
      %v5761 = vpop.f32.mrb[0].mxu0
      %5762 = vdwg.mxu0
      %v5763 = vadd.f32 %v5701, %v5758
      %s5764 = scalar_lea.vmem %s5, 240
      %v5765 = vld [vmem:[%s5764] sm:$0xf]
      %v5766 = vld [vmem:[%s5764 + $0x4] sm:$0xf]
      %v5767 = vld [vmem:[%s5764 + $0x8] sm:$0xf]
      %v5768 = vld [vmem:[%s5764 + $0xc] sm:$0xf]
      %v5769 = vrot.slane %v4845, 7
      %v5774 = vunpack.c.l.b16 %v5765
      %v5775 = vunpack.c.l.b16 %v5766
      %v5776 = vunpack.c.l.b16 %v5767
      %v5777 = vunpack.c.l.b16 %v5768
      %v5778 = vpack.c.b16 %v5775, %v5774
      %v5779 = vpack.c.b16 %v5777, %v5776
      %v5783 = vsel %vm4859, %v5769, 0
      %5785 = vmatprep.subr.bf16.mxu0 0
      %5786 = vmatpush1.bf16.msra.mxu0 %v5778
      %5787 = vmatprep.subr.bf16.mxu0 0
      %5788 = vmatpush1.bf16.msra.mxu0 %v5779
      %5789 = vmatprep.subr.bf16.mxu0 0
      %5790 = vmatpush1.bf16.msra.mxu0 0
      %5791 = vmatprep.subr.bf16.mxu0 0
      %5792 = vmatpush1.bf16.msra.mxu0 0
      %5793 = vmatprep.subr.bf16.mxu0 0
      %5794 = vmatpush1.bf16.msra.mxu0 0
      %5795 = vmatprep.subr.bf16.mxu0 0
      %5796 = vmatpush1.bf16.msra.mxu0 0
      %5797 = vmatprep.subr.bf16.mxu0 0
      %5798 = vmatpush1.bf16.msra.mxu0 0
      %5799 = vmatprep.subr.bf16.mxu0 0
      %5800 = vmatpush1.bf16.msra.mxu0 0
      %5801 = vmatprep.subr.bf16.mxu0 0
      %5802 = vmatpush1.bf16.msra.mxu0 0
      %5803 = vmatprep.subr.bf16.mxu0 0
      %5804 = vmatpush1.bf16.msra.mxu0 0
      %5805 = vmatprep.subr.bf16.mxu0 0
      %5806 = vmatpush1.bf16.msra.mxu0 0
      %5807 = vmatprep.subr.bf16.mxu0 0
      %5808 = vmatpush1.bf16.msra.mxu0 0
      %5809 = vmatprep.subr.bf16.mxu0 0
      %5810 = vmatpush1.bf16.msra.mxu0 0
      %5811 = vmatprep.subr.bf16.mxu0 0
      %5812 = vmatpush1.bf16.msra.mxu0 0
      %5813 = vmatprep.subr.bf16.mxu0 0
      %5814 = vmatpush1.bf16.msra.mxu0 0
      %5815 = vmatprep.subr.bf16.mxu0 0
      %5816 = vmatpush1.bf16.msra.mxu0 0
      %5817 = vmatprep.mubr.bf16.mxu0 0
      %5818 = vmatmul.mubr.bf16.gmra.mrb[0].mxu0 %v5783
      %v5819 = vpop.f32.mrb[0].mxu0
      %v5820 = vadd.f32 0.0, %v5819
      %v5821 = vpop.f32.mrb[0].mxu0
      %v5822 = vpop.f32.mrb[0].mxu0
      %v5823 = vpop.f32.mrb[0].mxu0
      %5824 = vdwg.mxu0
      %v5825 = vadd.f32 %v5763, %v5820
      %v5826 = vld [vmem:[%s6] sm:$0x1]
      %v5827 = vadd.f32 %v5825, %v5826
      %vm5828 = vcmask 106496
      %5829 = vst.msk [vmem:[%s328] sm:$0x1] %vm5828, %v5827
      %p5830 = scmp.lt.s32.totalorder %s20, 1
      %s5831 = scalar_select %p5830, %s20, 1
      %s5832 = scalar_lea.vmem %s9, %s5831
      // Predicated region
      $region57: #{custom_model_forward.1} parent=55 // pred_check
        %p5833 = pneg %p232
      $region58: #{custom_model_forward.1} parent=55 // pred_check_branch
        %5835 = sbr.rel (%p5833) target = $region60
      $region59: #{custom_model_forward.1} parent=55 // pred_region
        _
      $region60: #{custom_model_forward.1} parent=55 // pred_fallthru
        _
    $region56: #{custom_model_forward.1} parent=5 // pred_fallthru
      _
    %p5836 = scmp.le.s32.totalorder 2, %s15
    // Predicated region
    $region61: #{custom_model_forward.1} parent=5 // pred_check
      %p5837 = pneg %p5836
    $region62: #{custom_model_forward.1} parent=5 // pred_check_branch
      %5839 = sbr.rel (%p5837) target = $region64
    $region63: #{custom_model_forward.1} parent=5 // pred_region
      %s5840 = ssub.s32 %s15, 2
      // Predicated region
      $region65: #{custom_model_forward.1} parent=63 // pred_check
        %p5841 = pneg %p238
      $region66: #{custom_model_forward.1} parent=63 // pred_check_branch
        %5843 = sbr.rel (%p5841) target = $region68
      $region67: #{custom_model_forward.1} parent=63 // pred_region
        %p5844 = scmp.lt.s32.totalorder %s21, 1
        %s5845 = scalar_select %p5844, %s21, 1
        %s5846 = scalar_lea.vmem %s9, %s5845
      $region68: #{custom_model_forward.1} parent=63 // pred_fallthru
        _
    $region64: #{custom_model_forward.1} parent=5 // pred_fallthru
      _
  $region6: #{custom_model_forward.1} parent=0 // loop_footer
    %s19 = sadd.s32 1, %s15
  $region7: #{custom_model_forward.1} parent=0 // loop_footer_branch
    %14 = sbr.rel target = $region3
  $region8: #{custom_model_forward.1} parent=0 // loop_exit
    _

</llo_original>
